<compile_context>
chip_gen: v7x
topology: tpu7x:2x2x1
jax: 0.10.0
libtpu: 0.0.40
codegen_flags: <defaults>
</compile_context>

<pallas_src>
import math
from functools import partial

import jax
import jax.numpy as jnp
from jax.experimental import pallas as pl
from jax.experimental.pallas import tpu as pltpu

# ----------------------------- configuration --------------------------------
B, S, C, H, W = 2, 2, 3, 16, 16          # batch, frames, channels, spatial
PATCH = 4
HF, WF = H // PATCH, W // PATCH          # feature-map size after "backbone"
L = HF * WF                              # 16 encoder tokens
D = 32                                   # hidden dim (scaled-down 'tiny')
NHEADS = 4
HEAD_DIM = D // NHEADS
FFN = 64                                 # scaled-down dim_feedforward
ENC_LAYERS = 2                           # MODEL_SIZE['tiny'][0]
NUM_ACTIONS = 4
NUM_REASONS = 21
NUM_QUERIES = NUM_ACTIONS + NUM_REASONS  # 25 -> logits.view(B, -1, 2)
QPAD = 32                                # queries padded to sublane-aligned 32
PATCH_DIM = C * PATCH * PATCH            # 48
CLS_PAD = 128                            # lane-dense padded classifier width
WDT = jnp.bfloat16                       # MXU operand dtype


# ----------------------- math helpers (pure jnp, kernel-safe) -----------------
def _layernorm(x, g, b, eps=1e-5):
    mu = jnp.mean(x, axis=-1, keepdims=True)
    var = jnp.mean((x - mu) ** 2, axis=-1, keepdims=True)
    return (x - mu) * jax.lax.rsqrt(var + eps) * g + b


def _attend(q3, k3, v3, wo, bo):
    """Multi-head attention on (nb, lq, D)/(nb, lk, D) operands.
    The 1/sqrt(head_dim) scale is pre-folded into q.  K is transposed once
    (not per head); per-head contexts are lane-concatenated and projected with
    a single full-K matmul against the unsplit Wo."""
    nb, lq, _ = q3.shape
    kT = jnp.transpose(k3, (0, 2, 1))                       # (nb, D, lk), once
    qb, kTb, vb = q3.astype(WDT), kT.astype(WDT), v3.astype(WDT)
    ctxs = []
    for h in range(NHEADS):
        sl = slice(h * HEAD_DIM, (h + 1) * HEAD_DIM)
        s = jnp.einsum("bqd,bdk->bqk", qb[:, :, sl], kTb[:, sl, :],
                       preferred_element_type=jnp.float32)
        s = s - jnp.max(s, axis=-1, keepdims=True)
        p = jnp.exp(s)
        p = p * pl.reciprocal(jnp.sum(p, axis=-1, keepdims=True), approx=True)
        ctxs.append(jnp.einsum("bqk,bkd->bqd", p.astype(WDT), vb[:, :, sl],
                               preferred_element_type=jnp.float32))
    ctx = jnp.concatenate(ctxs, axis=-1).reshape(nb * lq, D)
    return jnp.dot(ctx.astype(WDT), wo, preferred_element_type=jnp.float32) + bo


# --------------------------- the single fused kernel --------------------------
def fused_forward_kernel(*refs):
    out_ref = refs[-1]
    it = iter(refs[:-1])
    take = lambda n: [next(it) for _ in range(n)]   # yields REFS; read lazily

    patches_ref, pw_ref, pb_ref = take(3)
    nb = patches_ref.shape[0]

    # "backbone" patch-embed projection -> (nb*L, D) tokens (f32 activations)
    x = jnp.dot(patches_ref[...].reshape(nb * L, PATCH_DIM).astype(WDT),
                pw_ref[...], preferred_element_type=jnp.float32) + pb_ref[...]

    # ---- DETR transformer encoder (post-norm) ----
    #   q = k = src + pos ; v = src  (pos / scale / biases pre-folded into bias)
    for _ in range(ENC_LAYERS):
        (wqkv, qkv_bias, wo, bo, g1, b1,
         w1, bf1, w2, bf2, g2, b2) = take(12)
        qkv = jnp.dot(x.astype(WDT), wqkv[...],
                      preferred_element_type=jnp.float32).reshape(nb, L, 3 * D)
        qkv = qkv + qkv_bias[...][None]               # per-token bias, batch bcast
        attn = _attend(qkv[:, :, :D], qkv[:, :, D:2 * D], qkv[:, :, 2 * D:],
                       wo[...], bo[...])
        x = _layernorm(x + attn, g1[...], b1[...])
        hdn = jnp.maximum(
            jnp.dot(x.astype(WDT), w1[...],
                    preferred_element_type=jnp.float32) + bf1[...], 0.0)
        x = _layernorm(
            x + jnp.dot(hdn.astype(WDT), w2[...],
                        preferred_element_type=jnp.float32) + bf2[...],
            g2[...], b2[...])
    mem = x                                           # (nb*L, D) encoder memory

    # ---- decoder: self-attention block constant-folded out (tgt == 0) ----
    # t_const = LN1(self_attn(query_pos)) ; q_const = (t_const+query_pos)@Wq*scale+bq
    (t_const_ref, q_const_ref, wkv_c, kvbias_c, wo_c, bo_c, g2d, b2d) = take(8)
    kv = jnp.dot(mem.astype(WDT), wkv_c[...],
                 preferred_element_type=jnp.float32).reshape(nb, L, 2 * D)
    kv = kv + kvbias_c[...][None]
    q3 = jnp.broadcast_to(q_const_ref[...][None], (nb, QPAD, D))
    ca = _attend(q3, kv[:, :, :D], kv[:, :, D:], wo_c[...], bo_c[...])
    t_res = jnp.broadcast_to(t_const_ref[...][None],
                             (nb, QPAD, D)).reshape(nb * QPAD, D)
    t = _layernorm(t_res + ca, g2d[...], b2d[...])

    # decoder FFN
    (w1d, bf1d, w2d, bf2d, g3, b3) = take(6)
    hdn = jnp.maximum(
        jnp.dot(t.astype(WDT), w1d[...],
                preferred_element_type=jnp.float32) + bf1d[...], 0.0)
    t = _layernorm(
        t + jnp.dot(hdn.astype(WDT), w2d[...],
                    preferred_element_type=jnp.float32) + bf2d[...],
        g3[...], b3[...])

    # classification head, padded to CLS_PAD lanes -> lane-dense store
    (wc, bc) = take(2)
    logits = jnp.dot(t.astype(WDT), wc[...],
                     preferred_element_type=jnp.float32) + bc[...]
    out_ref[...] = logits.reshape(nb, QPAD, CLS_PAD)


# --------------------------- parameters (synthetic) ---------------------------
def _init_mha(key):
    ks = jax.random.split(key, 4)
    init = lambda k, shp: jax.random.normal(k, shp, jnp.float32) * 0.02
    zb = jnp.zeros((1, D), jnp.float32)
    return dict(wq=init(ks[0], (D, D)), bq=zb, wk=init(ks[1], (D, D)), bk=zb,
                wv=init(ks[2], (D, D)), bv=zb, wo=init(ks[3], (D, D)), bo=zb)


def _init_ln():
    return jnp.ones((1, D), jnp.float32), jnp.zeros((1, D), jnp.float32)


def _init_ffn(key):
    k1, k2 = jax.random.split(key)
    return dict(w1=jax.random.normal(k1, (D, FFN), jnp.float32) * 0.02,
                b1=jnp.zeros((1, FFN), jnp.float32),
                w2=jax.random.normal(k2, (FFN, D), jnp.float32) * 0.02,
                b2=jnp.zeros((1, D), jnp.float32))


def init_params(key):
    keys = jax.random.split(key, ENC_LAYERS + 6)
    params = {}
    params["patch_w"] = jax.random.normal(keys[0], (PATCH_DIM, D), jnp.float32) * 0.02
    params["patch_b"] = jnp.zeros((1, D), jnp.float32)
    enc = []
    for i in range(ENC_LAYERS):
        k = keys[1 + i]
        ffn = _init_ffn(jax.random.fold_in(k, 7))
        g1, b1 = _init_ln()
        g2, b2 = _init_ln()
        enc.append(dict(mha=_init_mha(k), ln1_g=g1, ln1_b=b1,
                        w1=ffn["w1"], b1=ffn["b1"], w2=ffn["w2"], b2=ffn["b2"],
                        ln2_g=g2, ln2_b=b2))
    params["enc_layers"] = enc
    params["query_embed"] = jax.random.normal(keys[ENC_LAYERS + 1],
                                              (NUM_QUERIES, D), jnp.float32) * 0.02
    g1, b1 = _init_ln()
    g2, b2 = _init_ln()
    g3, b3 = _init_ln()
    ffn = _init_ffn(keys[ENC_LAYERS + 5])
    params["dec"] = dict(
        sa=_init_mha(keys[ENC_LAYERS + 3]),
        ca=_init_mha(keys[ENC_LAYERS + 4]),
        ln1_g=g1, ln1_b=b1, ln2_g=g2, ln2_b=b2, ln3_g=g3, ln3_b=b3,
        w1=ffn["w1"], b1=ffn["b1"], w2=ffn["w2"], b2=ffn["b2"],
        wc=jax.random.normal(keys[ENC_LAYERS + 2], (D, 2), jnp.float32) * 0.02,
        bc=jnp.zeros((1, 2), jnp.float32))
    return params


# -------------------- fold / pack weights for the fused kernel ----------------
def sine_pos_embed(hf, wf, d):
    """DETR PositionEmbeddingSine (normalize=True) for an all-ones mask."""
    npf = d // 2
    temperature = 10000.0
    eps = 1e-6
    scale = 2.0 * math.pi
    y = (jnp.arange(hf, dtype=jnp.float32) + 1.0)
    x = (jnp.arange(wf, dtype=jnp.float32) + 1.0)
    y = y / (y[-1] + eps) * scale
    x = x / (x[-1] + eps) * scale
    i = jnp.arange(npf, dtype=jnp.float32)
    dim_t = temperature ** (2.0 * jnp.floor(i / 2.0) / npf)
    py = y[:, None] / dim_t
    px = x[:, None] / dim_t

    def interleave(p):
        s = jnp.sin(p[:, 0::2])
        c = jnp.cos(p[:, 1::2])
        return jnp.stack([s, c], axis=-1).reshape(p.shape[0], -1)

    py = interleave(py)
    px = interleave(px)
    pos = jnp.concatenate(
        [jnp.broadcast_to(py[:, None, :], (hf, wf, npf)),
         jnp.broadcast_to(px[None, :, :], (hf, wf, npf))], axis=-1)
    return pos.reshape(hf * wf, d).astype(jnp.float32)    # (L, D)


def _fold_self_attn(mha, pos_qk, scale):
    """Fused (D,3D) QKV weight with the attention scale folded into the Q part,
    and a per-token (n,3D) bias that contains the positional projections
    (q,k get pos_qk, v does not) and all linear biases."""
    wq_s, bq_s = mha["wq"] * scale, mha["bq"] * scale
    wqkv = jnp.concatenate([wq_s, mha["wk"], mha["wv"]], axis=1)          # (D, 3D)
    n = pos_qk.shape[0]
    bias = jnp.concatenate([pos_qk @ wq_s + bq_s,
                            pos_qk @ mha["wk"] + mha["bk"],
                            jnp.broadcast_to(mha["bv"], (n, D))], axis=1)  # (n, 3D)
    return wqkv, bias


def _dec_self_attn_fold(dec, qpos, scale):
    """Decoder self-attention with tgt == 0 is input-independent: compute the
    post-LN1 target rows (NUM_QUERIES, D) once, host/XLA-side."""
    sa = dec["sa"]
    q = qpos @ (sa["wq"] * scale) + sa["bq"] * scale
    k = qpos @ sa["wk"] + sa["bk"]
    v = jnp.broadcast_to(sa["bv"], (NUM_QUERIES, D))
    ctxs = []
    for h in range(NHEADS):
        sl = slice(h * HEAD_DIM, (h + 1) * HEAD_DIM)
        s = q[:, sl] @ k[:, sl].T
        s = s - jnp.max(s, axis=-1, keepdims=True)
        p = jnp.exp(s)
        p = p / jnp.sum(p, axis=-1, keepdims=True)
        ctxs.append(p @ v[:, sl])
    attn = jnp.concatenate(ctxs, axis=-1) @ sa["wo"] + sa["bo"]
    return _layernorm(attn, dec["ln1_g"], dec["ln1_b"])     # (Q, D), tgt==0 residual


def pack_params(params):
    """Flat, kernel-ready weight list.  All folding (pos embeds, attention
    scale, zero-tgt decoder self-attention, query padding) done here, once.
    MXU-operand weights are bf16; additive biases / LN params stay f32."""
    bf = lambda a: a.astype(WDT)
    f32 = lambda a: a.astype(jnp.float32)
    scale = 1.0 / math.sqrt(HEAD_DIM)
    pos = sine_pos_embed(HF, WF, D)                 # (L, D)
    qpos = params["query_embed"]                    # (Q, D)

    flat = [bf(params["patch_w"]), f32(params["patch_b"])]

    for lp in params["enc_layers"]:
        wqkv, bias = _fold_self_attn(lp["mha"], pos, scale)
        flat += [bf(wqkv), f32(bias), bf(lp["mha"]["wo"]), f32(lp["mha"]["bo"]),
                 f32(lp["ln1_g"]), f32(lp["ln1_b"]),
                 bf(lp["w1"]), f32(lp["b1"]), bf(lp["w2"]), f32(lp["b2"]),
                 f32(lp["ln2_g"]), f32(lp["ln2_b"])]

    dec = params["dec"]
    # constant-folded decoder self-attention + LN1 (tgt == 0)
    t1 = _dec_self_attn_fold(dec, qpos, scale)                       # (Q, D)
    ca = dec["ca"]
    q_const = (t1 + qpos) @ (ca["wq"] * scale) + ca["bq"] * scale    # (Q, D)
    # pad queries 25 -> 32 for sublane-aligned decoder tensors
    t_pad = jnp.zeros((QPAD, D), jnp.float32).at[:NUM_QUERIES].set(t1)
    q_pad = jnp.zeros((QPAD, D), jnp.float32).at[:NUM_QUERIES].set(q_const)

    # cross-attention: k = mem + pos ; v = mem
    wkv = jnp.concatenate([ca["wk"], ca["wv"]], axis=1)              # (D, 2D)
    kvbias = jnp.concatenate([pos @ ca["wk"] + ca["bk"],
                              jnp.broadcast_to(ca["bv"], (L, D))], axis=1)  # (L, 2D)
    flat += [f32(t_pad), f32(q_pad), bf(wkv), f32(kvbias),
             bf(ca["wo"]), f32(ca["bo"]), f32(dec["ln2_g"]), f32(dec["ln2_b"])]

    flat += [bf(dec["w1"]), f32(dec["b1"]), bf(dec["w2"]), f32(dec["b2"]),
             f32(dec["ln3_g"]), f32(dec["ln3_b"])]

    # classification head padded to CLS_PAD lanes (sliced back outside kernel)
    wc_pad = jnp.zeros((D, CLS_PAD), jnp.float32).at[:, :2].set(dec["wc"])
    bc_pad = jnp.zeros((1, CLS_PAD), jnp.float32).at[:, :2].set(dec["bc"])
    flat += [bf(wc_pad), f32(bc_pad)]
    return flat


# --------------------------- forward (plain JAX glue) --------------------------
def _cross_entropy(logits, labels):
    logits = logits.reshape(-1, 2)
    labels = labels.reshape(-1)
    logz = jax.nn.logsumexp(logits, axis=-1)
    ll = jnp.take_along_axis(logits, labels[:, None], axis=-1)[:, 0]
    return jnp.mean(logz - ll)


def _device_kind():
    try:
        return jax.devices()[0].device_kind.lower()
    except Exception:
        return ""


def bddoia_forward(params, img_feats, label_action, label_reason):
    bsz = img_feats.shape[0]
    images = img_feats[:, 0]                               # first frame only, as in PyTorch
    # "backbone": 4x4 patchify (NCHW -> tokens); projection happens in-kernel
    patches = images.reshape(bsz, C, HF, PATCH, WF, PATCH)
    patches = patches.transpose(0, 2, 4, 1, 3, 5).reshape(bsz, L, PATCH_DIM)

    flat = pack_params(params)               # weight folding; constant under jit
    out_shape = jax.ShapeDtypeStruct((bsz, QPAD, CLS_PAD), jnp.float32)

    kind = _device_kind()
    use_batch_grid = (("v7" in kind) or ("7x" in kind)) and bsz > 1

    if use_batch_grid:
        # v7x has 2 TensorCores/chip: shard the batch across cores.
        def _rep_spec(a):
            nd = a.ndim
            return pl.BlockSpec(a.shape, lambda b: (0,) * nd)

        in_specs = [pl.BlockSpec((1, L, PATCH_DIM), lambda b: (b, 0, 0))]
        in_specs += [_rep_spec(a) for a in flat]
        logits_pad = pl.pallas_call(
            fused_forward_kernel,
            out_shape=out_shape,
            grid=(bsz,),
            in_specs=in_specs,
            out_specs=pl.BlockSpec((1, QPAD, CLS_PAD), lambda b: (b, 0, 0)),
            compiler_params=pltpu.CompilerParams(
                dimension_semantics=("parallel",)),
        )(patches, *flat)
    else:
        # v5e/v6e (1 TensorCore): single no-grid call, everything VMEM-resident.
        logits_pad = pl.pallas_call(
            fused_forward_kernel,
            out_shape=out_shape,
        )(patches, *flat)

    logits = logits_pad[:, :NUM_QUERIES, :2]               # drop query / lane padding
    logits_action = logits[:, :NUM_ACTIONS, :]
    logits_reason = logits[:, NUM_ACTIONS:, :]
    loss_action = _cross_entropy(logits_action, label_action)
    loss_reason = _cross_entropy(logits_reason, label_reason)
    return logits_action, logits_reason, loss_action, loss_reason


# ------------------------------------ main -----------------------------------
if __name__ == "__main__":
    key = jax.random.PRNGKey(0)
    k_img, k_la, k_lr, k_param = jax.random.split(key, 4)
    img_feats = jax.random.normal(k_img, (B, S, C, H, W), jnp.float32)
    label_action = jax.random.randint(k_la, (B, NUM_ACTIONS), 0, 2, dtype=jnp.int32)
    label_reason = jax.random.randint(k_lr, (B, NUM_REASONS), 0, 2, dtype=jnp.int32)

    params = init_params(k_param)
    fwd = jax.jit(partial(bddoia_forward, params))
    la, lr, loss_a, loss_r = fwd(img_feats, label_action, label_reason)
    jax.block_until_ready((la, lr, loss_a, loss_r))

    assert la.shape == (B, NUM_ACTIONS, 2)
    assert lr.shape == (B, NUM_REASONS, 2)
    assert loss_a.shape == () and loss_r.shape == ()
    assert bool(jnp.isfinite(loss_a)) and bool(jnp.isfinite(loss_r))
    print("KERNEL_OK")
</pallas_src>

<mosaic_0001>
module attributes {stable_mosaic.version = 11 : i64} {
  func.func @fused_forward_kernel(%arg0: memref<2x16x48xf32, #tpu.memory_space<vmem>>, %arg1: memref<48x32xbf16, #tpu.memory_space<vmem>>, %arg2: memref<1x32xf32, #tpu.memory_space<vmem>>, %arg3: memref<32x96xbf16, #tpu.memory_space<vmem>>, %arg4: memref<16x96xf32, #tpu.memory_space<vmem>>, %arg5: memref<32x32xbf16, #tpu.memory_space<vmem>>, %arg6: memref<1x32xf32, #tpu.memory_space<vmem>>, %arg7: memref<1x32xf32, #tpu.memory_space<vmem>>, %arg8: memref<1x32xf32, #tpu.memory_space<vmem>>, %arg9: memref<32x64xbf16, #tpu.memory_space<vmem>>, %arg10: memref<1x64xf32, #tpu.memory_space<vmem>>, %arg11: memref<64x32xbf16, #tpu.memory_space<vmem>>, %arg12: memref<1x32xf32, #tpu.memory_space<vmem>>, %arg13: memref<1x32xf32, #tpu.memory_space<vmem>>, %arg14: memref<1x32xf32, #tpu.memory_space<vmem>>, %arg15: memref<32x96xbf16, #tpu.memory_space<vmem>>, %arg16: memref<16x96xf32, #tpu.memory_space<vmem>>, %arg17: memref<32x32xbf16, #tpu.memory_space<vmem>>, %arg18: memref<1x32xf32, #tpu.memory_space<vmem>>, %arg19: memref<1x32xf32, #tpu.memory_space<vmem>>, %arg20: memref<1x32xf32, #tpu.memory_space<vmem>>, %arg21: memref<32x64xbf16, #tpu.memory_space<vmem>>, %arg22: memref<1x64xf32, #tpu.memory_space<vmem>>, %arg23: memref<64x32xbf16, #tpu.memory_space<vmem>>, %arg24: memref<1x32xf32, #tpu.memory_space<vmem>>, %arg25: memref<1x32xf32, #tpu.memory_space<vmem>>, %arg26: memref<1x32xf32, #tpu.memory_space<vmem>>, %arg27: memref<32x32xf32, #tpu.memory_space<vmem>>, %arg28: memref<32x32xf32, #tpu.memory_space<vmem>>, %arg29: memref<32x64xbf16, #tpu.memory_space<vmem>>, %arg30: memref<16x64xf32, #tpu.memory_space<vmem>>, %arg31: memref<32x32xbf16, #tpu.memory_space<vmem>>, %arg32: memref<1x32xf32, #tpu.memory_space<vmem>>, %arg33: memref<1x32xf32, #tpu.memory_space<vmem>>, %arg34: memref<1x32xf32, #tpu.memory_space<vmem>>, %arg35: memref<32x64xbf16, #tpu.memory_space<vmem>>, %arg36: memref<1x64xf32, #tpu.memory_space<vmem>>, %arg37: memref<64x32xbf16, #tpu.memory_space<vmem>>, %arg38: memref<1x32xf32, #tpu.memory_space<vmem>>, %arg39: memref<1x32xf32, #tpu.memory_space<vmem>>, %arg40: memref<1x32xf32, #tpu.memory_space<vmem>>, %arg41: memref<32x128xbf16, #tpu.memory_space<vmem>>, %arg42: memref<1x128xf32, #tpu.memory_space<vmem>>, %arg43: memref<2x32x128xf32, #tpu.memory_space<vmem>>) attributes {dimension_semantics = [], scalar_prefetch = 0 : i64, scratch_operands = 0 : i64, tpu.core_type = #tpu.core_type<tc>} {
    %c0 = arith.constant 0 : index
    %c0_0 = arith.constant 0 : index
    %c0_1 = arith.constant 0 : index
    %0 = vector.load %arg0[%c0, %c0_0, %c0_1] : memref<2x16x48xf32, #tpu.memory_space<vmem>>, vector<2x16x48xf32>
    %1 = vector.shape_cast %0 : vector<2x16x48xf32> to vector<32x48xf32>
    %2 = arith.truncf %1 : vector<32x48xf32> to vector<32x48xbf16>
    %c0_2 = arith.constant 0 : index
    %c0_3 = arith.constant 0 : index
    %3 = vector.load %arg1[%c0_2, %c0_3] : memref<48x32xbf16, #tpu.memory_space<vmem>>, vector<48x32xbf16>
    %cst = arith.constant dense<0.000000e+00> : vector<32x32xf32>
    %4 = tpu.matmul %2, %3, %cst {dimension_numbers = #tpu.dot_dimension_numbers<[1], [0], [0], [1], [0, 0, 1, 1], [], []>} : vector<32x48xbf16>, vector<48x32xbf16>, vector<32x32xf32> -> vector<32x32xf32>
    %c0_4 = arith.constant 0 : index
    %c0_5 = arith.constant 0 : index
    %5 = vector.load %arg2[%c0_4, %c0_5] : memref<1x32xf32, #tpu.memory_space<vmem>>, vector<1x32xf32>
    %6 = vector.broadcast %5 : vector<1x32xf32> to vector<32x32xf32>
    %7 = arith.addf %4, %6 : vector<32x32xf32>
    %8 = arith.truncf %7 : vector<32x32xf32> to vector<32x32xbf16>
    %c0_6 = arith.constant 0 : index
    %c0_7 = arith.constant 0 : index
    %9 = vector.load %arg3[%c0_6, %c0_7] : memref<32x96xbf16, #tpu.memory_space<vmem>>, vector<32x96xbf16>
    %cst_8 = arith.constant dense<0.000000e+00> : vector<32x96xf32>
    %10 = tpu.matmul %8, %9, %cst_8 {dimension_numbers = #tpu.dot_dimension_numbers<[1], [0], [0], [1], [0, 0, 1, 1], [], []>} : vector<32x32xbf16>, vector<32x96xbf16>, vector<32x96xf32> -> vector<32x96xf32>
    %11 = vector.shape_cast %10 : vector<32x96xf32> to vector<2x16x96xf32>
    %c0_9 = arith.constant 0 : index
    %c0_10 = arith.constant 0 : index
    %12 = vector.load %arg4[%c0_9, %c0_10] : memref<16x96xf32, #tpu.memory_space<vmem>>, vector<16x96xf32>
    %13 = vector.shape_cast %12 : vector<16x96xf32> to vector<1x16x96xf32>
    %14 = vector.broadcast %13 : vector<1x16x96xf32> to vector<2x16x96xf32>
    %15 = arith.addf %11, %14 : vector<2x16x96xf32>
    %16 = vector.extract_strided_slice %15 {offsets = [0, 0, 0], sizes = [2, 16, 32], strides = [1, 1, 1]} : vector<2x16x96xf32> to vector<2x16x32xf32>
    %17 = vector.extract_strided_slice %15 {offsets = [0, 0, 32], sizes = [2, 16, 32], strides = [1, 1, 1]} : vector<2x16x96xf32> to vector<2x16x32xf32>
    %18 = vector.extract_strided_slice %15 {offsets = [0, 0, 64], sizes = [2, 16, 32], strides = [1, 1, 1]} : vector<2x16x96xf32> to vector<2x16x32xf32>
    %c0_11 = arith.constant 0 : index
    %c0_12 = arith.constant 0 : index
    %19 = vector.load %arg5[%c0_11, %c0_12] : memref<32x32xbf16, #tpu.memory_space<vmem>>, vector<32x32xbf16>
    %c0_13 = arith.constant 0 : index
    %c0_14 = arith.constant 0 : index
    %20 = vector.load %arg6[%c0_13, %c0_14] : memref<1x32xf32, #tpu.memory_space<vmem>>, vector<1x32xf32>
    %21 = tpu.transpose %17, [0, 2, 1] : vector<2x16x32xf32> -> vector<2x32x16xf32>
    %22 = arith.truncf %16 : vector<2x16x32xf32> to vector<2x16x32xbf16>
    %23 = arith.truncf %21 : vector<2x32x16xf32> to vector<2x32x16xbf16>
    %24 = arith.truncf %18 : vector<2x16x32xf32> to vector<2x16x32xbf16>
    %25 = vector.extract_strided_slice %22 {offsets = [0, 0, 0], sizes = [2, 16, 8], strides = [1, 1, 1]} : vector<2x16x32xbf16> to vector<2x16x8xbf16>
    %26 = vector.extract_strided_slice %23 {offsets = [0, 0, 0], sizes = [2, 8, 16], strides = [1, 1, 1]} : vector<2x32x16xbf16> to vector<2x8x16xbf16>
    "tpu.trace_start"() <{level = 10 : i32, message = "bqd,bdk->bqk"}> : () -> ()
    %cst_15 = arith.constant dense<0.000000e+00> : vector<2x16x16xf32>
    %27 = tpu.matmul %25, %26, %cst_15 {dimension_numbers = #tpu.dot_dimension_numbers<[2], [1], [1], [2], [0, 0, 0, 1, 1, 2], [0], [0]>} : vector<2x16x8xbf16>, vector<2x8x16xbf16>, vector<2x16x16xf32> -> vector<2x16x16xf32>
    "tpu.trace_stop"() : () -> ()
    %cst_16 = arith.constant dense<0xFF800000> : vector<2x16xf32>
    %28 = vector.multi_reduction <maximumf>, %27, %cst_16 [2] : vector<2x16x16xf32> to vector<2x16xf32>
    %29 = vector.shape_cast %28 : vector<2x16xf32> to vector<2x16x1xf32>
    %30 = vector.broadcast %29 : vector<2x16x1xf32> to vector<2x16x16xf32>
    %31 = arith.subf %27, %30 : vector<2x16x16xf32>
    %32 = math.exp %31 : vector<2x16x16xf32>
    %cst_17 = arith.constant dense<0.000000e+00> : vector<2x16xf32>
    %33 = vector.multi_reduction <add>, %32, %cst_17 [2] : vector<2x16x16xf32> to vector<2x16xf32>
    %34 = vector.shape_cast %33 : vector<2x16xf32> to vector<2x16x1xf32>
    %35 = tpu.reciprocal %34 {approx = true} : vector<2x16x1xf32> -> vector<2x16x1xf32>
    %36 = vector.broadcast %35 : vector<2x16x1xf32> to vector<2x16x16xf32>
    %37 = arith.mulf %32, %36 : vector<2x16x16xf32>
    %38 = arith.truncf %37 : vector<2x16x16xf32> to vector<2x16x16xbf16>
    %39 = vector.extract_strided_slice %24 {offsets = [0, 0, 0], sizes = [2, 16, 8], strides = [1, 1, 1]} : vector<2x16x32xbf16> to vector<2x16x8xbf16>
    "tpu.trace_start"() <{level = 10 : i32, message = "bqk,bkd->bqd"}> : () -> ()
    %cst_18 = arith.constant dense<0.000000e+00> : vector<2x16x8xf32>
    %40 = tpu.matmul %38, %39, %cst_18 {dimension_numbers = #tpu.dot_dimension_numbers<[2], [1], [1], [2], [0, 0, 0, 1, 1, 2], [0], [0]>} : vector<2x16x16xbf16>, vector<2x16x8xbf16>, vector<2x16x8xf32> -> vector<2x16x8xf32>
    "tpu.trace_stop"() : () -> ()
    %41 = vector.extract_strided_slice %22 {offsets = [0, 0, 8], sizes = [2, 16, 8], strides = [1, 1, 1]} : vector<2x16x32xbf16> to vector<2x16x8xbf16>
    %42 = vector.extract_strided_slice %23 {offsets = [0, 8, 0], sizes = [2, 8, 16], strides = [1, 1, 1]} : vector<2x32x16xbf16> to vector<2x8x16xbf16>
    "tpu.trace_start"() <{level = 10 : i32, message = "bqd,bdk->bqk"}> : () -> ()
    %cst_19 = arith.constant dense<0.000000e+00> : vector<2x16x16xf32>
    %43 = tpu.matmul %41, %42, %cst_19 {dimension_numbers = #tpu.dot_dimension_numbers<[2], [1], [1], [2], [0, 0, 0, 1, 1, 2], [0], [0]>} : vector<2x16x8xbf16>, vector<2x8x16xbf16>, vector<2x16x16xf32> -> vector<2x16x16xf32>
    "tpu.trace_stop"() : () -> ()
    %cst_20 = arith.constant dense<0xFF800000> : vector<2x16xf32>
    %44 = vector.multi_reduction <maximumf>, %43, %cst_20 [2] : vector<2x16x16xf32> to vector<2x16xf32>
    %45 = vector.shape_cast %44 : vector<2x16xf32> to vector<2x16x1xf32>
    %46 = vector.broadcast %45 : vector<2x16x1xf32> to vector<2x16x16xf32>
    %47 = arith.subf %43, %46 : vector<2x16x16xf32>
    %48 = math.exp %47 : vector<2x16x16xf32>
    %cst_21 = arith.constant dense<0.000000e+00> : vector<2x16xf32>
    %49 = vector.multi_reduction <add>, %48, %cst_21 [2] : vector<2x16x16xf32> to vector<2x16xf32>
    %50 = vector.shape_cast %49 : vector<2x16xf32> to vector<2x16x1xf32>
    %51 = tpu.reciprocal %50 {approx = true} : vector<2x16x1xf32> -> vector<2x16x1xf32>
    %52 = vector.broadcast %51 : vector<2x16x1xf32> to vector<2x16x16xf32>
    %53 = arith.mulf %48, %52 : vector<2x16x16xf32>
    %54 = arith.truncf %53 : vector<2x16x16xf32> to vector<2x16x16xbf16>
    %55 = vector.extract_strided_slice %24 {offsets = [0, 0, 8], sizes = [2, 16, 8], strides = [1, 1, 1]} : vector<2x16x32xbf16> to vector<2x16x8xbf16>
    "tpu.trace_start"() <{level = 10 : i32, message = "bqk,bkd->bqd"}> : () -> ()
    %cst_22 = arith.constant dense<0.000000e+00> : vector<2x16x8xf32>
    %56 = tpu.matmul %54, %55, %cst_22 {dimension_numbers = #tpu.dot_dimension_numbers<[2], [1], [1], [2], [0, 0, 0, 1, 1, 2], [0], [0]>} : vector<2x16x16xbf16>, vector<2x16x8xbf16>, vector<2x16x8xf32> -> vector<2x16x8xf32>
    "tpu.trace_stop"() : () -> ()
    %57 = vector.extract_strided_slice %22 {offsets = [0, 0, 16], sizes = [2, 16, 8], strides = [1, 1, 1]} : vector<2x16x32xbf16> to vector<2x16x8xbf16>
    %58 = vector.extract_strided_slice %23 {offsets = [0, 16, 0], sizes = [2, 8, 16], strides = [1, 1, 1]} : vector<2x32x16xbf16> to vector<2x8x16xbf16>
    "tpu.trace_start"() <{level = 10 : i32, message = "bqd,bdk->bqk"}> : () -> ()
    %cst_23 = arith.constant dense<0.000000e+00> : vector<2x16x16xf32>
    %59 = tpu.matmul %57, %58, %cst_23 {dimension_numbers = #tpu.dot_dimension_numbers<[2], [1], [1], [2], [0, 0, 0, 1, 1, 2], [0], [0]>} : vector<2x16x8xbf16>, vector<2x8x16xbf16>, vector<2x16x16xf32> -> vector<2x16x16xf32>
    "tpu.trace_stop"() : () -> ()
    %cst_24 = arith.constant dense<0xFF800000> : vector<2x16xf32>
    %60 = vector.multi_reduction <maximumf>, %59, %cst_24 [2] : vector<2x16x16xf32> to vector<2x16xf32>
    %61 = vector.shape_cast %60 : vector<2x16xf32> to vector<2x16x1xf32>
    %62 = vector.broadcast %61 : vector<2x16x1xf32> to vector<2x16x16xf32>
    %63 = arith.subf %59, %62 : vector<2x16x16xf32>
    %64 = math.exp %63 : vector<2x16x16xf32>
    %cst_25 = arith.constant dense<0.000000e+00> : vector<2x16xf32>
    %65 = vector.multi_reduction <add>, %64, %cst_25 [2] : vector<2x16x16xf32> to vector<2x16xf32>
    %66 = vector.shape_cast %65 : vector<2x16xf32> to vector<2x16x1xf32>
    %67 = tpu.reciprocal %66 {approx = true} : vector<2x16x1xf32> -> vector<2x16x1xf32>
    %68 = vector.broadcast %67 : vector<2x16x1xf32> to vector<2x16x16xf32>
    %69 = arith.mulf %64, %68 : vector<2x16x16xf32>
    %70 = arith.truncf %69 : vector<2x16x16xf32> to vector<2x16x16xbf16>
    %71 = vector.extract_strided_slice %24 {offsets = [0, 0, 16], sizes = [2, 16, 8], strides = [1, 1, 1]} : vector<2x16x32xbf16> to vector<2x16x8xbf16>
    "tpu.trace_start"() <{level = 10 : i32, message = "bqk,bkd->bqd"}> : () -> ()
    %cst_26 = arith.constant dense<0.000000e+00> : vector<2x16x8xf32>
    %72 = tpu.matmul %70, %71, %cst_26 {dimension_numbers = #tpu.dot_dimension_numbers<[2], [1], [1], [2], [0, 0, 0, 1, 1, 2], [0], [0]>} : vector<2x16x16xbf16>, vector<2x16x8xbf16>, vector<2x16x8xf32> -> vector<2x16x8xf32>
    "tpu.trace_stop"() : () -> ()
    %73 = vector.extract_strided_slice %22 {offsets = [0, 0, 24], sizes = [2, 16, 8], strides = [1, 1, 1]} : vector<2x16x32xbf16> to vector<2x16x8xbf16>
    %74 = vector.extract_strided_slice %23 {offsets = [0, 24, 0], sizes = [2, 8, 16], strides = [1, 1, 1]} : vector<2x32x16xbf16> to vector<2x8x16xbf16>
    "tpu.trace_start"() <{level = 10 : i32, message = "bqd,bdk->bqk"}> : () -> ()
    %cst_27 = arith.constant dense<0.000000e+00> : vector<2x16x16xf32>
    %75 = tpu.matmul %73, %74, %cst_27 {dimension_numbers = #tpu.dot_dimension_numbers<[2], [1], [1], [2], [0, 0, 0, 1, 1, 2], [0], [0]>} : vector<2x16x8xbf16>, vector<2x8x16xbf16>, vector<2x16x16xf32> -> vector<2x16x16xf32>
    "tpu.trace_stop"() : () -> ()
    %cst_28 = arith.constant dense<0xFF800000> : vector<2x16xf32>
    %76 = vector.multi_reduction <maximumf>, %75, %cst_28 [2] : vector<2x16x16xf32> to vector<2x16xf32>
    %77 = vector.shape_cast %76 : vector<2x16xf32> to vector<2x16x1xf32>
    %78 = vector.broadcast %77 : vector<2x16x1xf32> to vector<2x16x16xf32>
    %79 = arith.subf %75, %78 : vector<2x16x16xf32>
    %80 = math.exp %79 : vector<2x16x16xf32>
    %cst_29 = arith.constant dense<0.000000e+00> : vector<2x16xf32>
    %81 = vector.multi_reduction <add>, %80, %cst_29 [2] : vector<2x16x16xf32> to vector<2x16xf32>
    %82 = vector.shape_cast %81 : vector<2x16xf32> to vector<2x16x1xf32>
    %83 = tpu.reciprocal %82 {approx = true} : vector<2x16x1xf32> -> vector<2x16x1xf32>
    %84 = vector.broadcast %83 : vector<2x16x1xf32> to vector<2x16x16xf32>
    %85 = arith.mulf %80, %84 : vector<2x16x16xf32>
    %86 = arith.truncf %85 : vector<2x16x16xf32> to vector<2x16x16xbf16>
    %87 = vector.extract_strided_slice %24 {offsets = [0, 0, 24], sizes = [2, 16, 8], strides = [1, 1, 1]} : vector<2x16x32xbf16> to vector<2x16x8xbf16>
    "tpu.trace_start"() <{level = 10 : i32, message = "bqk,bkd->bqd"}> : () -> ()
    %cst_30 = arith.constant dense<0.000000e+00> : vector<2x16x8xf32>
    %88 = tpu.matmul %86, %87, %cst_30 {dimension_numbers = #tpu.dot_dimension_numbers<[2], [1], [1], [2], [0, 0, 0, 1, 1, 2], [0], [0]>} : vector<2x16x16xbf16>, vector<2x16x8xbf16>, vector<2x16x8xf32> -> vector<2x16x8xf32>
    "tpu.trace_stop"() : () -> ()
    %89 = tpu.concatenate %40, %56, %72, %88 in 2 : vector<2x16x8xf32>, vector<2x16x8xf32>, vector<2x16x8xf32>, vector<2x16x8xf32> -> vector<2x16x32xf32>
    %90 = vector.shape_cast %89 : vector<2x16x32xf32> to vector<32x32xf32>
    %91 = arith.truncf %90 : vector<32x32xf32> to vector<32x32xbf16>
    %cst_31 = arith.constant dense<0.000000e+00> : vector<32x32xf32>
    %92 = tpu.matmul %91, %19, %cst_31 {dimension_numbers = #tpu.dot_dimension_numbers<[1], [0], [0], [1], [0, 0, 1, 1], [], []>} : vector<32x32xbf16>, vector<32x32xbf16>, vector<32x32xf32> -> vector<32x32xf32>
    %93 = vector.broadcast %20 : vector<1x32xf32> to vector<32x32xf32>
    %94 = arith.addf %92, %93 : vector<32x32xf32>
    %95 = arith.addf %7, %94 : vector<32x32xf32>
    %c0_32 = arith.constant 0 : index
    %c0_33 = arith.constant 0 : index
    %96 = vector.load %arg7[%c0_32, %c0_33] : memref<1x32xf32, #tpu.memory_space<vmem>>, vector<1x32xf32>
    %c0_34 = arith.constant 0 : index
    %c0_35 = arith.constant 0 : index
    %97 = vector.load %arg8[%c0_34, %c0_35] : memref<1x32xf32, #tpu.memory_space<vmem>>, vector<1x32xf32>
    %cst_36 = arith.constant dense<0.000000e+00> : vector<32xf32>
    %98 = vector.multi_reduction <add>, %95, %cst_36 [1] : vector<32x32xf32> to vector<32xf32>
    %99 = vector.shape_cast %98 : vector<32xf32> to vector<32x1xf32>
    %cst_37 = arith.constant 3.200000e+01 : f32
    %100 = vector.broadcast %cst_37 : f32 to vector<32x1xf32>
    %101 = arith.divf %99, %100 : vector<32x1xf32>
    %102 = vector.broadcast %101 : vector<32x1xf32> to vector<32x32xf32>
    %103 = arith.subf %95, %102 : vector<32x32xf32>
    %104 = arith.mulf %103, %103 : vector<32x32xf32>
    %cst_38 = arith.constant dense<0.000000e+00> : vector<32xf32>
    %105 = vector.multi_reduction <add>, %104, %cst_38 [1] : vector<32x32xf32> to vector<32xf32>
    %106 = vector.shape_cast %105 : vector<32xf32> to vector<32x1xf32>
    %cst_39 = arith.constant 3.200000e+01 : f32
    %107 = vector.broadcast %cst_39 : f32 to vector<32x1xf32>
    %108 = arith.divf %106, %107 : vector<32x1xf32>
    %109 = vector.broadcast %101 : vector<32x1xf32> to vector<32x32xf32>
    %110 = arith.subf %95, %109 : vector<32x32xf32>
    %cst_40 = arith.constant 9.99999974E-6 : f32
    %111 = vector.broadcast %cst_40 : f32 to vector<32x1xf32>
    %112 = arith.addf %108, %111 : vector<32x1xf32>
    %113 = math.rsqrt %112 : vector<32x1xf32>
    %114 = vector.broadcast %113 : vector<32x1xf32> to vector<32x32xf32>
    %115 = arith.mulf %110, %114 : vector<32x32xf32>
    %116 = vector.broadcast %96 : vector<1x32xf32> to vector<32x32xf32>
    %117 = arith.mulf %115, %116 : vector<32x32xf32>
    %118 = vector.broadcast %97 : vector<1x32xf32> to vector<32x32xf32>
    %119 = arith.addf %117, %118 : vector<32x32xf32>
    %120 = arith.truncf %119 : vector<32x32xf32> to vector<32x32xbf16>
    %c0_41 = arith.constant 0 : index
    %c0_42 = arith.constant 0 : index
    %121 = vector.load %arg9[%c0_41, %c0_42] : memref<32x64xbf16, #tpu.memory_space<vmem>>, vector<32x64xbf16>
    %cst_43 = arith.constant dense<0.000000e+00> : vector<32x64xf32>
    %122 = tpu.matmul %120, %121, %cst_43 {dimension_numbers = #tpu.dot_dimension_numbers<[1], [0], [0], [1], [0, 0, 1, 1], [], []>} : vector<32x32xbf16>, vector<32x64xbf16>, vector<32x64xf32> -> vector<32x64xf32>
    %c0_44 = arith.constant 0 : index
    %c0_45 = arith.constant 0 : index
    %123 = vector.load %arg10[%c0_44, %c0_45] : memref<1x64xf32, #tpu.memory_space<vmem>>, vector<1x64xf32>
    %124 = vector.broadcast %123 : vector<1x64xf32> to vector<32x64xf32>
    %125 = arith.addf %122, %124 : vector<32x64xf32>
    %cst_46 = arith.constant 0.000000e+00 : f32
    %126 = vector.broadcast %cst_46 : f32 to vector<32x64xf32>
    %127 = arith.maximumf %125, %126 : vector<32x64xf32>
    %128 = arith.truncf %127 : vector<32x64xf32> to vector<32x64xbf16>
    %c0_47 = arith.constant 0 : index
    %c0_48 = arith.constant 0 : index
    %129 = vector.load %arg11[%c0_47, %c0_48] : memref<64x32xbf16, #tpu.memory_space<vmem>>, vector<64x32xbf16>
    %cst_49 = arith.constant dense<0.000000e+00> : vector<32x32xf32>
    %130 = tpu.matmul %128, %129, %cst_49 {dimension_numbers = #tpu.dot_dimension_numbers<[1], [0], [0], [1], [0, 0, 1, 1], [], []>} : vector<32x64xbf16>, vector<64x32xbf16>, vector<32x32xf32> -> vector<32x32xf32>
    %131 = arith.addf %119, %130 : vector<32x32xf32>
    %c0_50 = arith.constant 0 : index
    %c0_51 = arith.constant 0 : index
    %132 = vector.load %arg12[%c0_50, %c0_51] : memref<1x32xf32, #tpu.memory_space<vmem>>, vector<1x32xf32>
    %133 = vector.broadcast %132 : vector<1x32xf32> to vector<32x32xf32>
    %134 = arith.addf %131, %133 : vector<32x32xf32>
    %c0_52 = arith.constant 0 : index
    %c0_53 = arith.constant 0 : index
    %135 = vector.load %arg13[%c0_52, %c0_53] : memref<1x32xf32, #tpu.memory_space<vmem>>, vector<1x32xf32>
    %c0_54 = arith.constant 0 : index
    %c0_55 = arith.constant 0 : index
    %136 = vector.load %arg14[%c0_54, %c0_55] : memref<1x32xf32, #tpu.memory_space<vmem>>, vector<1x32xf32>
    %cst_56 = arith.constant dense<0.000000e+00> : vector<32xf32>
    %137 = vector.multi_reduction <add>, %134, %cst_56 [1] : vector<32x32xf32> to vector<32xf32>
    %138 = vector.shape_cast %137 : vector<32xf32> to vector<32x1xf32>
    %cst_57 = arith.constant 3.200000e+01 : f32
    %139 = vector.broadcast %cst_57 : f32 to vector<32x1xf32>
    %140 = arith.divf %138, %139 : vector<32x1xf32>
    %141 = vector.broadcast %140 : vector<32x1xf32> to vector<32x32xf32>
    %142 = arith.subf %134, %141 : vector<32x32xf32>
    %143 = arith.mulf %142, %142 : vector<32x32xf32>
    %cst_58 = arith.constant dense<0.000000e+00> : vector<32xf32>
    %144 = vector.multi_reduction <add>, %143, %cst_58 [1] : vector<32x32xf32> to vector<32xf32>
    %145 = vector.shape_cast %144 : vector<32xf32> to vector<32x1xf32>
    %cst_59 = arith.constant 3.200000e+01 : f32
    %146 = vector.broadcast %cst_59 : f32 to vector<32x1xf32>
    %147 = arith.divf %145, %146 : vector<32x1xf32>
    %148 = vector.broadcast %140 : vector<32x1xf32> to vector<32x32xf32>
    %149 = arith.subf %134, %148 : vector<32x32xf32>
    %cst_60 = arith.constant 9.99999974E-6 : f32
    %150 = vector.broadcast %cst_60 : f32 to vector<32x1xf32>
    %151 = arith.addf %147, %150 : vector<32x1xf32>
    %152 = math.rsqrt %151 : vector<32x1xf32>
    %153 = vector.broadcast %152 : vector<32x1xf32> to vector<32x32xf32>
    %154 = arith.mulf %149, %153 : vector<32x32xf32>
    %155 = vector.broadcast %135 : vector<1x32xf32> to vector<32x32xf32>
    %156 = arith.mulf %154, %155 : vector<32x32xf32>
    %157 = vector.broadcast %136 : vector<1x32xf32> to vector<32x32xf32>
    %158 = arith.addf %156, %157 : vector<32x32xf32>
    %159 = arith.truncf %158 : vector<32x32xf32> to vector<32x32xbf16>
    %c0_61 = arith.constant 0 : index
    %c0_62 = arith.constant 0 : index
    %160 = vector.load %arg15[%c0_61, %c0_62] : memref<32x96xbf16, #tpu.memory_space<vmem>>, vector<32x96xbf16>
    %cst_63 = arith.constant dense<0.000000e+00> : vector<32x96xf32>
    %161 = tpu.matmul %159, %160, %cst_63 {dimension_numbers = #tpu.dot_dimension_numbers<[1], [0], [0], [1], [0, 0, 1, 1], [], []>} : vector<32x32xbf16>, vector<32x96xbf16>, vector<32x96xf32> -> vector<32x96xf32>
    %162 = vector.shape_cast %161 : vector<32x96xf32> to vector<2x16x96xf32>
    %c0_64 = arith.constant 0 : index
    %c0_65 = arith.constant 0 : index
    %163 = vector.load %arg16[%c0_64, %c0_65] : memref<16x96xf32, #tpu.memory_space<vmem>>, vector<16x96xf32>
    %164 = vector.shape_cast %163 : vector<16x96xf32> to vector<1x16x96xf32>
    %165 = vector.broadcast %164 : vector<1x16x96xf32> to vector<2x16x96xf32>
    %166 = arith.addf %162, %165 : vector<2x16x96xf32>
    %167 = vector.extract_strided_slice %166 {offsets = [0, 0, 0], sizes = [2, 16, 32], strides = [1, 1, 1]} : vector<2x16x96xf32> to vector<2x16x32xf32>
    %168 = vector.extract_strided_slice %166 {offsets = [0, 0, 32], sizes = [2, 16, 32], strides = [1, 1, 1]} : vector<2x16x96xf32> to vector<2x16x32xf32>
    %169 = vector.extract_strided_slice %166 {offsets = [0, 0, 64], sizes = [2, 16, 32], strides = [1, 1, 1]} : vector<2x16x96xf32> to vector<2x16x32xf32>
    %c0_66 = arith.constant 0 : index
    %c0_67 = arith.constant 0 : index
    %170 = vector.load %arg17[%c0_66, %c0_67] : memref<32x32xbf16, #tpu.memory_space<vmem>>, vector<32x32xbf16>
    %c0_68 = arith.constant 0 : index
    %c0_69 = arith.constant 0 : index
    %171 = vector.load %arg18[%c0_68, %c0_69] : memref<1x32xf32, #tpu.memory_space<vmem>>, vector<1x32xf32>
    %172 = tpu.transpose %168, [0, 2, 1] : vector<2x16x32xf32> -> vector<2x32x16xf32>
    %173 = arith.truncf %167 : vector<2x16x32xf32> to vector<2x16x32xbf16>
    %174 = arith.truncf %172 : vector<2x32x16xf32> to vector<2x32x16xbf16>
    %175 = arith.truncf %169 : vector<2x16x32xf32> to vector<2x16x32xbf16>
    %176 = vector.extract_strided_slice %173 {offsets = [0, 0, 0], sizes = [2, 16, 8], strides = [1, 1, 1]} : vector<2x16x32xbf16> to vector<2x16x8xbf16>
    %177 = vector.extract_strided_slice %174 {offsets = [0, 0, 0], sizes = [2, 8, 16], strides = [1, 1, 1]} : vector<2x32x16xbf16> to vector<2x8x16xbf16>
    "tpu.trace_start"() <{level = 10 : i32, message = "bqd,bdk->bqk"}> : () -> ()
    %cst_70 = arith.constant dense<0.000000e+00> : vector<2x16x16xf32>
    %178 = tpu.matmul %176, %177, %cst_70 {dimension_numbers = #tpu.dot_dimension_numbers<[2], [1], [1], [2], [0, 0, 0, 1, 1, 2], [0], [0]>} : vector<2x16x8xbf16>, vector<2x8x16xbf16>, vector<2x16x16xf32> -> vector<2x16x16xf32>
    "tpu.trace_stop"() : () -> ()
    %cst_71 = arith.constant dense<0xFF800000> : vector<2x16xf32>
    %179 = vector.multi_reduction <maximumf>, %178, %cst_71 [2] : vector<2x16x16xf32> to vector<2x16xf32>
    %180 = vector.shape_cast %179 : vector<2x16xf32> to vector<2x16x1xf32>
    %181 = vector.broadcast %180 : vector<2x16x1xf32> to vector<2x16x16xf32>
    %182 = arith.subf %178, %181 : vector<2x16x16xf32>
    %183 = math.exp %182 : vector<2x16x16xf32>
    %cst_72 = arith.constant dense<0.000000e+00> : vector<2x16xf32>
    %184 = vector.multi_reduction <add>, %183, %cst_72 [2] : vector<2x16x16xf32> to vector<2x16xf32>
    %185 = vector.shape_cast %184 : vector<2x16xf32> to vector<2x16x1xf32>
    %186 = tpu.reciprocal %185 {approx = true} : vector<2x16x1xf32> -> vector<2x16x1xf32>
    %187 = vector.broadcast %186 : vector<2x16x1xf32> to vector<2x16x16xf32>
    %188 = arith.mulf %183, %187 : vector<2x16x16xf32>
    %189 = arith.truncf %188 : vector<2x16x16xf32> to vector<2x16x16xbf16>
    %190 = vector.extract_strided_slice %175 {offsets = [0, 0, 0], sizes = [2, 16, 8], strides = [1, 1, 1]} : vector<2x16x32xbf16> to vector<2x16x8xbf16>
    "tpu.trace_start"() <{level = 10 : i32, message = "bqk,bkd->bqd"}> : () -> ()
    %cst_73 = arith.constant dense<0.000000e+00> : vector<2x16x8xf32>
    %191 = tpu.matmul %189, %190, %cst_73 {dimension_numbers = #tpu.dot_dimension_numbers<[2], [1], [1], [2], [0, 0, 0, 1, 1, 2], [0], [0]>} : vector<2x16x16xbf16>, vector<2x16x8xbf16>, vector<2x16x8xf32> -> vector<2x16x8xf32>
    "tpu.trace_stop"() : () -> ()
    %192 = vector.extract_strided_slice %173 {offsets = [0, 0, 8], sizes = [2, 16, 8], strides = [1, 1, 1]} : vector<2x16x32xbf16> to vector<2x16x8xbf16>
    %193 = vector.extract_strided_slice %174 {offsets = [0, 8, 0], sizes = [2, 8, 16], strides = [1, 1, 1]} : vector<2x32x16xbf16> to vector<2x8x16xbf16>
    "tpu.trace_start"() <{level = 10 : i32, message = "bqd,bdk->bqk"}> : () -> ()
    %cst_74 = arith.constant dense<0.000000e+00> : vector<2x16x16xf32>
    %194 = tpu.matmul %192, %193, %cst_74 {dimension_numbers = #tpu.dot_dimension_numbers<[2], [1], [1], [2], [0, 0, 0, 1, 1, 2], [0], [0]>} : vector<2x16x8xbf16>, vector<2x8x16xbf16>, vector<2x16x16xf32> -> vector<2x16x16xf32>
    "tpu.trace_stop"() : () -> ()
    %cst_75 = arith.constant dense<0xFF800000> : vector<2x16xf32>
    %195 = vector.multi_reduction <maximumf>, %194, %cst_75 [2] : vector<2x16x16xf32> to vector<2x16xf32>
    %196 = vector.shape_cast %195 : vector<2x16xf32> to vector<2x16x1xf32>
    %197 = vector.broadcast %196 : vector<2x16x1xf32> to vector<2x16x16xf32>
    %198 = arith.subf %194, %197 : vector<2x16x16xf32>
    %199 = math.exp %198 : vector<2x16x16xf32>
    %cst_76 = arith.constant dense<0.000000e+00> : vector<2x16xf32>
    %200 = vector.multi_reduction <add>, %199, %cst_76 [2] : vector<2x16x16xf32> to vector<2x16xf32>
    %201 = vector.shape_cast %200 : vector<2x16xf32> to vector<2x16x1xf32>
    %202 = tpu.reciprocal %201 {approx = true} : vector<2x16x1xf32> -> vector<2x16x1xf32>
    %203 = vector.broadcast %202 : vector<2x16x1xf32> to vector<2x16x16xf32>
    %204 = arith.mulf %199, %203 : vector<2x16x16xf32>
    %205 = arith.truncf %204 : vector<2x16x16xf32> to vector<2x16x16xbf16>
    %206 = vector.extract_strided_slice %175 {offsets = [0, 0, 8], sizes = [2, 16, 8], strides = [1, 1, 1]} : vector<2x16x32xbf16> to vector<2x16x8xbf16>
    "tpu.trace_start"() <{level = 10 : i32, message = "bqk,bkd->bqd"}> : () -> ()
    %cst_77 = arith.constant dense<0.000000e+00> : vector<2x16x8xf32>
    %207 = tpu.matmul %205, %206, %cst_77 {dimension_numbers = #tpu.dot_dimension_numbers<[2], [1], [1], [2], [0, 0, 0, 1, 1, 2], [0], [0]>} : vector<2x16x16xbf16>, vector<2x16x8xbf16>, vector<2x16x8xf32> -> vector<2x16x8xf32>
    "tpu.trace_stop"() : () -> ()
    %208 = vector.extract_strided_slice %173 {offsets = [0, 0, 16], sizes = [2, 16, 8], strides = [1, 1, 1]} : vector<2x16x32xbf16> to vector<2x16x8xbf16>
    %209 = vector.extract_strided_slice %174 {offsets = [0, 16, 0], sizes = [2, 8, 16], strides = [1, 1, 1]} : vector<2x32x16xbf16> to vector<2x8x16xbf16>
    "tpu.trace_start"() <{level = 10 : i32, message = "bqd,bdk->bqk"}> : () -> ()
    %cst_78 = arith.constant dense<0.000000e+00> : vector<2x16x16xf32>
    %210 = tpu.matmul %208, %209, %cst_78 {dimension_numbers = #tpu.dot_dimension_numbers<[2], [1], [1], [2], [0, 0, 0, 1, 1, 2], [0], [0]>} : vector<2x16x8xbf16>, vector<2x8x16xbf16>, vector<2x16x16xf32> -> vector<2x16x16xf32>
    "tpu.trace_stop"() : () -> ()
    %cst_79 = arith.constant dense<0xFF800000> : vector<2x16xf32>
    %211 = vector.multi_reduction <maximumf>, %210, %cst_79 [2] : vector<2x16x16xf32> to vector<2x16xf32>
    %212 = vector.shape_cast %211 : vector<2x16xf32> to vector<2x16x1xf32>
    %213 = vector.broadcast %212 : vector<2x16x1xf32> to vector<2x16x16xf32>
    %214 = arith.subf %210, %213 : vector<2x16x16xf32>
    %215 = math.exp %214 : vector<2x16x16xf32>
    %cst_80 = arith.constant dense<0.000000e+00> : vector<2x16xf32>
    %216 = vector.multi_reduction <add>, %215, %cst_80 [2] : vector<2x16x16xf32> to vector<2x16xf32>
    %217 = vector.shape_cast %216 : vector<2x16xf32> to vector<2x16x1xf32>
    %218 = tpu.reciprocal %217 {approx = true} : vector<2x16x1xf32> -> vector<2x16x1xf32>
    %219 = vector.broadcast %218 : vector<2x16x1xf32> to vector<2x16x16xf32>
    %220 = arith.mulf %215, %219 : vector<2x16x16xf32>
    %221 = arith.truncf %220 : vector<2x16x16xf32> to vector<2x16x16xbf16>
    %222 = vector.extract_strided_slice %175 {offsets = [0, 0, 16], sizes = [2, 16, 8], strides = [1, 1, 1]} : vector<2x16x32xbf16> to vector<2x16x8xbf16>
    "tpu.trace_start"() <{level = 10 : i32, message = "bqk,bkd->bqd"}> : () -> ()
    %cst_81 = arith.constant dense<0.000000e+00> : vector<2x16x8xf32>
    %223 = tpu.matmul %221, %222, %cst_81 {dimension_numbers = #tpu.dot_dimension_numbers<[2], [1], [1], [2], [0, 0, 0, 1, 1, 2], [0], [0]>} : vector<2x16x16xbf16>, vector<2x16x8xbf16>, vector<2x16x8xf32> -> vector<2x16x8xf32>
    "tpu.trace_stop"() : () -> ()
    %224 = vector.extract_strided_slice %173 {offsets = [0, 0, 24], sizes = [2, 16, 8], strides = [1, 1, 1]} : vector<2x16x32xbf16> to vector<2x16x8xbf16>
    %225 = vector.extract_strided_slice %174 {offsets = [0, 24, 0], sizes = [2, 8, 16], strides = [1, 1, 1]} : vector<2x32x16xbf16> to vector<2x8x16xbf16>
    "tpu.trace_start"() <{level = 10 : i32, message = "bqd,bdk->bqk"}> : () -> ()
    %cst_82 = arith.constant dense<0.000000e+00> : vector<2x16x16xf32>
    %226 = tpu.matmul %224, %225, %cst_82 {dimension_numbers = #tpu.dot_dimension_numbers<[2], [1], [1], [2], [0, 0, 0, 1, 1, 2], [0], [0]>} : vector<2x16x8xbf16>, vector<2x8x16xbf16>, vector<2x16x16xf32> -> vector<2x16x16xf32>
    "tpu.trace_stop"() : () -> ()
    %cst_83 = arith.constant dense<0xFF800000> : vector<2x16xf32>
    %227 = vector.multi_reduction <maximumf>, %226, %cst_83 [2] : vector<2x16x16xf32> to vector<2x16xf32>
    %228 = vector.shape_cast %227 : vector<2x16xf32> to vector<2x16x1xf32>
    %229 = vector.broadcast %228 : vector<2x16x1xf32> to vector<2x16x16xf32>
    %230 = arith.subf %226, %229 : vector<2x16x16xf32>
    %231 = math.exp %230 : vector<2x16x16xf32>
    %cst_84 = arith.constant dense<0.000000e+00> : vector<2x16xf32>
    %232 = vector.multi_reduction <add>, %231, %cst_84 [2] : vector<2x16x16xf32> to vector<2x16xf32>
    %233 = vector.shape_cast %232 : vector<2x16xf32> to vector<2x16x1xf32>
    %234 = tpu.reciprocal %233 {approx = true} : vector<2x16x1xf32> -> vector<2x16x1xf32>
    %235 = vector.broadcast %234 : vector<2x16x1xf32> to vector<2x16x16xf32>
    %236 = arith.mulf %231, %235 : vector<2x16x16xf32>
    %237 = arith.truncf %236 : vector<2x16x16xf32> to vector<2x16x16xbf16>
    %238 = vector.extract_strided_slice %175 {offsets = [0, 0, 24], sizes = [2, 16, 8], strides = [1, 1, 1]} : vector<2x16x32xbf16> to vector<2x16x8xbf16>
    "tpu.trace_start"() <{level = 10 : i32, message = "bqk,bkd->bqd"}> : () -> ()
    %cst_85 = arith.constant dense<0.000000e+00> : vector<2x16x8xf32>
    %239 = tpu.matmul %237, %238, %cst_85 {dimension_numbers = #tpu.dot_dimension_numbers<[2], [1], [1], [2], [0, 0, 0, 1, 1, 2], [0], [0]>} : vector<2x16x16xbf16>, vector<2x16x8xbf16>, vector<2x16x8xf32> -> vector<2x16x8xf32>
    "tpu.trace_stop"() : () -> ()
    %240 = tpu.concatenate %191, %207, %223, %239 in 2 : vector<2x16x8xf32>, vector<2x16x8xf32>, vector<2x16x8xf32>, vector<2x16x8xf32> -> vector<2x16x32xf32>
    %241 = vector.shape_cast %240 : vector<2x16x32xf32> to vector<32x32xf32>
    %242 = arith.truncf %241 : vector<32x32xf32> to vector<32x32xbf16>
    %cst_86 = arith.constant dense<0.000000e+00> : vector<32x32xf32>
    %243 = tpu.matmul %242, %170, %cst_86 {dimension_numbers = #tpu.dot_dimension_numbers<[1], [0], [0], [1], [0, 0, 1, 1], [], []>} : vector<32x32xbf16>, vector<32x32xbf16>, vector<32x32xf32> -> vector<32x32xf32>
    %244 = vector.broadcast %171 : vector<1x32xf32> to vector<32x32xf32>
    %245 = arith.addf %243, %244 : vector<32x32xf32>
    %246 = arith.addf %158, %245 : vector<32x32xf32>
    %c0_87 = arith.constant 0 : index
    %c0_88 = arith.constant 0 : index
    %247 = vector.load %arg19[%c0_87, %c0_88] : memref<1x32xf32, #tpu.memory_space<vmem>>, vector<1x32xf32>
    %c0_89 = arith.constant 0 : index
    %c0_90 = arith.constant 0 : index
    %248 = vector.load %arg20[%c0_89, %c0_90] : memref<1x32xf32, #tpu.memory_space<vmem>>, vector<1x32xf32>
    %cst_91 = arith.constant dense<0.000000e+00> : vector<32xf32>
    %249 = vector.multi_reduction <add>, %246, %cst_91 [1] : vector<32x32xf32> to vector<32xf32>
    %250 = vector.shape_cast %249 : vector<32xf32> to vector<32x1xf32>
    %cst_92 = arith.constant 3.200000e+01 : f32
    %251 = vector.broadcast %cst_92 : f32 to vector<32x1xf32>
    %252 = arith.divf %250, %251 : vector<32x1xf32>
    %253 = vector.broadcast %252 : vector<32x1xf32> to vector<32x32xf32>
    %254 = arith.subf %246, %253 : vector<32x32xf32>
    %255 = arith.mulf %254, %254 : vector<32x32xf32>
    %cst_93 = arith.constant dense<0.000000e+00> : vector<32xf32>
    %256 = vector.multi_reduction <add>, %255, %cst_93 [1] : vector<32x32xf32> to vector<32xf32>
    %257 = vector.shape_cast %256 : vector<32xf32> to vector<32x1xf32>
    %cst_94 = arith.constant 3.200000e+01 : f32
    %258 = vector.broadcast %cst_94 : f32 to vector<32x1xf32>
    %259 = arith.divf %257, %258 : vector<32x1xf32>
    %260 = vector.broadcast %252 : vector<32x1xf32> to vector<32x32xf32>
    %261 = arith.subf %246, %260 : vector<32x32xf32>
    %cst_95 = arith.constant 9.99999974E-6 : f32
    %262 = vector.broadcast %cst_95 : f32 to vector<32x1xf32>
    %263 = arith.addf %259, %262 : vector<32x1xf32>
    %264 = math.rsqrt %263 : vector<32x1xf32>
    %265 = vector.broadcast %264 : vector<32x1xf32> to vector<32x32xf32>
    %266 = arith.mulf %261, %265 : vector<32x32xf32>
    %267 = vector.broadcast %247 : vector<1x32xf32> to vector<32x32xf32>
    %268 = arith.mulf %266, %267 : vector<32x32xf32>
    %269 = vector.broadcast %248 : vector<1x32xf32> to vector<32x32xf32>
    %270 = arith.addf %268, %269 : vector<32x32xf32>
    %271 = arith.truncf %270 : vector<32x32xf32> to vector<32x32xbf16>
    %c0_96 = arith.constant 0 : index
    %c0_97 = arith.constant 0 : index
    %272 = vector.load %arg21[%c0_96, %c0_97] : memref<32x64xbf16, #tpu.memory_space<vmem>>, vector<32x64xbf16>
    %cst_98 = arith.constant dense<0.000000e+00> : vector<32x64xf32>
    %273 = tpu.matmul %271, %272, %cst_98 {dimension_numbers = #tpu.dot_dimension_numbers<[1], [0], [0], [1], [0, 0, 1, 1], [], []>} : vector<32x32xbf16>, vector<32x64xbf16>, vector<32x64xf32> -> vector<32x64xf32>
    %c0_99 = arith.constant 0 : index
    %c0_100 = arith.constant 0 : index
    %274 = vector.load %arg22[%c0_99, %c0_100] : memref<1x64xf32, #tpu.memory_space<vmem>>, vector<1x64xf32>
    %275 = vector.broadcast %274 : vector<1x64xf32> to vector<32x64xf32>
    %276 = arith.addf %273, %275 : vector<32x64xf32>
    %cst_101 = arith.constant 0.000000e+00 : f32
    %277 = vector.broadcast %cst_101 : f32 to vector<32x64xf32>
    %278 = arith.maximumf %276, %277 : vector<32x64xf32>
    %279 = arith.truncf %278 : vector<32x64xf32> to vector<32x64xbf16>
    %c0_102 = arith.constant 0 : index
    %c0_103 = arith.constant 0 : index
    %280 = vector.load %arg23[%c0_102, %c0_103] : memref<64x32xbf16, #tpu.memory_space<vmem>>, vector<64x32xbf16>
    %cst_104 = arith.constant dense<0.000000e+00> : vector<32x32xf32>
    %281 = tpu.matmul %279, %280, %cst_104 {dimension_numbers = #tpu.dot_dimension_numbers<[1], [0], [0], [1], [0, 0, 1, 1], [], []>} : vector<32x64xbf16>, vector<64x32xbf16>, vector<32x32xf32> -> vector<32x32xf32>
    %282 = arith.addf %270, %281 : vector<32x32xf32>
    %c0_105 = arith.constant 0 : index
    %c0_106 = arith.constant 0 : index
    %283 = vector.load %arg24[%c0_105, %c0_106] : memref<1x32xf32, #tpu.memory_space<vmem>>, vector<1x32xf32>
    %284 = vector.broadcast %283 : vector<1x32xf32> to vector<32x32xf32>
    %285 = arith.addf %282, %284 : vector<32x32xf32>
    %c0_107 = arith.constant 0 : index
    %c0_108 = arith.constant 0 : index
    %286 = vector.load %arg25[%c0_107, %c0_108] : memref<1x32xf32, #tpu.memory_space<vmem>>, vector<1x32xf32>
    %c0_109 = arith.constant 0 : index
    %c0_110 = arith.constant 0 : index
    %287 = vector.load %arg26[%c0_109, %c0_110] : memref<1x32xf32, #tpu.memory_space<vmem>>, vector<1x32xf32>
    %cst_111 = arith.constant dense<0.000000e+00> : vector<32xf32>
    %288 = vector.multi_reduction <add>, %285, %cst_111 [1] : vector<32x32xf32> to vector<32xf32>
    %289 = vector.shape_cast %288 : vector<32xf32> to vector<32x1xf32>
    %cst_112 = arith.constant 3.200000e+01 : f32
    %290 = vector.broadcast %cst_112 : f32 to vector<32x1xf32>
    %291 = arith.divf %289, %290 : vector<32x1xf32>
    %292 = vector.broadcast %291 : vector<32x1xf32> to vector<32x32xf32>
    %293 = arith.subf %285, %292 : vector<32x32xf32>
    %294 = arith.mulf %293, %293 : vector<32x32xf32>
    %cst_113 = arith.constant dense<0.000000e+00> : vector<32xf32>
    %295 = vector.multi_reduction <add>, %294, %cst_113 [1] : vector<32x32xf32> to vector<32xf32>
    %296 = vector.shape_cast %295 : vector<32xf32> to vector<32x1xf32>
    %cst_114 = arith.constant 3.200000e+01 : f32
    %297 = vector.broadcast %cst_114 : f32 to vector<32x1xf32>
    %298 = arith.divf %296, %297 : vector<32x1xf32>
    %299 = vector.broadcast %291 : vector<32x1xf32> to vector<32x32xf32>
    %300 = arith.subf %285, %299 : vector<32x32xf32>
    %cst_115 = arith.constant 9.99999974E-6 : f32
    %301 = vector.broadcast %cst_115 : f32 to vector<32x1xf32>
    %302 = arith.addf %298, %301 : vector<32x1xf32>
    %303 = math.rsqrt %302 : vector<32x1xf32>
    %304 = vector.broadcast %303 : vector<32x1xf32> to vector<32x32xf32>
    %305 = arith.mulf %300, %304 : vector<32x32xf32>
    %306 = vector.broadcast %286 : vector<1x32xf32> to vector<32x32xf32>
    %307 = arith.mulf %305, %306 : vector<32x32xf32>
    %308 = vector.broadcast %287 : vector<1x32xf32> to vector<32x32xf32>
    %309 = arith.addf %307, %308 : vector<32x32xf32>
    %310 = arith.truncf %309 : vector<32x32xf32> to vector<32x32xbf16>
    %c0_116 = arith.constant 0 : index
    %c0_117 = arith.constant 0 : index
    %311 = vector.load %arg29[%c0_116, %c0_117] : memref<32x64xbf16, #tpu.memory_space<vmem>>, vector<32x64xbf16>
    %cst_118 = arith.constant dense<0.000000e+00> : vector<32x64xf32>
    %312 = tpu.matmul %310, %311, %cst_118 {dimension_numbers = #tpu.dot_dimension_numbers<[1], [0], [0], [1], [0, 0, 1, 1], [], []>} : vector<32x32xbf16>, vector<32x64xbf16>, vector<32x64xf32> -> vector<32x64xf32>
    %313 = vector.shape_cast %312 : vector<32x64xf32> to vector<2x16x64xf32>
    %c0_119 = arith.constant 0 : index
    %c0_120 = arith.constant 0 : index
    %314 = vector.load %arg30[%c0_119, %c0_120] : memref<16x64xf32, #tpu.memory_space<vmem>>, vector<16x64xf32>
    %315 = vector.shape_cast %314 : vector<16x64xf32> to vector<1x16x64xf32>
    %316 = vector.broadcast %315 : vector<1x16x64xf32> to vector<2x16x64xf32>
    %317 = arith.addf %313, %316 : vector<2x16x64xf32>
    %c0_121 = arith.constant 0 : index
    %c0_122 = arith.constant 0 : index
    %318 = vector.load %arg28[%c0_121, %c0_122] : memref<32x32xf32, #tpu.memory_space<vmem>>, vector<32x32xf32>
    %319 = vector.shape_cast %318 : vector<32x32xf32> to vector<1x32x32xf32>
    %320 = vector.shape_cast %319 : vector<1x32x32xf32> to vector<1x32x32xf32>
    %321 = vector.broadcast %320 : vector<1x32x32xf32> to vector<2x32x32xf32>
    %322 = vector.extract_strided_slice %317 {offsets = [0, 0, 0], sizes = [2, 16, 32], strides = [1, 1, 1]} : vector<2x16x64xf32> to vector<2x16x32xf32>
    %323 = vector.extract_strided_slice %317 {offsets = [0, 0, 32], sizes = [2, 16, 32], strides = [1, 1, 1]} : vector<2x16x64xf32> to vector<2x16x32xf32>
    %c0_123 = arith.constant 0 : index
    %c0_124 = arith.constant 0 : index
    %324 = vector.load %arg31[%c0_123, %c0_124] : memref<32x32xbf16, #tpu.memory_space<vmem>>, vector<32x32xbf16>
    %c0_125 = arith.constant 0 : index
    %c0_126 = arith.constant 0 : index
    %325 = vector.load %arg32[%c0_125, %c0_126] : memref<1x32xf32, #tpu.memory_space<vmem>>, vector<1x32xf32>
    %326 = tpu.transpose %322, [0, 2, 1] : vector<2x16x32xf32> -> vector<2x32x16xf32>
    %327 = arith.truncf %321 : vector<2x32x32xf32> to vector<2x32x32xbf16>
    %328 = arith.truncf %326 : vector<2x32x16xf32> to vector<2x32x16xbf16>
    %329 = arith.truncf %323 : vector<2x16x32xf32> to vector<2x16x32xbf16>
    %330 = vector.extract_strided_slice %327 {offsets = [0, 0, 0], sizes = [2, 32, 8], strides = [1, 1, 1]} : vector<2x32x32xbf16> to vector<2x32x8xbf16>
    %331 = vector.extract_strided_slice %328 {offsets = [0, 0, 0], sizes = [2, 8, 16], strides = [1, 1, 1]} : vector<2x32x16xbf16> to vector<2x8x16xbf16>
    "tpu.trace_start"() <{level = 10 : i32, message = "bqd,bdk->bqk"}> : () -> ()
    %cst_127 = arith.constant dense<0.000000e+00> : vector<2x32x16xf32>
    %332 = tpu.matmul %330, %331, %cst_127 {dimension_numbers = #tpu.dot_dimension_numbers<[2], [1], [1], [2], [0, 0, 0, 1, 1, 2], [0], [0]>} : vector<2x32x8xbf16>, vector<2x8x16xbf16>, vector<2x32x16xf32> -> vector<2x32x16xf32>
    "tpu.trace_stop"() : () -> ()
    %cst_128 = arith.constant dense<0xFF800000> : vector<2x32xf32>
    %333 = vector.multi_reduction <maximumf>, %332, %cst_128 [2] : vector<2x32x16xf32> to vector<2x32xf32>
    %334 = vector.shape_cast %333 : vector<2x32xf32> to vector<2x32x1xf32>
    %335 = vector.broadcast %334 : vector<2x32x1xf32> to vector<2x32x16xf32>
    %336 = arith.subf %332, %335 : vector<2x32x16xf32>
    %337 = math.exp %336 : vector<2x32x16xf32>
    %cst_129 = arith.constant dense<0.000000e+00> : vector<2x32xf32>
    %338 = vector.multi_reduction <add>, %337, %cst_129 [2] : vector<2x32x16xf32> to vector<2x32xf32>
    %339 = vector.shape_cast %338 : vector<2x32xf32> to vector<2x32x1xf32>
    %340 = tpu.reciprocal %339 {approx = true} : vector<2x32x1xf32> -> vector<2x32x1xf32>
    %341 = vector.broadcast %340 : vector<2x32x1xf32> to vector<2x32x16xf32>
    %342 = arith.mulf %337, %341 : vector<2x32x16xf32>
    %343 = arith.truncf %342 : vector<2x32x16xf32> to vector<2x32x16xbf16>
    %344 = vector.extract_strided_slice %329 {offsets = [0, 0, 0], sizes = [2, 16, 8], strides = [1, 1, 1]} : vector<2x16x32xbf16> to vector<2x16x8xbf16>
    "tpu.trace_start"() <{level = 10 : i32, message = "bqk,bkd->bqd"}> : () -> ()
    %cst_130 = arith.constant dense<0.000000e+00> : vector<2x32x8xf32>
    %345 = tpu.matmul %343, %344, %cst_130 {dimension_numbers = #tpu.dot_dimension_numbers<[2], [1], [1], [2], [0, 0, 0, 1, 1, 2], [0], [0]>} : vector<2x32x16xbf16>, vector<2x16x8xbf16>, vector<2x32x8xf32> -> vector<2x32x8xf32>
    "tpu.trace_stop"() : () -> ()
    %346 = vector.extract_strided_slice %327 {offsets = [0, 0, 8], sizes = [2, 32, 8], strides = [1, 1, 1]} : vector<2x32x32xbf16> to vector<2x32x8xbf16>
    %347 = vector.extract_strided_slice %328 {offsets = [0, 8, 0], sizes = [2, 8, 16], strides = [1, 1, 1]} : vector<2x32x16xbf16> to vector<2x8x16xbf16>
    "tpu.trace_start"() <{level = 10 : i32, message = "bqd,bdk->bqk"}> : () -> ()
    %cst_131 = arith.constant dense<0.000000e+00> : vector<2x32x16xf32>
    %348 = tpu.matmul %346, %347, %cst_131 {dimension_numbers = #tpu.dot_dimension_numbers<[2], [1], [1], [2], [0, 0, 0, 1, 1, 2], [0], [0]>} : vector<2x32x8xbf16>, vector<2x8x16xbf16>, vector<2x32x16xf32> -> vector<2x32x16xf32>
    "tpu.trace_stop"() : () -> ()
    %cst_132 = arith.constant dense<0xFF800000> : vector<2x32xf32>
    %349 = vector.multi_reduction <maximumf>, %348, %cst_132 [2] : vector<2x32x16xf32> to vector<2x32xf32>
    %350 = vector.shape_cast %349 : vector<2x32xf32> to vector<2x32x1xf32>
    %351 = vector.broadcast %350 : vector<2x32x1xf32> to vector<2x32x16xf32>
    %352 = arith.subf %348, %351 : vector<2x32x16xf32>
    %353 = math.exp %352 : vector<2x32x16xf32>
    %cst_133 = arith.constant dense<0.000000e+00> : vector<2x32xf32>
    %354 = vector.multi_reduction <add>, %353, %cst_133 [2] : vector<2x32x16xf32> to vector<2x32xf32>
    %355 = vector.shape_cast %354 : vector<2x32xf32> to vector<2x32x1xf32>
    %356 = tpu.reciprocal %355 {approx = true} : vector<2x32x1xf32> -> vector<2x32x1xf32>
    %357 = vector.broadcast %356 : vector<2x32x1xf32> to vector<2x32x16xf32>
    %358 = arith.mulf %353, %357 : vector<2x32x16xf32>
    %359 = arith.truncf %358 : vector<2x32x16xf32> to vector<2x32x16xbf16>
    %360 = vector.extract_strided_slice %329 {offsets = [0, 0, 8], sizes = [2, 16, 8], strides = [1, 1, 1]} : vector<2x16x32xbf16> to vector<2x16x8xbf16>
    "tpu.trace_start"() <{level = 10 : i32, message = "bqk,bkd->bqd"}> : () -> ()
    %cst_134 = arith.constant dense<0.000000e+00> : vector<2x32x8xf32>
    %361 = tpu.matmul %359, %360, %cst_134 {dimension_numbers = #tpu.dot_dimension_numbers<[2], [1], [1], [2], [0, 0, 0, 1, 1, 2], [0], [0]>} : vector<2x32x16xbf16>, vector<2x16x8xbf16>, vector<2x32x8xf32> -> vector<2x32x8xf32>
    "tpu.trace_stop"() : () -> ()
    %362 = vector.extract_strided_slice %327 {offsets = [0, 0, 16], sizes = [2, 32, 8], strides = [1, 1, 1]} : vector<2x32x32xbf16> to vector<2x32x8xbf16>
    %363 = vector.extract_strided_slice %328 {offsets = [0, 16, 0], sizes = [2, 8, 16], strides = [1, 1, 1]} : vector<2x32x16xbf16> to vector<2x8x16xbf16>
    "tpu.trace_start"() <{level = 10 : i32, message = "bqd,bdk->bqk"}> : () -> ()
    %cst_135 = arith.constant dense<0.000000e+00> : vector<2x32x16xf32>
    %364 = tpu.matmul %362, %363, %cst_135 {dimension_numbers = #tpu.dot_dimension_numbers<[2], [1], [1], [2], [0, 0, 0, 1, 1, 2], [0], [0]>} : vector<2x32x8xbf16>, vector<2x8x16xbf16>, vector<2x32x16xf32> -> vector<2x32x16xf32>
    "tpu.trace_stop"() : () -> ()
    %cst_136 = arith.constant dense<0xFF800000> : vector<2x32xf32>
    %365 = vector.multi_reduction <maximumf>, %364, %cst_136 [2] : vector<2x32x16xf32> to vector<2x32xf32>
    %366 = vector.shape_cast %365 : vector<2x32xf32> to vector<2x32x1xf32>
    %367 = vector.broadcast %366 : vector<2x32x1xf32> to vector<2x32x16xf32>
    %368 = arith.subf %364, %367 : vector<2x32x16xf32>
    %369 = math.exp %368 : vector<2x32x16xf32>
    %cst_137 = arith.constant dense<0.000000e+00> : vector<2x32xf32>
    %370 = vector.multi_reduction <add>, %369, %cst_137 [2] : vector<2x32x16xf32> to vector<2x32xf32>
    %371 = vector.shape_cast %370 : vector<2x32xf32> to vector<2x32x1xf32>
    %372 = tpu.reciprocal %371 {approx = true} : vector<2x32x1xf32> -> vector<2x32x1xf32>
    %373 = vector.broadcast %372 : vector<2x32x1xf32> to vector<2x32x16xf32>
    %374 = arith.mulf %369, %373 : vector<2x32x16xf32>
    %375 = arith.truncf %374 : vector<2x32x16xf32> to vector<2x32x16xbf16>
    %376 = vector.extract_strided_slice %329 {offsets = [0, 0, 16], sizes = [2, 16, 8], strides = [1, 1, 1]} : vector<2x16x32xbf16> to vector<2x16x8xbf16>
    "tpu.trace_start"() <{level = 10 : i32, message = "bqk,bkd->bqd"}> : () -> ()
    %cst_138 = arith.constant dense<0.000000e+00> : vector<2x32x8xf32>
    %377 = tpu.matmul %375, %376, %cst_138 {dimension_numbers = #tpu.dot_dimension_numbers<[2], [1], [1], [2], [0, 0, 0, 1, 1, 2], [0], [0]>} : vector<2x32x16xbf16>, vector<2x16x8xbf16>, vector<2x32x8xf32> -> vector<2x32x8xf32>
    "tpu.trace_stop"() : () -> ()
    %378 = vector.extract_strided_slice %327 {offsets = [0, 0, 24], sizes = [2, 32, 8], strides = [1, 1, 1]} : vector<2x32x32xbf16> to vector<2x32x8xbf16>
    %379 = vector.extract_strided_slice %328 {offsets = [0, 24, 0], sizes = [2, 8, 16], strides = [1, 1, 1]} : vector<2x32x16xbf16> to vector<2x8x16xbf16>
    "tpu.trace_start"() <{level = 10 : i32, message = "bqd,bdk->bqk"}> : () -> ()
    %cst_139 = arith.constant dense<0.000000e+00> : vector<2x32x16xf32>
    %380 = tpu.matmul %378, %379, %cst_139 {dimension_numbers = #tpu.dot_dimension_numbers<[2], [1], [1], [2], [0, 0, 0, 1, 1, 2], [0], [0]>} : vector<2x32x8xbf16>, vector<2x8x16xbf16>, vector<2x32x16xf32> -> vector<2x32x16xf32>
    "tpu.trace_stop"() : () -> ()
    %cst_140 = arith.constant dense<0xFF800000> : vector<2x32xf32>
    %381 = vector.multi_reduction <maximumf>, %380, %cst_140 [2] : vector<2x32x16xf32> to vector<2x32xf32>
    %382 = vector.shape_cast %381 : vector<2x32xf32> to vector<2x32x1xf32>
    %383 = vector.broadcast %382 : vector<2x32x1xf32> to vector<2x32x16xf32>
    %384 = arith.subf %380, %383 : vector<2x32x16xf32>
    %385 = math.exp %384 : vector<2x32x16xf32>
    %cst_141 = arith.constant dense<0.000000e+00> : vector<2x32xf32>
    %386 = vector.multi_reduction <add>, %385, %cst_141 [2] : vector<2x32x16xf32> to vector<2x32xf32>
    %387 = vector.shape_cast %386 : vector<2x32xf32> to vector<2x32x1xf32>
    %388 = tpu.reciprocal %387 {approx = true} : vector<2x32x1xf32> -> vector<2x32x1xf32>
    %389 = vector.broadcast %388 : vector<2x32x1xf32> to vector<2x32x16xf32>
    %390 = arith.mulf %385, %389 : vector<2x32x16xf32>
    %391 = arith.truncf %390 : vector<2x32x16xf32> to vector<2x32x16xbf16>
    %392 = vector.extract_strided_slice %329 {offsets = [0, 0, 24], sizes = [2, 16, 8], strides = [1, 1, 1]} : vector<2x16x32xbf16> to vector<2x16x8xbf16>
    "tpu.trace_start"() <{level = 10 : i32, message = "bqk,bkd->bqd"}> : () -> ()
    %cst_142 = arith.constant dense<0.000000e+00> : vector<2x32x8xf32>
    %393 = tpu.matmul %391, %392, %cst_142 {dimension_numbers = #tpu.dot_dimension_numbers<[2], [1], [1], [2], [0, 0, 0, 1, 1, 2], [0], [0]>} : vector<2x32x16xbf16>, vector<2x16x8xbf16>, vector<2x32x8xf32> -> vector<2x32x8xf32>
    "tpu.trace_stop"() : () -> ()
    %394 = tpu.concatenate %345, %361, %377, %393 in 2 : vector<2x32x8xf32>, vector<2x32x8xf32>, vector<2x32x8xf32>, vector<2x32x8xf32> -> vector<2x32x32xf32>
    %395 = vector.shape_cast %394 : vector<2x32x32xf32> to vector<64x32xf32>
    %396 = arith.truncf %395 : vector<64x32xf32> to vector<64x32xbf16>
    %cst_143 = arith.constant dense<0.000000e+00> : vector<64x32xf32>
    %397 = tpu.matmul %396, %324, %cst_143 {dimension_numbers = #tpu.dot_dimension_numbers<[1], [0], [0], [1], [0, 0, 1, 1], [], []>} : vector<64x32xbf16>, vector<32x32xbf16>, vector<64x32xf32> -> vector<64x32xf32>
    %398 = vector.broadcast %325 : vector<1x32xf32> to vector<64x32xf32>
    %399 = arith.addf %397, %398 : vector<64x32xf32>
    %c0_144 = arith.constant 0 : index
    %c0_145 = arith.constant 0 : index
    %400 = vector.load %arg27[%c0_144, %c0_145] : memref<32x32xf32, #tpu.memory_space<vmem>>, vector<32x32xf32>
    %401 = vector.shape_cast %400 : vector<32x32xf32> to vector<1x32x32xf32>
    %402 = vector.shape_cast %401 : vector<1x32x32xf32> to vector<1x32x32xf32>
    %403 = vector.broadcast %402 : vector<1x32x32xf32> to vector<2x32x32xf32>
    %404 = vector.shape_cast %403 : vector<2x32x32xf32> to vector<64x32xf32>
    %405 = arith.addf %404, %399 : vector<64x32xf32>
    %c0_146 = arith.constant 0 : index
    %c0_147 = arith.constant 0 : index
    %406 = vector.load %arg33[%c0_146, %c0_147] : memref<1x32xf32, #tpu.memory_space<vmem>>, vector<1x32xf32>
    %c0_148 = arith.constant 0 : index
    %c0_149 = arith.constant 0 : index
    %407 = vector.load %arg34[%c0_148, %c0_149] : memref<1x32xf32, #tpu.memory_space<vmem>>, vector<1x32xf32>
    %cst_150 = arith.constant dense<0.000000e+00> : vector<64xf32>
    %408 = vector.multi_reduction <add>, %405, %cst_150 [1] : vector<64x32xf32> to vector<64xf32>
    %409 = vector.shape_cast %408 : vector<64xf32> to vector<64x1xf32>
    %cst_151 = arith.constant 3.200000e+01 : f32
    %410 = vector.broadcast %cst_151 : f32 to vector<64x1xf32>
    %411 = arith.divf %409, %410 : vector<64x1xf32>
    %412 = vector.broadcast %411 : vector<64x1xf32> to vector<64x32xf32>
    %413 = arith.subf %405, %412 : vector<64x32xf32>
    %414 = arith.mulf %413, %413 : vector<64x32xf32>
    %cst_152 = arith.constant dense<0.000000e+00> : vector<64xf32>
    %415 = vector.multi_reduction <add>, %414, %cst_152 [1] : vector<64x32xf32> to vector<64xf32>
    %416 = vector.shape_cast %415 : vector<64xf32> to vector<64x1xf32>
    %cst_153 = arith.constant 3.200000e+01 : f32
    %417 = vector.broadcast %cst_153 : f32 to vector<64x1xf32>
    %418 = arith.divf %416, %417 : vector<64x1xf32>
    %419 = vector.broadcast %411 : vector<64x1xf32> to vector<64x32xf32>
    %420 = arith.subf %405, %419 : vector<64x32xf32>
    %cst_154 = arith.constant 9.99999974E-6 : f32
    %421 = vector.broadcast %cst_154 : f32 to vector<64x1xf32>
    %422 = arith.addf %418, %421 : vector<64x1xf32>
    %423 = math.rsqrt %422 : vector<64x1xf32>
    %424 = vector.broadcast %423 : vector<64x1xf32> to vector<64x32xf32>
    %425 = arith.mulf %420, %424 : vector<64x32xf32>
    %426 = vector.broadcast %406 : vector<1x32xf32> to vector<64x32xf32>
    %427 = arith.mulf %425, %426 : vector<64x32xf32>
    %428 = vector.broadcast %407 : vector<1x32xf32> to vector<64x32xf32>
    %429 = arith.addf %427, %428 : vector<64x32xf32>
    %430 = arith.truncf %429 : vector<64x32xf32> to vector<64x32xbf16>
    %c0_155 = arith.constant 0 : index
    %c0_156 = arith.constant 0 : index
    %431 = vector.load %arg35[%c0_155, %c0_156] : memref<32x64xbf16, #tpu.memory_space<vmem>>, vector<32x64xbf16>
    %cst_157 = arith.constant dense<0.000000e+00> : vector<64x64xf32>
    %432 = tpu.matmul %430, %431, %cst_157 {dimension_numbers = #tpu.dot_dimension_numbers<[1], [0], [0], [1], [0, 0, 1, 1], [], []>} : vector<64x32xbf16>, vector<32x64xbf16>, vector<64x64xf32> -> vector<64x64xf32>
    %c0_158 = arith.constant 0 : index
    %c0_159 = arith.constant 0 : index
    %433 = vector.load %arg36[%c0_158, %c0_159] : memref<1x64xf32, #tpu.memory_space<vmem>>, vector<1x64xf32>
    %434 = vector.broadcast %433 : vector<1x64xf32> to vector<64x64xf32>
    %435 = arith.addf %432, %434 : vector<64x64xf32>
    %cst_160 = arith.constant 0.000000e+00 : f32
    %436 = vector.broadcast %cst_160 : f32 to vector<64x64xf32>
    %437 = arith.maximumf %435, %436 : vector<64x64xf32>
    %438 = arith.truncf %437 : vector<64x64xf32> to vector<64x64xbf16>
    %c0_161 = arith.constant 0 : index
    %c0_162 = arith.constant 0 : index
    %439 = vector.load %arg37[%c0_161, %c0_162] : memref<64x32xbf16, #tpu.memory_space<vmem>>, vector<64x32xbf16>
    %cst_163 = arith.constant dense<0.000000e+00> : vector<64x32xf32>
    %440 = tpu.matmul %438, %439, %cst_163 {dimension_numbers = #tpu.dot_dimension_numbers<[1], [0], [0], [1], [0, 0, 1, 1], [], []>} : vector<64x64xbf16>, vector<64x32xbf16>, vector<64x32xf32> -> vector<64x32xf32>
    %441 = arith.addf %429, %440 : vector<64x32xf32>
    %c0_164 = arith.constant 0 : index
    %c0_165 = arith.constant 0 : index
    %442 = vector.load %arg38[%c0_164, %c0_165] : memref<1x32xf32, #tpu.memory_space<vmem>>, vector<1x32xf32>
    %443 = vector.broadcast %442 : vector<1x32xf32> to vector<64x32xf32>
    %444 = arith.addf %441, %443 : vector<64x32xf32>
    %c0_166 = arith.constant 0 : index
    %c0_167 = arith.constant 0 : index
    %445 = vector.load %arg39[%c0_166, %c0_167] : memref<1x32xf32, #tpu.memory_space<vmem>>, vector<1x32xf32>
    %c0_168 = arith.constant 0 : index
    %c0_169 = arith.constant 0 : index
    %446 = vector.load %arg40[%c0_168, %c0_169] : memref<1x32xf32, #tpu.memory_space<vmem>>, vector<1x32xf32>
    %cst_170 = arith.constant dense<0.000000e+00> : vector<64xf32>
    %447 = vector.multi_reduction <add>, %444, %cst_170 [1] : vector<64x32xf32> to vector<64xf32>
    %448 = vector.shape_cast %447 : vector<64xf32> to vector<64x1xf32>
    %cst_171 = arith.constant 3.200000e+01 : f32
    %449 = vector.broadcast %cst_171 : f32 to vector<64x1xf32>
    %450 = arith.divf %448, %449 : vector<64x1xf32>
    %451 = vector.broadcast %450 : vector<64x1xf32> to vector<64x32xf32>
    %452 = arith.subf %444, %451 : vector<64x32xf32>
    %453 = arith.mulf %452, %452 : vector<64x32xf32>
    %cst_172 = arith.constant dense<0.000000e+00> : vector<64xf32>
    %454 = vector.multi_reduction <add>, %453, %cst_172 [1] : vector<64x32xf32> to vector<64xf32>
    %455 = vector.shape_cast %454 : vector<64xf32> to vector<64x1xf32>
    %cst_173 = arith.constant 3.200000e+01 : f32
    %456 = vector.broadcast %cst_173 : f32 to vector<64x1xf32>
    %457 = arith.divf %455, %456 : vector<64x1xf32>
    %458 = vector.broadcast %450 : vector<64x1xf32> to vector<64x32xf32>
    %459 = arith.subf %444, %458 : vector<64x32xf32>
    %cst_174 = arith.constant 9.99999974E-6 : f32
    %460 = vector.broadcast %cst_174 : f32 to vector<64x1xf32>
    %461 = arith.addf %457, %460 : vector<64x1xf32>
    %462 = math.rsqrt %461 : vector<64x1xf32>
    %463 = vector.broadcast %462 : vector<64x1xf32> to vector<64x32xf32>
    %464 = arith.mulf %459, %463 : vector<64x32xf32>
    %465 = vector.broadcast %445 : vector<1x32xf32> to vector<64x32xf32>
    %466 = arith.mulf %464, %465 : vector<64x32xf32>
    %467 = vector.broadcast %446 : vector<1x32xf32> to vector<64x32xf32>
    %468 = arith.addf %466, %467 : vector<64x32xf32>
    %469 = arith.truncf %468 : vector<64x32xf32> to vector<64x32xbf16>
    %c0_175 = arith.constant 0 : index
    %c0_176 = arith.constant 0 : index
    %470 = vector.load %arg41[%c0_175, %c0_176] : memref<32x128xbf16, #tpu.memory_space<vmem>>, vector<32x128xbf16>
    %cst_177 = arith.constant dense<0.000000e+00> : vector<64x128xf32>
    %471 = tpu.matmul %469, %470, %cst_177 {dimension_numbers = #tpu.dot_dimension_numbers<[1], [0], [0], [1], [0, 0, 1, 1], [], []>} : vector<64x32xbf16>, vector<32x128xbf16>, vector<64x128xf32> -> vector<64x128xf32>
    %c0_178 = arith.constant 0 : index
    %c0_179 = arith.constant 0 : index
    %472 = vector.load %arg42[%c0_178, %c0_179] : memref<1x128xf32, #tpu.memory_space<vmem>>, vector<1x128xf32>
    %473 = vector.broadcast %472 : vector<1x128xf32> to vector<64x128xf32>
    %474 = arith.addf %471, %473 : vector<64x128xf32>
    %475 = vector.shape_cast %474 : vector<64x128xf32> to vector<2x32x128xf32>
    %c0_180 = arith.constant 0 : index
    %c0_181 = arith.constant 0 : index
    %c0_182 = arith.constant 0 : index
    %476 = vector.load %arg43[%c0_180, %c0_181, %c0_182] : memref<2x32x128xf32, #tpu.memory_space<vmem>>, vector<2x32x128xf32>
    tpu.vector_store %arg43[%c0_180, %c0_181, %c0_182], %475 {strides = array<i32>} : memref<2x32x128xf32, #tpu.memory_space<vmem>>, vector<2x32x128xf32>,
    return
  }
}

</mosaic_0001>

<llo_original>
// kernel: squeeze.5
$region0: #{squeeze.5}
  %s0 = inlined_call_operand.vmem [shape: f32[2,1,3,16,16], index: 0, kind: input, shape index: {}]
  %s1 = inlined_call_operand.vmem [shape: f32[2,3,4,4,4,4], index: 1, kind: output, shape index: {}]
  $region1: #{squeeze.5} parent=0
    #allocation0 [shape = 'u8[393216]{0}', space=vmem, size = 0x60000, scoped, tag = 'scoped mem for output reshape']
    %v2 = vld [vmem:[%s0] sm:$0xff]
    %vm3 = vcmask 31744
    %4 = vst.msk [vmem:[#allocation0] ss:$8 sm:$0xf] %vm3, %v2
    %5 = vst.msk [vmem:[#allocation0] ss:$8 sm:$0xf0] %vm3, %v2
    %s6 = scalar_lea.vmem %s0, 8
    %v7 = vld [vmem:[%s6] sm:$0xff]
    %vm8 = vcmask 31744
    %s9 = scalar_lea.vmem [#allocation0], 64
    %10 = vst.msk [vmem:[%s9] ss:$8 sm:$0xf] %vm8, %v7
    %s11 = scalar_lea.vmem [#allocation0], 64
    %12 = vst.msk [vmem:[%s11] ss:$8 sm:$0xf0] %vm8, %v7
    %s13 = scalar_lea.vmem %s0, 16
    %v14 = vld [vmem:[%s13] sm:$0xff]
    %vm15 = vcmask 31744
    %s16 = scalar_lea.vmem [#allocation0], 128
    %17 = vst.msk [vmem:[%s16] ss:$8 sm:$0xf] %vm15, %v14
    %s18 = scalar_lea.vmem [#allocation0], 128
    %19 = vst.msk [vmem:[%s18] ss:$8 sm:$0xf0] %vm15, %v14
    %s20 = scalar_lea.vmem %s0, 24
    %v21 = vld [vmem:[%s20] sm:$0xff]
    %vm22 = vcmask 31744
    %s23 = scalar_lea.vmem [#allocation0], 192
    %24 = vst.msk [vmem:[%s23] ss:$8 sm:$0xf] %vm22, %v21
    %s25 = scalar_lea.vmem [#allocation0], 192
    %26 = vst.msk [vmem:[%s25] ss:$8 sm:$0xf0] %vm22, %v21
    %s27 = scalar_lea.vmem %s0, 32
    %v28 = vld [vmem:[%s27] sm:$0xff]
    %vm29 = vcmask 31744
    %s30 = scalar_lea.vmem [#allocation0], 256
    %31 = vst.msk [vmem:[%s30] ss:$8 sm:$0xf] %vm29, %v28
    %s32 = scalar_lea.vmem [#allocation0], 256
    %33 = vst.msk [vmem:[%s32] ss:$8 sm:$0xf0] %vm29, %v28
    %s34 = scalar_lea.vmem %s0, 40
    %v35 = vld [vmem:[%s34] sm:$0xff]
    %vm36 = vcmask 31744
    %s37 = scalar_lea.vmem [#allocation0], 320
    %38 = vst.msk [vmem:[%s37] ss:$8 sm:$0xf] %vm36, %v35
    %s39 = scalar_lea.vmem [#allocation0], 320
    %40 = vst.msk [vmem:[%s39] ss:$8 sm:$0xf0] %vm36, %v35
    %s41 = scalar_lea.vmem %s0, 48
    %v42 = vld [vmem:[%s41] sm:$0xff]
    %vm43 = vcmask 31744
    %s44 = scalar_lea.vmem [#allocation0], 384
    %45 = vst.msk [vmem:[%s44] ss:$8 sm:$0xf] %vm43, %v42
    %s46 = scalar_lea.vmem [#allocation0], 384
    %47 = vst.msk [vmem:[%s46] ss:$8 sm:$0xf0] %vm43, %v42
    %s48 = scalar_lea.vmem %s0, 56
    %v49 = vld [vmem:[%s48] sm:$0xff]
    %vm50 = vcmask 31744
    %s51 = scalar_lea.vmem [#allocation0], 448
    %52 = vst.msk [vmem:[%s51] ss:$8 sm:$0xf] %vm50, %v49
    %s53 = scalar_lea.vmem [#allocation0], 448
    %54 = vst.msk [vmem:[%s53] ss:$8 sm:$0xf0] %vm50, %v49
    %s55 = scalar_lea.vmem %s0, 64
    %v56 = vld [vmem:[%s55] sm:$0xff]
    %vm57 = vcmask 31744
    %s58 = scalar_lea.vmem [#allocation0], 512
    %59 = vst.msk [vmem:[%s58] ss:$8 sm:$0xf] %vm57, %v56
    %s60 = scalar_lea.vmem [#allocation0], 512
    %61 = vst.msk [vmem:[%s60] ss:$8 sm:$0xf0] %vm57, %v56
    %s62 = scalar_lea.vmem %s0, 72
    %v63 = vld [vmem:[%s62] sm:$0xff]
    %vm64 = vcmask 31744
    %s65 = scalar_lea.vmem [#allocation0], 576
    %66 = vst.msk [vmem:[%s65] ss:$8 sm:$0xf] %vm64, %v63
    %s67 = scalar_lea.vmem [#allocation0], 576
    %68 = vst.msk [vmem:[%s67] ss:$8 sm:$0xf0] %vm64, %v63
    %s69 = scalar_lea.vmem %s0, 80
    %v70 = vld [vmem:[%s69] sm:$0xff]
    %vm71 = vcmask 31744
    %s72 = scalar_lea.vmem [#allocation0], 640
    %73 = vst.msk [vmem:[%s72] ss:$8 sm:$0xf] %vm71, %v70
    %s74 = scalar_lea.vmem [#allocation0], 640
    %75 = vst.msk [vmem:[%s74] ss:$8 sm:$0xf0] %vm71, %v70
    %s76 = scalar_lea.vmem %s0, 88
    %v77 = vld [vmem:[%s76] sm:$0xff]
    %vm78 = vcmask 31744
    %s79 = scalar_lea.vmem [#allocation0], 704
    %80 = vst.msk [vmem:[%s79] ss:$8 sm:$0xf] %vm78, %v77
    %s81 = scalar_lea.vmem [#allocation0], 704
    %82 = vst.msk [vmem:[%s81] ss:$8 sm:$0xf0] %vm78, %v77
    %v83 = vld [vmem:[%s0] sm:$0xff]
    %84 = vrot.lane.b32.xlu0 %v83, 124
    %v85 = vpop.permute.xlu0 %84
    %vm86 = vcmask 31744
    %s87 = scalar_lea.vmem [#allocation0], 1
    %88 = vst.msk [vmem:[%s87] ss:$8 sm:$0xf] %vm86, %v85
    %s89 = scalar_lea.vmem [#allocation0], 1
    %90 = vst.msk [vmem:[%s89] ss:$8 sm:$0xf0] %vm86, %v85
    %s91 = scalar_lea.vmem %s0, 8
    %v92 = vld [vmem:[%s91] sm:$0xff]
    %93 = vrot.lane.b32.xlu0 %v92, 124
    %v94 = vpop.permute.xlu0 %93
    %vm95 = vcmask 31744
    %s96 = scalar_lea.vmem [#allocation0], 65
    %97 = vst.msk [vmem:[%s96] ss:$8 sm:$0xf] %vm95, %v94
    %s98 = scalar_lea.vmem [#allocation0], 65
    %99 = vst.msk [vmem:[%s98] ss:$8 sm:$0xf0] %vm95, %v94
    %s100 = scalar_lea.vmem %s0, 16
    %v101 = vld [vmem:[%s100] sm:$0xff]
    %102 = vrot.lane.b32.xlu0 %v101, 124
    %v103 = vpop.permute.xlu0 %102
    %vm104 = vcmask 31744
    %s105 = scalar_lea.vmem [#allocation0], 129
    %106 = vst.msk [vmem:[%s105] ss:$8 sm:$0xf] %vm104, %v103
    %s107 = scalar_lea.vmem [#allocation0], 129
    %108 = vst.msk [vmem:[%s107] ss:$8 sm:$0xf0] %vm104, %v103
    %s109 = scalar_lea.vmem %s0, 24
    %v110 = vld [vmem:[%s109] sm:$0xff]
    %111 = vrot.lane.b32.xlu0 %v110, 124
    %v112 = vpop.permute.xlu0 %111
    %vm113 = vcmask 31744
    %s114 = scalar_lea.vmem [#allocation0], 193
    %115 = vst.msk [vmem:[%s114] ss:$8 sm:$0xf] %vm113, %v112
    %s116 = scalar_lea.vmem [#allocation0], 193
    %117 = vst.msk [vmem:[%s116] ss:$8 sm:$0xf0] %vm113, %v112
    %s118 = scalar_lea.vmem %s0, 32
    %v119 = vld [vmem:[%s118] sm:$0xff]
    %120 = vrot.lane.b32.xlu0 %v119, 124
    %v121 = vpop.permute.xlu0 %120
    %vm122 = vcmask 31744
    %s123 = scalar_lea.vmem [#allocation0], 257
    %124 = vst.msk [vmem:[%s123] ss:$8 sm:$0xf] %vm122, %v121
    %s125 = scalar_lea.vmem [#allocation0], 257
    %126 = vst.msk [vmem:[%s125] ss:$8 sm:$0xf0] %vm122, %v121
    %s127 = scalar_lea.vmem %s0, 40
    %v128 = vld [vmem:[%s127] sm:$0xff]
    %129 = vrot.lane.b32.xlu0 %v128, 124
    %v130 = vpop.permute.xlu0 %129
    %vm131 = vcmask 31744
    %s132 = scalar_lea.vmem [#allocation0], 321
    %133 = vst.msk [vmem:[%s132] ss:$8 sm:$0xf] %vm131, %v130
    %s134 = scalar_lea.vmem [#allocation0], 321
    %135 = vst.msk [vmem:[%s134] ss:$8 sm:$0xf0] %vm131, %v130
    %s136 = scalar_lea.vmem %s0, 48
    %v137 = vld [vmem:[%s136] sm:$0xff]
    %138 = vrot.lane.b32.xlu0 %v137, 124
    %v139 = vpop.permute.xlu0 %138
    %vm140 = vcmask 31744
    %s141 = scalar_lea.vmem [#allocation0], 385
    %142 = vst.msk [vmem:[%s141] ss:$8 sm:$0xf] %vm140, %v139
    %s143 = scalar_lea.vmem [#allocation0], 385
    %144 = vst.msk [vmem:[%s143] ss:$8 sm:$0xf0] %vm140, %v139
    %s145 = scalar_lea.vmem %s0, 56
    %v146 = vld [vmem:[%s145] sm:$0xff]
    %147 = vrot.lane.b32.xlu0 %v146, 124
    %v148 = vpop.permute.xlu0 %147
    %vm149 = vcmask 31744
    %s150 = scalar_lea.vmem [#allocation0], 449
    %151 = vst.msk [vmem:[%s150] ss:$8 sm:$0xf] %vm149, %v148
    %s152 = scalar_lea.vmem [#allocation0], 449
    %153 = vst.msk [vmem:[%s152] ss:$8 sm:$0xf0] %vm149, %v148
    %s154 = scalar_lea.vmem %s0, 64
    %v155 = vld [vmem:[%s154] sm:$0xff]
    %156 = vrot.lane.b32.xlu0 %v155, 124
    %v157 = vpop.permute.xlu0 %156
    %vm158 = vcmask 31744
    %s159 = scalar_lea.vmem [#allocation0], 513
    %160 = vst.msk [vmem:[%s159] ss:$8 sm:$0xf] %vm158, %v157
    %s161 = scalar_lea.vmem [#allocation0], 513
    %162 = vst.msk [vmem:[%s161] ss:$8 sm:$0xf0] %vm158, %v157
    %s163 = scalar_lea.vmem %s0, 72
    %v164 = vld [vmem:[%s163] sm:$0xff]
    %165 = vrot.lane.b32.xlu0 %v164, 124
    %v166 = vpop.permute.xlu0 %165
    %vm167 = vcmask 31744
    %s168 = scalar_lea.vmem [#allocation0], 577
    %169 = vst.msk [vmem:[%s168] ss:$8 sm:$0xf] %vm167, %v166
    %s170 = scalar_lea.vmem [#allocation0], 577
    %171 = vst.msk [vmem:[%s170] ss:$8 sm:$0xf0] %vm167, %v166
    %s172 = scalar_lea.vmem %s0, 80
    %v173 = vld [vmem:[%s172] sm:$0xff]
    %174 = vrot.lane.b32.xlu0 %v173, 124
    %v175 = vpop.permute.xlu0 %174
    %vm176 = vcmask 31744
    %s177 = scalar_lea.vmem [#allocation0], 641
    %178 = vst.msk [vmem:[%s177] ss:$8 sm:$0xf] %vm176, %v175
    %s179 = scalar_lea.vmem [#allocation0], 641
    %180 = vst.msk [vmem:[%s179] ss:$8 sm:$0xf0] %vm176, %v175
    %s181 = scalar_lea.vmem %s0, 88
    %v182 = vld [vmem:[%s181] sm:$0xff]
    %183 = vrot.lane.b32.xlu0 %v182, 124
    %v184 = vpop.permute.xlu0 %183
    %vm185 = vcmask 31744
    %s186 = scalar_lea.vmem [#allocation0], 705
    %187 = vst.msk [vmem:[%s186] ss:$8 sm:$0xf] %vm185, %v184
    %s188 = scalar_lea.vmem [#allocation0], 705
    %189 = vst.msk [vmem:[%s188] ss:$8 sm:$0xf0] %vm185, %v184
    %v190 = vld [vmem:[%s0] sm:$0xff]
    %191 = vrot.lane.b32.xlu0 %v190, 120
    %v192 = vpop.permute.xlu0 %191
    %vm193 = vcmask 31744
    %s194 = scalar_lea.vmem [#allocation0], 2
    %195 = vst.msk [vmem:[%s194] ss:$8 sm:$0xf] %vm193, %v192
    %s196 = scalar_lea.vmem [#allocation0], 2
    %197 = vst.msk [vmem:[%s196] ss:$8 sm:$0xf0] %vm193, %v192
    %s198 = scalar_lea.vmem %s0, 8
    %v199 = vld [vmem:[%s198] sm:$0xff]
    %200 = vrot.lane.b32.xlu0 %v199, 120
    %v201 = vpop.permute.xlu0 %200
    %vm202 = vcmask 31744
    %s203 = scalar_lea.vmem [#allocation0], 66
    %204 = vst.msk [vmem:[%s203] ss:$8 sm:$0xf] %vm202, %v201
    %s205 = scalar_lea.vmem [#allocation0], 66
    %206 = vst.msk [vmem:[%s205] ss:$8 sm:$0xf0] %vm202, %v201
    %s207 = scalar_lea.vmem %s0, 16
    %v208 = vld [vmem:[%s207] sm:$0xff]
    %209 = vrot.lane.b32.xlu0 %v208, 120
    %v210 = vpop.permute.xlu0 %209
    %vm211 = vcmask 31744
    %s212 = scalar_lea.vmem [#allocation0], 130
    %213 = vst.msk [vmem:[%s212] ss:$8 sm:$0xf] %vm211, %v210
    %s214 = scalar_lea.vmem [#allocation0], 130
    %215 = vst.msk [vmem:[%s214] ss:$8 sm:$0xf0] %vm211, %v210
    %s216 = scalar_lea.vmem %s0, 24
    %v217 = vld [vmem:[%s216] sm:$0xff]
    %218 = vrot.lane.b32.xlu0 %v217, 120
    %v219 = vpop.permute.xlu0 %218
    %vm220 = vcmask 31744
    %s221 = scalar_lea.vmem [#allocation0], 194
    %222 = vst.msk [vmem:[%s221] ss:$8 sm:$0xf] %vm220, %v219
    %s223 = scalar_lea.vmem [#allocation0], 194
    %224 = vst.msk [vmem:[%s223] ss:$8 sm:$0xf0] %vm220, %v219
    %s225 = scalar_lea.vmem %s0, 32
    %v226 = vld [vmem:[%s225] sm:$0xff]
    %227 = vrot.lane.b32.xlu0 %v226, 120
    %v228 = vpop.permute.xlu0 %227
    %vm229 = vcmask 31744
    %s230 = scalar_lea.vmem [#allocation0], 258
    %231 = vst.msk [vmem:[%s230] ss:$8 sm:$0xf] %vm229, %v228
    %s232 = scalar_lea.vmem [#allocation0], 258
    %233 = vst.msk [vmem:[%s232] ss:$8 sm:$0xf0] %vm229, %v228
    %s234 = scalar_lea.vmem %s0, 40
    %v235 = vld [vmem:[%s234] sm:$0xff]
    %236 = vrot.lane.b32.xlu0 %v235, 120
    %v237 = vpop.permute.xlu0 %236
    %vm238 = vcmask 31744
    %s239 = scalar_lea.vmem [#allocation0], 322
    %240 = vst.msk [vmem:[%s239] ss:$8 sm:$0xf] %vm238, %v237
    %s241 = scalar_lea.vmem [#allocation0], 322
    %242 = vst.msk [vmem:[%s241] ss:$8 sm:$0xf0] %vm238, %v237
    %s243 = scalar_lea.vmem %s0, 48
    %v244 = vld [vmem:[%s243] sm:$0xff]
    %245 = vrot.lane.b32.xlu0 %v244, 120
    %v246 = vpop.permute.xlu0 %245
    %vm247 = vcmask 31744
    %s248 = scalar_lea.vmem [#allocation0], 386
    %249 = vst.msk [vmem:[%s248] ss:$8 sm:$0xf] %vm247, %v246
    %s250 = scalar_lea.vmem [#allocation0], 386
    %251 = vst.msk [vmem:[%s250] ss:$8 sm:$0xf0] %vm247, %v246
    %s252 = scalar_lea.vmem %s0, 56
    %v253 = vld [vmem:[%s252] sm:$0xff]
    %254 = vrot.lane.b32.xlu0 %v253, 120
    %v255 = vpop.permute.xlu0 %254
    %vm256 = vcmask 31744
    %s257 = scalar_lea.vmem [#allocation0], 450
    %258 = vst.msk [vmem:[%s257] ss:$8 sm:$0xf] %vm256, %v255
    %s259 = scalar_lea.vmem [#allocation0], 450
    %260 = vst.msk [vmem:[%s259] ss:$8 sm:$0xf0] %vm256, %v255
    %s261 = scalar_lea.vmem %s0, 64
    %v262 = vld [vmem:[%s261] sm:$0xff]
    %263 = vrot.lane.b32.xlu0 %v262, 120
    %v264 = vpop.permute.xlu0 %263
    %vm265 = vcmask 31744
    %s266 = scalar_lea.vmem [#allocation0], 514
    %267 = vst.msk [vmem:[%s266] ss:$8 sm:$0xf] %vm265, %v264
    %s268 = scalar_lea.vmem [#allocation0], 514
    %269 = vst.msk [vmem:[%s268] ss:$8 sm:$0xf0] %vm265, %v264
    %s270 = scalar_lea.vmem %s0, 72
    %v271 = vld [vmem:[%s270] sm:$0xff]
    %272 = vrot.lane.b32.xlu0 %v271, 120
    %v273 = vpop.permute.xlu0 %272
    %vm274 = vcmask 31744
    %s275 = scalar_lea.vmem [#allocation0], 578
    %276 = vst.msk [vmem:[%s275] ss:$8 sm:$0xf] %vm274, %v273
    %s277 = scalar_lea.vmem [#allocation0], 578
    %278 = vst.msk [vmem:[%s277] ss:$8 sm:$0xf0] %vm274, %v273
    %s279 = scalar_lea.vmem %s0, 80
    %v280 = vld [vmem:[%s279] sm:$0xff]
    %281 = vrot.lane.b32.xlu0 %v280, 120
    %v282 = vpop.permute.xlu0 %281
    %vm283 = vcmask 31744
    %s284 = scalar_lea.vmem [#allocation0], 642
    %285 = vst.msk [vmem:[%s284] ss:$8 sm:$0xf] %vm283, %v282
    %s286 = scalar_lea.vmem [#allocation0], 642
    %287 = vst.msk [vmem:[%s286] ss:$8 sm:$0xf0] %vm283, %v282
    %s288 = scalar_lea.vmem %s0, 88
    %v289 = vld [vmem:[%s288] sm:$0xff]
    %290 = vrot.lane.b32.xlu0 %v289, 120
    %v291 = vpop.permute.xlu0 %290
    %vm292 = vcmask 31744
    %s293 = scalar_lea.vmem [#allocation0], 706
    %294 = vst.msk [vmem:[%s293] ss:$8 sm:$0xf] %vm292, %v291
    %s295 = scalar_lea.vmem [#allocation0], 706
    %296 = vst.msk [vmem:[%s295] ss:$8 sm:$0xf0] %vm292, %v291
    %v297 = vld [vmem:[%s0] sm:$0xff]
    %298 = vrot.lane.b32.xlu0 %v297, 116
    %v299 = vpop.permute.xlu0 %298
    %vm300 = vcmask 31744
    %s301 = scalar_lea.vmem [#allocation0], 3
    %302 = vst.msk [vmem:[%s301] ss:$8 sm:$0xf] %vm300, %v299
    %s303 = scalar_lea.vmem [#allocation0], 3
    %304 = vst.msk [vmem:[%s303] ss:$8 sm:$0xf0] %vm300, %v299
    %s305 = scalar_lea.vmem %s0, 8
    %v306 = vld [vmem:[%s305] sm:$0xff]
    %307 = vrot.lane.b32.xlu0 %v306, 116
    %v308 = vpop.permute.xlu0 %307
    %vm309 = vcmask 31744
    %s310 = scalar_lea.vmem [#allocation0], 67
    %311 = vst.msk [vmem:[%s310] ss:$8 sm:$0xf] %vm309, %v308
    %s312 = scalar_lea.vmem [#allocation0], 67
    %313 = vst.msk [vmem:[%s312] ss:$8 sm:$0xf0] %vm309, %v308
    %s314 = scalar_lea.vmem %s0, 16
    %v315 = vld [vmem:[%s314] sm:$0xff]
    %316 = vrot.lane.b32.xlu0 %v315, 116
    %v317 = vpop.permute.xlu0 %316
    %vm318 = vcmask 31744
    %s319 = scalar_lea.vmem [#allocation0], 131
    %320 = vst.msk [vmem:[%s319] ss:$8 sm:$0xf] %vm318, %v317
    %s321 = scalar_lea.vmem [#allocation0], 131
    %322 = vst.msk [vmem:[%s321] ss:$8 sm:$0xf0] %vm318, %v317
    %s323 = scalar_lea.vmem %s0, 24
    %v324 = vld [vmem:[%s323] sm:$0xff]
    %325 = vrot.lane.b32.xlu0 %v324, 116
    %v326 = vpop.permute.xlu0 %325
    %vm327 = vcmask 31744
    %s328 = scalar_lea.vmem [#allocation0], 195
    %329 = vst.msk [vmem:[%s328] ss:$8 sm:$0xf] %vm327, %v326
    %s330 = scalar_lea.vmem [#allocation0], 195
    %331 = vst.msk [vmem:[%s330] ss:$8 sm:$0xf0] %vm327, %v326
    %s332 = scalar_lea.vmem %s0, 32
    %v333 = vld [vmem:[%s332] sm:$0xff]
    %334 = vrot.lane.b32.xlu0 %v333, 116
    %v335 = vpop.permute.xlu0 %334
    %vm336 = vcmask 31744
    %s337 = scalar_lea.vmem [#allocation0], 259
    %338 = vst.msk [vmem:[%s337] ss:$8 sm:$0xf] %vm336, %v335
    %s339 = scalar_lea.vmem [#allocation0], 259
    %340 = vst.msk [vmem:[%s339] ss:$8 sm:$0xf0] %vm336, %v335
    %s341 = scalar_lea.vmem %s0, 40
    %v342 = vld [vmem:[%s341] sm:$0xff]
    %343 = vrot.lane.b32.xlu0 %v342, 116
    %v344 = vpop.permute.xlu0 %343
    %vm345 = vcmask 31744
    %s346 = scalar_lea.vmem [#allocation0], 323
    %347 = vst.msk [vmem:[%s346] ss:$8 sm:$0xf] %vm345, %v344
    %s348 = scalar_lea.vmem [#allocation0], 323
    %349 = vst.msk [vmem:[%s348] ss:$8 sm:$0xf0] %vm345, %v344
    %s350 = scalar_lea.vmem %s0, 48
    %v351 = vld [vmem:[%s350] sm:$0xff]
    %352 = vrot.lane.b32.xlu0 %v351, 116
    %v353 = vpop.permute.xlu0 %352
    %vm354 = vcmask 31744
    %s355 = scalar_lea.vmem [#allocation0], 387
    %356 = vst.msk [vmem:[%s355] ss:$8 sm:$0xf] %vm354, %v353
    %s357 = scalar_lea.vmem [#allocation0], 387
    %358 = vst.msk [vmem:[%s357] ss:$8 sm:$0xf0] %vm354, %v353
    %s359 = scalar_lea.vmem %s0, 56
    %v360 = vld [vmem:[%s359] sm:$0xff]
    %361 = vrot.lane.b32.xlu0 %v360, 116
    %v362 = vpop.permute.xlu0 %361
    %vm363 = vcmask 31744
    %s364 = scalar_lea.vmem [#allocation0], 451
    %365 = vst.msk [vmem:[%s364] ss:$8 sm:$0xf] %vm363, %v362
    %s366 = scalar_lea.vmem [#allocation0], 451
    %367 = vst.msk [vmem:[%s366] ss:$8 sm:$0xf0] %vm363, %v362
    %s368 = scalar_lea.vmem %s0, 64
    %v369 = vld [vmem:[%s368] sm:$0xff]
    %370 = vrot.lane.b32.xlu0 %v369, 116
    %v371 = vpop.permute.xlu0 %370
    %vm372 = vcmask 31744
    %s373 = scalar_lea.vmem [#allocation0], 515
    %374 = vst.msk [vmem:[%s373] ss:$8 sm:$0xf] %vm372, %v371
    %s375 = scalar_lea.vmem [#allocation0], 515
    %376 = vst.msk [vmem:[%s375] ss:$8 sm:$0xf0] %vm372, %v371
    %s377 = scalar_lea.vmem %s0, 72
    %v378 = vld [vmem:[%s377] sm:$0xff]
    %379 = vrot.lane.b32.xlu0 %v378, 116
    %v380 = vpop.permute.xlu0 %379
    %vm381 = vcmask 31744
    %s382 = scalar_lea.vmem [#allocation0], 579
    %383 = vst.msk [vmem:[%s382] ss:$8 sm:$0xf] %vm381, %v380
    %s384 = scalar_lea.vmem [#allocation0], 579
    %385 = vst.msk [vmem:[%s384] ss:$8 sm:$0xf0] %vm381, %v380
    %s386 = scalar_lea.vmem %s0, 80
    %v387 = vld [vmem:[%s386] sm:$0xff]
    %388 = vrot.lane.b32.xlu0 %v387, 116
    %v389 = vpop.permute.xlu0 %388
    %vm390 = vcmask 31744
    %s391 = scalar_lea.vmem [#allocation0], 643
    %392 = vst.msk [vmem:[%s391] ss:$8 sm:$0xf] %vm390, %v389
    %s393 = scalar_lea.vmem [#allocation0], 643
    %394 = vst.msk [vmem:[%s393] ss:$8 sm:$0xf0] %vm390, %v389
    %s395 = scalar_lea.vmem %s0, 88
    %v396 = vld [vmem:[%s395] sm:$0xff]
    %397 = vrot.lane.b32.xlu0 %v396, 116
    %v398 = vpop.permute.xlu0 %397
    %vm399 = vcmask 31744
    %s400 = scalar_lea.vmem [#allocation0], 707
    %401 = vst.msk [vmem:[%s400] ss:$8 sm:$0xf] %vm399, %v398
    %s402 = scalar_lea.vmem [#allocation0], 707
    %403 = vst.msk [vmem:[%s402] ss:$8 sm:$0xf0] %vm399, %v398
    %s405 = sshllo.u32 0, 4
    %v407 = vld [vmem:[#allocation0] sm:%s405]
    %s408 = sshllo.u32 0, 4
    %409 = vst [vmem:[%s1] sm:%s408] %v407
    %s410 = scalar_lea.vmem [#allocation0], 8
    %v411 = vld [vmem:[%s410] sm:%s405]
    %s412 = sshllo.u32 0, 4
    %s413 = scalar_lea.vmem %s1, 4
    %414 = vst [vmem:[%s413] sm:%s412] %v411
    %s415 = scalar_lea.vmem [#allocation0], 16
    %v416 = vld [vmem:[%s415] sm:%s405]
    %s417 = sshllo.u32 0, 4
    %s418 = smul.addr 4, 2
    %s419 = scalar_lea.vmem %s1, %s418
    %420 = vst [vmem:[%s419] sm:%s417] %v416
    %s421 = scalar_lea.vmem [#allocation0], 24
    %v422 = vld [vmem:[%s421] sm:%s405]
    %s423 = sshllo.u32 0, 4
    %s424 = smul.addr 4, 3
    %s425 = scalar_lea.vmem %s1, %s424
    %426 = vst [vmem:[%s425] sm:%s423] %v422
    %s427 = scalar_lea.vmem [#allocation0], 32
    %v428 = vld [vmem:[%s427] sm:%s405]
    %s429 = sshllo.u32 0, 4
    %s430 = smul.addr 4, 4
    %s431 = scalar_lea.vmem %s1, %s430
    %432 = vst [vmem:[%s431] sm:%s429] %v428
    %s433 = scalar_lea.vmem [#allocation0], 40
    %v434 = vld [vmem:[%s433] sm:%s405]
    %s435 = sshllo.u32 0, 4
    %s436 = smul.addr 4, 5
    %s437 = scalar_lea.vmem %s1, %s436
    %438 = vst [vmem:[%s437] sm:%s435] %v434
    %s439 = scalar_lea.vmem [#allocation0], 48
    %v440 = vld [vmem:[%s439] sm:%s405]
    %s441 = sshllo.u32 0, 4
    %s442 = smul.addr 4, 6
    %s443 = scalar_lea.vmem %s1, %s442
    %444 = vst [vmem:[%s443] sm:%s441] %v440
    %s445 = scalar_lea.vmem [#allocation0], 56
    %v446 = vld [vmem:[%s445] sm:%s405]
    %s447 = sshllo.u32 0, 4
    %s448 = smul.addr 4, 7
    %s449 = scalar_lea.vmem %s1, %s448
    %450 = vst [vmem:[%s449] sm:%s447] %v446
    %s451 = scalar_lea.vmem [#allocation0], 64
    %v452 = vld [vmem:[%s451] sm:%s405]
    %s453 = sshllo.u32 0, 4
    %s454 = smul.addr 4, 8
    %s455 = scalar_lea.vmem %s1, %s454
    %456 = vst [vmem:[%s455] sm:%s453] %v452
    %s457 = scalar_lea.vmem [#allocation0], 72
    %v458 = vld [vmem:[%s457] sm:%s405]
    %s459 = sshllo.u32 0, 4
    %s460 = smul.addr 4, 9
    %s461 = scalar_lea.vmem %s1, %s460
    %462 = vst [vmem:[%s461] sm:%s459] %v458
    %s463 = scalar_lea.vmem [#allocation0], 80
    %v464 = vld [vmem:[%s463] sm:%s405]
    %s465 = sshllo.u32 0, 4
    %s466 = smul.addr 4, 10
    %s467 = scalar_lea.vmem %s1, %s466
    %468 = vst [vmem:[%s467] sm:%s465] %v464
    %s469 = scalar_lea.vmem [#allocation0], 88
    %v470 = vld [vmem:[%s469] sm:%s405]
    %s471 = sshllo.u32 0, 4
    %s472 = smul.addr 4, 11
    %s473 = scalar_lea.vmem %s1, %s472
    %474 = vst [vmem:[%s473] sm:%s471] %v470
    %s475 = scalar_lea.vmem [#allocation0], 96
    %v476 = vld [vmem:[%s475] sm:%s405]
    %s477 = sshllo.u32 0, 4
    %s478 = smul.addr 4, 12
    %s479 = scalar_lea.vmem %s1, %s478
    %480 = vst [vmem:[%s479] sm:%s477] %v476
    %s481 = scalar_lea.vmem [#allocation0], 104
    %v482 = vld [vmem:[%s481] sm:%s405]
    %s483 = sshllo.u32 0, 4
    %s484 = smul.addr 4, 13
    %s485 = scalar_lea.vmem %s1, %s484
    %486 = vst [vmem:[%s485] sm:%s483] %v482
    %s487 = scalar_lea.vmem [#allocation0], 112
    %v488 = vld [vmem:[%s487] sm:%s405]
    %s489 = sshllo.u32 0, 4
    %s490 = smul.addr 4, 14
    %s491 = scalar_lea.vmem %s1, %s490
    %492 = vst [vmem:[%s491] sm:%s489] %v488
    %s493 = scalar_lea.vmem [#allocation0], 120
    %v494 = vld [vmem:[%s493] sm:%s405]
    %s495 = sshllo.u32 0, 4
    %s496 = smul.addr 4, 15
    %s497 = scalar_lea.vmem %s1, %s496
    %498 = vst [vmem:[%s497] sm:%s495] %v494
    %s499 = scalar_lea.vmem [#allocation0], 128
    %v500 = vld [vmem:[%s499] sm:%s405]
    %s501 = sshllo.u32 0, 4
    %s502 = smul.addr 4, 16
    %s503 = scalar_lea.vmem %s1, %s502
    %504 = vst [vmem:[%s503] sm:%s501] %v500
    %s505 = scalar_lea.vmem [#allocation0], 136
    %v506 = vld [vmem:[%s505] sm:%s405]
    %s507 = sshllo.u32 0, 4
    %s508 = smul.addr 4, 17
    %s509 = scalar_lea.vmem %s1, %s508
    %510 = vst [vmem:[%s509] sm:%s507] %v506
    %s511 = scalar_lea.vmem [#allocation0], 144
    %v512 = vld [vmem:[%s511] sm:%s405]
    %s513 = sshllo.u32 0, 4
    %s514 = smul.addr 4, 18
    %s515 = scalar_lea.vmem %s1, %s514
    %516 = vst [vmem:[%s515] sm:%s513] %v512
    %s517 = scalar_lea.vmem [#allocation0], 152
    %v518 = vld [vmem:[%s517] sm:%s405]
    %s519 = sshllo.u32 0, 4
    %s520 = smul.addr 4, 19
    %s521 = scalar_lea.vmem %s1, %s520
    %522 = vst [vmem:[%s521] sm:%s519] %v518
    %s523 = scalar_lea.vmem [#allocation0], 160
    %v524 = vld [vmem:[%s523] sm:%s405]
    %s525 = sshllo.u32 0, 4
    %s526 = smul.addr 4, 20
    %s527 = scalar_lea.vmem %s1, %s526
    %528 = vst [vmem:[%s527] sm:%s525] %v524
    %s529 = scalar_lea.vmem [#allocation0], 168
    %v530 = vld [vmem:[%s529] sm:%s405]
    %s531 = sshllo.u32 0, 4
    %s532 = smul.addr 4, 21
    %s533 = scalar_lea.vmem %s1, %s532
    %534 = vst [vmem:[%s533] sm:%s531] %v530
    %s535 = scalar_lea.vmem [#allocation0], 176
    %v536 = vld [vmem:[%s535] sm:%s405]
    %s537 = sshllo.u32 0, 4
    %s538 = smul.addr 4, 22
    %s539 = scalar_lea.vmem %s1, %s538
    %540 = vst [vmem:[%s539] sm:%s537] %v536
    %s541 = scalar_lea.vmem [#allocation0], 184
    %v542 = vld [vmem:[%s541] sm:%s405]
    %s543 = sshllo.u32 0, 4
    %s544 = smul.addr 4, 23
    %s545 = scalar_lea.vmem %s1, %s544
    %546 = vst [vmem:[%s545] sm:%s543] %v542
    %s547 = scalar_lea.vmem [#allocation0], 192
    %v548 = vld [vmem:[%s547] sm:%s405]
    %s549 = sshllo.u32 0, 4
    %s550 = smul.addr 4, 24
    %s551 = scalar_lea.vmem %s1, %s550
    %552 = vst [vmem:[%s551] sm:%s549] %v548
    %s553 = scalar_lea.vmem [#allocation0], 200
    %v554 = vld [vmem:[%s553] sm:%s405]
    %s555 = sshllo.u32 0, 4
    %s556 = smul.addr 4, 25
    %s557 = scalar_lea.vmem %s1, %s556
    %558 = vst [vmem:[%s557] sm:%s555] %v554
    %s559 = scalar_lea.vmem [#allocation0], 208
    %v560 = vld [vmem:[%s559] sm:%s405]
    %s561 = sshllo.u32 0, 4
    %s562 = smul.addr 4, 26
    %s563 = scalar_lea.vmem %s1, %s562
    %564 = vst [vmem:[%s563] sm:%s561] %v560
    %s565 = scalar_lea.vmem [#allocation0], 216
    %v566 = vld [vmem:[%s565] sm:%s405]
    %s567 = sshllo.u32 0, 4
    %s568 = smul.addr 4, 27
    %s569 = scalar_lea.vmem %s1, %s568
    %570 = vst [vmem:[%s569] sm:%s567] %v566
    %s571 = scalar_lea.vmem [#allocation0], 224
    %v572 = vld [vmem:[%s571] sm:%s405]
    %s573 = sshllo.u32 0, 4
    %s574 = smul.addr 4, 28
    %s575 = scalar_lea.vmem %s1, %s574
    %576 = vst [vmem:[%s575] sm:%s573] %v572
    %s577 = scalar_lea.vmem [#allocation0], 232
    %v578 = vld [vmem:[%s577] sm:%s405]
    %s579 = sshllo.u32 0, 4
    %s580 = smul.addr 4, 29
    %s581 = scalar_lea.vmem %s1, %s580
    %582 = vst [vmem:[%s581] sm:%s579] %v578
    %s583 = scalar_lea.vmem [#allocation0], 240
    %v584 = vld [vmem:[%s583] sm:%s405]
    %s585 = sshllo.u32 0, 4
    %s586 = smul.addr 4, 30
    %s587 = scalar_lea.vmem %s1, %s586
    %588 = vst [vmem:[%s587] sm:%s585] %v584
    %s589 = scalar_lea.vmem [#allocation0], 248
    %v590 = vld [vmem:[%s589] sm:%s405]
    %s591 = sshllo.u32 0, 4
    %s592 = smul.addr 4, 31
    %s593 = scalar_lea.vmem %s1, %s592
    %594 = vst [vmem:[%s593] sm:%s591] %v590
    %s595 = scalar_lea.vmem [#allocation0], 256
    %v596 = vld [vmem:[%s595] sm:%s405]
    %s597 = sshllo.u32 0, 4
    %s598 = smul.addr 4, 32
    %s599 = scalar_lea.vmem %s1, %s598
    %600 = vst [vmem:[%s599] sm:%s597] %v596
    %s601 = scalar_lea.vmem [#allocation0], 264
    %v602 = vld [vmem:[%s601] sm:%s405]
    %s603 = sshllo.u32 0, 4
    %s604 = smul.addr 4, 33
    %s605 = scalar_lea.vmem %s1, %s604
    %606 = vst [vmem:[%s605] sm:%s603] %v602
    %s607 = scalar_lea.vmem [#allocation0], 272
    %v608 = vld [vmem:[%s607] sm:%s405]
    %s609 = sshllo.u32 0, 4
    %s610 = smul.addr 4, 34
    %s611 = scalar_lea.vmem %s1, %s610
    %612 = vst [vmem:[%s611] sm:%s609] %v608
    %s613 = scalar_lea.vmem [#allocation0], 280
    %v614 = vld [vmem:[%s613] sm:%s405]
    %s615 = sshllo.u32 0, 4
    %s616 = smul.addr 4, 35
    %s617 = scalar_lea.vmem %s1, %s616
    %618 = vst [vmem:[%s617] sm:%s615] %v614
    %s619 = scalar_lea.vmem [#allocation0], 288
    %v620 = vld [vmem:[%s619] sm:%s405]
    %s621 = sshllo.u32 0, 4
    %s622 = smul.addr 4, 36
    %s623 = scalar_lea.vmem %s1, %s622
    %624 = vst [vmem:[%s623] sm:%s621] %v620
    %s625 = scalar_lea.vmem [#allocation0], 296
    %v626 = vld [vmem:[%s625] sm:%s405]
    %s627 = sshllo.u32 0, 4
    %s628 = smul.addr 4, 37
    %s629 = scalar_lea.vmem %s1, %s628
    %630 = vst [vmem:[%s629] sm:%s627] %v626
    %s631 = scalar_lea.vmem [#allocation0], 304
    %v632 = vld [vmem:[%s631] sm:%s405]
    %s633 = sshllo.u32 0, 4
    %s634 = smul.addr 4, 38
    %s635 = scalar_lea.vmem %s1, %s634
    %636 = vst [vmem:[%s635] sm:%s633] %v632
    %s637 = scalar_lea.vmem [#allocation0], 312
    %v638 = vld [vmem:[%s637] sm:%s405]
    %s639 = sshllo.u32 0, 4
    %s640 = smul.addr 4, 39
    %s641 = scalar_lea.vmem %s1, %s640
    %642 = vst [vmem:[%s641] sm:%s639] %v638
    %s643 = scalar_lea.vmem [#allocation0], 320
    %v644 = vld [vmem:[%s643] sm:%s405]
    %s645 = sshllo.u32 0, 4
    %s646 = smul.addr 4, 40
    %s647 = scalar_lea.vmem %s1, %s646
    %648 = vst [vmem:[%s647] sm:%s645] %v644
    %s649 = scalar_lea.vmem [#allocation0], 328
    %v650 = vld [vmem:[%s649] sm:%s405]
    %s651 = sshllo.u32 0, 4
    %s652 = smul.addr 4, 41
    %s653 = scalar_lea.vmem %s1, %s652
    %654 = vst [vmem:[%s653] sm:%s651] %v650
    %s655 = scalar_lea.vmem [#allocation0], 336
    %v656 = vld [vmem:[%s655] sm:%s405]
    %s657 = sshllo.u32 0, 4
    %s658 = smul.addr 4, 42
    %s659 = scalar_lea.vmem %s1, %s658
    %660 = vst [vmem:[%s659] sm:%s657] %v656
    %s661 = scalar_lea.vmem [#allocation0], 344
    %v662 = vld [vmem:[%s661] sm:%s405]
    %s663 = sshllo.u32 0, 4
    %s664 = smul.addr 4, 43
    %s665 = scalar_lea.vmem %s1, %s664
    %666 = vst [vmem:[%s665] sm:%s663] %v662
    %s667 = scalar_lea.vmem [#allocation0], 352
    %v668 = vld [vmem:[%s667] sm:%s405]
    %s669 = sshllo.u32 0, 4
    %s670 = smul.addr 4, 44
    %s671 = scalar_lea.vmem %s1, %s670
    %672 = vst [vmem:[%s671] sm:%s669] %v668
    %s673 = scalar_lea.vmem [#allocation0], 360
    %v674 = vld [vmem:[%s673] sm:%s405]
    %s675 = sshllo.u32 0, 4
    %s676 = smul.addr 4, 45
    %s677 = scalar_lea.vmem %s1, %s676
    %678 = vst [vmem:[%s677] sm:%s675] %v674
    %s679 = scalar_lea.vmem [#allocation0], 368
    %v680 = vld [vmem:[%s679] sm:%s405]
    %s681 = sshllo.u32 0, 4
    %s682 = smul.addr 4, 46
    %s683 = scalar_lea.vmem %s1, %s682
    %684 = vst [vmem:[%s683] sm:%s681] %v680
    %s685 = scalar_lea.vmem [#allocation0], 376
    %v686 = vld [vmem:[%s685] sm:%s405]
    %s687 = sshllo.u32 0, 4
    %s688 = smul.addr 4, 47
    %s689 = scalar_lea.vmem %s1, %s688
    %690 = vst [vmem:[%s689] sm:%s687] %v686
    %s691 = scalar_lea.vmem [#allocation0], 384
    %v692 = vld [vmem:[%s691] sm:%s405]
    %s693 = sshllo.u32 0, 4
    %s694 = smul.addr 4, 48
    %s695 = scalar_lea.vmem %s1, %s694
    %696 = vst [vmem:[%s695] sm:%s693] %v692
    %s697 = scalar_lea.vmem [#allocation0], 392
    %v698 = vld [vmem:[%s697] sm:%s405]
    %s699 = sshllo.u32 0, 4
    %s700 = smul.addr 4, 49
    %s701 = scalar_lea.vmem %s1, %s700
    %702 = vst [vmem:[%s701] sm:%s699] %v698
    %s703 = scalar_lea.vmem [#allocation0], 400
    %v704 = vld [vmem:[%s703] sm:%s405]
    %s705 = sshllo.u32 0, 4
    %s706 = smul.addr 4, 50
    %s707 = scalar_lea.vmem %s1, %s706
    %708 = vst [vmem:[%s707] sm:%s705] %v704
    %s709 = scalar_lea.vmem [#allocation0], 408
    %v710 = vld [vmem:[%s709] sm:%s405]
    %s711 = sshllo.u32 0, 4
    %s712 = smul.addr 4, 51
    %s713 = scalar_lea.vmem %s1, %s712
    %714 = vst [vmem:[%s713] sm:%s711] %v710
    %s715 = scalar_lea.vmem [#allocation0], 416
    %v716 = vld [vmem:[%s715] sm:%s405]
    %s717 = sshllo.u32 0, 4
    %s718 = smul.addr 4, 52
    %s719 = scalar_lea.vmem %s1, %s718
    %720 = vst [vmem:[%s719] sm:%s717] %v716
    %s721 = scalar_lea.vmem [#allocation0], 424
    %v722 = vld [vmem:[%s721] sm:%s405]
    %s723 = sshllo.u32 0, 4
    %s724 = smul.addr 4, 53
    %s725 = scalar_lea.vmem %s1, %s724
    %726 = vst [vmem:[%s725] sm:%s723] %v722
    %s727 = scalar_lea.vmem [#allocation0], 432
    %v728 = vld [vmem:[%s727] sm:%s405]
    %s729 = sshllo.u32 0, 4
    %s730 = smul.addr 4, 54
    %s731 = scalar_lea.vmem %s1, %s730
    %732 = vst [vmem:[%s731] sm:%s729] %v728
    %s733 = scalar_lea.vmem [#allocation0], 440
    %v734 = vld [vmem:[%s733] sm:%s405]
    %s735 = sshllo.u32 0, 4
    %s736 = smul.addr 4, 55
    %s737 = scalar_lea.vmem %s1, %s736
    %738 = vst [vmem:[%s737] sm:%s735] %v734
    %s739 = scalar_lea.vmem [#allocation0], 448
    %v740 = vld [vmem:[%s739] sm:%s405]
    %s741 = sshllo.u32 0, 4
    %s742 = smul.addr 4, 56
    %s743 = scalar_lea.vmem %s1, %s742
    %744 = vst [vmem:[%s743] sm:%s741] %v740
    %s745 = scalar_lea.vmem [#allocation0], 456
    %v746 = vld [vmem:[%s745] sm:%s405]
    %s747 = sshllo.u32 0, 4
    %s748 = smul.addr 4, 57
    %s749 = scalar_lea.vmem %s1, %s748
    %750 = vst [vmem:[%s749] sm:%s747] %v746
    %s751 = scalar_lea.vmem [#allocation0], 464
    %v752 = vld [vmem:[%s751] sm:%s405]
    %s753 = sshllo.u32 0, 4
    %s754 = smul.addr 4, 58
    %s755 = scalar_lea.vmem %s1, %s754
    %756 = vst [vmem:[%s755] sm:%s753] %v752
    %s757 = scalar_lea.vmem [#allocation0], 472
    %v758 = vld [vmem:[%s757] sm:%s405]
    %s759 = sshllo.u32 0, 4
    %s760 = smul.addr 4, 59
    %s761 = scalar_lea.vmem %s1, %s760
    %762 = vst [vmem:[%s761] sm:%s759] %v758
    %s763 = scalar_lea.vmem [#allocation0], 480
    %v764 = vld [vmem:[%s763] sm:%s405]
    %s765 = sshllo.u32 0, 4
    %s766 = smul.addr 4, 60
    %s767 = scalar_lea.vmem %s1, %s766
    %768 = vst [vmem:[%s767] sm:%s765] %v764
    %s769 = scalar_lea.vmem [#allocation0], 488
    %v770 = vld [vmem:[%s769] sm:%s405]
    %s771 = sshllo.u32 0, 4
    %s772 = smul.addr 4, 61
    %s773 = scalar_lea.vmem %s1, %s772
    %774 = vst [vmem:[%s773] sm:%s771] %v770
    %s775 = scalar_lea.vmem [#allocation0], 496
    %v776 = vld [vmem:[%s775] sm:%s405]
    %s777 = sshllo.u32 0, 4
    %s778 = smul.addr 4, 62
    %s779 = scalar_lea.vmem %s1, %s778
    %780 = vst [vmem:[%s779] sm:%s777] %v776
    %s781 = scalar_lea.vmem [#allocation0], 504
    %v782 = vld [vmem:[%s781] sm:%s405]
    %s783 = sshllo.u32 0, 4
    %s784 = smul.addr 4, 63
    %s785 = scalar_lea.vmem %s1, %s784
    %786 = vst [vmem:[%s785] sm:%s783] %v782
    %s787 = scalar_lea.vmem [#allocation0], 512
    %v788 = vld [vmem:[%s787] sm:%s405]
    %s789 = sshllo.u32 0, 4
    %s790 = smul.addr 4, 64
    %s791 = scalar_lea.vmem %s1, %s790
    %792 = vst [vmem:[%s791] sm:%s789] %v788
    %s793 = scalar_lea.vmem [#allocation0], 520
    %v794 = vld [vmem:[%s793] sm:%s405]
    %s795 = sshllo.u32 0, 4
    %s796 = smul.addr 4, 65
    %s797 = scalar_lea.vmem %s1, %s796
    %798 = vst [vmem:[%s797] sm:%s795] %v794
    %s799 = scalar_lea.vmem [#allocation0], 528
    %v800 = vld [vmem:[%s799] sm:%s405]
    %s801 = sshllo.u32 0, 4
    %s802 = smul.addr 4, 66
    %s803 = scalar_lea.vmem %s1, %s802
    %804 = vst [vmem:[%s803] sm:%s801] %v800
    %s805 = scalar_lea.vmem [#allocation0], 536
    %v806 = vld [vmem:[%s805] sm:%s405]
    %s807 = sshllo.u32 0, 4
    %s808 = smul.addr 4, 67
    %s809 = scalar_lea.vmem %s1, %s808
    %810 = vst [vmem:[%s809] sm:%s807] %v806
    %s811 = scalar_lea.vmem [#allocation0], 544
    %v812 = vld [vmem:[%s811] sm:%s405]
    %s813 = sshllo.u32 0, 4
    %s814 = smul.addr 4, 68
    %s815 = scalar_lea.vmem %s1, %s814
    %816 = vst [vmem:[%s815] sm:%s813] %v812
    %s817 = scalar_lea.vmem [#allocation0], 552
    %v818 = vld [vmem:[%s817] sm:%s405]
    %s819 = sshllo.u32 0, 4
    %s820 = smul.addr 4, 69
    %s821 = scalar_lea.vmem %s1, %s820
    %822 = vst [vmem:[%s821] sm:%s819] %v818
    %s823 = scalar_lea.vmem [#allocation0], 560
    %v824 = vld [vmem:[%s823] sm:%s405]
    %s825 = sshllo.u32 0, 4
    %s826 = smul.addr 4, 70
    %s827 = scalar_lea.vmem %s1, %s826
    %828 = vst [vmem:[%s827] sm:%s825] %v824
    %s829 = scalar_lea.vmem [#allocation0], 568
    %v830 = vld [vmem:[%s829] sm:%s405]
    %s831 = sshllo.u32 0, 4
    %s832 = smul.addr 4, 71
    %s833 = scalar_lea.vmem %s1, %s832
    %834 = vst [vmem:[%s833] sm:%s831] %v830
    %s835 = scalar_lea.vmem [#allocation0], 576
    %v836 = vld [vmem:[%s835] sm:%s405]
    %s837 = sshllo.u32 0, 4
    %s838 = smul.addr 4, 72
    %s839 = scalar_lea.vmem %s1, %s838
    %840 = vst [vmem:[%s839] sm:%s837] %v836
    %s841 = scalar_lea.vmem [#allocation0], 584
    %v842 = vld [vmem:[%s841] sm:%s405]
    %s843 = sshllo.u32 0, 4
    %s844 = smul.addr 4, 73
    %s845 = scalar_lea.vmem %s1, %s844
    %846 = vst [vmem:[%s845] sm:%s843] %v842
    %s847 = scalar_lea.vmem [#allocation0], 592
    %v848 = vld [vmem:[%s847] sm:%s405]
    %s849 = sshllo.u32 0, 4
    %s850 = smul.addr 4, 74
    %s851 = scalar_lea.vmem %s1, %s850
    %852 = vst [vmem:[%s851] sm:%s849] %v848
    %s853 = scalar_lea.vmem [#allocation0], 600
    %v854 = vld [vmem:[%s853] sm:%s405]
    %s855 = sshllo.u32 0, 4
    %s856 = smul.addr 4, 75
    %s857 = scalar_lea.vmem %s1, %s856
    %858 = vst [vmem:[%s857] sm:%s855] %v854
    %s859 = scalar_lea.vmem [#allocation0], 608
    %v860 = vld [vmem:[%s859] sm:%s405]
    %s861 = sshllo.u32 0, 4
    %s862 = smul.addr 4, 76
    %s863 = scalar_lea.vmem %s1, %s862
    %864 = vst [vmem:[%s863] sm:%s861] %v860
    %s865 = scalar_lea.vmem [#allocation0], 616
    %v866 = vld [vmem:[%s865] sm:%s405]
    %s867 = sshllo.u32 0, 4
    %s868 = smul.addr 4, 77
    %s869 = scalar_lea.vmem %s1, %s868
    %870 = vst [vmem:[%s869] sm:%s867] %v866
    %s871 = scalar_lea.vmem [#allocation0], 624
    %v872 = vld [vmem:[%s871] sm:%s405]
    %s873 = sshllo.u32 0, 4
    %s874 = smul.addr 4, 78
    %s875 = scalar_lea.vmem %s1, %s874
    %876 = vst [vmem:[%s875] sm:%s873] %v872
    %s877 = scalar_lea.vmem [#allocation0], 632
    %v878 = vld [vmem:[%s877] sm:%s405]
    %s879 = sshllo.u32 0, 4
    %s880 = smul.addr 4, 79
    %s881 = scalar_lea.vmem %s1, %s880
    %882 = vst [vmem:[%s881] sm:%s879] %v878
    %s883 = scalar_lea.vmem [#allocation0], 640
    %v884 = vld [vmem:[%s883] sm:%s405]
    %s885 = sshllo.u32 0, 4
    %s886 = smul.addr 4, 80
    %s887 = scalar_lea.vmem %s1, %s886
    %888 = vst [vmem:[%s887] sm:%s885] %v884
    %s889 = scalar_lea.vmem [#allocation0], 648
    %v890 = vld [vmem:[%s889] sm:%s405]
    %s891 = sshllo.u32 0, 4
    %s892 = smul.addr 4, 81
    %s893 = scalar_lea.vmem %s1, %s892
    %894 = vst [vmem:[%s893] sm:%s891] %v890
    %s895 = scalar_lea.vmem [#allocation0], 656
    %v896 = vld [vmem:[%s895] sm:%s405]
    %s897 = sshllo.u32 0, 4
    %s898 = smul.addr 4, 82
    %s899 = scalar_lea.vmem %s1, %s898
    %900 = vst [vmem:[%s899] sm:%s897] %v896
    %s901 = scalar_lea.vmem [#allocation0], 664
    %v902 = vld [vmem:[%s901] sm:%s405]
    %s903 = sshllo.u32 0, 4
    %s904 = smul.addr 4, 83
    %s905 = scalar_lea.vmem %s1, %s904
    %906 = vst [vmem:[%s905] sm:%s903] %v902
    %s907 = scalar_lea.vmem [#allocation0], 672
    %v908 = vld [vmem:[%s907] sm:%s405]
    %s909 = sshllo.u32 0, 4
    %s910 = smul.addr 4, 84
    %s911 = scalar_lea.vmem %s1, %s910
    %912 = vst [vmem:[%s911] sm:%s909] %v908
    %s913 = scalar_lea.vmem [#allocation0], 680
    %v914 = vld [vmem:[%s913] sm:%s405]
    %s915 = sshllo.u32 0, 4
    %s916 = smul.addr 4, 85
    %s917 = scalar_lea.vmem %s1, %s916
    %918 = vst [vmem:[%s917] sm:%s915] %v914
    %s919 = scalar_lea.vmem [#allocation0], 688
    %v920 = vld [vmem:[%s919] sm:%s405]
    %s921 = sshllo.u32 0, 4
    %s922 = smul.addr 4, 86
    %s923 = scalar_lea.vmem %s1, %s922
    %924 = vst [vmem:[%s923] sm:%s921] %v920
    %s925 = scalar_lea.vmem [#allocation0], 696
    %v926 = vld [vmem:[%s925] sm:%s405]
    %s927 = sshllo.u32 0, 4
    %s928 = smul.addr 4, 87
    %s929 = scalar_lea.vmem %s1, %s928
    %930 = vst [vmem:[%s929] sm:%s927] %v926
    %s931 = scalar_lea.vmem [#allocation0], 704
    %v932 = vld [vmem:[%s931] sm:%s405]
    %s933 = sshllo.u32 0, 4
    %s934 = smul.addr 4, 88
    %s935 = scalar_lea.vmem %s1, %s934
    %936 = vst [vmem:[%s935] sm:%s933] %v932
    %s937 = scalar_lea.vmem [#allocation0], 712
    %v938 = vld [vmem:[%s937] sm:%s405]
    %s939 = sshllo.u32 0, 4
    %s940 = smul.addr 4, 89
    %s941 = scalar_lea.vmem %s1, %s940
    %942 = vst [vmem:[%s941] sm:%s939] %v938
    %s943 = scalar_lea.vmem [#allocation0], 720
    %v944 = vld [vmem:[%s943] sm:%s405]
    %s945 = sshllo.u32 0, 4
    %s946 = smul.addr 4, 90
    %s947 = scalar_lea.vmem %s1, %s946
    %948 = vst [vmem:[%s947] sm:%s945] %v944
    %s949 = scalar_lea.vmem [#allocation0], 728
    %v950 = vld [vmem:[%s949] sm:%s405]
    %s951 = sshllo.u32 0, 4
    %s952 = smul.addr 4, 91
    %s953 = scalar_lea.vmem %s1, %s952
    %954 = vst [vmem:[%s953] sm:%s951] %v950
    %s955 = scalar_lea.vmem [#allocation0], 736
    %v956 = vld [vmem:[%s955] sm:%s405]
    %s957 = sshllo.u32 0, 4
    %s958 = smul.addr 4, 92
    %s959 = scalar_lea.vmem %s1, %s958
    %960 = vst [vmem:[%s959] sm:%s957] %v956
    %s961 = scalar_lea.vmem [#allocation0], 744
    %v962 = vld [vmem:[%s961] sm:%s405]
    %s963 = sshllo.u32 0, 4
    %s964 = smul.addr 4, 93
    %s965 = scalar_lea.vmem %s1, %s964
    %966 = vst [vmem:[%s965] sm:%s963] %v962
    %s967 = scalar_lea.vmem [#allocation0], 752
    %v968 = vld [vmem:[%s967] sm:%s405]
    %s969 = sshllo.u32 0, 4
    %s970 = smul.addr 4, 94
    %s971 = scalar_lea.vmem %s1, %s970
    %972 = vst [vmem:[%s971] sm:%s969] %v968
    %s973 = scalar_lea.vmem [#allocation0], 760
    %v974 = vld [vmem:[%s973] sm:%s405]
    %s975 = sshllo.u32 0, 4
    %s976 = smul.addr 4, 95
    %s977 = scalar_lea.vmem %s1, %s976
    %978 = vst [vmem:[%s977] sm:%s975] %v974

// kernel: bddoia_forward.1
$region0: #{bddoia_forward.1}
  #allocation0 [shape = 'u32[]', space=smem, size = 0x4, offset = 0x4, fixed_abs, tag = 'smem constant byte address 0x4 - core index']
  #allocation1 [shape = 'u32[144,128]{1,0:T(1,128)}', space=vmem, size = 0x12000, scoped, tag = 'internal scratch']
  %s0 = inlined_call_operand.smem [shape: u32[44], index: -1, kind: input, shape index: {}]
  %s1 = sld [smem:[%s0]]
  %s2 = scalar_lea.smem %s0, 1
  %s3 = sld [smem:[%s2]]
  %s4 = scalar_lea.smem %s0, 2
  %s5 = sld [smem:[%s4]]
  %s6 = scalar_lea.smem %s0, 3
  %s7 = sld [smem:[%s6]]
  %s8 = scalar_lea.smem %s0, 4
  %s9 = sld [smem:[%s8]]
  %s10 = scalar_lea.smem %s0, 5
  %s11 = sld [smem:[%s10]]
  %s12 = scalar_lea.smem %s0, 6
  %s13 = sld [smem:[%s12]]
  %s14 = scalar_lea.smem %s0, 7
  %s15 = sld [smem:[%s14]]
  %s16 = scalar_lea.smem %s0, 8
  %s17 = sld [smem:[%s16]]
  %s18 = scalar_lea.smem %s0, 9
  %s19 = sld [smem:[%s18]]
  %s20 = scalar_lea.smem %s0, 10
  %s21 = sld [smem:[%s20]]
  %s22 = scalar_lea.smem %s0, 11
  %s23 = sld [smem:[%s22]]
  %s24 = scalar_lea.smem %s0, 12
  %s25 = sld [smem:[%s24]]
  %s26 = scalar_lea.smem %s0, 13
  %s27 = sld [smem:[%s26]]
  %s28 = scalar_lea.smem %s0, 14
  %s29 = sld [smem:[%s28]]
  %s30 = scalar_lea.smem %s0, 15
  %s31 = sld [smem:[%s30]]
  %s32 = scalar_lea.smem %s0, 16
  %s33 = sld [smem:[%s32]]
  %s34 = scalar_lea.smem %s0, 17
  %s35 = sld [smem:[%s34]]
  %s36 = scalar_lea.smem %s0, 18
  %s37 = sld [smem:[%s36]]
  %s38 = scalar_lea.smem %s0, 19
  %s39 = sld [smem:[%s38]]
  %s40 = scalar_lea.smem %s0, 20
  %s41 = sld [smem:[%s40]]
  %s42 = scalar_lea.smem %s0, 21
  %s43 = sld [smem:[%s42]]
  %s44 = scalar_lea.smem %s0, 22
  %s45 = sld [smem:[%s44]]
  %s46 = scalar_lea.smem %s0, 23
  %s47 = sld [smem:[%s46]]
  %s48 = scalar_lea.smem %s0, 24
  %s49 = sld [smem:[%s48]]
  %s50 = scalar_lea.smem %s0, 25
  %s51 = sld [smem:[%s50]]
  %s52 = scalar_lea.smem %s0, 26
  %s53 = sld [smem:[%s52]]
  %s54 = scalar_lea.smem %s0, 27
  %s55 = sld [smem:[%s54]]
  %s56 = scalar_lea.smem %s0, 28
  %s57 = sld [smem:[%s56]]
  %s58 = scalar_lea.smem %s0, 29
  %s59 = sld [smem:[%s58]]
  %s60 = scalar_lea.smem %s0, 30
  %s61 = sld [smem:[%s60]]
  %s62 = scalar_lea.smem %s0, 31
  %s63 = sld [smem:[%s62]]
  %s64 = scalar_lea.smem %s0, 32
  %s65 = sld [smem:[%s64]]
  %s66 = scalar_lea.smem %s0, 33
  %s67 = sld [smem:[%s66]]
  %s68 = scalar_lea.smem %s0, 34
  %s69 = sld [smem:[%s68]]
  %s70 = scalar_lea.smem %s0, 35
  %s71 = sld [smem:[%s70]]
  %s72 = scalar_lea.smem %s0, 36
  %s73 = sld [smem:[%s72]]
  %s74 = scalar_lea.smem %s0, 37
  %s75 = sld [smem:[%s74]]
  %s76 = scalar_lea.smem %s0, 38
  %s77 = sld [smem:[%s76]]
  %s78 = scalar_lea.smem %s0, 39
  %s79 = sld [smem:[%s78]]
  %s80 = scalar_lea.smem %s0, 40
  %s81 = sld [smem:[%s80]]
  %s82 = scalar_lea.smem %s0, 41
  %s83 = sld [smem:[%s82]]
  %s84 = scalar_lea.smem %s0, 42
  %s85 = sld [smem:[%s84]]
  %s86 = scalar_lea.smem %s0, 43
  %s87 = sld [smem:[%s86]]
  %s88 = sld [smem:[#allocation0]]
  $region182: #{bddoia_forward.1} parent=0
    _
  %s90 = ssub.s32 1, %s88
  %s91 = scalar_select 0, %s90, %s88
  // Predicated region
  $region2: #{bddoia_forward.1} parent=0 // pred_check
    _
  $region3: #{bddoia_forward.1} parent=0 // pred_check_branch
    %93 = sbr.rel (0) target = $region5
  $region4: #{bddoia_forward.1} parent=0 // pred_region
    _
  $region5: #{bddoia_forward.1} parent=0 // pred_fallthru
    _
  // Predicated region
  $region6: #{bddoia_forward.1} parent=0 // pred_check
    _
  $region7: #{bddoia_forward.1} parent=0 // pred_check_branch
    %95 = sbr.rel (0) target = $region9
  $region8: #{bddoia_forward.1} parent=0 // pred_region
    _
  $region9: #{bddoia_forward.1} parent=0 // pred_fallthru
    _
  // Predicated region
  $region10: #{bddoia_forward.1} parent=0 // pred_check
    _
  $region11: #{bddoia_forward.1} parent=0 // pred_check_branch
    %97 = sbr.rel (0) target = $region13
  $region12: #{bddoia_forward.1} parent=0 // pred_region
    _
  $region13: #{bddoia_forward.1} parent=0 // pred_fallthru
    _
  // Predicated region
  $region14: #{bddoia_forward.1} parent=0 // pred_check
    _
  $region15: #{bddoia_forward.1} parent=0 // pred_check_branch
    %99 = sbr.rel (0) target = $region17
  $region16: #{bddoia_forward.1} parent=0 // pred_region
    _
  $region17: #{bddoia_forward.1} parent=0 // pred_fallthru
    _
  // Predicated region
  $region18: #{bddoia_forward.1} parent=0 // pred_check
    _
  $region19: #{bddoia_forward.1} parent=0 // pred_check_branch
    %101 = sbr.rel (0) target = $region21
  $region20: #{bddoia_forward.1} parent=0 // pred_region
    _
  $region21: #{bddoia_forward.1} parent=0 // pred_fallthru
    _
  // Predicated region
  $region22: #{bddoia_forward.1} parent=0 // pred_check
    _
  $region23: #{bddoia_forward.1} parent=0 // pred_check_branch
    %103 = sbr.rel (0) target = $region25
  $region24: #{bddoia_forward.1} parent=0 // pred_region
    _
  $region25: #{bddoia_forward.1} parent=0 // pred_fallthru
    _
  // Predicated region
  $region26: #{bddoia_forward.1} parent=0 // pred_check
    _
  $region27: #{bddoia_forward.1} parent=0 // pred_check_branch
    %105 = sbr.rel (0) target = $region29
  $region28: #{bddoia_forward.1} parent=0 // pred_region
    _
  $region29: #{bddoia_forward.1} parent=0 // pred_fallthru
    _
  // Predicated region
  $region30: #{bddoia_forward.1} parent=0 // pred_check
    _
  $region31: #{bddoia_forward.1} parent=0 // pred_check_branch
    %107 = sbr.rel (0) target = $region33
  $region32: #{bddoia_forward.1} parent=0 // pred_region
    _
  $region33: #{bddoia_forward.1} parent=0 // pred_fallthru
    _
  // Predicated region
  $region34: #{bddoia_forward.1} parent=0 // pred_check
    _
  $region35: #{bddoia_forward.1} parent=0 // pred_check_branch
    %109 = sbr.rel (0) target = $region37
  $region36: #{bddoia_forward.1} parent=0 // pred_region
    _
  $region37: #{bddoia_forward.1} parent=0 // pred_fallthru
    _
  // Predicated region
  $region38: #{bddoia_forward.1} parent=0 // pred_check
    _
  $region39: #{bddoia_forward.1} parent=0 // pred_check_branch
    %111 = sbr.rel (0) target = $region41
  $region40: #{bddoia_forward.1} parent=0 // pred_region
    _
  $region41: #{bddoia_forward.1} parent=0 // pred_fallthru
    _
  // Predicated region
  $region42: #{bddoia_forward.1} parent=0 // pred_check
    _
  $region43: #{bddoia_forward.1} parent=0 // pred_check_branch
    %113 = sbr.rel (0) target = $region45
  $region44: #{bddoia_forward.1} parent=0 // pred_region
    _
  $region45: #{bddoia_forward.1} parent=0 // pred_fallthru
    _
  // Predicated region
  $region46: #{bddoia_forward.1} parent=0 // pred_check
    _
  $region47: #{bddoia_forward.1} parent=0 // pred_check_branch
    %115 = sbr.rel (0) target = $region49
  $region48: #{bddoia_forward.1} parent=0 // pred_region
    _
  $region49: #{bddoia_forward.1} parent=0 // pred_fallthru
    _
  // Predicated region
  $region50: #{bddoia_forward.1} parent=0 // pred_check
    _
  $region51: #{bddoia_forward.1} parent=0 // pred_check_branch
    %117 = sbr.rel (0) target = $region53
  $region52: #{bddoia_forward.1} parent=0 // pred_region
    _
  $region53: #{bddoia_forward.1} parent=0 // pred_fallthru
    _
  // Predicated region
  $region54: #{bddoia_forward.1} parent=0 // pred_check
    _
  $region55: #{bddoia_forward.1} parent=0 // pred_check_branch
    %119 = sbr.rel (0) target = $region57
  $region56: #{bddoia_forward.1} parent=0 // pred_region
    _
  $region57: #{bddoia_forward.1} parent=0 // pred_fallthru
    _
  // Predicated region
  $region58: #{bddoia_forward.1} parent=0 // pred_check
    _
  $region59: #{bddoia_forward.1} parent=0 // pred_check_branch
    %121 = sbr.rel (0) target = $region61
  $region60: #{bddoia_forward.1} parent=0 // pred_region
    _
  $region61: #{bddoia_forward.1} parent=0 // pred_fallthru
    _
  // Predicated region
  $region62: #{bddoia_forward.1} parent=0 // pred_check
    _
  $region63: #{bddoia_forward.1} parent=0 // pred_check_branch
    %123 = sbr.rel (0) target = $region65
  $region64: #{bddoia_forward.1} parent=0 // pred_region
    _
  $region65: #{bddoia_forward.1} parent=0 // pred_fallthru
    _
  // Predicated region
  $region66: #{bddoia_forward.1} parent=0 // pred_check
    _
  $region67: #{bddoia_forward.1} parent=0 // pred_check_branch
    %125 = sbr.rel (0) target = $region69
  $region68: #{bddoia_forward.1} parent=0 // pred_region
    _
  $region69: #{bddoia_forward.1} parent=0 // pred_fallthru
    _
  // Predicated region
  $region70: #{bddoia_forward.1} parent=0 // pred_check
    _
  $region71: #{bddoia_forward.1} parent=0 // pred_check_branch
    %127 = sbr.rel (0) target = $region73
  $region72: #{bddoia_forward.1} parent=0 // pred_region
    _
  $region73: #{bddoia_forward.1} parent=0 // pred_fallthru
    _
  // Predicated region
  $region74: #{bddoia_forward.1} parent=0 // pred_check
    _
  $region75: #{bddoia_forward.1} parent=0 // pred_check_branch
    %129 = sbr.rel (0) target = $region77
  $region76: #{bddoia_forward.1} parent=0 // pred_region
    _
  $region77: #{bddoia_forward.1} parent=0 // pred_fallthru
    _
  // Predicated region
  $region78: #{bddoia_forward.1} parent=0 // pred_check
    _
  $region79: #{bddoia_forward.1} parent=0 // pred_check_branch
    %131 = sbr.rel (0) target = $region81
  $region80: #{bddoia_forward.1} parent=0 // pred_region
    _
  $region81: #{bddoia_forward.1} parent=0 // pred_fallthru
    _
  // Predicated region
  $region82: #{bddoia_forward.1} parent=0 // pred_check
    _
  $region83: #{bddoia_forward.1} parent=0 // pred_check_branch
    %133 = sbr.rel (0) target = $region85
  $region84: #{bddoia_forward.1} parent=0 // pred_region
    _
  $region85: #{bddoia_forward.1} parent=0 // pred_fallthru
    _
  // Predicated region
  $region86: #{bddoia_forward.1} parent=0 // pred_check
    _
  $region87: #{bddoia_forward.1} parent=0 // pred_check_branch
    %135 = sbr.rel (0) target = $region89
  $region88: #{bddoia_forward.1} parent=0 // pred_region
    _
  $region89: #{bddoia_forward.1} parent=0 // pred_fallthru
    _
  // Predicated region
  $region90: #{bddoia_forward.1} parent=0 // pred_check
    _
  $region91: #{bddoia_forward.1} parent=0 // pred_check_branch
    %137 = sbr.rel (0) target = $region93
  $region92: #{bddoia_forward.1} parent=0 // pred_region
    _
  $region93: #{bddoia_forward.1} parent=0 // pred_fallthru
    _
  // Predicated region
  $region94: #{bddoia_forward.1} parent=0 // pred_check
    _
  $region95: #{bddoia_forward.1} parent=0 // pred_check_branch
    %139 = sbr.rel (0) target = $region97
  $region96: #{bddoia_forward.1} parent=0 // pred_region
    _
  $region97: #{bddoia_forward.1} parent=0 // pred_fallthru
    _
  // Predicated region
  $region98: #{bddoia_forward.1} parent=0 // pred_check
    _
  $region99: #{bddoia_forward.1} parent=0 // pred_check_branch
    %141 = sbr.rel (0) target = $region101
  $region100: #{bddoia_forward.1} parent=0 // pred_region
    _
  $region101: #{bddoia_forward.1} parent=0 // pred_fallthru
    _
  // Predicated region
  $region102: #{bddoia_forward.1} parent=0 // pred_check
    _
  $region103: #{bddoia_forward.1} parent=0 // pred_check_branch
    %143 = sbr.rel (0) target = $region105
  $region104: #{bddoia_forward.1} parent=0 // pred_region
    _
  $region105: #{bddoia_forward.1} parent=0 // pred_fallthru
    _
  // Predicated region
  $region106: #{bddoia_forward.1} parent=0 // pred_check
    _
  $region107: #{bddoia_forward.1} parent=0 // pred_check_branch
    %145 = sbr.rel (0) target = $region109
  $region108: #{bddoia_forward.1} parent=0 // pred_region
    _
  $region109: #{bddoia_forward.1} parent=0 // pred_fallthru
    _
  // Predicated region
  $region110: #{bddoia_forward.1} parent=0 // pred_check
    _
  $region111: #{bddoia_forward.1} parent=0 // pred_check_branch
    %147 = sbr.rel (0) target = $region113
  $region112: #{bddoia_forward.1} parent=0 // pred_region
    _
  $region113: #{bddoia_forward.1} parent=0 // pred_fallthru
    _
  // Predicated region
  $region114: #{bddoia_forward.1} parent=0 // pred_check
    _
  $region115: #{bddoia_forward.1} parent=0 // pred_check_branch
    %149 = sbr.rel (0) target = $region117
  $region116: #{bddoia_forward.1} parent=0 // pred_region
    _
  $region117: #{bddoia_forward.1} parent=0 // pred_fallthru
    _
  // Predicated region
  $region118: #{bddoia_forward.1} parent=0 // pred_check
    _
  $region119: #{bddoia_forward.1} parent=0 // pred_check_branch
    %151 = sbr.rel (0) target = $region121
  $region120: #{bddoia_forward.1} parent=0 // pred_region
    _
  $region121: #{bddoia_forward.1} parent=0 // pred_fallthru
    _
  // Predicated region
  $region122: #{bddoia_forward.1} parent=0 // pred_check
    _
  $region123: #{bddoia_forward.1} parent=0 // pred_check_branch
    %153 = sbr.rel (0) target = $region125
  $region124: #{bddoia_forward.1} parent=0 // pred_region
    _
  $region125: #{bddoia_forward.1} parent=0 // pred_fallthru
    _
  // Predicated region
  $region126: #{bddoia_forward.1} parent=0 // pred_check
    _
  $region127: #{bddoia_forward.1} parent=0 // pred_check_branch
    %155 = sbr.rel (0) target = $region129
  $region128: #{bddoia_forward.1} parent=0 // pred_region
    _
  $region129: #{bddoia_forward.1} parent=0 // pred_fallthru
    _
  // Predicated region
  $region130: #{bddoia_forward.1} parent=0 // pred_check
    _
  $region131: #{bddoia_forward.1} parent=0 // pred_check_branch
    %157 = sbr.rel (0) target = $region133
  $region132: #{bddoia_forward.1} parent=0 // pred_region
    _
  $region133: #{bddoia_forward.1} parent=0 // pred_fallthru
    _
  // Predicated region
  $region134: #{bddoia_forward.1} parent=0 // pred_check
    _
  $region135: #{bddoia_forward.1} parent=0 // pred_check_branch
    %159 = sbr.rel (0) target = $region137
  $region136: #{bddoia_forward.1} parent=0 // pred_region
    _
  $region137: #{bddoia_forward.1} parent=0 // pred_fallthru
    _
  // Predicated region
  $region138: #{bddoia_forward.1} parent=0 // pred_check
    _
  $region139: #{bddoia_forward.1} parent=0 // pred_check_branch
    %161 = sbr.rel (0) target = $region141
  $region140: #{bddoia_forward.1} parent=0 // pred_region
    _
  $region141: #{bddoia_forward.1} parent=0 // pred_fallthru
    _
  // Predicated region
  $region142: #{bddoia_forward.1} parent=0 // pred_check
    _
  $region143: #{bddoia_forward.1} parent=0 // pred_check_branch
    %163 = sbr.rel (0) target = $region145
  $region144: #{bddoia_forward.1} parent=0 // pred_region
    _
  $region145: #{bddoia_forward.1} parent=0 // pred_fallthru
    _
  // Predicated region
  $region146: #{bddoia_forward.1} parent=0 // pred_check
    _
  $region147: #{bddoia_forward.1} parent=0 // pred_check_branch
    %165 = sbr.rel (0) target = $region149
  $region148: #{bddoia_forward.1} parent=0 // pred_region
    _
  $region149: #{bddoia_forward.1} parent=0 // pred_fallthru
    _
  // Predicated region
  $region150: #{bddoia_forward.1} parent=0 // pred_check
    _
  $region151: #{bddoia_forward.1} parent=0 // pred_check_branch
    %167 = sbr.rel (0) target = $region153
  $region152: #{bddoia_forward.1} parent=0 // pred_region
    _
  $region153: #{bddoia_forward.1} parent=0 // pred_fallthru
    _
  // Predicated region
  $region154: #{bddoia_forward.1} parent=0 // pred_check
    _
  $region155: #{bddoia_forward.1} parent=0 // pred_check_branch
    %169 = sbr.rel (0) target = $region157
  $region156: #{bddoia_forward.1} parent=0 // pred_region
    _
  $region157: #{bddoia_forward.1} parent=0 // pred_fallthru
    _
  // Predicated region
  $region158: #{bddoia_forward.1} parent=0 // pred_check
    _
  $region159: #{bddoia_forward.1} parent=0 // pred_check_branch
    %171 = sbr.rel (0) target = $region161
  $region160: #{bddoia_forward.1} parent=0 // pred_region
    _
  $region161: #{bddoia_forward.1} parent=0 // pred_fallthru
    _
  // Predicated region
  $region162: #{bddoia_forward.1} parent=0 // pred_check
    _
  $region163: #{bddoia_forward.1} parent=0 // pred_check_branch
    %173 = sbr.rel (0) target = $region165
  $region164: #{bddoia_forward.1} parent=0 // pred_region
    _
  $region165: #{bddoia_forward.1} parent=0 // pred_fallthru
    _
  // Predicated region
  $region166: #{bddoia_forward.1} parent=0 // pred_check
    _
  $region167: #{bddoia_forward.1} parent=0 // pred_check_branch
    %175 = sbr.rel (0) target = $region169
  $region168: #{bddoia_forward.1} parent=0 // pred_region
    _
  $region169: #{bddoia_forward.1} parent=0 // pred_fallthru
    _
  // Predicated region
  $region170: #{bddoia_forward.1} parent=0 // pred_check
    _
  $region171: #{bddoia_forward.1} parent=0 // pred_check_branch
    %177 = sbr.rel (0) target = $region173
  $region172: #{bddoia_forward.1} parent=0 // pred_region
    _
  $region173: #{bddoia_forward.1} parent=0 // pred_fallthru
    _
  %v179 = vld [vmem:[%s1] sm:$0xff]
  %v180 = vld [vmem:[%s1 + $0x8] sm:$0xff]
  %v181 = vld [vmem:[%s1 + $0x10] sm:$0xff]
  %v182 = vld [vmem:[%s1 + $0x18] sm:$0xff]
  %v183 = vpack.c.bf16 %v180, %v179
  %v184 = vpack.c.bf16 %v182, %v181
  %v185 = vld [vmem:[%s3] sm:$0xf]
  %v186 = vld [vmem:[%s3 + $0x4] sm:$0xf]
  %v187 = vld [vmem:[%s3 + $0x8] sm:$0xf]
  %v188 = vld [vmem:[%s3 + $0xc] sm:$0xf]
  %v189 = vld [vmem:[%s3 + $0x10] sm:$0xf]
  %v190 = vld [vmem:[%s3 + $0x14] sm:$0xf]
  %v191 = vld [vmem:[%s5] sm:$0x1]
  %v193 = vlaneseq
  %v194 = vshrl.u32 %v193, 7
  %v195 = vsub.s32 0, %v194
  %v196 = vrot.slane %v191, %v195
  %v204 = vunpack.c.l.b16 %v185
  %v205 = vunpack.c.l.b16 %v186
  %v206 = vunpack.c.l.b16 %v187
  %v207 = vunpack.c.l.b16 %v188
  %v208 = vunpack.c.l.b16 %v189
  %v209 = vunpack.c.l.b16 %v190
  %v210 = vpack.c.b16 %v205, %v204
  %v211 = vpack.c.b16 %v207, %v206
  %v212 = vpack.c.b16 %v209, %v208
  %vm216 = vcmask 392192
  %v218 = vsel %vm216, %v183, 0
  %v221 = vsel %vm216, %v184, 0
  %223 = vmatprep.subr.bf16.mxu0 0
  %224 = vmatpush1.bf16.msra.mxu0 %v210
  %225 = vmatprep.subr.bf16.mxu0 0
  %226 = vmatpush1.bf16.msra.mxu0 %v211
  %227 = vmatprep.subr.bf16.mxu0 0
  %228 = vmatpush1.bf16.msra.mxu0 %v212
  %229 = vmatprep.subr.bf16.mxu0 0
  %230 = vmatpush1.bf16.msra.mxu0 0
  %231 = vmatprep.subr.bf16.mxu0 0
  %232 = vmatpush1.bf16.msra.mxu0 0
  %233 = vmatprep.subr.bf16.mxu0 0
  %234 = vmatpush1.bf16.msra.mxu0 0
  %235 = vmatprep.subr.bf16.mxu0 0
  %236 = vmatpush1.bf16.msra.mxu0 0
  %237 = vmatprep.subr.bf16.mxu0 0
  %238 = vmatpush1.bf16.msra.mxu0 0
  %239 = vmatprep.subr.bf16.mxu0 0
  %240 = vmatpush1.bf16.msra.mxu0 0
  %241 = vmatprep.subr.bf16.mxu0 0
  %242 = vmatpush1.bf16.msra.mxu0 0
  %243 = vmatprep.subr.bf16.mxu0 0
  %244 = vmatpush1.bf16.msra.mxu0 0
  %245 = vmatprep.subr.bf16.mxu0 0
  %246 = vmatpush1.bf16.msra.mxu0 0
  %247 = vmatprep.subr.bf16.mxu0 0
  %248 = vmatpush1.bf16.msra.mxu0 0
  %249 = vmatprep.subr.bf16.mxu0 0
  %250 = vmatpush1.bf16.msra.mxu0 0
  %251 = vmatprep.subr.bf16.mxu0 0
  %252 = vmatpush1.bf16.msra.mxu0 0
  %253 = vmatprep.subr.bf16.mxu0 0
  %254 = vmatpush1.bf16.msra.mxu0 0
  %255 = vmatprep.mubr.bf16.mxu0 0
  %256 = vmatmul.mubr.bf16.gmra.mrb[0].mxu0 %v218
  %v257 = vpop.f32.mrb[0].mxu0
  %v258 = vadd.f32 %v196, %v257
  %v259 = vpop.f32.mrb[0].mxu0
  %v260 = vpop.f32.mrb[0].mxu0
  %v261 = vadd.f32 %v196, %v260
  %v262 = vpop.f32.mrb[0].mxu0
  %263 = vmatprep.mubr.bf16.mxu0 0
  %264 = vmatmul.mubr.bf16.gmra.mrb[0].mxu0 %v221
  %v265 = vpop.f32.mrb[0].mxu0
  %v266 = vadd.f32 %v196, %v265
  %v267 = vpop.f32.mrb[0].mxu0
  %v268 = vpop.f32.mrb[0].mxu0
  %v269 = vadd.f32 %v196, %v268
  %v270 = vpop.f32.mrb[0].mxu0
  %271 = vdwg.mxu0
  %v272 = vpack.c.bf16 %v261, %v258
  %v273 = vpack.c.bf16 %v269, %v266
  %v274 = vld [vmem:[%s7] sm:$0xf]
  %v275 = vld [vmem:[%s7 + $0x4] sm:$0xf]
  %v276 = vld [vmem:[%s7 + $0x8] sm:$0xf]
  %v277 = vld [vmem:[%s7 + $0xc] sm:$0xf]
  %v282 = vunpack.c.l.b16 %v274
  %v283 = vunpack.c.l.b16 %v275
  %v284 = vunpack.c.l.b16 %v276
  %v285 = vunpack.c.l.b16 %v277
  %v286 = vpack.c.b16 %v283, %v282
  %v287 = vpack.c.b16 %v285, %v284
  %vm290 = vcmask 261120
  %v292 = vsel %vm290, %v272, 0
  %v295 = vsel %vm290, %v273, 0
  %297 = vmatprep.subr.bf16.mxu0 0
  %298 = vmatpush1.bf16.msra.mxu0 %v286
  %299 = vmatprep.subr.bf16.mxu0 0
  %300 = vmatpush1.bf16.msra.mxu0 %v287
  %301 = vmatprep.subr.bf16.mxu0 0
  %302 = vmatpush1.bf16.msra.mxu0 0
  %303 = vmatprep.subr.bf16.mxu0 0
  %304 = vmatpush1.bf16.msra.mxu0 0
  %305 = vmatprep.subr.bf16.mxu0 0
  %306 = vmatpush1.bf16.msra.mxu0 0
  %307 = vmatprep.subr.bf16.mxu0 0
  %308 = vmatpush1.bf16.msra.mxu0 0
  %309 = vmatprep.subr.bf16.mxu0 0
  %310 = vmatpush1.bf16.msra.mxu0 0
  %311 = vmatprep.subr.bf16.mxu0 0
  %312 = vmatpush1.bf16.msra.mxu0 0
  %313 = vmatprep.subr.bf16.mxu0 0
  %314 = vmatpush1.bf16.msra.mxu0 0
  %315 = vmatprep.subr.bf16.mxu0 0
  %316 = vmatpush1.bf16.msra.mxu0 0
  %317 = vmatprep.subr.bf16.mxu0 0
  %318 = vmatpush1.bf16.msra.mxu0 0
  %319 = vmatprep.subr.bf16.mxu0 0
  %320 = vmatpush1.bf16.msra.mxu0 0
  %321 = vmatprep.subr.bf16.mxu0 0
  %322 = vmatpush1.bf16.msra.mxu0 0
  %323 = vmatprep.subr.bf16.mxu0 0
  %324 = vmatpush1.bf16.msra.mxu0 0
  %325 = vmatprep.subr.bf16.mxu0 0
  %326 = vmatpush1.bf16.msra.mxu0 0
  %327 = vmatprep.subr.bf16.mxu0 0
  %328 = vmatpush1.bf16.msra.mxu0 0
  %329 = vmatprep.mubr.bf16.mxu0 0
  %330 = vmatmul.mubr.bf16.gmra.mrb[0].mxu0 %v292
  %v331 = vpop.f32.mrb[0].mxu0
  %v332 = vadd.f32 0.0, %v331
  %v333 = vpop.f32.mrb[0].mxu0
  %v334 = vpop.f32.mrb[0].mxu0
  %v335 = vadd.f32 0.0, %v334
  %v336 = vpop.f32.mrb[0].mxu0
  %337 = vmatprep.mubr.bf16.mxu0 0
  %338 = vmatmul.mubr.bf16.gmra.mrb[0].mxu0 %v295
  %v339 = vpop.f32.mrb[0].mxu0
  %v340 = vadd.f32 0.0, %v339
  %v341 = vpop.f32.mrb[0].mxu0
  %v342 = vpop.f32.mrb[0].mxu0
  %v343 = vadd.f32 0.0, %v342
  %v344 = vpop.f32.mrb[0].mxu0
  %345 = vdwg.mxu0
  %v346 = vld [vmem:[%s9] sm:$0xff]
  %v347 = vld [vmem:[%s9 + $0x8] sm:$0xff]
  %v348 = vadd.f32 %v332, %v346
  %v349 = vadd.f32 %v335, %v347
  %v350 = vadd.f32 %v340, %v346
  %v351 = vadd.f32 %v343, %v347
  %v352 = vld [vmem:[%s11] sm:$0xf]
  %v353 = vld [vmem:[%s11 + $0x4] sm:$0xf]
  %v354 = vld [vmem:[%s11 + $0x8] sm:$0xf]
  %v355 = vld [vmem:[%s11 + $0xc] sm:$0xf]
  %v356 = vld [vmem:[%s13] sm:$0x1]
  %361 = vrot.lane.b32.xlu0 %v348, 96
  %v362 = vpop.permute.xlu0 %361
  %363 = vrot.lane.b32.xlu0 %v349, 96
  %v364 = vpop.permute.xlu0 %363
  %365 = vrot.lane.b32.xlu0 %v350, 96
  %v366 = vpop.permute.xlu0 %365
  %367 = vrot.lane.b32.xlu0 %v351, 96
  %v368 = vpop.permute.xlu0 %367
  %373 = vxpose.xlu0.b32.start [1/16] %v362, 128
  %374 = vxpose.xlu0.b32.cont [2/16] %v364, 128
  %375 = vxpose.xlu0.b32.cont [3/16] 0.0, 128
  %376 = vxpose.xlu0.b32.cont [4/16] 0.0, 128
  %377 = vxpose.xlu0.b32.cont [5/16] 0.0, 128
  %378 = vxpose.xlu0.b32.cont [6/16] 0.0, 128
  %379 = vxpose.xlu0.b32.cont [7/16] 0.0, 128
  %380 = vxpose.xlu0.b32.cont [8/16] 0.0, 128
  %381 = vxpose.xlu0.b32.cont [9/16] 0.0, 128
  %382 = vxpose.xlu0.b32.cont [10/16] 0.0, 128
  %383 = vxpose.xlu0.b32.cont [11/16] 0.0, 128
  %384 = vxpose.xlu0.b32.cont [12/16] 0.0, 128
  %385 = vxpose.xlu0.b32.cont [13/16] 0.0, 128
  %386 = vxpose.xlu0.b32.cont [14/16] 0.0, 128
  %387 = vxpose.xlu0.b32.cont [15/16] 0.0, 128
  %388 = vxpose.xlu0.b32.end [16/16] 0.0, 128
  %v389 = vpop.trf.xlu0
  %v390 = vpop.trf.xlu0
  %v391 = vpop.trf.xlu0
  %v392 = vpop.trf.xlu0
  %v393 = vpop.trf.xlu0
  %v394 = vpop.trf.xlu0
  %v395 = vpop.trf.xlu0
  %v396 = vpop.trf.xlu0
  %v397 = vpop.trf.xlu0
  %v398 = vpop.trf.xlu0
  %v399 = vpop.trf.xlu0
  %v400 = vpop.trf.xlu0
  %v401 = vpop.trf.xlu0
  %v402 = vpop.trf.xlu0
  %v403 = vpop.trf.xlu0
  %v404 = vpop.trf.xlu0
  %405 = vxpose.xlu0.b32.start [1/16] %v366, 128
  %406 = vxpose.xlu0.b32.cont [2/16] %v368, 128
  %407 = vxpose.xlu0.b32.cont [3/16] 0.0, 128
  %408 = vxpose.xlu0.b32.cont [4/16] 0.0, 128
  %409 = vxpose.xlu0.b32.cont [5/16] 0.0, 128
  %410 = vxpose.xlu0.b32.cont [6/16] 0.0, 128
  %411 = vxpose.xlu0.b32.cont [7/16] 0.0, 128
  %412 = vxpose.xlu0.b32.cont [8/16] 0.0, 128
  %413 = vxpose.xlu0.b32.cont [9/16] 0.0, 128
  %414 = vxpose.xlu0.b32.cont [10/16] 0.0, 128
  %415 = vxpose.xlu0.b32.cont [11/16] 0.0, 128
  %416 = vxpose.xlu0.b32.cont [12/16] 0.0, 128
  %417 = vxpose.xlu0.b32.cont [13/16] 0.0, 128
  %418 = vxpose.xlu0.b32.cont [14/16] 0.0, 128
  %419 = vxpose.xlu0.b32.cont [15/16] 0.0, 128
  %420 = vxpose.xlu0.b32.end [16/16] 0.0, 128
  %v421 = vpop.trf.xlu0
  %v422 = vpop.trf.xlu0
  %v423 = vpop.trf.xlu0
  %v424 = vpop.trf.xlu0
  %v425 = vpop.trf.xlu0
  %v426 = vpop.trf.xlu0
  %v427 = vpop.trf.xlu0
  %v428 = vpop.trf.xlu0
  %v429 = vpop.trf.xlu0
  %v430 = vpop.trf.xlu0
  %v431 = vpop.trf.xlu0
  %v432 = vpop.trf.xlu0
  %v433 = vpop.trf.xlu0
  %v434 = vpop.trf.xlu0
  %v435 = vpop.trf.xlu0
  %v436 = vpop.trf.xlu0
  %v437 = vpack.c.bf16 %v349, %v348
  %v438 = vpack.c.bf16 %v351, %v350
  %v439 = vpack.c.bf16 %v390, %v389
  %v440 = vpack.c.bf16 %v392, %v391
  %v441 = vpack.c.bf16 %v422, %v421
  %v442 = vpack.c.bf16 %v424, %v423
  %vm443 = vcmask 64512
  %v445 = vsel %vm443, %v437, 0
  %vm447 = vcmask 1043456
  %v449 = vsel %vm447, %v439, 0
  %451 = vmatprep.subr.bf16.mxu0 0
  %452 = vmatpush1.bf16.msra.mxu0 %v449
  %453 = vmatprep.subr.bf16.mxu0 0
  %454 = vmatpush1.bf16.msra.mxu0 0
  %455 = vmatprep.subr.bf16.mxu0 0
  %456 = vmatpush1.bf16.msra.mxu0 0
  %457 = vmatprep.subr.bf16.mxu0 0
  %458 = vmatpush1.bf16.msra.mxu0 0
  %459 = vmatprep.subr.bf16.mxu0 0
  %460 = vmatpush1.bf16.msra.mxu0 0
  %461 = vmatprep.subr.bf16.mxu0 0
  %462 = vmatpush1.bf16.msra.mxu0 0
  %463 = vmatprep.subr.bf16.mxu0 0
  %464 = vmatpush1.bf16.msra.mxu0 0
  %465 = vmatprep.subr.bf16.mxu0 0
  %466 = vmatpush1.bf16.msra.mxu0 0
  %467 = vmatprep.subr.bf16.mxu0 0
  %468 = vmatpush1.bf16.msra.mxu0 0
  %469 = vmatprep.subr.bf16.mxu0 0
  %470 = vmatpush1.bf16.msra.mxu0 0
  %471 = vmatprep.subr.bf16.mxu0 0
  %472 = vmatpush1.bf16.msra.mxu0 0
  %473 = vmatprep.subr.bf16.mxu0 0
  %474 = vmatpush1.bf16.msra.mxu0 0
  %475 = vmatprep.subr.bf16.mxu0 0
  %476 = vmatpush1.bf16.msra.mxu0 0
  %477 = vmatprep.subr.bf16.mxu0 0
  %478 = vmatpush1.bf16.msra.mxu0 0
  %479 = vmatprep.subr.bf16.mxu0 0
  %480 = vmatpush1.bf16.msra.mxu0 0
  %481 = vmatprep.subr.bf16.mxu0 0
  %482 = vmatpush1.bf16.msra.mxu0 0
  %483 = vmatprep.mubr.bf16.mxu0 0
  %484 = vmatmul.mubr.bf16.gmra.mrb[0].mxu0 %v445
  %v485 = vpop.f32.mrb[0].mxu0
  %v486 = vadd.f32 0.0, %v485
  %v487 = vpop.f32.mrb[0].mxu0
  %v488 = vpop.f32.mrb[0].mxu0
  %v489 = vadd.f32 0.0, %v488
  %v490 = vpop.f32.mrb[0].mxu0
  %491 = vdwg.mxu0
  %v493 = vsel %vm443, %v438, 0
  %v496 = vsel %vm447, %v441, 0
  %498 = vmatprep.subr.bf16.mxu0 0
  %499 = vmatpush1.bf16.msra.mxu0 %v496
  %500 = vmatprep.subr.bf16.mxu0 0
  %501 = vmatpush1.bf16.msra.mxu0 0
  %502 = vmatprep.subr.bf16.mxu0 0
  %503 = vmatpush1.bf16.msra.mxu0 0
  %504 = vmatprep.subr.bf16.mxu0 0
  %505 = vmatpush1.bf16.msra.mxu0 0
  %506 = vmatprep.subr.bf16.mxu0 0
  %507 = vmatpush1.bf16.msra.mxu0 0
  %508 = vmatprep.subr.bf16.mxu0 0
  %509 = vmatpush1.bf16.msra.mxu0 0
  %510 = vmatprep.subr.bf16.mxu0 0
  %511 = vmatpush1.bf16.msra.mxu0 0
  %512 = vmatprep.subr.bf16.mxu0 0
  %513 = vmatpush1.bf16.msra.mxu0 0
  %514 = vmatprep.subr.bf16.mxu0 0
  %515 = vmatpush1.bf16.msra.mxu0 0
  %516 = vmatprep.subr.bf16.mxu0 0
  %517 = vmatpush1.bf16.msra.mxu0 0
  %518 = vmatprep.subr.bf16.mxu0 0
  %519 = vmatpush1.bf16.msra.mxu0 0
  %520 = vmatprep.subr.bf16.mxu0 0
  %521 = vmatpush1.bf16.msra.mxu0 0
  %522 = vmatprep.subr.bf16.mxu0 0
  %523 = vmatpush1.bf16.msra.mxu0 0
  %524 = vmatprep.subr.bf16.mxu0 0
  %525 = vmatpush1.bf16.msra.mxu0 0
  %526 = vmatprep.subr.bf16.mxu0 0
  %527 = vmatpush1.bf16.msra.mxu0 0
  %528 = vmatprep.subr.bf16.mxu0 0
  %529 = vmatpush1.bf16.msra.mxu0 0
  %530 = vmatprep.mubr.bf16.mxu0 0
  %531 = vmatmul.mubr.bf16.gmra.mrb[0].mxu0 %v493
  %v532 = vpop.f32.mrb[0].mxu0
  %v533 = vadd.f32 0.0, %v532
  %v534 = vpop.f32.mrb[0].mxu0
  %v535 = vpop.f32.mrb[0].mxu0
  %v536 = vadd.f32 0.0, %v535
  %v537 = vpop.f32.mrb[0].mxu0
  %538 = vdwg.mxu0
  %vm539 = vcmask 130048
  %v540 = vsel %vm539, %v486, -inf
  %541 = vmax.xlane.f32.xlu0 %v540
  %v542 = vpop.xlane.xlu0 %541
  %v543 = vsel %vm539, %v489, -inf
  %544 = vmax.xlane.f32.xlu0 %v543
  %v545 = vpop.xlane.xlu0 %544
  %v546 = vsel %vm539, %v533, -inf
  %547 = vmax.xlane.f32.xlu0 %v546
  %v548 = vpop.xlane.xlu0 %547
  %v549 = vsel %vm539, %v536, -inf
  %550 = vmax.xlane.f32.xlu0 %v549
  %v551 = vpop.xlane.xlu0 %550
  %v552 = vsub.f32 %v486, %v542
  %v553 = vsub.f32 %v489, %v545
  %v554 = vsub.f32 %v533, %v548
  %v555 = vsub.f32 %v536, %v551
  %v556 = vmul.f32 %v552, 1.442695
  %v557 = vpow.pop %v556
  %v558 = vmul.f32 %v553, 1.442695
  %v559 = vpow.pop %v558
  %v560 = vmul.f32 %v554, 1.442695
  %v561 = vpow.pop %v560
  %v562 = vmul.f32 %v555, 1.442695
  %v563 = vpow.pop %v562
  %v564 = vsel %vm539, %v557, 0.0
  %565 = vadd.xlane.f32.xlu0 %v564
  %v566 = vpop.xlane.xlu0 %565
  %v567 = vsel %vm539, %v559, 0.0
  %568 = vadd.xlane.f32.xlu0 %v567
  %v569 = vpop.xlane.xlu0 %568
  %v570 = vsel %vm539, %v561, 0.0
  %571 = vadd.xlane.f32.xlu0 %v570
  %v572 = vpop.xlane.xlu0 %571
  %v573 = vsel %vm539, %v563, 0.0
  %574 = vadd.xlane.f32.xlu0 %v573
  %v575 = vpop.xlane.xlu0 %574
  %v576 = vrcp.pop %v566
  %v577 = vrcp.pop %v569
  %v578 = vrcp.pop %v572
  %v579 = vrcp.pop %v575
  %v580 = vmul.f32 %v557, %v576
  %v581 = vmul.f32 %v559, %v577
  %v582 = vmul.f32 %v561, %v578
  %v583 = vmul.f32 %v563, %v579
  %v584 = vpack.c.bf16 %v581, %v580
  %v585 = vpack.c.bf16 %v583, %v582
  %587 = vrot.lane.b32.xlu0 %v437, 64
  %v588 = vpop.permute.xlu0 %587
  %v591 = vsel %vm539, %v584, 0
  %593 = vmatprep.subr.bf16.mxu0 0
  %594 = vmatpush1.bf16.msra.mxu0 %v588
  %595 = vmatprep.subr.bf16.mxu0 0
  %596 = vmatpush1.bf16.msra.mxu0 0
  %597 = vmatprep.subr.bf16.mxu0 0
  %598 = vmatpush1.bf16.msra.mxu0 0
  %599 = vmatprep.subr.bf16.mxu0 0
  %600 = vmatpush1.bf16.msra.mxu0 0
  %601 = vmatprep.subr.bf16.mxu0 0
  %602 = vmatpush1.bf16.msra.mxu0 0
  %603 = vmatprep.subr.bf16.mxu0 0
  %604 = vmatpush1.bf16.msra.mxu0 0
  %605 = vmatprep.subr.bf16.mxu0 0
  %606 = vmatpush1.bf16.msra.mxu0 0
  %607 = vmatprep.subr.bf16.mxu0 0
  %608 = vmatpush1.bf16.msra.mxu0 0
  %609 = vmatprep.subr.bf16.mxu0 0
  %610 = vmatpush1.bf16.msra.mxu0 0
  %611 = vmatprep.subr.bf16.mxu0 0
  %612 = vmatpush1.bf16.msra.mxu0 0
  %613 = vmatprep.subr.bf16.mxu0 0
  %614 = vmatpush1.bf16.msra.mxu0 0
  %615 = vmatprep.subr.bf16.mxu0 0
  %616 = vmatpush1.bf16.msra.mxu0 0
  %617 = vmatprep.subr.bf16.mxu0 0
  %618 = vmatpush1.bf16.msra.mxu0 0
  %619 = vmatprep.subr.bf16.mxu0 0
  %620 = vmatpush1.bf16.msra.mxu0 0
  %621 = vmatprep.subr.bf16.mxu0 0
  %622 = vmatpush1.bf16.msra.mxu0 0
  %623 = vmatprep.subr.bf16.mxu0 0
  %624 = vmatpush1.bf16.msra.mxu0 0
  %625 = vmatprep.mubr.bf16.mxu0 0
  %626 = vmatmul.mubr.bf16.gmra.mrb[0].mxu0 %v591
  %v627 = vpop.f32.mrb[0].mxu0
  %v628 = vadd.f32 0.0, %v627
  %v629 = vpop.f32.mrb[0].mxu0
  %v630 = vpop.f32.mrb[0].mxu0
  %v631 = vadd.f32 0.0, %v630
  %v632 = vpop.f32.mrb[0].mxu0
  %633 = vdwg.mxu0
  %635 = vrot.lane.b32.xlu0 %v438, 64
  %v636 = vpop.permute.xlu0 %635
  %v639 = vsel %vm539, %v585, 0
  %641 = vmatprep.subr.bf16.mxu0 0
  %642 = vmatpush1.bf16.msra.mxu0 %v636
  %643 = vmatprep.subr.bf16.mxu0 0
  %644 = vmatpush1.bf16.msra.mxu0 0
  %645 = vmatprep.subr.bf16.mxu0 0
  %646 = vmatpush1.bf16.msra.mxu0 0
  %647 = vmatprep.subr.bf16.mxu0 0
  %648 = vmatpush1.bf16.msra.mxu0 0
  %649 = vmatprep.subr.bf16.mxu0 0
  %650 = vmatpush1.bf16.msra.mxu0 0
  %651 = vmatprep.subr.bf16.mxu0 0
  %652 = vmatpush1.bf16.msra.mxu0 0
  %653 = vmatprep.subr.bf16.mxu0 0
  %654 = vmatpush1.bf16.msra.mxu0 0
  %655 = vmatprep.subr.bf16.mxu0 0
  %656 = vmatpush1.bf16.msra.mxu0 0
  %657 = vmatprep.subr.bf16.mxu0 0
  %658 = vmatpush1.bf16.msra.mxu0 0
  %659 = vmatprep.subr.bf16.mxu0 0
  %660 = vmatpush1.bf16.msra.mxu0 0
  %661 = vmatprep.subr.bf16.mxu0 0
  %662 = vmatpush1.bf16.msra.mxu0 0
  %663 = vmatprep.subr.bf16.mxu0 0
  %664 = vmatpush1.bf16.msra.mxu0 0
  %665 = vmatprep.subr.bf16.mxu0 0
  %666 = vmatpush1.bf16.msra.mxu0 0
  %667 = vmatprep.subr.bf16.mxu0 0
  %668 = vmatpush1.bf16.msra.mxu0 0
  %669 = vmatprep.subr.bf16.mxu0 0
  %670 = vmatpush1.bf16.msra.mxu0 0
  %671 = vmatprep.subr.bf16.mxu0 0
  %672 = vmatpush1.bf16.msra.mxu0 0
  %673 = vmatprep.mubr.bf16.mxu0 0
  %674 = vmatmul.mubr.bf16.gmra.mrb[0].mxu0 %v639
  %v675 = vpop.f32.mrb[0].mxu0
  %v676 = vadd.f32 0.0, %v675
  %v677 = vpop.f32.mrb[0].mxu0
  %v678 = vpop.f32.mrb[0].mxu0
  %v679 = vadd.f32 0.0, %v678
  %v680 = vpop.f32.mrb[0].mxu0
  %681 = vdwg.mxu0
  %682 = vrot.lane.b32.xlu0 %v437, 120
  %v683 = vpop.permute.xlu0 %682
  %v685 = vrot.slane %v439, 4
  %v687 = vsel %vm443, %v683, 0
  %v690 = vsel %vm447, %v685, 0
  %692 = vmatprep.subr.bf16.mxu0 0
  %693 = vmatpush1.bf16.msra.mxu0 %v690
  %694 = vmatprep.subr.bf16.mxu0 0
  %695 = vmatpush1.bf16.msra.mxu0 0
  %696 = vmatprep.subr.bf16.mxu0 0
  %697 = vmatpush1.bf16.msra.mxu0 0
  %698 = vmatprep.subr.bf16.mxu0 0
  %699 = vmatpush1.bf16.msra.mxu0 0
  %700 = vmatprep.subr.bf16.mxu0 0
  %701 = vmatpush1.bf16.msra.mxu0 0
  %702 = vmatprep.subr.bf16.mxu0 0
  %703 = vmatpush1.bf16.msra.mxu0 0
  %704 = vmatprep.subr.bf16.mxu0 0
  %705 = vmatpush1.bf16.msra.mxu0 0
  %706 = vmatprep.subr.bf16.mxu0 0
  %707 = vmatpush1.bf16.msra.mxu0 0
  %708 = vmatprep.subr.bf16.mxu0 0
  %709 = vmatpush1.bf16.msra.mxu0 0
  %710 = vmatprep.subr.bf16.mxu0 0
  %711 = vmatpush1.bf16.msra.mxu0 0
  %712 = vmatprep.subr.bf16.mxu0 0
  %713 = vmatpush1.bf16.msra.mxu0 0
  %714 = vmatprep.subr.bf16.mxu0 0
  %715 = vmatpush1.bf16.msra.mxu0 0
  %716 = vmatprep.subr.bf16.mxu0 0
  %717 = vmatpush1.bf16.msra.mxu0 0
  %718 = vmatprep.subr.bf16.mxu0 0
  %719 = vmatpush1.bf16.msra.mxu0 0
  %720 = vmatprep.subr.bf16.mxu0 0
  %721 = vmatpush1.bf16.msra.mxu0 0
  %722 = vmatprep.subr.bf16.mxu0 0
  %723 = vmatpush1.bf16.msra.mxu0 0
  %724 = vmatprep.mubr.bf16.mxu0 0
  %725 = vmatmul.mubr.bf16.gmra.mrb[0].mxu0 %v687
  %v726 = vpop.f32.mrb[0].mxu0
  %v727 = vadd.f32 0.0, %v726
  %v728 = vpop.f32.mrb[0].mxu0
  %v729 = vpop.f32.mrb[0].mxu0
  %v730 = vadd.f32 0.0, %v729
  %v731 = vpop.f32.mrb[0].mxu0
  %732 = vdwg.mxu0
  %733 = vrot.lane.b32.xlu0 %v438, 120
  %v734 = vpop.permute.xlu0 %733
  %v736 = vrot.slane %v441, 4
  %v738 = vsel %vm443, %v734, 0
  %v741 = vsel %vm447, %v736, 0
  %743 = vmatprep.subr.bf16.mxu0 0
  %744 = vmatpush1.bf16.msra.mxu0 %v741
  %745 = vmatprep.subr.bf16.mxu0 0
  %746 = vmatpush1.bf16.msra.mxu0 0
  %747 = vmatprep.subr.bf16.mxu0 0
  %748 = vmatpush1.bf16.msra.mxu0 0
  %749 = vmatprep.subr.bf16.mxu0 0
  %750 = vmatpush1.bf16.msra.mxu0 0
  %751 = vmatprep.subr.bf16.mxu0 0
  %752 = vmatpush1.bf16.msra.mxu0 0
  %753 = vmatprep.subr.bf16.mxu0 0
  %754 = vmatpush1.bf16.msra.mxu0 0
  %755 = vmatprep.subr.bf16.mxu0 0
  %756 = vmatpush1.bf16.msra.mxu0 0
  %757 = vmatprep.subr.bf16.mxu0 0
  %758 = vmatpush1.bf16.msra.mxu0 0
  %759 = vmatprep.subr.bf16.mxu0 0
  %760 = vmatpush1.bf16.msra.mxu0 0
  %761 = vmatprep.subr.bf16.mxu0 0
  %762 = vmatpush1.bf16.msra.mxu0 0
  %763 = vmatprep.subr.bf16.mxu0 0
  %764 = vmatpush1.bf16.msra.mxu0 0
  %765 = vmatprep.subr.bf16.mxu0 0
  %766 = vmatpush1.bf16.msra.mxu0 0
  %767 = vmatprep.subr.bf16.mxu0 0
  %768 = vmatpush1.bf16.msra.mxu0 0
  %769 = vmatprep.subr.bf16.mxu0 0
  %770 = vmatpush1.bf16.msra.mxu0 0
  %771 = vmatprep.subr.bf16.mxu0 0
  %772 = vmatpush1.bf16.msra.mxu0 0
  %773 = vmatprep.subr.bf16.mxu0 0
  %774 = vmatpush1.bf16.msra.mxu0 0
  %775 = vmatprep.mubr.bf16.mxu0 0
  %776 = vmatmul.mubr.bf16.gmra.mrb[0].mxu0 %v738
  %v777 = vpop.f32.mrb[0].mxu0
  %v778 = vadd.f32 0.0, %v777
  %v779 = vpop.f32.mrb[0].mxu0
  %v780 = vpop.f32.mrb[0].mxu0
  %v781 = vadd.f32 0.0, %v780
  %v782 = vpop.f32.mrb[0].mxu0
  %783 = vdwg.mxu0
  %v784 = vsel %vm539, %v727, -inf
  %785 = vmax.xlane.f32.xlu0 %v784
  %v786 = vpop.xlane.xlu0 %785
  %v787 = vsel %vm539, %v730, -inf
  %788 = vmax.xlane.f32.xlu0 %v787
  %v789 = vpop.xlane.xlu0 %788
  %v790 = vsel %vm539, %v778, -inf
  %791 = vmax.xlane.f32.xlu0 %v790
  %v792 = vpop.xlane.xlu0 %791
  %v793 = vsel %vm539, %v781, -inf
  %794 = vmax.xlane.f32.xlu0 %v793
  %v795 = vpop.xlane.xlu0 %794
  %v796 = vsub.f32 %v727, %v786
  %v797 = vsub.f32 %v730, %v789
  %v798 = vsub.f32 %v778, %v792
  %v799 = vsub.f32 %v781, %v795
  %v800 = vmul.f32 %v796, 1.442695
  %v801 = vpow.pop %v800
  %v802 = vmul.f32 %v797, 1.442695
  %v803 = vpow.pop %v802
  %v804 = vmul.f32 %v798, 1.442695
  %v805 = vpow.pop %v804
  %v806 = vmul.f32 %v799, 1.442695
  %v807 = vpow.pop %v806
  %v808 = vsel %vm539, %v801, 0.0
  %809 = vadd.xlane.f32.xlu0 %v808
  %v810 = vpop.xlane.xlu0 %809
  %v811 = vsel %vm539, %v803, 0.0
  %812 = vadd.xlane.f32.xlu0 %v811
  %v813 = vpop.xlane.xlu0 %812
  %v814 = vsel %vm539, %v805, 0.0
  %815 = vadd.xlane.f32.xlu0 %v814
  %v816 = vpop.xlane.xlu0 %815
  %v817 = vsel %vm539, %v807, 0.0
  %818 = vadd.xlane.f32.xlu0 %v817
  %v819 = vpop.xlane.xlu0 %818
  %v820 = vrcp.pop %v810
  %v821 = vrcp.pop %v813
  %v822 = vrcp.pop %v816
  %v823 = vrcp.pop %v819
  %v824 = vmul.f32 %v801, %v820
  %v825 = vmul.f32 %v803, %v821
  %v826 = vmul.f32 %v805, %v822
  %v827 = vmul.f32 %v807, %v823
  %v828 = vpack.c.bf16 %v825, %v824
  %v829 = vpack.c.bf16 %v827, %v826
  %830 = vrot.lane.b32.xlu0 %v437, 56
  %v831 = vpop.permute.xlu0 %830
  %v834 = vsel %vm539, %v828, 0
  %836 = vmatprep.subr.bf16.mxu0 0
  %837 = vmatpush1.bf16.msra.mxu0 %v831
  %838 = vmatprep.subr.bf16.mxu0 0
  %839 = vmatpush1.bf16.msra.mxu0 0
  %840 = vmatprep.subr.bf16.mxu0 0
  %841 = vmatpush1.bf16.msra.mxu0 0
  %842 = vmatprep.subr.bf16.mxu0 0
  %843 = vmatpush1.bf16.msra.mxu0 0
  %844 = vmatprep.subr.bf16.mxu0 0
  %845 = vmatpush1.bf16.msra.mxu0 0
  %846 = vmatprep.subr.bf16.mxu0 0
  %847 = vmatpush1.bf16.msra.mxu0 0
  %848 = vmatprep.subr.bf16.mxu0 0
  %849 = vmatpush1.bf16.msra.mxu0 0
  %850 = vmatprep.subr.bf16.mxu0 0
  %851 = vmatpush1.bf16.msra.mxu0 0
  %852 = vmatprep.subr.bf16.mxu0 0
  %853 = vmatpush1.bf16.msra.mxu0 0
  %854 = vmatprep.subr.bf16.mxu0 0
  %855 = vmatpush1.bf16.msra.mxu0 0
  %856 = vmatprep.subr.bf16.mxu0 0
  %857 = vmatpush1.bf16.msra.mxu0 0
  %858 = vmatprep.subr.bf16.mxu0 0
  %859 = vmatpush1.bf16.msra.mxu0 0
  %860 = vmatprep.subr.bf16.mxu0 0
  %861 = vmatpush1.bf16.msra.mxu0 0
  %862 = vmatprep.subr.bf16.mxu0 0
  %863 = vmatpush1.bf16.msra.mxu0 0
  %864 = vmatprep.subr.bf16.mxu0 0
  %865 = vmatpush1.bf16.msra.mxu0 0
  %866 = vmatprep.subr.bf16.mxu0 0
  %867 = vmatpush1.bf16.msra.mxu0 0
  %868 = vmatprep.mubr.bf16.mxu0 0
  %869 = vmatmul.mubr.bf16.gmra.mrb[0].mxu0 %v834
  %v870 = vpop.f32.mrb[0].mxu0
  %v871 = vadd.f32 0.0, %v870
  %v872 = vpop.f32.mrb[0].mxu0
  %v873 = vpop.f32.mrb[0].mxu0
  %v874 = vadd.f32 0.0, %v873
  %v875 = vpop.f32.mrb[0].mxu0
  %876 = vdwg.mxu0
  %877 = vrot.lane.b32.xlu0 %v438, 56
  %v878 = vpop.permute.xlu0 %877
  %v881 = vsel %vm539, %v829, 0
  %883 = vmatprep.subr.bf16.mxu0 0
  %884 = vmatpush1.bf16.msra.mxu0 %v878
  %885 = vmatprep.subr.bf16.mxu0 0
  %886 = vmatpush1.bf16.msra.mxu0 0
  %887 = vmatprep.subr.bf16.mxu0 0
  %888 = vmatpush1.bf16.msra.mxu0 0
  %889 = vmatprep.subr.bf16.mxu0 0
  %890 = vmatpush1.bf16.msra.mxu0 0
  %891 = vmatprep.subr.bf16.mxu0 0
  %892 = vmatpush1.bf16.msra.mxu0 0
  %893 = vmatprep.subr.bf16.mxu0 0
  %894 = vmatpush1.bf16.msra.mxu0 0
  %895 = vmatprep.subr.bf16.mxu0 0
  %896 = vmatpush1.bf16.msra.mxu0 0
  %897 = vmatprep.subr.bf16.mxu0 0
  %898 = vmatpush1.bf16.msra.mxu0 0
  %899 = vmatprep.subr.bf16.mxu0 0
  %900 = vmatpush1.bf16.msra.mxu0 0
  %901 = vmatprep.subr.bf16.mxu0 0
  %902 = vmatpush1.bf16.msra.mxu0 0
  %903 = vmatprep.subr.bf16.mxu0 0
  %904 = vmatpush1.bf16.msra.mxu0 0
  %905 = vmatprep.subr.bf16.mxu0 0
  %906 = vmatpush1.bf16.msra.mxu0 0
  %907 = vmatprep.subr.bf16.mxu0 0
  %908 = vmatpush1.bf16.msra.mxu0 0
  %909 = vmatprep.subr.bf16.mxu0 0
  %910 = vmatpush1.bf16.msra.mxu0 0
  %911 = vmatprep.subr.bf16.mxu0 0
  %912 = vmatpush1.bf16.msra.mxu0 0
  %913 = vmatprep.subr.bf16.mxu0 0
  %914 = vmatpush1.bf16.msra.mxu0 0
  %915 = vmatprep.mubr.bf16.mxu0 0
  %916 = vmatmul.mubr.bf16.gmra.mrb[0].mxu0 %v881
  %v917 = vpop.f32.mrb[0].mxu0
  %v918 = vadd.f32 0.0, %v917
  %v919 = vpop.f32.mrb[0].mxu0
  %v920 = vpop.f32.mrb[0].mxu0
  %v921 = vadd.f32 0.0, %v920
  %v922 = vpop.f32.mrb[0].mxu0
  %923 = vdwg.mxu0
  %924 = vrot.lane.b32.xlu0 %v437, 112
  %v925 = vpop.permute.xlu0 %924
  %v927 = vsel %vm443, %v925, 0
  %v930 = vsel %vm447, %v440, 0
  %932 = vmatprep.subr.bf16.mxu0 0
  %933 = vmatpush1.bf16.msra.mxu0 %v930
  %934 = vmatprep.subr.bf16.mxu0 0
  %935 = vmatpush1.bf16.msra.mxu0 0
  %936 = vmatprep.subr.bf16.mxu0 0
  %937 = vmatpush1.bf16.msra.mxu0 0
  %938 = vmatprep.subr.bf16.mxu0 0
  %939 = vmatpush1.bf16.msra.mxu0 0
  %940 = vmatprep.subr.bf16.mxu0 0
  %941 = vmatpush1.bf16.msra.mxu0 0
  %942 = vmatprep.subr.bf16.mxu0 0
  %943 = vmatpush1.bf16.msra.mxu0 0
  %944 = vmatprep.subr.bf16.mxu0 0
  %945 = vmatpush1.bf16.msra.mxu0 0
  %946 = vmatprep.subr.bf16.mxu0 0
  %947 = vmatpush1.bf16.msra.mxu0 0
  %948 = vmatprep.subr.bf16.mxu0 0
  %949 = vmatpush1.bf16.msra.mxu0 0
  %950 = vmatprep.subr.bf16.mxu0 0
  %951 = vmatpush1.bf16.msra.mxu0 0
  %952 = vmatprep.subr.bf16.mxu0 0
  %953 = vmatpush1.bf16.msra.mxu0 0
  %954 = vmatprep.subr.bf16.mxu0 0
  %955 = vmatpush1.bf16.msra.mxu0 0
  %956 = vmatprep.subr.bf16.mxu0 0
  %957 = vmatpush1.bf16.msra.mxu0 0
  %958 = vmatprep.subr.bf16.mxu0 0
  %959 = vmatpush1.bf16.msra.mxu0 0
  %960 = vmatprep.subr.bf16.mxu0 0
  %961 = vmatpush1.bf16.msra.mxu0 0
  %962 = vmatprep.subr.bf16.mxu0 0
  %963 = vmatpush1.bf16.msra.mxu0 0
  %964 = vmatprep.mubr.bf16.mxu0 0
  %965 = vmatmul.mubr.bf16.gmra.mrb[0].mxu0 %v927
  %v966 = vpop.f32.mrb[0].mxu0
  %v967 = vadd.f32 0.0, %v966
  %v968 = vpop.f32.mrb[0].mxu0
  %v969 = vpop.f32.mrb[0].mxu0
  %v970 = vadd.f32 0.0, %v969
  %v971 = vpop.f32.mrb[0].mxu0
  %972 = vdwg.mxu0
  %973 = vrot.lane.b32.xlu0 %v438, 112
  %v974 = vpop.permute.xlu0 %973
  %v976 = vsel %vm443, %v974, 0
  %v979 = vsel %vm447, %v442, 0
  %981 = vmatprep.subr.bf16.mxu0 0
  %982 = vmatpush1.bf16.msra.mxu0 %v979
  %983 = vmatprep.subr.bf16.mxu0 0
  %984 = vmatpush1.bf16.msra.mxu0 0
  %985 = vmatprep.subr.bf16.mxu0 0
  %986 = vmatpush1.bf16.msra.mxu0 0
  %987 = vmatprep.subr.bf16.mxu0 0
  %988 = vmatpush1.bf16.msra.mxu0 0
  %989 = vmatprep.subr.bf16.mxu0 0
  %990 = vmatpush1.bf16.msra.mxu0 0
  %991 = vmatprep.subr.bf16.mxu0 0
  %992 = vmatpush1.bf16.msra.mxu0 0
  %993 = vmatprep.subr.bf16.mxu0 0
  %994 = vmatpush1.bf16.msra.mxu0 0
  %995 = vmatprep.subr.bf16.mxu0 0
  %996 = vmatpush1.bf16.msra.mxu0 0
  %997 = vmatprep.subr.bf16.mxu0 0
  %998 = vmatpush1.bf16.msra.mxu0 0
  %999 = vmatprep.subr.bf16.mxu0 0
  %1000 = vmatpush1.bf16.msra.mxu0 0
  %1001 = vmatprep.subr.bf16.mxu0 0
  %1002 = vmatpush1.bf16.msra.mxu0 0
  %1003 = vmatprep.subr.bf16.mxu0 0
  %1004 = vmatpush1.bf16.msra.mxu0 0
  %1005 = vmatprep.subr.bf16.mxu0 0
  %1006 = vmatpush1.bf16.msra.mxu0 0
  %1007 = vmatprep.subr.bf16.mxu0 0
  %1008 = vmatpush1.bf16.msra.mxu0 0
  %1009 = vmatprep.subr.bf16.mxu0 0
  %1010 = vmatpush1.bf16.msra.mxu0 0
  %1011 = vmatprep.subr.bf16.mxu0 0
  %1012 = vmatpush1.bf16.msra.mxu0 0
  %1013 = vmatprep.mubr.bf16.mxu0 0
  %1014 = vmatmul.mubr.bf16.gmra.mrb[0].mxu0 %v976
  %v1015 = vpop.f32.mrb[0].mxu0
  %v1016 = vadd.f32 0.0, %v1015
  %v1017 = vpop.f32.mrb[0].mxu0
  %v1018 = vpop.f32.mrb[0].mxu0
  %v1019 = vadd.f32 0.0, %v1018
  %v1020 = vpop.f32.mrb[0].mxu0
  %1021 = vdwg.mxu0
  %v1022 = vsel %vm539, %v967, -inf
  %1023 = vmax.xlane.f32.xlu0 %v1022
  %v1024 = vpop.xlane.xlu0 %1023
  %v1025 = vsel %vm539, %v970, -inf
  %1026 = vmax.xlane.f32.xlu0 %v1025
  %v1027 = vpop.xlane.xlu0 %1026
  %v1028 = vsel %vm539, %v1016, -inf
  %1029 = vmax.xlane.f32.xlu0 %v1028
  %v1030 = vpop.xlane.xlu0 %1029
  %v1031 = vsel %vm539, %v1019, -inf
  %1032 = vmax.xlane.f32.xlu0 %v1031
  %v1033 = vpop.xlane.xlu0 %1032
  %v1034 = vsub.f32 %v967, %v1024
  %v1035 = vsub.f32 %v970, %v1027
  %v1036 = vsub.f32 %v1016, %v1030
  %v1037 = vsub.f32 %v1019, %v1033
  %v1038 = vmul.f32 %v1034, 1.442695
  %v1039 = vpow.pop %v1038
  %v1040 = vmul.f32 %v1035, 1.442695
  %v1041 = vpow.pop %v1040
  %v1042 = vmul.f32 %v1036, 1.442695
  %v1043 = vpow.pop %v1042
  %v1044 = vmul.f32 %v1037, 1.442695
  %v1045 = vpow.pop %v1044
  %v1046 = vsel %vm539, %v1039, 0.0
  %1047 = vadd.xlane.f32.xlu0 %v1046
  %v1048 = vpop.xlane.xlu0 %1047
  %v1049 = vsel %vm539, %v1041, 0.0
  %1050 = vadd.xlane.f32.xlu0 %v1049
  %v1051 = vpop.xlane.xlu0 %1050
  %v1052 = vsel %vm539, %v1043, 0.0
  %1053 = vadd.xlane.f32.xlu0 %v1052
  %v1054 = vpop.xlane.xlu0 %1053
  %v1055 = vsel %vm539, %v1045, 0.0
  %1056 = vadd.xlane.f32.xlu0 %v1055
  %v1057 = vpop.xlane.xlu0 %1056
  %v1058 = vrcp.pop %v1048
  %v1059 = vrcp.pop %v1051
  %v1060 = vrcp.pop %v1054
  %v1061 = vrcp.pop %v1057
  %v1062 = vmul.f32 %v1039, %v1058
  %v1063 = vmul.f32 %v1041, %v1059
  %v1064 = vmul.f32 %v1043, %v1060
  %v1065 = vmul.f32 %v1045, %v1061
  %v1066 = vpack.c.bf16 %v1063, %v1062
  %v1067 = vpack.c.bf16 %v1065, %v1064
  %1068 = vrot.lane.b32.xlu0 %v437, 48
  %v1069 = vpop.permute.xlu0 %1068
  %v1072 = vsel %vm539, %v1066, 0
  %1074 = vmatprep.subr.bf16.mxu0 0
  %1075 = vmatpush1.bf16.msra.mxu0 %v1069
  %1076 = vmatprep.subr.bf16.mxu0 0
  %1077 = vmatpush1.bf16.msra.mxu0 0
  %1078 = vmatprep.subr.bf16.mxu0 0
  %1079 = vmatpush1.bf16.msra.mxu0 0
  %1080 = vmatprep.subr.bf16.mxu0 0
  %1081 = vmatpush1.bf16.msra.mxu0 0
  %1082 = vmatprep.subr.bf16.mxu0 0
  %1083 = vmatpush1.bf16.msra.mxu0 0
  %1084 = vmatprep.subr.bf16.mxu0 0
  %1085 = vmatpush1.bf16.msra.mxu0 0
  %1086 = vmatprep.subr.bf16.mxu0 0
  %1087 = vmatpush1.bf16.msra.mxu0 0
  %1088 = vmatprep.subr.bf16.mxu0 0
  %1089 = vmatpush1.bf16.msra.mxu0 0
  %1090 = vmatprep.subr.bf16.mxu0 0
  %1091 = vmatpush1.bf16.msra.mxu0 0
  %1092 = vmatprep.subr.bf16.mxu0 0
  %1093 = vmatpush1.bf16.msra.mxu0 0
  %1094 = vmatprep.subr.bf16.mxu0 0
  %1095 = vmatpush1.bf16.msra.mxu0 0
  %1096 = vmatprep.subr.bf16.mxu0 0
  %1097 = vmatpush1.bf16.msra.mxu0 0
  %1098 = vmatprep.subr.bf16.mxu0 0
  %1099 = vmatpush1.bf16.msra.mxu0 0
  %1100 = vmatprep.subr.bf16.mxu0 0
  %1101 = vmatpush1.bf16.msra.mxu0 0
  %1102 = vmatprep.subr.bf16.mxu0 0
  %1103 = vmatpush1.bf16.msra.mxu0 0
  %1104 = vmatprep.subr.bf16.mxu0 0
  %1105 = vmatpush1.bf16.msra.mxu0 0
  %1106 = vmatprep.mubr.bf16.mxu0 0
  %1107 = vmatmul.mubr.bf16.gmra.mrb[0].mxu0 %v1072
  %v1108 = vpop.f32.mrb[0].mxu0
  %v1109 = vadd.f32 0.0, %v1108
  %v1110 = vpop.f32.mrb[0].mxu0
  %v1111 = vpop.f32.mrb[0].mxu0
  %v1112 = vadd.f32 0.0, %v1111
  %v1113 = vpop.f32.mrb[0].mxu0
  %1114 = vdwg.mxu0
  %1115 = vrot.lane.b32.xlu0 %v438, 48
  %v1116 = vpop.permute.xlu0 %1115
  %v1119 = vsel %vm539, %v1067, 0
  %1121 = vmatprep.subr.bf16.mxu0 0
  %1122 = vmatpush1.bf16.msra.mxu0 %v1116
  %1123 = vmatprep.subr.bf16.mxu0 0
  %1124 = vmatpush1.bf16.msra.mxu0 0
  %1125 = vmatprep.subr.bf16.mxu0 0
  %1126 = vmatpush1.bf16.msra.mxu0 0
  %1127 = vmatprep.subr.bf16.mxu0 0
  %1128 = vmatpush1.bf16.msra.mxu0 0
  %1129 = vmatprep.subr.bf16.mxu0 0
  %1130 = vmatpush1.bf16.msra.mxu0 0
  %1131 = vmatprep.subr.bf16.mxu0 0
  %1132 = vmatpush1.bf16.msra.mxu0 0
  %1133 = vmatprep.subr.bf16.mxu0 0
  %1134 = vmatpush1.bf16.msra.mxu0 0
  %1135 = vmatprep.subr.bf16.mxu0 0
  %1136 = vmatpush1.bf16.msra.mxu0 0
  %1137 = vmatprep.subr.bf16.mxu0 0
  %1138 = vmatpush1.bf16.msra.mxu0 0
  %1139 = vmatprep.subr.bf16.mxu0 0
  %1140 = vmatpush1.bf16.msra.mxu0 0
  %1141 = vmatprep.subr.bf16.mxu0 0
  %1142 = vmatpush1.bf16.msra.mxu0 0
  %1143 = vmatprep.subr.bf16.mxu0 0
  %1144 = vmatpush1.bf16.msra.mxu0 0
  %1145 = vmatprep.subr.bf16.mxu0 0
  %1146 = vmatpush1.bf16.msra.mxu0 0
  %1147 = vmatprep.subr.bf16.mxu0 0
  %1148 = vmatpush1.bf16.msra.mxu0 0
  %1149 = vmatprep.subr.bf16.mxu0 0
  %1150 = vmatpush1.bf16.msra.mxu0 0
  %1151 = vmatprep.subr.bf16.mxu0 0
  %1152 = vmatpush1.bf16.msra.mxu0 0
  %1153 = vmatprep.mubr.bf16.mxu0 0
  %1154 = vmatmul.mubr.bf16.gmra.mrb[0].mxu0 %v1119
  %v1155 = vpop.f32.mrb[0].mxu0
  %v1156 = vadd.f32 0.0, %v1155
  %v1157 = vpop.f32.mrb[0].mxu0
  %v1158 = vpop.f32.mrb[0].mxu0
  %v1159 = vadd.f32 0.0, %v1158
  %v1160 = vpop.f32.mrb[0].mxu0
  %1161 = vdwg.mxu0
  %1162 = vrot.lane.b32.xlu0 %v437, 104
  %v1163 = vpop.permute.xlu0 %1162
  %v1165 = vrot.slane %v440, 4
  %v1167 = vsel %vm443, %v1163, 0
  %v1170 = vsel %vm447, %v1165, 0
  %1172 = vmatprep.subr.bf16.mxu0 0
  %1173 = vmatpush1.bf16.msra.mxu0 %v1170
  %1174 = vmatprep.subr.bf16.mxu0 0
  %1175 = vmatpush1.bf16.msra.mxu0 0
  %1176 = vmatprep.subr.bf16.mxu0 0
  %1177 = vmatpush1.bf16.msra.mxu0 0
  %1178 = vmatprep.subr.bf16.mxu0 0
  %1179 = vmatpush1.bf16.msra.mxu0 0
  %1180 = vmatprep.subr.bf16.mxu0 0
  %1181 = vmatpush1.bf16.msra.mxu0 0
  %1182 = vmatprep.subr.bf16.mxu0 0
  %1183 = vmatpush1.bf16.msra.mxu0 0
  %1184 = vmatprep.subr.bf16.mxu0 0
  %1185 = vmatpush1.bf16.msra.mxu0 0
  %1186 = vmatprep.subr.bf16.mxu0 0
  %1187 = vmatpush1.bf16.msra.mxu0 0
  %1188 = vmatprep.subr.bf16.mxu0 0
  %1189 = vmatpush1.bf16.msra.mxu0 0
  %1190 = vmatprep.subr.bf16.mxu0 0
  %1191 = vmatpush1.bf16.msra.mxu0 0
  %1192 = vmatprep.subr.bf16.mxu0 0
  %1193 = vmatpush1.bf16.msra.mxu0 0
  %1194 = vmatprep.subr.bf16.mxu0 0
  %1195 = vmatpush1.bf16.msra.mxu0 0
  %1196 = vmatprep.subr.bf16.mxu0 0
  %1197 = vmatpush1.bf16.msra.mxu0 0
  %1198 = vmatprep.subr.bf16.mxu0 0
  %1199 = vmatpush1.bf16.msra.mxu0 0
  %1200 = vmatprep.subr.bf16.mxu0 0
  %1201 = vmatpush1.bf16.msra.mxu0 0
  %1202 = vmatprep.subr.bf16.mxu0 0
  %1203 = vmatpush1.bf16.msra.mxu0 0
  %1204 = vmatprep.mubr.bf16.mxu0 0
  %1205 = vmatmul.mubr.bf16.gmra.mrb[0].mxu0 %v1167
  %v1206 = vpop.f32.mrb[0].mxu0
  %v1207 = vadd.f32 0.0, %v1206
  %v1208 = vpop.f32.mrb[0].mxu0
  %v1209 = vpop.f32.mrb[0].mxu0
  %v1210 = vadd.f32 0.0, %v1209
  %v1211 = vpop.f32.mrb[0].mxu0
  %1212 = vdwg.mxu0
  %1213 = vrot.lane.b32.xlu0 %v438, 104
  %v1214 = vpop.permute.xlu0 %1213
  %v1216 = vrot.slane %v442, 4
  %v1218 = vsel %vm443, %v1214, 0
  %v1221 = vsel %vm447, %v1216, 0
  %1223 = vmatprep.subr.bf16.mxu0 0
  %1224 = vmatpush1.bf16.msra.mxu0 %v1221
  %1225 = vmatprep.subr.bf16.mxu0 0
  %1226 = vmatpush1.bf16.msra.mxu0 0
  %1227 = vmatprep.subr.bf16.mxu0 0
  %1228 = vmatpush1.bf16.msra.mxu0 0
  %1229 = vmatprep.subr.bf16.mxu0 0
  %1230 = vmatpush1.bf16.msra.mxu0 0
  %1231 = vmatprep.subr.bf16.mxu0 0
  %1232 = vmatpush1.bf16.msra.mxu0 0
  %1233 = vmatprep.subr.bf16.mxu0 0
  %1234 = vmatpush1.bf16.msra.mxu0 0
  %1235 = vmatprep.subr.bf16.mxu0 0
  %1236 = vmatpush1.bf16.msra.mxu0 0
  %1237 = vmatprep.subr.bf16.mxu0 0
  %1238 = vmatpush1.bf16.msra.mxu0 0
  %1239 = vmatprep.subr.bf16.mxu0 0
  %1240 = vmatpush1.bf16.msra.mxu0 0
  %1241 = vmatprep.subr.bf16.mxu0 0
  %1242 = vmatpush1.bf16.msra.mxu0 0
  %1243 = vmatprep.subr.bf16.mxu0 0
  %1244 = vmatpush1.bf16.msra.mxu0 0
  %1245 = vmatprep.subr.bf16.mxu0 0
  %1246 = vmatpush1.bf16.msra.mxu0 0
  %1247 = vmatprep.subr.bf16.mxu0 0
  %1248 = vmatpush1.bf16.msra.mxu0 0
  %1249 = vmatprep.subr.bf16.mxu0 0
  %1250 = vmatpush1.bf16.msra.mxu0 0
  %1251 = vmatprep.subr.bf16.mxu0 0
  %1252 = vmatpush1.bf16.msra.mxu0 0
  %1253 = vmatprep.subr.bf16.mxu0 0
  %1254 = vmatpush1.bf16.msra.mxu0 0
  %1255 = vmatprep.mubr.bf16.mxu0 0
  %1256 = vmatmul.mubr.bf16.gmra.mrb[0].mxu0 %v1218
  %v1257 = vpop.f32.mrb[0].mxu0
  %v1258 = vadd.f32 0.0, %v1257
  %v1259 = vpop.f32.mrb[0].mxu0
  %v1260 = vpop.f32.mrb[0].mxu0
  %v1261 = vadd.f32 0.0, %v1260
  %v1262 = vpop.f32.mrb[0].mxu0
  %1263 = vdwg.mxu0
  %v1264 = vsel %vm539, %v1207, -inf
  %1265 = vmax.xlane.f32.xlu0 %v1264
  %v1266 = vpop.xlane.xlu0 %1265
  %v1267 = vsel %vm539, %v1210, -inf
  %1268 = vmax.xlane.f32.xlu0 %v1267
  %v1269 = vpop.xlane.xlu0 %1268
  %v1270 = vsel %vm539, %v1258, -inf
  %1271 = vmax.xlane.f32.xlu0 %v1270
  %v1272 = vpop.xlane.xlu0 %1271
  %v1273 = vsel %vm539, %v1261, -inf
  %1274 = vmax.xlane.f32.xlu0 %v1273
  %v1275 = vpop.xlane.xlu0 %1274
  %v1276 = vsub.f32 %v1207, %v1266
  %v1277 = vsub.f32 %v1210, %v1269
  %v1278 = vsub.f32 %v1258, %v1272
  %v1279 = vsub.f32 %v1261, %v1275
  %v1280 = vmul.f32 %v1276, 1.442695
  %v1281 = vpow.pop %v1280
  %v1282 = vmul.f32 %v1277, 1.442695
  %v1283 = vpow.pop %v1282
  %v1284 = vmul.f32 %v1278, 1.442695
  %v1285 = vpow.pop %v1284
  %v1286 = vmul.f32 %v1279, 1.442695
  %v1287 = vpow.pop %v1286
  %v1288 = vsel %vm539, %v1281, 0.0
  %1289 = vadd.xlane.f32.xlu0 %v1288
  %v1290 = vpop.xlane.xlu0 %1289
  %v1291 = vsel %vm539, %v1283, 0.0
  %1292 = vadd.xlane.f32.xlu0 %v1291
  %v1293 = vpop.xlane.xlu0 %1292
  %v1294 = vsel %vm539, %v1285, 0.0
  %1295 = vadd.xlane.f32.xlu0 %v1294
  %v1296 = vpop.xlane.xlu0 %1295
  %v1297 = vsel %vm539, %v1287, 0.0
  %1298 = vadd.xlane.f32.xlu0 %v1297
  %v1299 = vpop.xlane.xlu0 %1298
  %v1300 = vrcp.pop %v1290
  %v1301 = vrcp.pop %v1293
  %v1302 = vrcp.pop %v1296
  %v1303 = vrcp.pop %v1299
  %v1304 = vmul.f32 %v1281, %v1300
  %v1305 = vmul.f32 %v1283, %v1301
  %v1306 = vmul.f32 %v1285, %v1302
  %v1307 = vmul.f32 %v1287, %v1303
  %v1308 = vpack.c.bf16 %v1305, %v1304
  %v1309 = vpack.c.bf16 %v1307, %v1306
  %1310 = vrot.lane.b32.xlu0 %v437, 40
  %v1311 = vpop.permute.xlu0 %1310
  %v1314 = vsel %vm539, %v1308, 0
  %1316 = vmatprep.subr.bf16.mxu0 0
  %1317 = vmatpush1.bf16.msra.mxu0 %v1311
  %1318 = vmatprep.subr.bf16.mxu0 0
  %1319 = vmatpush1.bf16.msra.mxu0 0
  %1320 = vmatprep.subr.bf16.mxu0 0
  %1321 = vmatpush1.bf16.msra.mxu0 0
  %1322 = vmatprep.subr.bf16.mxu0 0
  %1323 = vmatpush1.bf16.msra.mxu0 0
  %1324 = vmatprep.subr.bf16.mxu0 0
  %1325 = vmatpush1.bf16.msra.mxu0 0
  %1326 = vmatprep.subr.bf16.mxu0 0
  %1327 = vmatpush1.bf16.msra.mxu0 0
  %1328 = vmatprep.subr.bf16.mxu0 0
  %1329 = vmatpush1.bf16.msra.mxu0 0
  %1330 = vmatprep.subr.bf16.mxu0 0
  %1331 = vmatpush1.bf16.msra.mxu0 0
  %1332 = vmatprep.subr.bf16.mxu0 0
  %1333 = vmatpush1.bf16.msra.mxu0 0
  %1334 = vmatprep.subr.bf16.mxu0 0
  %1335 = vmatpush1.bf16.msra.mxu0 0
  %1336 = vmatprep.subr.bf16.mxu0 0
  %1337 = vmatpush1.bf16.msra.mxu0 0
  %1338 = vmatprep.subr.bf16.mxu0 0
  %1339 = vmatpush1.bf16.msra.mxu0 0
  %1340 = vmatprep.subr.bf16.mxu0 0
  %1341 = vmatpush1.bf16.msra.mxu0 0
  %1342 = vmatprep.subr.bf16.mxu0 0
  %1343 = vmatpush1.bf16.msra.mxu0 0
  %1344 = vmatprep.subr.bf16.mxu0 0
  %1345 = vmatpush1.bf16.msra.mxu0 0
  %1346 = vmatprep.subr.bf16.mxu0 0
  %1347 = vmatpush1.bf16.msra.mxu0 0
  %1348 = vmatprep.mubr.bf16.mxu0 0
  %1349 = vmatmul.mubr.bf16.gmra.mrb[0].mxu0 %v1314
  %v1350 = vpop.f32.mrb[0].mxu0
  %v1351 = vadd.f32 0.0, %v1350
  %v1352 = vpop.f32.mrb[0].mxu0
  %v1353 = vpop.f32.mrb[0].mxu0
  %v1354 = vadd.f32 0.0, %v1353
  %v1355 = vpop.f32.mrb[0].mxu0
  %1356 = vdwg.mxu0
  %1357 = vrot.lane.b32.xlu0 %v438, 40
  %v1358 = vpop.permute.xlu0 %1357
  %v1361 = vsel %vm539, %v1309, 0
  %1363 = vmatprep.subr.bf16.mxu0 0
  %1364 = vmatpush1.bf16.msra.mxu0 %v1358
  %1365 = vmatprep.subr.bf16.mxu0 0
  %1366 = vmatpush1.bf16.msra.mxu0 0
  %1367 = vmatprep.subr.bf16.mxu0 0
  %1368 = vmatpush1.bf16.msra.mxu0 0
  %1369 = vmatprep.subr.bf16.mxu0 0
  %1370 = vmatpush1.bf16.msra.mxu0 0
  %1371 = vmatprep.subr.bf16.mxu0 0
  %1372 = vmatpush1.bf16.msra.mxu0 0
  %1373 = vmatprep.subr.bf16.mxu0 0
  %1374 = vmatpush1.bf16.msra.mxu0 0
  %1375 = vmatprep.subr.bf16.mxu0 0
  %1376 = vmatpush1.bf16.msra.mxu0 0
  %1377 = vmatprep.subr.bf16.mxu0 0
  %1378 = vmatpush1.bf16.msra.mxu0 0
  %1379 = vmatprep.subr.bf16.mxu0 0
  %1380 = vmatpush1.bf16.msra.mxu0 0
  %1381 = vmatprep.subr.bf16.mxu0 0
  %1382 = vmatpush1.bf16.msra.mxu0 0
  %1383 = vmatprep.subr.bf16.mxu0 0
  %1384 = vmatpush1.bf16.msra.mxu0 0
  %1385 = vmatprep.subr.bf16.mxu0 0
  %1386 = vmatpush1.bf16.msra.mxu0 0
  %1387 = vmatprep.subr.bf16.mxu0 0
  %1388 = vmatpush1.bf16.msra.mxu0 0
  %1389 = vmatprep.subr.bf16.mxu0 0
  %1390 = vmatpush1.bf16.msra.mxu0 0
  %1391 = vmatprep.subr.bf16.mxu0 0
  %1392 = vmatpush1.bf16.msra.mxu0 0
  %1393 = vmatprep.subr.bf16.mxu0 0
  %1394 = vmatpush1.bf16.msra.mxu0 0
  %1395 = vmatprep.mubr.bf16.mxu0 0
  %1396 = vmatmul.mubr.bf16.gmra.mrb[0].mxu0 %v1361
  %v1397 = vpop.f32.mrb[0].mxu0
  %v1398 = vadd.f32 0.0, %v1397
  %v1399 = vpop.f32.mrb[0].mxu0
  %v1400 = vpop.f32.mrb[0].mxu0
  %v1401 = vadd.f32 0.0, %v1400
  %v1402 = vpop.f32.mrb[0].mxu0
  %1403 = vdwg.mxu0
  %1408 = vrot.lane.b32.xlu0 %v871, 8
  %v1409 = vpop.permute.xlu0 %1408
  %1410 = vrot.lane.b32.xlu0 %v874, 8
  %v1411 = vpop.permute.xlu0 %1410
  %1412 = vrot.lane.b32.xlu0 %v918, 8
  %v1413 = vpop.permute.xlu0 %1412
  %1414 = vrot.lane.b32.xlu0 %v921, 8
  %v1415 = vpop.permute.xlu0 %1414
  %1424 = vrot.lane.b32.xlu0 %v1109, 16
  %v1425 = vpop.permute.xlu0 %1424
  %1426 = vrot.lane.b32.xlu0 %v1112, 16
  %v1427 = vpop.permute.xlu0 %1426
  %1428 = vrot.lane.b32.xlu0 %v1156, 16
  %v1429 = vpop.permute.xlu0 %1428
  %1430 = vrot.lane.b32.xlu0 %v1159, 16
  %v1431 = vpop.permute.xlu0 %1430
  %1440 = vrot.lane.b32.xlu0 %v1351, 24
  %v1441 = vpop.permute.xlu0 %1440
  %1442 = vrot.lane.b32.xlu0 %v1354, 24
  %v1443 = vpop.permute.xlu0 %1442
  %1444 = vrot.lane.b32.xlu0 %v1398, 24
  %v1445 = vpop.permute.xlu0 %1444
  %1446 = vrot.lane.b32.xlu0 %v1401, 24
  %v1447 = vpop.permute.xlu0 %1446
  %v1452 = vsel %vm443, %v628, %v1409
  %v1453 = vsel %vm443, %v631, %v1411
  %v1454 = vsel %vm443, %v676, %v1413
  %v1455 = vsel %vm443, %v679, %v1415
  %v1456 = vsel %vm539, %v1452, %v1425
  %v1457 = vsel %vm539, %v1453, %v1427
  %v1458 = vsel %vm539, %v1454, %v1429
  %v1459 = vsel %vm539, %v1455, %v1431
  %vm1460 = vcmask 195584
  %v1461 = vsel %vm1460, %v1456, %v1441
  %v1462 = vsel %vm1460, %v1457, %v1443
  %v1463 = vsel %vm1460, %v1458, %v1445
  %v1464 = vsel %vm1460, %v1459, %v1447
  %v1465 = vpack.c.bf16 %v1462, %v1461
  %v1466 = vpack.c.bf16 %v1464, %v1463
  %v1468 = vlaneseq
  %v1469 = vshrl.u32 %v1468, 7
  %v1470 = vsub.s32 0, %v1469
  %v1471 = vrot.slane %v356, %v1470
  %v1477 = vunpack.c.l.b16 %v352
  %v1478 = vunpack.c.l.b16 %v353
  %v1479 = vunpack.c.l.b16 %v354
  %v1480 = vunpack.c.l.b16 %v355
  %v1481 = vpack.c.b16 %v1478, %v1477
  %v1482 = vpack.c.b16 %v1480, %v1479
  %v1486 = vsel %vm290, %v1465, 0
  %v1489 = vsel %vm290, %v1466, 0
  %1491 = vmatprep.subr.bf16.mxu0 0
  %1492 = vmatpush1.bf16.msra.mxu0 %v1481
  %1493 = vmatprep.subr.bf16.mxu0 0
  %1494 = vmatpush1.bf16.msra.mxu0 %v1482
  %1495 = vmatprep.subr.bf16.mxu0 0
  %1496 = vmatpush1.bf16.msra.mxu0 0
  %1497 = vmatprep.subr.bf16.mxu0 0
  %1498 = vmatpush1.bf16.msra.mxu0 0
  %1499 = vmatprep.subr.bf16.mxu0 0
  %1500 = vmatpush1.bf16.msra.mxu0 0
  %1501 = vmatprep.subr.bf16.mxu0 0
  %1502 = vmatpush1.bf16.msra.mxu0 0
  %1503 = vmatprep.subr.bf16.mxu0 0
  %1504 = vmatpush1.bf16.msra.mxu0 0
  %1505 = vmatprep.subr.bf16.mxu0 0
  %1506 = vmatpush1.bf16.msra.mxu0 0
  %1507 = vmatprep.subr.bf16.mxu0 0
  %1508 = vmatpush1.bf16.msra.mxu0 0
  %1509 = vmatprep.subr.bf16.mxu0 0
  %1510 = vmatpush1.bf16.msra.mxu0 0
  %1511 = vmatprep.subr.bf16.mxu0 0
  %1512 = vmatpush1.bf16.msra.mxu0 0
  %1513 = vmatprep.subr.bf16.mxu0 0
  %1514 = vmatpush1.bf16.msra.mxu0 0
  %1515 = vmatprep.subr.bf16.mxu0 0
  %1516 = vmatpush1.bf16.msra.mxu0 0
  %1517 = vmatprep.subr.bf16.mxu0 0
  %1518 = vmatpush1.bf16.msra.mxu0 0
  %1519 = vmatprep.subr.bf16.mxu0 0
  %1520 = vmatpush1.bf16.msra.mxu0 0
  %1521 = vmatprep.subr.bf16.mxu0 0
  %1522 = vmatpush1.bf16.msra.mxu0 0
  %1523 = vmatprep.mubr.bf16.mxu0 0
  %1524 = vmatmul.mubr.bf16.gmra.mrb[0].mxu0 %v1486
  %v1525 = vpop.f32.mrb[0].mxu0
  %v1526 = vadd.f32 %v1471, %v1525
  %v1527 = vpop.f32.mrb[0].mxu0
  %v1528 = vpop.f32.mrb[0].mxu0
  %v1529 = vadd.f32 %v1471, %v1528
  %v1530 = vpop.f32.mrb[0].mxu0
  %1531 = vmatprep.mubr.bf16.mxu0 0
  %1532 = vmatmul.mubr.bf16.gmra.mrb[0].mxu0 %v1489
  %v1533 = vpop.f32.mrb[0].mxu0
  %v1534 = vadd.f32 %v1471, %v1533
  %v1535 = vpop.f32.mrb[0].mxu0
  %v1536 = vpop.f32.mrb[0].mxu0
  %v1537 = vadd.f32 %v1471, %v1536
  %v1538 = vpop.f32.mrb[0].mxu0
  %1539 = vdwg.mxu0
  %v1540 = vadd.f32 %v258, %v1526
  %v1541 = vadd.f32 %v261, %v1529
  %v1542 = vadd.f32 %v266, %v1534
  %v1543 = vadd.f32 %v269, %v1537
  %v1544 = vld [vmem:[%s15] sm:$0x1]
  %v1545 = vld [vmem:[%s17] sm:$0x1]
  %v1546 = vsel %vm290, %v1540, 0.0
  %1547 = vadd.xlane.f32.xlu0 %v1546
  %v1548 = vpop.xlane.xlu0 %1547
  %v1549 = vsel %vm290, %v1541, 0.0
  %1550 = vadd.xlane.f32.xlu0 %v1549
  %v1551 = vpop.xlane.xlu0 %1550
  %v1552 = vsel %vm290, %v1542, 0.0
  %1553 = vadd.xlane.f32.xlu0 %v1552
  %v1554 = vpop.xlane.xlu0 %1553
  %v1555 = vsel %vm290, %v1543, 0.0
  %1556 = vadd.xlane.f32.xlu0 %v1555
  %v1557 = vpop.xlane.xlu0 %1556
  %v1558 = vrcp.pop 32.0
  %v1559 = vmul.f32 %v1548, %v1558
  %v1560 = vmul.f32 %v1551, %v1558
  %v1561 = vmul.f32 %v1554, %v1558
  %v1562 = vmul.f32 %v1557, %v1558
  %v1563 = vsub.f32 %v1540, %v1559
  %v1564 = vsub.f32 %v1541, %v1560
  %v1565 = vsub.f32 %v1542, %v1561
  %v1566 = vsub.f32 %v1543, %v1562
  %v1567 = vmul.f32 %v1563, %v1563
  %v1568 = vmul.f32 %v1564, %v1564
  %v1569 = vmul.f32 %v1565, %v1565
  %v1570 = vmul.f32 %v1566, %v1566
  %v1571 = vsel %vm290, %v1567, 0.0
  %1572 = vadd.xlane.f32.xlu0 %v1571
  %v1573 = vpop.xlane.xlu0 %1572
  %v1574 = vsel %vm290, %v1568, 0.0
  %1575 = vadd.xlane.f32.xlu0 %v1574
  %v1576 = vpop.xlane.xlu0 %1575
  %v1577 = vsel %vm290, %v1569, 0.0
  %1578 = vadd.xlane.f32.xlu0 %v1577
  %v1579 = vpop.xlane.xlu0 %1578
  %v1580 = vsel %vm290, %v1570, 0.0
  %1581 = vadd.xlane.f32.xlu0 %v1580
  %v1582 = vpop.xlane.xlu0 %1581
  %v1583 = vmul.f32 %v1573, %v1558
  %v1584 = vmul.f32 %v1576, %v1558
  %v1585 = vmul.f32 %v1579, %v1558
  %v1586 = vmul.f32 %v1582, %v1558
  %v1587 = vadd.f32 %v1583, 1e-05
  %v1588 = vadd.f32 %v1584, 1e-05
  %v1589 = vadd.f32 %v1585, 1e-05
  %v1590 = vadd.f32 %v1586, 1e-05
  %v1591 = vrsqrt.pop %v1587
  %v1592 = vrsqrt.pop %v1588
  %v1593 = vrsqrt.pop %v1589
  %v1594 = vrsqrt.pop %v1590
  %v1595 = vmul.f32 %v1563, %v1591
  %v1596 = vmul.f32 %v1564, %v1592
  %v1597 = vmul.f32 %v1565, %v1593
  %v1598 = vmul.f32 %v1566, %v1594
  %v1600 = vlaneseq
  %v1601 = vshrl.u32 %v1600, 7
  %v1602 = vsub.s32 0, %v1601
  %v1603 = vrot.slane %v1544, %v1602
  %v1605 = vmul.f32 %v1595, %v1603
  %v1606 = vmul.f32 %v1596, %v1603
  %v1607 = vmul.f32 %v1597, %v1603
  %v1608 = vmul.f32 %v1598, %v1603
  %v1610 = vlaneseq
  %v1611 = vshrl.u32 %v1610, 7
  %v1612 = vsub.s32 0, %v1611
  %v1613 = vrot.slane %v1545, %v1612
  %v1615 = vadd.f32 %v1605, %v1613
  %v1616 = vadd.f32 %v1606, %v1613
  %v1617 = vadd.f32 %v1607, %v1613
  %v1618 = vadd.f32 %v1608, %v1613
  %v1619 = vpack.c.bf16 %v1616, %v1615
  %v1620 = vpack.c.bf16 %v1618, %v1617
  %v1621 = vld [vmem:[%s19] sm:$0xf]
  %v1622 = vld [vmem:[%s19 + $0x4] sm:$0xf]
  %v1623 = vld [vmem:[%s19 + $0x8] sm:$0xf]
  %v1624 = vld [vmem:[%s19 + $0xc] sm:$0xf]
  %v1625 = vld [vmem:[%s21] sm:$0x1]
  %v1627 = vlaneseq
  %v1628 = vshrl.u32 %v1627, 7
  %v1629 = vsub.s32 0, %v1628
  %v1630 = vrot.slane %v1625, %v1629
  %v1636 = vunpack.c.l.b16 %v1621
  %v1637 = vunpack.c.l.b16 %v1622
  %v1638 = vunpack.c.l.b16 %v1623
  %v1639 = vunpack.c.l.b16 %v1624
  %v1640 = vpack.c.b16 %v1637, %v1636
  %v1641 = vpack.c.b16 %v1639, %v1638
  %v1645 = vsel %vm290, %v1619, 0
  %v1648 = vsel %vm290, %v1620, 0
  %1650 = vmatprep.subr.bf16.mxu0 0
  %1651 = vmatpush1.bf16.msra.mxu0 %v1640
  %1652 = vmatprep.subr.bf16.mxu0 0
  %1653 = vmatpush1.bf16.msra.mxu0 %v1641
  %1654 = vmatprep.subr.bf16.mxu0 0
  %1655 = vmatpush1.bf16.msra.mxu0 0
  %1656 = vmatprep.subr.bf16.mxu0 0
  %1657 = vmatpush1.bf16.msra.mxu0 0
  %1658 = vmatprep.subr.bf16.mxu0 0
  %1659 = vmatpush1.bf16.msra.mxu0 0
  %1660 = vmatprep.subr.bf16.mxu0 0
  %1661 = vmatpush1.bf16.msra.mxu0 0
  %1662 = vmatprep.subr.bf16.mxu0 0
  %1663 = vmatpush1.bf16.msra.mxu0 0
  %1664 = vmatprep.subr.bf16.mxu0 0
  %1665 = vmatpush1.bf16.msra.mxu0 0
  %1666 = vmatprep.subr.bf16.mxu0 0
  %1667 = vmatpush1.bf16.msra.mxu0 0
  %1668 = vmatprep.subr.bf16.mxu0 0
  %1669 = vmatpush1.bf16.msra.mxu0 0
  %1670 = vmatprep.subr.bf16.mxu0 0
  %1671 = vmatpush1.bf16.msra.mxu0 0
  %1672 = vmatprep.subr.bf16.mxu0 0
  %1673 = vmatpush1.bf16.msra.mxu0 0
  %1674 = vmatprep.subr.bf16.mxu0 0
  %1675 = vmatpush1.bf16.msra.mxu0 0
  %1676 = vmatprep.subr.bf16.mxu0 0
  %1677 = vmatpush1.bf16.msra.mxu0 0
  %1678 = vmatprep.subr.bf16.mxu0 0
  %1679 = vmatpush1.bf16.msra.mxu0 0
  %1680 = vmatprep.subr.bf16.mxu0 0
  %1681 = vmatpush1.bf16.msra.mxu0 0
  %1682 = vmatprep.mubr.bf16.mxu0 0
  %1683 = vmatmul.mubr.bf16.gmra.mrb[0].mxu0 %v1645
  %v1684 = vpop.f32.mrb[0].mxu0
  %v1685 = vadd.f32 %v1630, %v1684
  %v1686 = vpop.f32.mrb[0].mxu0
  %v1687 = vpop.f32.mrb[0].mxu0
  %v1688 = vadd.f32 %v1630, %v1687
  %v1689 = vpop.f32.mrb[0].mxu0
  %1690 = vmatprep.mubr.bf16.mxu0 0
  %1691 = vmatmul.mubr.bf16.gmra.mrb[0].mxu0 %v1648
  %v1692 = vpop.f32.mrb[0].mxu0
  %v1693 = vadd.f32 %v1630, %v1692
  %v1694 = vpop.f32.mrb[0].mxu0
  %v1695 = vpop.f32.mrb[0].mxu0
  %v1696 = vadd.f32 %v1630, %v1695
  %v1697 = vpop.f32.mrb[0].mxu0
  %1698 = vdwg.mxu0
  %v1699 = vmax.f32 %v1685, 0.0
  %v1700 = vmax.f32 %v1688, 0.0
  %v1701 = vmax.f32 %v1693, 0.0
  %v1702 = vmax.f32 %v1696, 0.0
  %v1703 = vpack.c.bf16 %v1700, %v1699
  %v1704 = vpack.c.bf16 %v1702, %v1701
  %v1705 = vld [vmem:[%s23] sm:$0xf]
  %v1706 = vld [vmem:[%s23 + $0x4] sm:$0xf]
  %v1707 = vld [vmem:[%s23 + $0x8] sm:$0xf]
  %v1708 = vld [vmem:[%s23 + $0xc] sm:$0xf]
  %v1709 = vld [vmem:[%s23 + $0x10] sm:$0xf]
  %v1710 = vld [vmem:[%s23 + $0x14] sm:$0xf]
  %v1711 = vld [vmem:[%s23 + $0x18] sm:$0xf]
  %v1712 = vld [vmem:[%s23 + $0x1c] sm:$0xf]
  %v1721 = vunpack.c.l.b16 %v1705
  %v1722 = vunpack.c.l.b16 %v1706
  %v1723 = vunpack.c.l.b16 %v1707
  %v1724 = vunpack.c.l.b16 %v1708
  %v1725 = vunpack.c.l.b16 %v1709
  %v1726 = vunpack.c.l.b16 %v1710
  %v1727 = vunpack.c.l.b16 %v1711
  %v1728 = vunpack.c.l.b16 %v1712
  %v1729 = vpack.c.b16 %v1722, %v1721
  %v1730 = vpack.c.b16 %v1724, %v1723
  %v1731 = vpack.c.b16 %v1726, %v1725
  %v1732 = vpack.c.b16 %v1728, %v1727
  %vm1737 = vcmask 523264
  %v1739 = vsel %vm1737, %v1703, 0
  %v1742 = vsel %vm1737, %v1704, 0
  %1744 = vmatprep.subr.bf16.mxu0 0
  %1745 = vmatpush1.bf16.msra.mxu0 %v1729
  %1746 = vmatprep.subr.bf16.mxu0 0
  %1747 = vmatpush1.bf16.msra.mxu0 %v1730
  %1748 = vmatprep.subr.bf16.mxu0 0
  %1749 = vmatpush1.bf16.msra.mxu0 %v1731
  %1750 = vmatprep.subr.bf16.mxu0 0
  %1751 = vmatpush1.bf16.msra.mxu0 %v1732
  %1752 = vmatprep.subr.bf16.mxu0 0
  %1753 = vmatpush1.bf16.msra.mxu0 0
  %1754 = vmatprep.subr.bf16.mxu0 0
  %1755 = vmatpush1.bf16.msra.mxu0 0
  %1756 = vmatprep.subr.bf16.mxu0 0
  %1757 = vmatpush1.bf16.msra.mxu0 0
  %1758 = vmatprep.subr.bf16.mxu0 0
  %1759 = vmatpush1.bf16.msra.mxu0 0
  %1760 = vmatprep.subr.bf16.mxu0 0
  %1761 = vmatpush1.bf16.msra.mxu0 0
  %1762 = vmatprep.subr.bf16.mxu0 0
  %1763 = vmatpush1.bf16.msra.mxu0 0
  %1764 = vmatprep.subr.bf16.mxu0 0
  %1765 = vmatpush1.bf16.msra.mxu0 0
  %1766 = vmatprep.subr.bf16.mxu0 0
  %1767 = vmatpush1.bf16.msra.mxu0 0
  %1768 = vmatprep.subr.bf16.mxu0 0
  %1769 = vmatpush1.bf16.msra.mxu0 0
  %1770 = vmatprep.subr.bf16.mxu0 0
  %1771 = vmatpush1.bf16.msra.mxu0 0
  %1772 = vmatprep.subr.bf16.mxu0 0
  %1773 = vmatpush1.bf16.msra.mxu0 0
  %1774 = vmatprep.subr.bf16.mxu0 0
  %1775 = vmatpush1.bf16.msra.mxu0 0
  %1776 = vmatprep.mubr.bf16.mxu0 0
  %1777 = vmatmul.mubr.bf16.gmra.mrb[0].mxu0 %v1739
  %v1778 = vpop.f32.mrb[0].mxu0
  %v1779 = vadd.f32 0.0, %v1778
  %v1780 = vpop.f32.mrb[0].mxu0
  %v1781 = vpop.f32.mrb[0].mxu0
  %v1782 = vadd.f32 0.0, %v1781
  %v1783 = vpop.f32.mrb[0].mxu0
  %1784 = vmatprep.mubr.bf16.mxu0 0
  %1785 = vmatmul.mubr.bf16.gmra.mrb[0].mxu0 %v1742
  %v1786 = vpop.f32.mrb[0].mxu0
  %v1787 = vadd.f32 0.0, %v1786
  %v1788 = vpop.f32.mrb[0].mxu0
  %v1789 = vpop.f32.mrb[0].mxu0
  %v1790 = vadd.f32 0.0, %v1789
  %v1791 = vpop.f32.mrb[0].mxu0
  %1792 = vdwg.mxu0
  %v1793 = vadd.f32 %v1615, %v1779
  %v1794 = vadd.f32 %v1616, %v1782
  %v1795 = vadd.f32 %v1617, %v1787
  %v1796 = vadd.f32 %v1618, %v1790
  %v1797 = vld [vmem:[%s25] sm:$0x1]
  %v1799 = vlaneseq
  %v1800 = vshrl.u32 %v1799, 7
  %v1801 = vsub.s32 0, %v1800
  %v1802 = vrot.slane %v1797, %v1801
  %v1804 = vadd.f32 %v1793, %v1802
  %v1805 = vadd.f32 %v1794, %v1802
  %v1806 = vadd.f32 %v1795, %v1802
  %v1807 = vadd.f32 %v1796, %v1802
  %v1808 = vld [vmem:[%s27] sm:$0x1]
  %v1809 = vld [vmem:[%s29] sm:$0x1]
  %v1810 = vsel %vm290, %v1804, 0.0
  %1811 = vadd.xlane.f32.xlu0 %v1810
  %v1812 = vpop.xlane.xlu0 %1811
  %v1813 = vsel %vm290, %v1805, 0.0
  %1814 = vadd.xlane.f32.xlu0 %v1813
  %v1815 = vpop.xlane.xlu0 %1814
  %v1816 = vsel %vm290, %v1806, 0.0
  %1817 = vadd.xlane.f32.xlu0 %v1816
  %v1818 = vpop.xlane.xlu0 %1817
  %v1819 = vsel %vm290, %v1807, 0.0
  %1820 = vadd.xlane.f32.xlu0 %v1819
  %v1821 = vpop.xlane.xlu0 %1820
  %v1822 = vmul.f32 %v1812, %v1558
  %v1823 = vmul.f32 %v1815, %v1558
  %v1824 = vmul.f32 %v1818, %v1558
  %v1825 = vmul.f32 %v1821, %v1558
  %v1826 = vsub.f32 %v1804, %v1822
  %v1827 = vsub.f32 %v1805, %v1823
  %v1828 = vsub.f32 %v1806, %v1824
  %v1829 = vsub.f32 %v1807, %v1825
  %v1830 = vmul.f32 %v1826, %v1826
  %v1831 = vmul.f32 %v1827, %v1827
  %v1832 = vmul.f32 %v1828, %v1828
  %v1833 = vmul.f32 %v1829, %v1829
  %v1834 = vsel %vm290, %v1830, 0.0
  %1835 = vadd.xlane.f32.xlu0 %v1834
  %v1836 = vpop.xlane.xlu0 %1835
  %v1837 = vsel %vm290, %v1831, 0.0
  %1838 = vadd.xlane.f32.xlu0 %v1837
  %v1839 = vpop.xlane.xlu0 %1838
  %v1840 = vsel %vm290, %v1832, 0.0
  %1841 = vadd.xlane.f32.xlu0 %v1840
  %v1842 = vpop.xlane.xlu0 %1841
  %v1843 = vsel %vm290, %v1833, 0.0
  %1844 = vadd.xlane.f32.xlu0 %v1843
  %v1845 = vpop.xlane.xlu0 %1844
  %v1846 = vmul.f32 %v1836, %v1558
  %v1847 = vmul.f32 %v1839, %v1558
  %v1848 = vmul.f32 %v1842, %v1558
  %v1849 = vmul.f32 %v1845, %v1558
  %v1850 = vadd.f32 %v1846, 1e-05
  %v1851 = vadd.f32 %v1847, 1e-05
  %v1852 = vadd.f32 %v1848, 1e-05
  %v1853 = vadd.f32 %v1849, 1e-05
  %v1854 = vrsqrt.pop %v1850
  %v1855 = vrsqrt.pop %v1851
  %v1856 = vrsqrt.pop %v1852
  %v1857 = vrsqrt.pop %v1853
  %v1858 = vmul.f32 %v1826, %v1854
  %v1859 = vmul.f32 %v1827, %v1855
  %v1860 = vmul.f32 %v1828, %v1856
  %v1861 = vmul.f32 %v1829, %v1857
  %v1863 = vlaneseq
  %v1864 = vshrl.u32 %v1863, 7
  %v1865 = vsub.s32 0, %v1864
  %v1866 = vrot.slane %v1808, %v1865
  %v1868 = vmul.f32 %v1858, %v1866
  %v1869 = vmul.f32 %v1859, %v1866
  %v1870 = vmul.f32 %v1860, %v1866
  %v1871 = vmul.f32 %v1861, %v1866
  %v1873 = vlaneseq
  %v1874 = vshrl.u32 %v1873, 7
  %v1875 = vsub.s32 0, %v1874
  %v1876 = vrot.slane %v1809, %v1875
  %v1878 = vadd.f32 %v1868, %v1876
  %v1879 = vadd.f32 %v1869, %v1876
  %v1880 = vadd.f32 %v1870, %v1876
  %v1881 = vadd.f32 %v1871, %v1876
  %v1882 = vpack.c.bf16 %v1879, %v1878
  %v1883 = vpack.c.bf16 %v1881, %v1880
  %v1884 = vld [vmem:[%s31] sm:$0xf]
  %v1885 = vld [vmem:[%s31 + $0x4] sm:$0xf]
  %v1886 = vld [vmem:[%s31 + $0x8] sm:$0xf]
  %v1887 = vld [vmem:[%s31 + $0xc] sm:$0xf]
  %v1892 = vunpack.c.l.b16 %v1884
  %v1893 = vunpack.c.l.b16 %v1885
  %v1894 = vunpack.c.l.b16 %v1886
  %v1895 = vunpack.c.l.b16 %v1887
  %v1896 = vpack.c.b16 %v1893, %v1892
  %v1897 = vpack.c.b16 %v1895, %v1894
  %v1901 = vsel %vm290, %v1882, 0
  %v1904 = vsel %vm290, %v1883, 0
  %1906 = vmatprep.subr.bf16.mxu0 0
  %1907 = vmatpush1.bf16.msra.mxu0 %v1896
  %1908 = vmatprep.subr.bf16.mxu0 0
  %1909 = vmatpush1.bf16.msra.mxu0 %v1897
  %1910 = vmatprep.subr.bf16.mxu0 0
  %1911 = vmatpush1.bf16.msra.mxu0 0
  %1912 = vmatprep.subr.bf16.mxu0 0
  %1913 = vmatpush1.bf16.msra.mxu0 0
  %1914 = vmatprep.subr.bf16.mxu0 0
  %1915 = vmatpush1.bf16.msra.mxu0 0
  %1916 = vmatprep.subr.bf16.mxu0 0
  %1917 = vmatpush1.bf16.msra.mxu0 0
  %1918 = vmatprep.subr.bf16.mxu0 0
  %1919 = vmatpush1.bf16.msra.mxu0 0
  %1920 = vmatprep.subr.bf16.mxu0 0
  %1921 = vmatpush1.bf16.msra.mxu0 0
  %1922 = vmatprep.subr.bf16.mxu0 0
  %1923 = vmatpush1.bf16.msra.mxu0 0
  %1924 = vmatprep.subr.bf16.mxu0 0
  %1925 = vmatpush1.bf16.msra.mxu0 0
  %1926 = vmatprep.subr.bf16.mxu0 0
  %1927 = vmatpush1.bf16.msra.mxu0 0
  %1928 = vmatprep.subr.bf16.mxu0 0
  %1929 = vmatpush1.bf16.msra.mxu0 0
  %1930 = vmatprep.subr.bf16.mxu0 0
  %1931 = vmatpush1.bf16.msra.mxu0 0
  %1932 = vmatprep.subr.bf16.mxu0 0
  %1933 = vmatpush1.bf16.msra.mxu0 0
  %1934 = vmatprep.subr.bf16.mxu0 0
  %1935 = vmatpush1.bf16.msra.mxu0 0
  %1936 = vmatprep.subr.bf16.mxu0 0
  %1937 = vmatpush1.bf16.msra.mxu0 0
  %1938 = vmatprep.mubr.bf16.mxu0 0
  %1939 = vmatmul.mubr.bf16.gmra.mrb[0].mxu0 %v1901
  %v1940 = vpop.f32.mrb[0].mxu0
  %v1941 = vadd.f32 0.0, %v1940
  %v1942 = vpop.f32.mrb[0].mxu0
  %v1943 = vpop.f32.mrb[0].mxu0
  %v1944 = vadd.f32 0.0, %v1943
  %v1945 = vpop.f32.mrb[0].mxu0
  %1946 = vmatprep.mubr.bf16.mxu0 0
  %1947 = vmatmul.mubr.bf16.gmra.mrb[0].mxu0 %v1904
  %v1948 = vpop.f32.mrb[0].mxu0
  %v1949 = vadd.f32 0.0, %v1948
  %v1950 = vpop.f32.mrb[0].mxu0
  %v1951 = vpop.f32.mrb[0].mxu0
  %v1952 = vadd.f32 0.0, %v1951
  %v1953 = vpop.f32.mrb[0].mxu0
  %1954 = vdwg.mxu0
  %v1955 = vld [vmem:[%s33] sm:$0xff]
  %v1956 = vld [vmem:[%s33 + $0x8] sm:$0xff]
  %v1957 = vadd.f32 %v1941, %v1955
  %v1958 = vadd.f32 %v1944, %v1956
  %v1959 = vadd.f32 %v1949, %v1955
  %v1960 = vadd.f32 %v1952, %v1956
  %v1961 = vld [vmem:[%s35] sm:$0xf]
  %v1962 = vld [vmem:[%s35 + $0x4] sm:$0xf]
  %v1963 = vld [vmem:[%s35 + $0x8] sm:$0xf]
  %v1964 = vld [vmem:[%s35 + $0xc] sm:$0xf]
  %v1965 = vld [vmem:[%s37] sm:$0x1]
  %1970 = vrot.lane.b32.xlu0 %v1957, 96
  %v1971 = vpop.permute.xlu0 %1970
  %1972 = vrot.lane.b32.xlu0 %v1958, 96
  %v1973 = vpop.permute.xlu0 %1972
  %1974 = vrot.lane.b32.xlu0 %v1959, 96
  %v1975 = vpop.permute.xlu0 %1974
  %1976 = vrot.lane.b32.xlu0 %v1960, 96
  %v1977 = vpop.permute.xlu0 %1976
  %1982 = vxpose.xlu0.b32.start [1/16] %v1971, 128
  %1983 = vxpose.xlu0.b32.cont [2/16] %v1973, 128
  %1984 = vxpose.xlu0.b32.cont [3/16] 0.0, 128
  %1985 = vxpose.xlu0.b32.cont [4/16] 0.0, 128
  %1986 = vxpose.xlu0.b32.cont [5/16] 0.0, 128
  %1987 = vxpose.xlu0.b32.cont [6/16] 0.0, 128
  %1988 = vxpose.xlu0.b32.cont [7/16] 0.0, 128
  %1989 = vxpose.xlu0.b32.cont [8/16] 0.0, 128
  %1990 = vxpose.xlu0.b32.cont [9/16] 0.0, 128
  %1991 = vxpose.xlu0.b32.cont [10/16] 0.0, 128
  %1992 = vxpose.xlu0.b32.cont [11/16] 0.0, 128
  %1993 = vxpose.xlu0.b32.cont [12/16] 0.0, 128
  %1994 = vxpose.xlu0.b32.cont [13/16] 0.0, 128
  %1995 = vxpose.xlu0.b32.cont [14/16] 0.0, 128
  %1996 = vxpose.xlu0.b32.cont [15/16] 0.0, 128
  %1997 = vxpose.xlu0.b32.end [16/16] 0.0, 128
  %v1998 = vpop.trf.xlu0
  %v1999 = vpop.trf.xlu0
  %v2000 = vpop.trf.xlu0
  %v2001 = vpop.trf.xlu0
  %v2002 = vpop.trf.xlu0
  %v2003 = vpop.trf.xlu0
  %v2004 = vpop.trf.xlu0
  %v2005 = vpop.trf.xlu0
  %v2006 = vpop.trf.xlu0
  %v2007 = vpop.trf.xlu0
  %v2008 = vpop.trf.xlu0
  %v2009 = vpop.trf.xlu0
  %v2010 = vpop.trf.xlu0
  %v2011 = vpop.trf.xlu0
  %v2012 = vpop.trf.xlu0
  %v2013 = vpop.trf.xlu0
  %2014 = vxpose.xlu0.b32.start [1/16] %v1975, 128
  %2015 = vxpose.xlu0.b32.cont [2/16] %v1977, 128
  %2016 = vxpose.xlu0.b32.cont [3/16] 0.0, 128
  %2017 = vxpose.xlu0.b32.cont [4/16] 0.0, 128
  %2018 = vxpose.xlu0.b32.cont [5/16] 0.0, 128
  %2019 = vxpose.xlu0.b32.cont [6/16] 0.0, 128
  %2020 = vxpose.xlu0.b32.cont [7/16] 0.0, 128
  %2021 = vxpose.xlu0.b32.cont [8/16] 0.0, 128
  %2022 = vxpose.xlu0.b32.cont [9/16] 0.0, 128
  %2023 = vxpose.xlu0.b32.cont [10/16] 0.0, 128
  %2024 = vxpose.xlu0.b32.cont [11/16] 0.0, 128
  %2025 = vxpose.xlu0.b32.cont [12/16] 0.0, 128
  %2026 = vxpose.xlu0.b32.cont [13/16] 0.0, 128
  %2027 = vxpose.xlu0.b32.cont [14/16] 0.0, 128
  %2028 = vxpose.xlu0.b32.cont [15/16] 0.0, 128
  %2029 = vxpose.xlu0.b32.end [16/16] 0.0, 128
  %v2030 = vpop.trf.xlu0
  %v2031 = vpop.trf.xlu0
  %v2032 = vpop.trf.xlu0
  %v2033 = vpop.trf.xlu0
  %v2034 = vpop.trf.xlu0
  %v2035 = vpop.trf.xlu0
  %v2036 = vpop.trf.xlu0
  %v2037 = vpop.trf.xlu0
  %v2038 = vpop.trf.xlu0
  %v2039 = vpop.trf.xlu0
  %v2040 = vpop.trf.xlu0
  %v2041 = vpop.trf.xlu0
  %v2042 = vpop.trf.xlu0
  %v2043 = vpop.trf.xlu0
  %v2044 = vpop.trf.xlu0
  %v2045 = vpop.trf.xlu0
  %v2046 = vpack.c.bf16 %v1958, %v1957
  %v2047 = vpack.c.bf16 %v1960, %v1959
  %v2048 = vpack.c.bf16 %v1999, %v1998
  %v2049 = vpack.c.bf16 %v2001, %v2000
  %v2050 = vpack.c.bf16 %v2031, %v2030
  %v2051 = vpack.c.bf16 %v2033, %v2032
  %v2053 = vsel %vm443, %v2046, 0
  %v2056 = vsel %vm447, %v2048, 0
  %2058 = vmatprep.subr.bf16.mxu0 0
  %2059 = vmatpush1.bf16.msra.mxu0 %v2056
  %2060 = vmatprep.subr.bf16.mxu0 0
  %2061 = vmatpush1.bf16.msra.mxu0 0
  %2062 = vmatprep.subr.bf16.mxu0 0
  %2063 = vmatpush1.bf16.msra.mxu0 0
  %2064 = vmatprep.subr.bf16.mxu0 0
  %2065 = vmatpush1.bf16.msra.mxu0 0
  %2066 = vmatprep.subr.bf16.mxu0 0
  %2067 = vmatpush1.bf16.msra.mxu0 0
  %2068 = vmatprep.subr.bf16.mxu0 0
  %2069 = vmatpush1.bf16.msra.mxu0 0
  %2070 = vmatprep.subr.bf16.mxu0 0
  %2071 = vmatpush1.bf16.msra.mxu0 0
  %2072 = vmatprep.subr.bf16.mxu0 0
  %2073 = vmatpush1.bf16.msra.mxu0 0
  %2074 = vmatprep.subr.bf16.mxu0 0
  %2075 = vmatpush1.bf16.msra.mxu0 0
  %2076 = vmatprep.subr.bf16.mxu0 0
  %2077 = vmatpush1.bf16.msra.mxu0 0
  %2078 = vmatprep.subr.bf16.mxu0 0
  %2079 = vmatpush1.bf16.msra.mxu0 0
  %2080 = vmatprep.subr.bf16.mxu0 0
  %2081 = vmatpush1.bf16.msra.mxu0 0
  %2082 = vmatprep.subr.bf16.mxu0 0
  %2083 = vmatpush1.bf16.msra.mxu0 0
  %2084 = vmatprep.subr.bf16.mxu0 0
  %2085 = vmatpush1.bf16.msra.mxu0 0
  %2086 = vmatprep.subr.bf16.mxu0 0
  %2087 = vmatpush1.bf16.msra.mxu0 0
  %2088 = vmatprep.subr.bf16.mxu0 0
  %2089 = vmatpush1.bf16.msra.mxu0 0
  %2090 = vmatprep.mubr.bf16.mxu0 0
  %2091 = vmatmul.mubr.bf16.gmra.mrb[0].mxu0 %v2053
  %v2092 = vpop.f32.mrb[0].mxu0
  %v2093 = vadd.f32 0.0, %v2092
  %v2094 = vpop.f32.mrb[0].mxu0
  %v2095 = vpop.f32.mrb[0].mxu0
  %v2096 = vadd.f32 0.0, %v2095
  %v2097 = vpop.f32.mrb[0].mxu0
  %2098 = vdwg.mxu0
  %v2100 = vsel %vm443, %v2047, 0
  %v2103 = vsel %vm447, %v2050, 0
  %2105 = vmatprep.subr.bf16.mxu0 0
  %2106 = vmatpush1.bf16.msra.mxu0 %v2103
  %2107 = vmatprep.subr.bf16.mxu0 0
  %2108 = vmatpush1.bf16.msra.mxu0 0
  %2109 = vmatprep.subr.bf16.mxu0 0
  %2110 = vmatpush1.bf16.msra.mxu0 0
  %2111 = vmatprep.subr.bf16.mxu0 0
  %2112 = vmatpush1.bf16.msra.mxu0 0
  %2113 = vmatprep.subr.bf16.mxu0 0
  %2114 = vmatpush1.bf16.msra.mxu0 0
  %2115 = vmatprep.subr.bf16.mxu0 0
  %2116 = vmatpush1.bf16.msra.mxu0 0
  %2117 = vmatprep.subr.bf16.mxu0 0
  %2118 = vmatpush1.bf16.msra.mxu0 0
  %2119 = vmatprep.subr.bf16.mxu0 0
  %2120 = vmatpush1.bf16.msra.mxu0 0
  %2121 = vmatprep.subr.bf16.mxu0 0
  %2122 = vmatpush1.bf16.msra.mxu0 0
  %2123 = vmatprep.subr.bf16.mxu0 0
  %2124 = vmatpush1.bf16.msra.mxu0 0
  %2125 = vmatprep.subr.bf16.mxu0 0
  %2126 = vmatpush1.bf16.msra.mxu0 0
  %2127 = vmatprep.subr.bf16.mxu0 0
  %2128 = vmatpush1.bf16.msra.mxu0 0
  %2129 = vmatprep.subr.bf16.mxu0 0
  %2130 = vmatpush1.bf16.msra.mxu0 0
  %2131 = vmatprep.subr.bf16.mxu0 0
  %2132 = vmatpush1.bf16.msra.mxu0 0
  %2133 = vmatprep.subr.bf16.mxu0 0
  %2134 = vmatpush1.bf16.msra.mxu0 0
  %2135 = vmatprep.subr.bf16.mxu0 0
  %2136 = vmatpush1.bf16.msra.mxu0 0
  %2137 = vmatprep.mubr.bf16.mxu0 0
  %2138 = vmatmul.mubr.bf16.gmra.mrb[0].mxu0 %v2100
  %v2139 = vpop.f32.mrb[0].mxu0
  %v2140 = vadd.f32 0.0, %v2139
  %v2141 = vpop.f32.mrb[0].mxu0
  %v2142 = vpop.f32.mrb[0].mxu0
  %v2143 = vadd.f32 0.0, %v2142
  %v2144 = vpop.f32.mrb[0].mxu0
  %2145 = vdwg.mxu0
  %v2146 = vsel %vm539, %v2093, -inf
  %2147 = vmax.xlane.f32.xlu0 %v2146
  %v2148 = vpop.xlane.xlu0 %2147
  %v2149 = vsel %vm539, %v2096, -inf
  %2150 = vmax.xlane.f32.xlu0 %v2149
  %v2151 = vpop.xlane.xlu0 %2150
  %v2152 = vsel %vm539, %v2140, -inf
  %2153 = vmax.xlane.f32.xlu0 %v2152
  %v2154 = vpop.xlane.xlu0 %2153
  %v2155 = vsel %vm539, %v2143, -inf
  %2156 = vmax.xlane.f32.xlu0 %v2155
  %v2157 = vpop.xlane.xlu0 %2156
  %v2158 = vsub.f32 %v2093, %v2148
  %v2159 = vsub.f32 %v2096, %v2151
  %v2160 = vsub.f32 %v2140, %v2154
  %v2161 = vsub.f32 %v2143, %v2157
  %v2162 = vmul.f32 %v2158, 1.442695
  %v2163 = vpow.pop %v2162
  %v2164 = vmul.f32 %v2159, 1.442695
  %v2165 = vpow.pop %v2164
  %v2166 = vmul.f32 %v2160, 1.442695
  %v2167 = vpow.pop %v2166
  %v2168 = vmul.f32 %v2161, 1.442695
  %v2169 = vpow.pop %v2168
  %v2170 = vsel %vm539, %v2163, 0.0
  %2171 = vadd.xlane.f32.xlu0 %v2170
  %v2172 = vpop.xlane.xlu0 %2171
  %v2173 = vsel %vm539, %v2165, 0.0
  %2174 = vadd.xlane.f32.xlu0 %v2173
  %v2175 = vpop.xlane.xlu0 %2174
  %v2176 = vsel %vm539, %v2167, 0.0
  %2177 = vadd.xlane.f32.xlu0 %v2176
  %v2178 = vpop.xlane.xlu0 %2177
  %v2179 = vsel %vm539, %v2169, 0.0
  %2180 = vadd.xlane.f32.xlu0 %v2179
  %v2181 = vpop.xlane.xlu0 %2180
  %v2182 = vrcp.pop %v2172
  %v2183 = vrcp.pop %v2175
  %v2184 = vrcp.pop %v2178
  %v2185 = vrcp.pop %v2181
  %v2186 = vmul.f32 %v2163, %v2182
  %v2187 = vmul.f32 %v2165, %v2183
  %v2188 = vmul.f32 %v2167, %v2184
  %v2189 = vmul.f32 %v2169, %v2185
  %v2190 = vpack.c.bf16 %v2187, %v2186
  %v2191 = vpack.c.bf16 %v2189, %v2188
  %2193 = vrot.lane.b32.xlu0 %v2046, 64
  %v2194 = vpop.permute.xlu0 %2193
  %v2197 = vsel %vm539, %v2190, 0
  %2199 = vmatprep.subr.bf16.mxu0 0
  %2200 = vmatpush1.bf16.msra.mxu0 %v2194
  %2201 = vmatprep.subr.bf16.mxu0 0
  %2202 = vmatpush1.bf16.msra.mxu0 0
  %2203 = vmatprep.subr.bf16.mxu0 0
  %2204 = vmatpush1.bf16.msra.mxu0 0
  %2205 = vmatprep.subr.bf16.mxu0 0
  %2206 = vmatpush1.bf16.msra.mxu0 0
  %2207 = vmatprep.subr.bf16.mxu0 0
  %2208 = vmatpush1.bf16.msra.mxu0 0
  %2209 = vmatprep.subr.bf16.mxu0 0
  %2210 = vmatpush1.bf16.msra.mxu0 0
  %2211 = vmatprep.subr.bf16.mxu0 0
  %2212 = vmatpush1.bf16.msra.mxu0 0
  %2213 = vmatprep.subr.bf16.mxu0 0
  %2214 = vmatpush1.bf16.msra.mxu0 0
  %2215 = vmatprep.subr.bf16.mxu0 0
  %2216 = vmatpush1.bf16.msra.mxu0 0
  %2217 = vmatprep.subr.bf16.mxu0 0
  %2218 = vmatpush1.bf16.msra.mxu0 0
  %2219 = vmatprep.subr.bf16.mxu0 0
  %2220 = vmatpush1.bf16.msra.mxu0 0
  %2221 = vmatprep.subr.bf16.mxu0 0
  %2222 = vmatpush1.bf16.msra.mxu0 0
  %2223 = vmatprep.subr.bf16.mxu0 0
  %2224 = vmatpush1.bf16.msra.mxu0 0
  %2225 = vmatprep.subr.bf16.mxu0 0
  %2226 = vmatpush1.bf16.msra.mxu0 0
  %2227 = vmatprep.subr.bf16.mxu0 0
  %2228 = vmatpush1.bf16.msra.mxu0 0
  %2229 = vmatprep.subr.bf16.mxu0 0
  %2230 = vmatpush1.bf16.msra.mxu0 0
  %2231 = vmatprep.mubr.bf16.mxu0 0
  %2232 = vmatmul.mubr.bf16.gmra.mrb[0].mxu0 %v2197
  %v2233 = vpop.f32.mrb[0].mxu0
  %v2234 = vadd.f32 0.0, %v2233
  %v2235 = vpop.f32.mrb[0].mxu0
  %v2236 = vpop.f32.mrb[0].mxu0
  %v2237 = vadd.f32 0.0, %v2236
  %v2238 = vpop.f32.mrb[0].mxu0
  %2239 = vdwg.mxu0
  %2241 = vrot.lane.b32.xlu0 %v2047, 64
  %v2242 = vpop.permute.xlu0 %2241
  %v2245 = vsel %vm539, %v2191, 0
  %2247 = vmatprep.subr.bf16.mxu0 0
  %2248 = vmatpush1.bf16.msra.mxu0 %v2242
  %2249 = vmatprep.subr.bf16.mxu0 0
  %2250 = vmatpush1.bf16.msra.mxu0 0
  %2251 = vmatprep.subr.bf16.mxu0 0
  %2252 = vmatpush1.bf16.msra.mxu0 0
  %2253 = vmatprep.subr.bf16.mxu0 0
  %2254 = vmatpush1.bf16.msra.mxu0 0
  %2255 = vmatprep.subr.bf16.mxu0 0
  %2256 = vmatpush1.bf16.msra.mxu0 0
  %2257 = vmatprep.subr.bf16.mxu0 0
  %2258 = vmatpush1.bf16.msra.mxu0 0
  %2259 = vmatprep.subr.bf16.mxu0 0
  %2260 = vmatpush1.bf16.msra.mxu0 0
  %2261 = vmatprep.subr.bf16.mxu0 0
  %2262 = vmatpush1.bf16.msra.mxu0 0
  %2263 = vmatprep.subr.bf16.mxu0 0
  %2264 = vmatpush1.bf16.msra.mxu0 0
  %2265 = vmatprep.subr.bf16.mxu0 0
  %2266 = vmatpush1.bf16.msra.mxu0 0
  %2267 = vmatprep.subr.bf16.mxu0 0
  %2268 = vmatpush1.bf16.msra.mxu0 0
  %2269 = vmatprep.subr.bf16.mxu0 0
  %2270 = vmatpush1.bf16.msra.mxu0 0
  %2271 = vmatprep.subr.bf16.mxu0 0
  %2272 = vmatpush1.bf16.msra.mxu0 0
  %2273 = vmatprep.subr.bf16.mxu0 0
  %2274 = vmatpush1.bf16.msra.mxu0 0
  %2275 = vmatprep.subr.bf16.mxu0 0
  %2276 = vmatpush1.bf16.msra.mxu0 0
  %2277 = vmatprep.subr.bf16.mxu0 0
  %2278 = vmatpush1.bf16.msra.mxu0 0
  %2279 = vmatprep.mubr.bf16.mxu0 0
  %2280 = vmatmul.mubr.bf16.gmra.mrb[0].mxu0 %v2245
  %v2281 = vpop.f32.mrb[0].mxu0
  %v2282 = vadd.f32 0.0, %v2281
  %v2283 = vpop.f32.mrb[0].mxu0
  %v2284 = vpop.f32.mrb[0].mxu0
  %v2285 = vadd.f32 0.0, %v2284
  %v2286 = vpop.f32.mrb[0].mxu0
  %2287 = vdwg.mxu0
  %2288 = vrot.lane.b32.xlu0 %v2046, 120
  %v2289 = vpop.permute.xlu0 %2288
  %v2291 = vrot.slane %v2048, 4
  %v2293 = vsel %vm443, %v2289, 0
  %v2296 = vsel %vm447, %v2291, 0
  %2298 = vmatprep.subr.bf16.mxu0 0
  %2299 = vmatpush1.bf16.msra.mxu0 %v2296
  %2300 = vmatprep.subr.bf16.mxu0 0
  %2301 = vmatpush1.bf16.msra.mxu0 0
  %2302 = vmatprep.subr.bf16.mxu0 0
  %2303 = vmatpush1.bf16.msra.mxu0 0
  %2304 = vmatprep.subr.bf16.mxu0 0
  %2305 = vmatpush1.bf16.msra.mxu0 0
  %2306 = vmatprep.subr.bf16.mxu0 0
  %2307 = vmatpush1.bf16.msra.mxu0 0
  %2308 = vmatprep.subr.bf16.mxu0 0
  %2309 = vmatpush1.bf16.msra.mxu0 0
  %2310 = vmatprep.subr.bf16.mxu0 0
  %2311 = vmatpush1.bf16.msra.mxu0 0
  %2312 = vmatprep.subr.bf16.mxu0 0
  %2313 = vmatpush1.bf16.msra.mxu0 0
  %2314 = vmatprep.subr.bf16.mxu0 0
  %2315 = vmatpush1.bf16.msra.mxu0 0
  %2316 = vmatprep.subr.bf16.mxu0 0
  %2317 = vmatpush1.bf16.msra.mxu0 0
  %2318 = vmatprep.subr.bf16.mxu0 0
  %2319 = vmatpush1.bf16.msra.mxu0 0
  %2320 = vmatprep.subr.bf16.mxu0 0
  %2321 = vmatpush1.bf16.msra.mxu0 0
  %2322 = vmatprep.subr.bf16.mxu0 0
  %2323 = vmatpush1.bf16.msra.mxu0 0
  %2324 = vmatprep.subr.bf16.mxu0 0
  %2325 = vmatpush1.bf16.msra.mxu0 0
  %2326 = vmatprep.subr.bf16.mxu0 0
  %2327 = vmatpush1.bf16.msra.mxu0 0
  %2328 = vmatprep.subr.bf16.mxu0 0
  %2329 = vmatpush1.bf16.msra.mxu0 0
  %2330 = vmatprep.mubr.bf16.mxu0 0
  %2331 = vmatmul.mubr.bf16.gmra.mrb[0].mxu0 %v2293
  %v2332 = vpop.f32.mrb[0].mxu0
  %v2333 = vadd.f32 0.0, %v2332
  %v2334 = vpop.f32.mrb[0].mxu0
  %v2335 = vpop.f32.mrb[0].mxu0
  %v2336 = vadd.f32 0.0, %v2335
  %v2337 = vpop.f32.mrb[0].mxu0
  %2338 = vdwg.mxu0
  %2339 = vrot.lane.b32.xlu0 %v2047, 120
  %v2340 = vpop.permute.xlu0 %2339
  %v2342 = vrot.slane %v2050, 4
  %v2344 = vsel %vm443, %v2340, 0
  %v2347 = vsel %vm447, %v2342, 0
  %2349 = vmatprep.subr.bf16.mxu0 0
  %2350 = vmatpush1.bf16.msra.mxu0 %v2347
  %2351 = vmatprep.subr.bf16.mxu0 0
  %2352 = vmatpush1.bf16.msra.mxu0 0
  %2353 = vmatprep.subr.bf16.mxu0 0
  %2354 = vmatpush1.bf16.msra.mxu0 0
  %2355 = vmatprep.subr.bf16.mxu0 0
  %2356 = vmatpush1.bf16.msra.mxu0 0
  %2357 = vmatprep.subr.bf16.mxu0 0
  %2358 = vmatpush1.bf16.msra.mxu0 0
  %2359 = vmatprep.subr.bf16.mxu0 0
  %2360 = vmatpush1.bf16.msra.mxu0 0
  %2361 = vmatprep.subr.bf16.mxu0 0
  %2362 = vmatpush1.bf16.msra.mxu0 0
  %2363 = vmatprep.subr.bf16.mxu0 0
  %2364 = vmatpush1.bf16.msra.mxu0 0
  %2365 = vmatprep.subr.bf16.mxu0 0
  %2366 = vmatpush1.bf16.msra.mxu0 0
  %2367 = vmatprep.subr.bf16.mxu0 0
  %2368 = vmatpush1.bf16.msra.mxu0 0
  %2369 = vmatprep.subr.bf16.mxu0 0
  %2370 = vmatpush1.bf16.msra.mxu0 0
  %2371 = vmatprep.subr.bf16.mxu0 0
  %2372 = vmatpush1.bf16.msra.mxu0 0
  %2373 = vmatprep.subr.bf16.mxu0 0
  %2374 = vmatpush1.bf16.msra.mxu0 0
  %2375 = vmatprep.subr.bf16.mxu0 0
  %2376 = vmatpush1.bf16.msra.mxu0 0
  %2377 = vmatprep.subr.bf16.mxu0 0
  %2378 = vmatpush1.bf16.msra.mxu0 0
  %2379 = vmatprep.subr.bf16.mxu0 0
  %2380 = vmatpush1.bf16.msra.mxu0 0
  %2381 = vmatprep.mubr.bf16.mxu0 0
  %2382 = vmatmul.mubr.bf16.gmra.mrb[0].mxu0 %v2344
  %v2383 = vpop.f32.mrb[0].mxu0
  %v2384 = vadd.f32 0.0, %v2383
  %v2385 = vpop.f32.mrb[0].mxu0
  %v2386 = vpop.f32.mrb[0].mxu0
  %v2387 = vadd.f32 0.0, %v2386
  %v2388 = vpop.f32.mrb[0].mxu0
  %2389 = vdwg.mxu0
  %v2390 = vsel %vm539, %v2333, -inf
  %2391 = vmax.xlane.f32.xlu0 %v2390
  %v2392 = vpop.xlane.xlu0 %2391
  %v2393 = vsel %vm539, %v2336, -inf
  %2394 = vmax.xlane.f32.xlu0 %v2393
  %v2395 = vpop.xlane.xlu0 %2394
  %v2396 = vsel %vm539, %v2384, -inf
  %2397 = vmax.xlane.f32.xlu0 %v2396
  %v2398 = vpop.xlane.xlu0 %2397
  %v2399 = vsel %vm539, %v2387, -inf
  %2400 = vmax.xlane.f32.xlu0 %v2399
  %v2401 = vpop.xlane.xlu0 %2400
  %v2402 = vsub.f32 %v2333, %v2392
  %v2403 = vsub.f32 %v2336, %v2395
  %v2404 = vsub.f32 %v2384, %v2398
  %v2405 = vsub.f32 %v2387, %v2401
  %v2406 = vmul.f32 %v2402, 1.442695
  %v2407 = vpow.pop %v2406
  %v2408 = vmul.f32 %v2403, 1.442695
  %v2409 = vpow.pop %v2408
  %v2410 = vmul.f32 %v2404, 1.442695
  %v2411 = vpow.pop %v2410
  %v2412 = vmul.f32 %v2405, 1.442695
  %v2413 = vpow.pop %v2412
  %v2414 = vsel %vm539, %v2407, 0.0
  %2415 = vadd.xlane.f32.xlu0 %v2414
  %v2416 = vpop.xlane.xlu0 %2415
  %v2417 = vsel %vm539, %v2409, 0.0
  %2418 = vadd.xlane.f32.xlu0 %v2417
  %v2419 = vpop.xlane.xlu0 %2418
  %v2420 = vsel %vm539, %v2411, 0.0
  %2421 = vadd.xlane.f32.xlu0 %v2420
  %v2422 = vpop.xlane.xlu0 %2421
  %v2423 = vsel %vm539, %v2413, 0.0
  %2424 = vadd.xlane.f32.xlu0 %v2423
  %v2425 = vpop.xlane.xlu0 %2424
  %v2426 = vrcp.pop %v2416
  %v2427 = vrcp.pop %v2419
  %v2428 = vrcp.pop %v2422
  %v2429 = vrcp.pop %v2425
  %v2430 = vmul.f32 %v2407, %v2426
  %v2431 = vmul.f32 %v2409, %v2427
  %v2432 = vmul.f32 %v2411, %v2428
  %v2433 = vmul.f32 %v2413, %v2429
  %v2434 = vpack.c.bf16 %v2431, %v2430
  %v2435 = vpack.c.bf16 %v2433, %v2432
  %2436 = vrot.lane.b32.xlu0 %v2046, 56
  %v2437 = vpop.permute.xlu0 %2436
  %v2440 = vsel %vm539, %v2434, 0
  %2442 = vmatprep.subr.bf16.mxu0 0
  %2443 = vmatpush1.bf16.msra.mxu0 %v2437
  %2444 = vmatprep.subr.bf16.mxu0 0
  %2445 = vmatpush1.bf16.msra.mxu0 0
  %2446 = vmatprep.subr.bf16.mxu0 0
  %2447 = vmatpush1.bf16.msra.mxu0 0
  %2448 = vmatprep.subr.bf16.mxu0 0
  %2449 = vmatpush1.bf16.msra.mxu0 0
  %2450 = vmatprep.subr.bf16.mxu0 0
  %2451 = vmatpush1.bf16.msra.mxu0 0
  %2452 = vmatprep.subr.bf16.mxu0 0
  %2453 = vmatpush1.bf16.msra.mxu0 0
  %2454 = vmatprep.subr.bf16.mxu0 0
  %2455 = vmatpush1.bf16.msra.mxu0 0
  %2456 = vmatprep.subr.bf16.mxu0 0
  %2457 = vmatpush1.bf16.msra.mxu0 0
  %2458 = vmatprep.subr.bf16.mxu0 0
  %2459 = vmatpush1.bf16.msra.mxu0 0
  %2460 = vmatprep.subr.bf16.mxu0 0
  %2461 = vmatpush1.bf16.msra.mxu0 0
  %2462 = vmatprep.subr.bf16.mxu0 0
  %2463 = vmatpush1.bf16.msra.mxu0 0
  %2464 = vmatprep.subr.bf16.mxu0 0
  %2465 = vmatpush1.bf16.msra.mxu0 0
  %2466 = vmatprep.subr.bf16.mxu0 0
  %2467 = vmatpush1.bf16.msra.mxu0 0
  %2468 = vmatprep.subr.bf16.mxu0 0
  %2469 = vmatpush1.bf16.msra.mxu0 0
  %2470 = vmatprep.subr.bf16.mxu0 0
  %2471 = vmatpush1.bf16.msra.mxu0 0
  %2472 = vmatprep.subr.bf16.mxu0 0
  %2473 = vmatpush1.bf16.msra.mxu0 0
  %2474 = vmatprep.mubr.bf16.mxu0 0
  %2475 = vmatmul.mubr.bf16.gmra.mrb[0].mxu0 %v2440
  %v2476 = vpop.f32.mrb[0].mxu0
  %v2477 = vadd.f32 0.0, %v2476
  %v2478 = vpop.f32.mrb[0].mxu0
  %v2479 = vpop.f32.mrb[0].mxu0
  %v2480 = vadd.f32 0.0, %v2479
  %v2481 = vpop.f32.mrb[0].mxu0
  %2482 = vdwg.mxu0
  %2483 = vrot.lane.b32.xlu0 %v2047, 56
  %v2484 = vpop.permute.xlu0 %2483
  %v2487 = vsel %vm539, %v2435, 0
  %2489 = vmatprep.subr.bf16.mxu0 0
  %2490 = vmatpush1.bf16.msra.mxu0 %v2484
  %2491 = vmatprep.subr.bf16.mxu0 0
  %2492 = vmatpush1.bf16.msra.mxu0 0
  %2493 = vmatprep.subr.bf16.mxu0 0
  %2494 = vmatpush1.bf16.msra.mxu0 0
  %2495 = vmatprep.subr.bf16.mxu0 0
  %2496 = vmatpush1.bf16.msra.mxu0 0
  %2497 = vmatprep.subr.bf16.mxu0 0
  %2498 = vmatpush1.bf16.msra.mxu0 0
  %2499 = vmatprep.subr.bf16.mxu0 0
  %2500 = vmatpush1.bf16.msra.mxu0 0
  %2501 = vmatprep.subr.bf16.mxu0 0
  %2502 = vmatpush1.bf16.msra.mxu0 0
  %2503 = vmatprep.subr.bf16.mxu0 0
  %2504 = vmatpush1.bf16.msra.mxu0 0
  %2505 = vmatprep.subr.bf16.mxu0 0
  %2506 = vmatpush1.bf16.msra.mxu0 0
  %2507 = vmatprep.subr.bf16.mxu0 0
  %2508 = vmatpush1.bf16.msra.mxu0 0
  %2509 = vmatprep.subr.bf16.mxu0 0
  %2510 = vmatpush1.bf16.msra.mxu0 0
  %2511 = vmatprep.subr.bf16.mxu0 0
  %2512 = vmatpush1.bf16.msra.mxu0 0
  %2513 = vmatprep.subr.bf16.mxu0 0
  %2514 = vmatpush1.bf16.msra.mxu0 0
  %2515 = vmatprep.subr.bf16.mxu0 0
  %2516 = vmatpush1.bf16.msra.mxu0 0
  %2517 = vmatprep.subr.bf16.mxu0 0
  %2518 = vmatpush1.bf16.msra.mxu0 0
  %2519 = vmatprep.subr.bf16.mxu0 0
  %2520 = vmatpush1.bf16.msra.mxu0 0
  %2521 = vmatprep.mubr.bf16.mxu0 0
  %2522 = vmatmul.mubr.bf16.gmra.mrb[0].mxu0 %v2487
  %v2523 = vpop.f32.mrb[0].mxu0
  %v2524 = vadd.f32 0.0, %v2523
  %v2525 = vpop.f32.mrb[0].mxu0
  %v2526 = vpop.f32.mrb[0].mxu0
  %v2527 = vadd.f32 0.0, %v2526
  %v2528 = vpop.f32.mrb[0].mxu0
  %2529 = vdwg.mxu0
  %2530 = vrot.lane.b32.xlu0 %v2046, 112
  %v2531 = vpop.permute.xlu0 %2530
  %v2533 = vsel %vm443, %v2531, 0
  %v2536 = vsel %vm447, %v2049, 0
  %2538 = vmatprep.subr.bf16.mxu0 0
  %2539 = vmatpush1.bf16.msra.mxu0 %v2536
  %2540 = vmatprep.subr.bf16.mxu0 0
  %2541 = vmatpush1.bf16.msra.mxu0 0
  %2542 = vmatprep.subr.bf16.mxu0 0
  %2543 = vmatpush1.bf16.msra.mxu0 0
  %2544 = vmatprep.subr.bf16.mxu0 0
  %2545 = vmatpush1.bf16.msra.mxu0 0
  %2546 = vmatprep.subr.bf16.mxu0 0
  %2547 = vmatpush1.bf16.msra.mxu0 0
  %2548 = vmatprep.subr.bf16.mxu0 0
  %2549 = vmatpush1.bf16.msra.mxu0 0
  %2550 = vmatprep.subr.bf16.mxu0 0
  %2551 = vmatpush1.bf16.msra.mxu0 0
  %2552 = vmatprep.subr.bf16.mxu0 0
  %2553 = vmatpush1.bf16.msra.mxu0 0
  %2554 = vmatprep.subr.bf16.mxu0 0
  %2555 = vmatpush1.bf16.msra.mxu0 0
  %2556 = vmatprep.subr.bf16.mxu0 0
  %2557 = vmatpush1.bf16.msra.mxu0 0
  %2558 = vmatprep.subr.bf16.mxu0 0
  %2559 = vmatpush1.bf16.msra.mxu0 0
  %2560 = vmatprep.subr.bf16.mxu0 0
  %2561 = vmatpush1.bf16.msra.mxu0 0
  %2562 = vmatprep.subr.bf16.mxu0 0
  %2563 = vmatpush1.bf16.msra.mxu0 0
  %2564 = vmatprep.subr.bf16.mxu0 0
  %2565 = vmatpush1.bf16.msra.mxu0 0
  %2566 = vmatprep.subr.bf16.mxu0 0
  %2567 = vmatpush1.bf16.msra.mxu0 0
  %2568 = vmatprep.subr.bf16.mxu0 0
  %2569 = vmatpush1.bf16.msra.mxu0 0
  %2570 = vmatprep.mubr.bf16.mxu0 0
  %2571 = vmatmul.mubr.bf16.gmra.mrb[0].mxu0 %v2533
  %v2572 = vpop.f32.mrb[0].mxu0
  %v2573 = vadd.f32 0.0, %v2572
  %v2574 = vpop.f32.mrb[0].mxu0
  %v2575 = vpop.f32.mrb[0].mxu0
  %v2576 = vadd.f32 0.0, %v2575
  %v2577 = vpop.f32.mrb[0].mxu0
  %2578 = vdwg.mxu0
  %2579 = vrot.lane.b32.xlu0 %v2047, 112
  %v2580 = vpop.permute.xlu0 %2579
  %v2582 = vsel %vm443, %v2580, 0
  %v2585 = vsel %vm447, %v2051, 0
  %2587 = vmatprep.subr.bf16.mxu0 0
  %2588 = vmatpush1.bf16.msra.mxu0 %v2585
  %2589 = vmatprep.subr.bf16.mxu0 0
  %2590 = vmatpush1.bf16.msra.mxu0 0
  %2591 = vmatprep.subr.bf16.mxu0 0
  %2592 = vmatpush1.bf16.msra.mxu0 0
  %2593 = vmatprep.subr.bf16.mxu0 0
  %2594 = vmatpush1.bf16.msra.mxu0 0
  %2595 = vmatprep.subr.bf16.mxu0 0
  %2596 = vmatpush1.bf16.msra.mxu0 0
  %2597 = vmatprep.subr.bf16.mxu0 0
  %2598 = vmatpush1.bf16.msra.mxu0 0
  %2599 = vmatprep.subr.bf16.mxu0 0
  %2600 = vmatpush1.bf16.msra.mxu0 0
  %2601 = vmatprep.subr.bf16.mxu0 0
  %2602 = vmatpush1.bf16.msra.mxu0 0
  %2603 = vmatprep.subr.bf16.mxu0 0
  %2604 = vmatpush1.bf16.msra.mxu0 0
  %2605 = vmatprep.subr.bf16.mxu0 0
  %2606 = vmatpush1.bf16.msra.mxu0 0
  %2607 = vmatprep.subr.bf16.mxu0 0
  %2608 = vmatpush1.bf16.msra.mxu0 0
  %2609 = vmatprep.subr.bf16.mxu0 0
  %2610 = vmatpush1.bf16.msra.mxu0 0
  %2611 = vmatprep.subr.bf16.mxu0 0
  %2612 = vmatpush1.bf16.msra.mxu0 0
  %2613 = vmatprep.subr.bf16.mxu0 0
  %2614 = vmatpush1.bf16.msra.mxu0 0
  %2615 = vmatprep.subr.bf16.mxu0 0
  %2616 = vmatpush1.bf16.msra.mxu0 0
  %2617 = vmatprep.subr.bf16.mxu0 0
  %2618 = vmatpush1.bf16.msra.mxu0 0
  %2619 = vmatprep.mubr.bf16.mxu0 0
  %2620 = vmatmul.mubr.bf16.gmra.mrb[0].mxu0 %v2582
  %v2621 = vpop.f32.mrb[0].mxu0
  %v2622 = vadd.f32 0.0, %v2621
  %v2623 = vpop.f32.mrb[0].mxu0
  %v2624 = vpop.f32.mrb[0].mxu0
  %v2625 = vadd.f32 0.0, %v2624
  %v2626 = vpop.f32.mrb[0].mxu0
  %2627 = vdwg.mxu0
  %v2628 = vsel %vm539, %v2573, -inf
  %2629 = vmax.xlane.f32.xlu0 %v2628
  %v2630 = vpop.xlane.xlu0 %2629
  %v2631 = vsel %vm539, %v2576, -inf
  %2632 = vmax.xlane.f32.xlu0 %v2631
  %v2633 = vpop.xlane.xlu0 %2632
  %v2634 = vsel %vm539, %v2622, -inf
  %2635 = vmax.xlane.f32.xlu0 %v2634
  %v2636 = vpop.xlane.xlu0 %2635
  %v2637 = vsel %vm539, %v2625, -inf
  %2638 = vmax.xlane.f32.xlu0 %v2637
  %v2639 = vpop.xlane.xlu0 %2638
  %v2640 = vsub.f32 %v2573, %v2630
  %v2641 = vsub.f32 %v2576, %v2633
  %v2642 = vsub.f32 %v2622, %v2636
  %v2643 = vsub.f32 %v2625, %v2639
  %v2644 = vmul.f32 %v2640, 1.442695
  %v2645 = vpow.pop %v2644
  %v2646 = vmul.f32 %v2641, 1.442695
  %v2647 = vpow.pop %v2646
  %v2648 = vmul.f32 %v2642, 1.442695
  %v2649 = vpow.pop %v2648
  %v2650 = vmul.f32 %v2643, 1.442695
  %v2651 = vpow.pop %v2650
  %v2652 = vsel %vm539, %v2645, 0.0
  %2653 = vadd.xlane.f32.xlu0 %v2652
  %v2654 = vpop.xlane.xlu0 %2653
  %v2655 = vsel %vm539, %v2647, 0.0
  %2656 = vadd.xlane.f32.xlu0 %v2655
  %v2657 = vpop.xlane.xlu0 %2656
  %v2658 = vsel %vm539, %v2649, 0.0
  %2659 = vadd.xlane.f32.xlu0 %v2658
  %v2660 = vpop.xlane.xlu0 %2659
  %v2661 = vsel %vm539, %v2651, 0.0
  %2662 = vadd.xlane.f32.xlu0 %v2661
  %v2663 = vpop.xlane.xlu0 %2662
  %v2664 = vrcp.pop %v2654
  %v2665 = vrcp.pop %v2657
  %v2666 = vrcp.pop %v2660
  %v2667 = vrcp.pop %v2663
  %v2668 = vmul.f32 %v2645, %v2664
  %v2669 = vmul.f32 %v2647, %v2665
  %v2670 = vmul.f32 %v2649, %v2666
  %v2671 = vmul.f32 %v2651, %v2667
  %v2672 = vpack.c.bf16 %v2669, %v2668
  %v2673 = vpack.c.bf16 %v2671, %v2670
  %2674 = vrot.lane.b32.xlu0 %v2046, 48
  %v2675 = vpop.permute.xlu0 %2674
  %v2678 = vsel %vm539, %v2672, 0
  %2680 = vmatprep.subr.bf16.mxu0 0
  %2681 = vmatpush1.bf16.msra.mxu0 %v2675
  %2682 = vmatprep.subr.bf16.mxu0 0
  %2683 = vmatpush1.bf16.msra.mxu0 0
  %2684 = vmatprep.subr.bf16.mxu0 0
  %2685 = vmatpush1.bf16.msra.mxu0 0
  %2686 = vmatprep.subr.bf16.mxu0 0
  %2687 = vmatpush1.bf16.msra.mxu0 0
  %2688 = vmatprep.subr.bf16.mxu0 0
  %2689 = vmatpush1.bf16.msra.mxu0 0
  %2690 = vmatprep.subr.bf16.mxu0 0
  %2691 = vmatpush1.bf16.msra.mxu0 0
  %2692 = vmatprep.subr.bf16.mxu0 0
  %2693 = vmatpush1.bf16.msra.mxu0 0
  %2694 = vmatprep.subr.bf16.mxu0 0
  %2695 = vmatpush1.bf16.msra.mxu0 0
  %2696 = vmatprep.subr.bf16.mxu0 0
  %2697 = vmatpush1.bf16.msra.mxu0 0
  %2698 = vmatprep.subr.bf16.mxu0 0
  %2699 = vmatpush1.bf16.msra.mxu0 0
  %2700 = vmatprep.subr.bf16.mxu0 0
  %2701 = vmatpush1.bf16.msra.mxu0 0
  %2702 = vmatprep.subr.bf16.mxu0 0
  %2703 = vmatpush1.bf16.msra.mxu0 0
  %2704 = vmatprep.subr.bf16.mxu0 0
  %2705 = vmatpush1.bf16.msra.mxu0 0
  %2706 = vmatprep.subr.bf16.mxu0 0
  %2707 = vmatpush1.bf16.msra.mxu0 0
  %2708 = vmatprep.subr.bf16.mxu0 0
  %2709 = vmatpush1.bf16.msra.mxu0 0
  %2710 = vmatprep.subr.bf16.mxu0 0
  %2711 = vmatpush1.bf16.msra.mxu0 0
  %2712 = vmatprep.mubr.bf16.mxu0 0
  %2713 = vmatmul.mubr.bf16.gmra.mrb[0].mxu0 %v2678
  %v2714 = vpop.f32.mrb[0].mxu0
  %v2715 = vadd.f32 0.0, %v2714
  %v2716 = vpop.f32.mrb[0].mxu0
  %v2717 = vpop.f32.mrb[0].mxu0
  %v2718 = vadd.f32 0.0, %v2717
  %v2719 = vpop.f32.mrb[0].mxu0
  %2720 = vdwg.mxu0
  %2721 = vrot.lane.b32.xlu0 %v2047, 48
  %v2722 = vpop.permute.xlu0 %2721
  %v2725 = vsel %vm539, %v2673, 0
  %2727 = vmatprep.subr.bf16.mxu0 0
  %2728 = vmatpush1.bf16.msra.mxu0 %v2722
  %2729 = vmatprep.subr.bf16.mxu0 0
  %2730 = vmatpush1.bf16.msra.mxu0 0
  %2731 = vmatprep.subr.bf16.mxu0 0
  %2732 = vmatpush1.bf16.msra.mxu0 0
  %2733 = vmatprep.subr.bf16.mxu0 0
  %2734 = vmatpush1.bf16.msra.mxu0 0
  %2735 = vmatprep.subr.bf16.mxu0 0
  %2736 = vmatpush1.bf16.msra.mxu0 0
  %2737 = vmatprep.subr.bf16.mxu0 0
  %2738 = vmatpush1.bf16.msra.mxu0 0
  %2739 = vmatprep.subr.bf16.mxu0 0
  %2740 = vmatpush1.bf16.msra.mxu0 0
  %2741 = vmatprep.subr.bf16.mxu0 0
  %2742 = vmatpush1.bf16.msra.mxu0 0
  %2743 = vmatprep.subr.bf16.mxu0 0
  %2744 = vmatpush1.bf16.msra.mxu0 0
  %2745 = vmatprep.subr.bf16.mxu0 0
  %2746 = vmatpush1.bf16.msra.mxu0 0
  %2747 = vmatprep.subr.bf16.mxu0 0
  %2748 = vmatpush1.bf16.msra.mxu0 0
  %2749 = vmatprep.subr.bf16.mxu0 0
  %2750 = vmatpush1.bf16.msra.mxu0 0
  %2751 = vmatprep.subr.bf16.mxu0 0
  %2752 = vmatpush1.bf16.msra.mxu0 0
  %2753 = vmatprep.subr.bf16.mxu0 0
  %2754 = vmatpush1.bf16.msra.mxu0 0
  %2755 = vmatprep.subr.bf16.mxu0 0
  %2756 = vmatpush1.bf16.msra.mxu0 0
  %2757 = vmatprep.subr.bf16.mxu0 0
  %2758 = vmatpush1.bf16.msra.mxu0 0
  %2759 = vmatprep.mubr.bf16.mxu0 0
  %2760 = vmatmul.mubr.bf16.gmra.mrb[0].mxu0 %v2725
  %v2761 = vpop.f32.mrb[0].mxu0
  %v2762 = vadd.f32 0.0, %v2761
  %v2763 = vpop.f32.mrb[0].mxu0
  %v2764 = vpop.f32.mrb[0].mxu0
  %v2765 = vadd.f32 0.0, %v2764
  %v2766 = vpop.f32.mrb[0].mxu0
  %2767 = vdwg.mxu0
  %2768 = vrot.lane.b32.xlu0 %v2046, 104
  %v2769 = vpop.permute.xlu0 %2768
  %v2771 = vrot.slane %v2049, 4
  %v2773 = vsel %vm443, %v2769, 0
  %v2776 = vsel %vm447, %v2771, 0
  %2778 = vmatprep.subr.bf16.mxu0 0
  %2779 = vmatpush1.bf16.msra.mxu0 %v2776
  %2780 = vmatprep.subr.bf16.mxu0 0
  %2781 = vmatpush1.bf16.msra.mxu0 0
  %2782 = vmatprep.subr.bf16.mxu0 0
  %2783 = vmatpush1.bf16.msra.mxu0 0
  %2784 = vmatprep.subr.bf16.mxu0 0
  %2785 = vmatpush1.bf16.msra.mxu0 0
  %2786 = vmatprep.subr.bf16.mxu0 0
  %2787 = vmatpush1.bf16.msra.mxu0 0
  %2788 = vmatprep.subr.bf16.mxu0 0
  %2789 = vmatpush1.bf16.msra.mxu0 0
  %2790 = vmatprep.subr.bf16.mxu0 0
  %2791 = vmatpush1.bf16.msra.mxu0 0
  %2792 = vmatprep.subr.bf16.mxu0 0
  %2793 = vmatpush1.bf16.msra.mxu0 0
  %2794 = vmatprep.subr.bf16.mxu0 0
  %2795 = vmatpush1.bf16.msra.mxu0 0
  %2796 = vmatprep.subr.bf16.mxu0 0
  %2797 = vmatpush1.bf16.msra.mxu0 0
  %2798 = vmatprep.subr.bf16.mxu0 0
  %2799 = vmatpush1.bf16.msra.mxu0 0
  %2800 = vmatprep.subr.bf16.mxu0 0
  %2801 = vmatpush1.bf16.msra.mxu0 0
  %2802 = vmatprep.subr.bf16.mxu0 0
  %2803 = vmatpush1.bf16.msra.mxu0 0
  %2804 = vmatprep.subr.bf16.mxu0 0
  %2805 = vmatpush1.bf16.msra.mxu0 0
  %2806 = vmatprep.subr.bf16.mxu0 0
  %2807 = vmatpush1.bf16.msra.mxu0 0
  %2808 = vmatprep.subr.bf16.mxu0 0
  %2809 = vmatpush1.bf16.msra.mxu0 0
  %2810 = vmatprep.mubr.bf16.mxu0 0
  %2811 = vmatmul.mubr.bf16.gmra.mrb[0].mxu0 %v2773
  %v2812 = vpop.f32.mrb[0].mxu0
  %v2813 = vadd.f32 0.0, %v2812
  %v2814 = vpop.f32.mrb[0].mxu0
  %v2815 = vpop.f32.mrb[0].mxu0
  %v2816 = vadd.f32 0.0, %v2815
  %v2817 = vpop.f32.mrb[0].mxu0
  %2818 = vdwg.mxu0
  %2819 = vrot.lane.b32.xlu0 %v2047, 104
  %v2820 = vpop.permute.xlu0 %2819
  %v2822 = vrot.slane %v2051, 4
  %v2824 = vsel %vm443, %v2820, 0
  %v2827 = vsel %vm447, %v2822, 0
  %2829 = vmatprep.subr.bf16.mxu0 0
  %2830 = vmatpush1.bf16.msra.mxu0 %v2827
  %2831 = vmatprep.subr.bf16.mxu0 0
  %2832 = vmatpush1.bf16.msra.mxu0 0
  %2833 = vmatprep.subr.bf16.mxu0 0
  %2834 = vmatpush1.bf16.msra.mxu0 0
  %2835 = vmatprep.subr.bf16.mxu0 0
  %2836 = vmatpush1.bf16.msra.mxu0 0
  %2837 = vmatprep.subr.bf16.mxu0 0
  %2838 = vmatpush1.bf16.msra.mxu0 0
  %2839 = vmatprep.subr.bf16.mxu0 0
  %2840 = vmatpush1.bf16.msra.mxu0 0
  %2841 = vmatprep.subr.bf16.mxu0 0
  %2842 = vmatpush1.bf16.msra.mxu0 0
  %2843 = vmatprep.subr.bf16.mxu0 0
  %2844 = vmatpush1.bf16.msra.mxu0 0
  %2845 = vmatprep.subr.bf16.mxu0 0
  %2846 = vmatpush1.bf16.msra.mxu0 0
  %2847 = vmatprep.subr.bf16.mxu0 0
  %2848 = vmatpush1.bf16.msra.mxu0 0
  %2849 = vmatprep.subr.bf16.mxu0 0
  %2850 = vmatpush1.bf16.msra.mxu0 0
  %2851 = vmatprep.subr.bf16.mxu0 0
  %2852 = vmatpush1.bf16.msra.mxu0 0
  %2853 = vmatprep.subr.bf16.mxu0 0
  %2854 = vmatpush1.bf16.msra.mxu0 0
  %2855 = vmatprep.subr.bf16.mxu0 0
  %2856 = vmatpush1.bf16.msra.mxu0 0
  %2857 = vmatprep.subr.bf16.mxu0 0
  %2858 = vmatpush1.bf16.msra.mxu0 0
  %2859 = vmatprep.subr.bf16.mxu0 0
  %2860 = vmatpush1.bf16.msra.mxu0 0
  %2861 = vmatprep.mubr.bf16.mxu0 0
  %2862 = vmatmul.mubr.bf16.gmra.mrb[0].mxu0 %v2824
  %v2863 = vpop.f32.mrb[0].mxu0
  %v2864 = vadd.f32 0.0, %v2863
  %v2865 = vpop.f32.mrb[0].mxu0
  %v2866 = vpop.f32.mrb[0].mxu0
  %v2867 = vadd.f32 0.0, %v2866
  %v2868 = vpop.f32.mrb[0].mxu0
  %2869 = vdwg.mxu0
  %v2870 = vsel %vm539, %v2813, -inf
  %2871 = vmax.xlane.f32.xlu0 %v2870
  %v2872 = vpop.xlane.xlu0 %2871
  %v2873 = vsel %vm539, %v2816, -inf
  %2874 = vmax.xlane.f32.xlu0 %v2873
  %v2875 = vpop.xlane.xlu0 %2874
  %v2876 = vsel %vm539, %v2864, -inf
  %2877 = vmax.xlane.f32.xlu0 %v2876
  %v2878 = vpop.xlane.xlu0 %2877
  %v2879 = vsel %vm539, %v2867, -inf
  %2880 = vmax.xlane.f32.xlu0 %v2879
  %v2881 = vpop.xlane.xlu0 %2880
  %v2882 = vsub.f32 %v2813, %v2872
  %v2883 = vsub.f32 %v2816, %v2875
  %v2884 = vsub.f32 %v2864, %v2878
  %v2885 = vsub.f32 %v2867, %v2881
  %v2886 = vmul.f32 %v2882, 1.442695
  %v2887 = vpow.pop %v2886
  %v2888 = vmul.f32 %v2883, 1.442695
  %v2889 = vpow.pop %v2888
  %v2890 = vmul.f32 %v2884, 1.442695
  %v2891 = vpow.pop %v2890
  %v2892 = vmul.f32 %v2885, 1.442695
  %v2893 = vpow.pop %v2892
  %v2894 = vsel %vm539, %v2887, 0.0
  %2895 = vadd.xlane.f32.xlu0 %v2894
  %v2896 = vpop.xlane.xlu0 %2895
  %v2897 = vsel %vm539, %v2889, 0.0
  %2898 = vadd.xlane.f32.xlu0 %v2897
  %v2899 = vpop.xlane.xlu0 %2898
  %v2900 = vsel %vm539, %v2891, 0.0
  %2901 = vadd.xlane.f32.xlu0 %v2900
  %v2902 = vpop.xlane.xlu0 %2901
  %v2903 = vsel %vm539, %v2893, 0.0
  %2904 = vadd.xlane.f32.xlu0 %v2903
  %v2905 = vpop.xlane.xlu0 %2904
  %v2906 = vrcp.pop %v2896
  %v2907 = vrcp.pop %v2899
  %v2908 = vrcp.pop %v2902
  %v2909 = vrcp.pop %v2905
  %v2910 = vmul.f32 %v2887, %v2906
  %v2911 = vmul.f32 %v2889, %v2907
  %v2912 = vmul.f32 %v2891, %v2908
  %v2913 = vmul.f32 %v2893, %v2909
  %v2914 = vpack.c.bf16 %v2911, %v2910
  %v2915 = vpack.c.bf16 %v2913, %v2912
  %2916 = vrot.lane.b32.xlu0 %v2046, 40
  %v2917 = vpop.permute.xlu0 %2916
  %v2920 = vsel %vm539, %v2914, 0
  %2922 = vmatprep.subr.bf16.mxu0 0
  %2923 = vmatpush1.bf16.msra.mxu0 %v2917
  %2924 = vmatprep.subr.bf16.mxu0 0
  %2925 = vmatpush1.bf16.msra.mxu0 0
  %2926 = vmatprep.subr.bf16.mxu0 0
  %2927 = vmatpush1.bf16.msra.mxu0 0
  %2928 = vmatprep.subr.bf16.mxu0 0
  %2929 = vmatpush1.bf16.msra.mxu0 0
  %2930 = vmatprep.subr.bf16.mxu0 0
  %2931 = vmatpush1.bf16.msra.mxu0 0
  %2932 = vmatprep.subr.bf16.mxu0 0
  %2933 = vmatpush1.bf16.msra.mxu0 0
  %2934 = vmatprep.subr.bf16.mxu0 0
  %2935 = vmatpush1.bf16.msra.mxu0 0
  %2936 = vmatprep.subr.bf16.mxu0 0
  %2937 = vmatpush1.bf16.msra.mxu0 0
  %2938 = vmatprep.subr.bf16.mxu0 0
  %2939 = vmatpush1.bf16.msra.mxu0 0
  %2940 = vmatprep.subr.bf16.mxu0 0
  %2941 = vmatpush1.bf16.msra.mxu0 0
  %2942 = vmatprep.subr.bf16.mxu0 0
  %2943 = vmatpush1.bf16.msra.mxu0 0
  %2944 = vmatprep.subr.bf16.mxu0 0
  %2945 = vmatpush1.bf16.msra.mxu0 0
  %2946 = vmatprep.subr.bf16.mxu0 0
  %2947 = vmatpush1.bf16.msra.mxu0 0
  %2948 = vmatprep.subr.bf16.mxu0 0
  %2949 = vmatpush1.bf16.msra.mxu0 0
  %2950 = vmatprep.subr.bf16.mxu0 0
  %2951 = vmatpush1.bf16.msra.mxu0 0
  %2952 = vmatprep.subr.bf16.mxu0 0
  %2953 = vmatpush1.bf16.msra.mxu0 0
  %2954 = vmatprep.mubr.bf16.mxu0 0
  %2955 = vmatmul.mubr.bf16.gmra.mrb[0].mxu0 %v2920
  %v2956 = vpop.f32.mrb[0].mxu0
  %v2957 = vadd.f32 0.0, %v2956
  %v2958 = vpop.f32.mrb[0].mxu0
  %v2959 = vpop.f32.mrb[0].mxu0
  %v2960 = vadd.f32 0.0, %v2959
  %v2961 = vpop.f32.mrb[0].mxu0
  %2962 = vdwg.mxu0
  %2963 = vrot.lane.b32.xlu0 %v2047, 40
  %v2964 = vpop.permute.xlu0 %2963
  %v2967 = vsel %vm539, %v2915, 0
  %2969 = vmatprep.subr.bf16.mxu0 0
  %2970 = vmatpush1.bf16.msra.mxu0 %v2964
  %2971 = vmatprep.subr.bf16.mxu0 0
  %2972 = vmatpush1.bf16.msra.mxu0 0
  %2973 = vmatprep.subr.bf16.mxu0 0
  %2974 = vmatpush1.bf16.msra.mxu0 0
  %2975 = vmatprep.subr.bf16.mxu0 0
  %2976 = vmatpush1.bf16.msra.mxu0 0
  %2977 = vmatprep.subr.bf16.mxu0 0
  %2978 = vmatpush1.bf16.msra.mxu0 0
  %2979 = vmatprep.subr.bf16.mxu0 0
  %2980 = vmatpush1.bf16.msra.mxu0 0
  %2981 = vmatprep.subr.bf16.mxu0 0
  %2982 = vmatpush1.bf16.msra.mxu0 0
  %2983 = vmatprep.subr.bf16.mxu0 0
  %2984 = vmatpush1.bf16.msra.mxu0 0
  %2985 = vmatprep.subr.bf16.mxu0 0
  %2986 = vmatpush1.bf16.msra.mxu0 0
  %2987 = vmatprep.subr.bf16.mxu0 0
  %2988 = vmatpush1.bf16.msra.mxu0 0
  %2989 = vmatprep.subr.bf16.mxu0 0
  %2990 = vmatpush1.bf16.msra.mxu0 0
  %2991 = vmatprep.subr.bf16.mxu0 0
  %2992 = vmatpush1.bf16.msra.mxu0 0
  %2993 = vmatprep.subr.bf16.mxu0 0
  %2994 = vmatpush1.bf16.msra.mxu0 0
  %2995 = vmatprep.subr.bf16.mxu0 0
  %2996 = vmatpush1.bf16.msra.mxu0 0
  %2997 = vmatprep.subr.bf16.mxu0 0
  %2998 = vmatpush1.bf16.msra.mxu0 0
  %2999 = vmatprep.subr.bf16.mxu0 0
  %3000 = vmatpush1.bf16.msra.mxu0 0
  %3001 = vmatprep.mubr.bf16.mxu0 0
  %3002 = vmatmul.mubr.bf16.gmra.mrb[0].mxu0 %v2967
  %v3003 = vpop.f32.mrb[0].mxu0
  %v3004 = vadd.f32 0.0, %v3003
  %v3005 = vpop.f32.mrb[0].mxu0
  %v3006 = vpop.f32.mrb[0].mxu0
  %v3007 = vadd.f32 0.0, %v3006
  %v3008 = vpop.f32.mrb[0].mxu0
  %3009 = vdwg.mxu0
  %3014 = vrot.lane.b32.xlu0 %v2477, 8
  %v3015 = vpop.permute.xlu0 %3014
  %3016 = vrot.lane.b32.xlu0 %v2480, 8
  %v3017 = vpop.permute.xlu0 %3016
  %3018 = vrot.lane.b32.xlu0 %v2524, 8
  %v3019 = vpop.permute.xlu0 %3018
  %3020 = vrot.lane.b32.xlu0 %v2527, 8
  %v3021 = vpop.permute.xlu0 %3020
  %3030 = vrot.lane.b32.xlu0 %v2715, 16
  %v3031 = vpop.permute.xlu0 %3030
  %3032 = vrot.lane.b32.xlu0 %v2718, 16
  %v3033 = vpop.permute.xlu0 %3032
  %3034 = vrot.lane.b32.xlu0 %v2762, 16
  %v3035 = vpop.permute.xlu0 %3034
  %3036 = vrot.lane.b32.xlu0 %v2765, 16
  %v3037 = vpop.permute.xlu0 %3036
  %3046 = vrot.lane.b32.xlu0 %v2957, 24
  %v3047 = vpop.permute.xlu0 %3046
  %3048 = vrot.lane.b32.xlu0 %v2960, 24
  %v3049 = vpop.permute.xlu0 %3048
  %3050 = vrot.lane.b32.xlu0 %v3004, 24
  %v3051 = vpop.permute.xlu0 %3050
  %3052 = vrot.lane.b32.xlu0 %v3007, 24
  %v3053 = vpop.permute.xlu0 %3052
  %v3058 = vsel %vm443, %v2234, %v3015
  %v3059 = vsel %vm443, %v2237, %v3017
  %v3060 = vsel %vm443, %v2282, %v3019
  %v3061 = vsel %vm443, %v2285, %v3021
  %v3062 = vsel %vm539, %v3058, %v3031
  %v3063 = vsel %vm539, %v3059, %v3033
  %v3064 = vsel %vm539, %v3060, %v3035
  %v3065 = vsel %vm539, %v3061, %v3037
  %v3066 = vsel %vm1460, %v3062, %v3047
  %v3067 = vsel %vm1460, %v3063, %v3049
  %v3068 = vsel %vm1460, %v3064, %v3051
  %v3069 = vsel %vm1460, %v3065, %v3053
  %v3070 = vpack.c.bf16 %v3067, %v3066
  %v3071 = vpack.c.bf16 %v3069, %v3068
  %v3073 = vlaneseq
  %v3074 = vshrl.u32 %v3073, 7
  %v3075 = vsub.s32 0, %v3074
  %v3076 = vrot.slane %v1965, %v3075
  %v3082 = vunpack.c.l.b16 %v1961
  %v3083 = vunpack.c.l.b16 %v1962
  %v3084 = vunpack.c.l.b16 %v1963
  %v3085 = vunpack.c.l.b16 %v1964
  %v3086 = vpack.c.b16 %v3083, %v3082
  %v3087 = vpack.c.b16 %v3085, %v3084
  %v3091 = vsel %vm290, %v3070, 0
  %v3094 = vsel %vm290, %v3071, 0
  %3096 = vmatprep.subr.bf16.mxu0 0
  %3097 = vmatpush1.bf16.msra.mxu0 %v3086
  %3098 = vmatprep.subr.bf16.mxu0 0
  %3099 = vmatpush1.bf16.msra.mxu0 %v3087
  %3100 = vmatprep.subr.bf16.mxu0 0
  %3101 = vmatpush1.bf16.msra.mxu0 0
  %3102 = vmatprep.subr.bf16.mxu0 0
  %3103 = vmatpush1.bf16.msra.mxu0 0
  %3104 = vmatprep.subr.bf16.mxu0 0
  %3105 = vmatpush1.bf16.msra.mxu0 0
  %3106 = vmatprep.subr.bf16.mxu0 0
  %3107 = vmatpush1.bf16.msra.mxu0 0
  %3108 = vmatprep.subr.bf16.mxu0 0
  %3109 = vmatpush1.bf16.msra.mxu0 0
  %3110 = vmatprep.subr.bf16.mxu0 0
  %3111 = vmatpush1.bf16.msra.mxu0 0
  %3112 = vmatprep.subr.bf16.mxu0 0
  %3113 = vmatpush1.bf16.msra.mxu0 0
  %3114 = vmatprep.subr.bf16.mxu0 0
  %3115 = vmatpush1.bf16.msra.mxu0 0
  %3116 = vmatprep.subr.bf16.mxu0 0
  %3117 = vmatpush1.bf16.msra.mxu0 0
  %3118 = vmatprep.subr.bf16.mxu0 0
  %3119 = vmatpush1.bf16.msra.mxu0 0
  %3120 = vmatprep.subr.bf16.mxu0 0
  %3121 = vmatpush1.bf16.msra.mxu0 0
  %3122 = vmatprep.subr.bf16.mxu0 0
  %3123 = vmatpush1.bf16.msra.mxu0 0
  %3124 = vmatprep.subr.bf16.mxu0 0
  %3125 = vmatpush1.bf16.msra.mxu0 0
  %3126 = vmatprep.subr.bf16.mxu0 0
  %3127 = vmatpush1.bf16.msra.mxu0 0
  %3128 = vmatprep.mubr.bf16.mxu0 0
  %3129 = vmatmul.mubr.bf16.gmra.mrb[0].mxu0 %v3091
  %v3130 = vpop.f32.mrb[0].mxu0
  %v3131 = vadd.f32 %v3076, %v3130
  %v3132 = vpop.f32.mrb[0].mxu0
  %v3133 = vpop.f32.mrb[0].mxu0
  %v3134 = vadd.f32 %v3076, %v3133
  %v3135 = vpop.f32.mrb[0].mxu0
  %3136 = vmatprep.mubr.bf16.mxu0 0
  %3137 = vmatmul.mubr.bf16.gmra.mrb[0].mxu0 %v3094
  %v3138 = vpop.f32.mrb[0].mxu0
  %v3139 = vadd.f32 %v3076, %v3138
  %v3140 = vpop.f32.mrb[0].mxu0
  %v3141 = vpop.f32.mrb[0].mxu0
  %v3142 = vadd.f32 %v3076, %v3141
  %v3143 = vpop.f32.mrb[0].mxu0
  %3144 = vdwg.mxu0
  %v3145 = vadd.f32 %v1878, %v3131
  %v3146 = vadd.f32 %v1879, %v3134
  %v3147 = vadd.f32 %v1880, %v3139
  %v3148 = vadd.f32 %v1881, %v3142
  %v3149 = vld [vmem:[%s39] sm:$0x1]
  %v3150 = vld [vmem:[%s41] sm:$0x1]
  %v3151 = vsel %vm290, %v3145, 0.0
  %3152 = vadd.xlane.f32.xlu0 %v3151
  %v3153 = vpop.xlane.xlu0 %3152
  %v3154 = vsel %vm290, %v3146, 0.0
  %3155 = vadd.xlane.f32.xlu0 %v3154
  %v3156 = vpop.xlane.xlu0 %3155
  %v3157 = vsel %vm290, %v3147, 0.0
  %3158 = vadd.xlane.f32.xlu0 %v3157
  %v3159 = vpop.xlane.xlu0 %3158
  %v3160 = vsel %vm290, %v3148, 0.0
  %3161 = vadd.xlane.f32.xlu0 %v3160
  %v3162 = vpop.xlane.xlu0 %3161
  %v3163 = vmul.f32 %v3153, %v1558
  %v3164 = vmul.f32 %v3156, %v1558
  %v3165 = vmul.f32 %v3159, %v1558
  %v3166 = vmul.f32 %v3162, %v1558
  %v3167 = vsub.f32 %v3145, %v3163
  %v3168 = vsub.f32 %v3146, %v3164
  %v3169 = vsub.f32 %v3147, %v3165
  %v3170 = vsub.f32 %v3148, %v3166
  %v3171 = vmul.f32 %v3167, %v3167
  %v3172 = vmul.f32 %v3168, %v3168
  %v3173 = vmul.f32 %v3169, %v3169
  %v3174 = vmul.f32 %v3170, %v3170
  %v3175 = vsel %vm290, %v3171, 0.0
  %3176 = vadd.xlane.f32.xlu0 %v3175
  %v3177 = vpop.xlane.xlu0 %3176
  %v3178 = vsel %vm290, %v3172, 0.0
  %3179 = vadd.xlane.f32.xlu0 %v3178
  %v3180 = vpop.xlane.xlu0 %3179
  %v3181 = vsel %vm290, %v3173, 0.0
  %3182 = vadd.xlane.f32.xlu0 %v3181
  %v3183 = vpop.xlane.xlu0 %3182
  %v3184 = vsel %vm290, %v3174, 0.0
  %3185 = vadd.xlane.f32.xlu0 %v3184
  %v3186 = vpop.xlane.xlu0 %3185
  %v3187 = vmul.f32 %v3177, %v1558
  %v3188 = vmul.f32 %v3180, %v1558
  %v3189 = vmul.f32 %v3183, %v1558
  %v3190 = vmul.f32 %v3186, %v1558
  %v3191 = vadd.f32 %v3187, 1e-05
  %v3192 = vadd.f32 %v3188, 1e-05
  %v3193 = vadd.f32 %v3189, 1e-05
  %v3194 = vadd.f32 %v3190, 1e-05
  %v3195 = vrsqrt.pop %v3191
  %v3196 = vrsqrt.pop %v3192
  %v3197 = vrsqrt.pop %v3193
  %v3198 = vrsqrt.pop %v3194
  %v3199 = vmul.f32 %v3167, %v3195
  %v3200 = vmul.f32 %v3168, %v3196
  %v3201 = vmul.f32 %v3169, %v3197
  %v3202 = vmul.f32 %v3170, %v3198
  %v3204 = vlaneseq
  %v3205 = vshrl.u32 %v3204, 7
  %v3206 = vsub.s32 0, %v3205
  %v3207 = vrot.slane %v3149, %v3206
  %v3209 = vmul.f32 %v3199, %v3207
  %v3210 = vmul.f32 %v3200, %v3207
  %v3211 = vmul.f32 %v3201, %v3207
  %v3212 = vmul.f32 %v3202, %v3207
  %v3214 = vlaneseq
  %v3215 = vshrl.u32 %v3214, 7
  %v3216 = vsub.s32 0, %v3215
  %v3217 = vrot.slane %v3150, %v3216
  %v3219 = vadd.f32 %v3209, %v3217
  %v3220 = vadd.f32 %v3210, %v3217
  %v3221 = vadd.f32 %v3211, %v3217
  %v3222 = vadd.f32 %v3212, %v3217
  %v3223 = vpack.c.bf16 %v3220, %v3219
  %v3224 = vpack.c.bf16 %v3222, %v3221
  %v3225 = vld [vmem:[%s43] sm:$0xf]
  %v3226 = vld [vmem:[%s43 + $0x4] sm:$0xf]
  %v3227 = vld [vmem:[%s43 + $0x8] sm:$0xf]
  %v3228 = vld [vmem:[%s43 + $0xc] sm:$0xf]
  %v3229 = vld [vmem:[%s45] sm:$0x1]
  %v3231 = vlaneseq
  %v3232 = vshrl.u32 %v3231, 7
  %v3233 = vsub.s32 0, %v3232
  %v3234 = vrot.slane %v3229, %v3233
  %v3240 = vunpack.c.l.b16 %v3225
  %v3241 = vunpack.c.l.b16 %v3226
  %v3242 = vunpack.c.l.b16 %v3227
  %v3243 = vunpack.c.l.b16 %v3228
  %v3244 = vpack.c.b16 %v3241, %v3240
  %v3245 = vpack.c.b16 %v3243, %v3242
  %v3249 = vsel %vm290, %v3223, 0
  %v3252 = vsel %vm290, %v3224, 0
  %3254 = vmatprep.subr.bf16.mxu0 0
  %3255 = vmatpush1.bf16.msra.mxu0 %v3244
  %3256 = vmatprep.subr.bf16.mxu0 0
  %3257 = vmatpush1.bf16.msra.mxu0 %v3245
  %3258 = vmatprep.subr.bf16.mxu0 0
  %3259 = vmatpush1.bf16.msra.mxu0 0
  %3260 = vmatprep.subr.bf16.mxu0 0
  %3261 = vmatpush1.bf16.msra.mxu0 0
  %3262 = vmatprep.subr.bf16.mxu0 0
  %3263 = vmatpush1.bf16.msra.mxu0 0
  %3264 = vmatprep.subr.bf16.mxu0 0
  %3265 = vmatpush1.bf16.msra.mxu0 0
  %3266 = vmatprep.subr.bf16.mxu0 0
  %3267 = vmatpush1.bf16.msra.mxu0 0
  %3268 = vmatprep.subr.bf16.mxu0 0
  %3269 = vmatpush1.bf16.msra.mxu0 0
  %3270 = vmatprep.subr.bf16.mxu0 0
  %3271 = vmatpush1.bf16.msra.mxu0 0
  %3272 = vmatprep.subr.bf16.mxu0 0
  %3273 = vmatpush1.bf16.msra.mxu0 0
  %3274 = vmatprep.subr.bf16.mxu0 0
  %3275 = vmatpush1.bf16.msra.mxu0 0
  %3276 = vmatprep.subr.bf16.mxu0 0
  %3277 = vmatpush1.bf16.msra.mxu0 0
  %3278 = vmatprep.subr.bf16.mxu0 0
  %3279 = vmatpush1.bf16.msra.mxu0 0
  %3280 = vmatprep.subr.bf16.mxu0 0
  %3281 = vmatpush1.bf16.msra.mxu0 0
  %3282 = vmatprep.subr.bf16.mxu0 0
  %3283 = vmatpush1.bf16.msra.mxu0 0
  %3284 = vmatprep.subr.bf16.mxu0 0
  %3285 = vmatpush1.bf16.msra.mxu0 0
  %3286 = vmatprep.mubr.bf16.mxu0 0
  %3287 = vmatmul.mubr.bf16.gmra.mrb[0].mxu0 %v3249
  %v3288 = vpop.f32.mrb[0].mxu0
  %v3289 = vadd.f32 %v3234, %v3288
  %v3290 = vpop.f32.mrb[0].mxu0
  %v3291 = vpop.f32.mrb[0].mxu0
  %v3292 = vadd.f32 %v3234, %v3291
  %v3293 = vpop.f32.mrb[0].mxu0
  %3294 = vmatprep.mubr.bf16.mxu0 0
  %3295 = vmatmul.mubr.bf16.gmra.mrb[0].mxu0 %v3252
  %v3296 = vpop.f32.mrb[0].mxu0
  %v3297 = vadd.f32 %v3234, %v3296
  %v3298 = vpop.f32.mrb[0].mxu0
  %v3299 = vpop.f32.mrb[0].mxu0
  %v3300 = vadd.f32 %v3234, %v3299
  %v3301 = vpop.f32.mrb[0].mxu0
  %3302 = vdwg.mxu0
  %v3303 = vmax.f32 %v3289, 0.0
  %v3304 = vmax.f32 %v3292, 0.0
  %v3305 = vmax.f32 %v3297, 0.0
  %v3306 = vmax.f32 %v3300, 0.0
  %v3307 = vpack.c.bf16 %v3304, %v3303
  %v3308 = vpack.c.bf16 %v3306, %v3305
  %v3309 = vld [vmem:[%s47] sm:$0xf]
  %v3310 = vld [vmem:[%s47 + $0x4] sm:$0xf]
  %v3311 = vld [vmem:[%s47 + $0x8] sm:$0xf]
  %v3312 = vld [vmem:[%s47 + $0xc] sm:$0xf]
  %v3313 = vld [vmem:[%s47 + $0x10] sm:$0xf]
  %v3314 = vld [vmem:[%s47 + $0x14] sm:$0xf]
  %v3315 = vld [vmem:[%s47 + $0x18] sm:$0xf]
  %v3316 = vld [vmem:[%s47 + $0x1c] sm:$0xf]
  %v3325 = vunpack.c.l.b16 %v3309
  %v3326 = vunpack.c.l.b16 %v3310
  %v3327 = vunpack.c.l.b16 %v3311
  %v3328 = vunpack.c.l.b16 %v3312
  %v3329 = vunpack.c.l.b16 %v3313
  %v3330 = vunpack.c.l.b16 %v3314
  %v3331 = vunpack.c.l.b16 %v3315
  %v3332 = vunpack.c.l.b16 %v3316
  %v3333 = vpack.c.b16 %v3326, %v3325
  %v3334 = vpack.c.b16 %v3328, %v3327
  %v3335 = vpack.c.b16 %v3330, %v3329
  %v3336 = vpack.c.b16 %v3332, %v3331
  %v3342 = vsel %vm1737, %v3307, 0
  %v3345 = vsel %vm1737, %v3308, 0
  %3347 = vmatprep.subr.bf16.mxu0 0
  %3348 = vmatpush1.bf16.msra.mxu0 %v3333
  %3349 = vmatprep.subr.bf16.mxu0 0
  %3350 = vmatpush1.bf16.msra.mxu0 %v3334
  %3351 = vmatprep.subr.bf16.mxu0 0
  %3352 = vmatpush1.bf16.msra.mxu0 %v3335
  %3353 = vmatprep.subr.bf16.mxu0 0
  %3354 = vmatpush1.bf16.msra.mxu0 %v3336
  %3355 = vmatprep.subr.bf16.mxu0 0
  %3356 = vmatpush1.bf16.msra.mxu0 0
  %3357 = vmatprep.subr.bf16.mxu0 0
  %3358 = vmatpush1.bf16.msra.mxu0 0
  %3359 = vmatprep.subr.bf16.mxu0 0
  %3360 = vmatpush1.bf16.msra.mxu0 0
  %3361 = vmatprep.subr.bf16.mxu0 0
  %3362 = vmatpush1.bf16.msra.mxu0 0
  %3363 = vmatprep.subr.bf16.mxu0 0
  %3364 = vmatpush1.bf16.msra.mxu0 0
  %3365 = vmatprep.subr.bf16.mxu0 0
  %3366 = vmatpush1.bf16.msra.mxu0 0
  %3367 = vmatprep.subr.bf16.mxu0 0
  %3368 = vmatpush1.bf16.msra.mxu0 0
  %3369 = vmatprep.subr.bf16.mxu0 0
  %3370 = vmatpush1.bf16.msra.mxu0 0
  %3371 = vmatprep.subr.bf16.mxu0 0
  %3372 = vmatpush1.bf16.msra.mxu0 0
  %3373 = vmatprep.subr.bf16.mxu0 0
  %3374 = vmatpush1.bf16.msra.mxu0 0
  %3375 = vmatprep.subr.bf16.mxu0 0
  %3376 = vmatpush1.bf16.msra.mxu0 0
  %3377 = vmatprep.subr.bf16.mxu0 0
  %3378 = vmatpush1.bf16.msra.mxu0 0
  %3379 = vmatprep.mubr.bf16.mxu0 0
  %3380 = vmatmul.mubr.bf16.gmra.mrb[0].mxu0 %v3342
  %v3381 = vpop.f32.mrb[0].mxu0
  %v3382 = vadd.f32 0.0, %v3381
  %v3383 = vpop.f32.mrb[0].mxu0
  %v3384 = vpop.f32.mrb[0].mxu0
  %v3385 = vadd.f32 0.0, %v3384
  %v3386 = vpop.f32.mrb[0].mxu0
  %3387 = vmatprep.mubr.bf16.mxu0 0
  %3388 = vmatmul.mubr.bf16.gmra.mrb[0].mxu0 %v3345
  %v3389 = vpop.f32.mrb[0].mxu0
  %v3390 = vadd.f32 0.0, %v3389
  %v3391 = vpop.f32.mrb[0].mxu0
  %v3392 = vpop.f32.mrb[0].mxu0
  %v3393 = vadd.f32 0.0, %v3392
  %v3394 = vpop.f32.mrb[0].mxu0
  %3395 = vdwg.mxu0
  %v3396 = vadd.f32 %v3219, %v3382
  %v3397 = vadd.f32 %v3220, %v3385
  %v3398 = vadd.f32 %v3221, %v3390
  %v3399 = vadd.f32 %v3222, %v3393
  %v3400 = vld [vmem:[%s49] sm:$0x1]
  %v3402 = vlaneseq
  %v3403 = vshrl.u32 %v3402, 7
  %v3404 = vsub.s32 0, %v3403
  %v3405 = vrot.slane %v3400, %v3404
  %v3407 = vadd.f32 %v3396, %v3405
  %v3408 = vadd.f32 %v3397, %v3405
  %v3409 = vadd.f32 %v3398, %v3405
  %v3410 = vadd.f32 %v3399, %v3405
  %v3411 = vld [vmem:[%s51] sm:$0x1]
  %v3412 = vld [vmem:[%s53] sm:$0x1]
  %v3413 = vsel %vm290, %v3407, 0.0
  %3414 = vadd.xlane.f32.xlu0 %v3413
  %v3415 = vpop.xlane.xlu0 %3414
  %v3416 = vsel %vm290, %v3408, 0.0
  %3417 = vadd.xlane.f32.xlu0 %v3416
  %v3418 = vpop.xlane.xlu0 %3417
  %v3419 = vsel %vm290, %v3409, 0.0
  %3420 = vadd.xlane.f32.xlu0 %v3419
  %v3421 = vpop.xlane.xlu0 %3420
  %v3422 = vsel %vm290, %v3410, 0.0
  %3423 = vadd.xlane.f32.xlu0 %v3422
  %v3424 = vpop.xlane.xlu0 %3423
  %v3425 = vmul.f32 %v3415, %v1558
  %v3426 = vmul.f32 %v3418, %v1558
  %v3427 = vmul.f32 %v3421, %v1558
  %v3428 = vmul.f32 %v3424, %v1558
  %v3429 = vsub.f32 %v3407, %v3425
  %v3430 = vsub.f32 %v3408, %v3426
  %v3431 = vsub.f32 %v3409, %v3427
  %v3432 = vsub.f32 %v3410, %v3428
  %v3433 = vmul.f32 %v3429, %v3429
  %v3434 = vmul.f32 %v3430, %v3430
  %v3435 = vmul.f32 %v3431, %v3431
  %v3436 = vmul.f32 %v3432, %v3432
  %v3437 = vsel %vm290, %v3433, 0.0
  %3438 = vadd.xlane.f32.xlu0 %v3437
  %v3439 = vpop.xlane.xlu0 %3438
  %v3440 = vsel %vm290, %v3434, 0.0
  %3441 = vadd.xlane.f32.xlu0 %v3440
  %v3442 = vpop.xlane.xlu0 %3441
  %v3443 = vsel %vm290, %v3435, 0.0
  %3444 = vadd.xlane.f32.xlu0 %v3443
  %v3445 = vpop.xlane.xlu0 %3444
  %v3446 = vsel %vm290, %v3436, 0.0
  %3447 = vadd.xlane.f32.xlu0 %v3446
  %v3448 = vpop.xlane.xlu0 %3447
  %v3449 = vmul.f32 %v3439, %v1558
  %v3450 = vmul.f32 %v3442, %v1558
  %v3451 = vmul.f32 %v3445, %v1558
  %v3452 = vmul.f32 %v3448, %v1558
  %v3453 = vadd.f32 %v3449, 1e-05
  %v3454 = vadd.f32 %v3450, 1e-05
  %v3455 = vadd.f32 %v3451, 1e-05
  %v3456 = vadd.f32 %v3452, 1e-05
  %v3457 = vrsqrt.pop %v3453
  %v3458 = vrsqrt.pop %v3454
  %v3459 = vrsqrt.pop %v3455
  %v3460 = vrsqrt.pop %v3456
  %v3461 = vmul.f32 %v3429, %v3457
  %v3462 = vmul.f32 %v3430, %v3458
  %v3463 = vmul.f32 %v3431, %v3459
  %v3464 = vmul.f32 %v3432, %v3460
  %v3466 = vlaneseq
  %v3467 = vshrl.u32 %v3466, 7
  %v3468 = vsub.s32 0, %v3467
  %v3469 = vrot.slane %v3411, %v3468
  %v3471 = vmul.f32 %v3461, %v3469
  %v3472 = vmul.f32 %v3462, %v3469
  %v3473 = vmul.f32 %v3463, %v3469
  %v3474 = vmul.f32 %v3464, %v3469
  %v3476 = vlaneseq
  %v3477 = vshrl.u32 %v3476, 7
  %v3478 = vsub.s32 0, %v3477
  %v3479 = vrot.slane %v3412, %v3478
  %v3481 = vadd.f32 %v3471, %v3479
  %v3482 = vadd.f32 %v3472, %v3479
  %v3483 = vadd.f32 %v3473, %v3479
  %v3484 = vadd.f32 %v3474, %v3479
  %v3485 = vpack.c.bf16 %v3482, %v3481
  %v3486 = vpack.c.bf16 %v3484, %v3483
  %v3487 = vld [vmem:[%s59] sm:$0xf]
  %v3488 = vld [vmem:[%s59 + $0x4] sm:$0xf]
  %v3489 = vld [vmem:[%s59 + $0x8] sm:$0xf]
  %v3490 = vld [vmem:[%s59 + $0xc] sm:$0xf]
  %v3495 = vunpack.c.l.b16 %v3487
  %v3496 = vunpack.c.l.b16 %v3488
  %v3497 = vunpack.c.l.b16 %v3489
  %v3498 = vunpack.c.l.b16 %v3490
  %v3499 = vpack.c.b16 %v3496, %v3495
  %v3500 = vpack.c.b16 %v3498, %v3497
  %v3504 = vsel %vm290, %v3485, 0
  %v3507 = vsel %vm290, %v3486, 0
  %3509 = vmatprep.subr.bf16.mxu0 0
  %3510 = vmatpush1.bf16.msra.mxu0 %v3499
  %3511 = vmatprep.subr.bf16.mxu0 0
  %3512 = vmatpush1.bf16.msra.mxu0 %v3500
  %3513 = vmatprep.subr.bf16.mxu0 0
  %3514 = vmatpush1.bf16.msra.mxu0 0
  %3515 = vmatprep.subr.bf16.mxu0 0
  %3516 = vmatpush1.bf16.msra.mxu0 0
  %3517 = vmatprep.subr.bf16.mxu0 0
  %3518 = vmatpush1.bf16.msra.mxu0 0
  %3519 = vmatprep.subr.bf16.mxu0 0
  %3520 = vmatpush1.bf16.msra.mxu0 0
  %3521 = vmatprep.subr.bf16.mxu0 0
  %3522 = vmatpush1.bf16.msra.mxu0 0
  %3523 = vmatprep.subr.bf16.mxu0 0
  %3524 = vmatpush1.bf16.msra.mxu0 0
  %3525 = vmatprep.subr.bf16.mxu0 0
  %3526 = vmatpush1.bf16.msra.mxu0 0
  %3527 = vmatprep.subr.bf16.mxu0 0
  %3528 = vmatpush1.bf16.msra.mxu0 0
  %3529 = vmatprep.subr.bf16.mxu0 0
  %3530 = vmatpush1.bf16.msra.mxu0 0
  %3531 = vmatprep.subr.bf16.mxu0 0
  %3532 = vmatpush1.bf16.msra.mxu0 0
  %3533 = vmatprep.subr.bf16.mxu0 0
  %3534 = vmatpush1.bf16.msra.mxu0 0
  %3535 = vmatprep.subr.bf16.mxu0 0
  %3536 = vmatpush1.bf16.msra.mxu0 0
  %3537 = vmatprep.subr.bf16.mxu0 0
  %3538 = vmatpush1.bf16.msra.mxu0 0
  %3539 = vmatprep.subr.bf16.mxu0 0
  %3540 = vmatpush1.bf16.msra.mxu0 0
  %3541 = vmatprep.mubr.bf16.mxu0 0
  %3542 = vmatmul.mubr.bf16.gmra.mrb[0].mxu0 %v3504
  %v3543 = vpop.f32.mrb[0].mxu0
  %v3544 = vadd.f32 0.0, %v3543
  %v3545 = vpop.f32.mrb[0].mxu0
  %v3546 = vpop.f32.mrb[0].mxu0
  %v3547 = vadd.f32 0.0, %v3546
  %v3548 = vpop.f32.mrb[0].mxu0
  %3549 = vmatprep.mubr.bf16.mxu0 0
  %3550 = vmatmul.mubr.bf16.gmra.mrb[0].mxu0 %v3507
  %v3551 = vpop.f32.mrb[0].mxu0
  %v3552 = vadd.f32 0.0, %v3551
  %v3553 = vpop.f32.mrb[0].mxu0
  %v3554 = vpop.f32.mrb[0].mxu0
  %v3555 = vadd.f32 0.0, %v3554
  %v3556 = vpop.f32.mrb[0].mxu0
  %3557 = vdwg.mxu0
  %v3558 = vld [vmem:[%s61] sm:$0xff]
  %v3559 = vld [vmem:[%s61 + $0x8] sm:$0xff]
  %v3560 = vadd.f32 %v3544, %v3558
  %v3561 = vadd.f32 %v3547, %v3559
  %v3562 = vadd.f32 %v3552, %v3558
  %v3563 = vadd.f32 %v3555, %v3559
  %v3564 = vld [vmem:[%s57] sm:$0xff]
  %v3565 = vld [vmem:[%s57 + $0x8] sm:$0xff]
  %v3566 = vld [vmem:[%s57 + $0x10] sm:$0xff]
  %v3567 = vld [vmem:[%s57 + $0x18] sm:$0xff]
  %v3568 = vld [vmem:[%s63] sm:$0xf]
  %v3569 = vld [vmem:[%s63 + $0x4] sm:$0xf]
  %v3570 = vld [vmem:[%s63 + $0x8] sm:$0xf]
  %v3571 = vld [vmem:[%s63 + $0xc] sm:$0xf]
  %v3572 = vld [vmem:[%s65] sm:$0x1]
  %3573 = vxpose.xlu0.b32.start [1/16] %v3560, 128
  %3574 = vxpose.xlu0.b32.cont [2/16] %v3561, 128
  %3575 = vxpose.xlu0.b32.cont [3/16] 0.0, 128
  %3576 = vxpose.xlu0.b32.cont [4/16] 0.0, 128
  %3577 = vxpose.xlu0.b32.cont [5/16] 0.0, 128
  %3578 = vxpose.xlu0.b32.cont [6/16] 0.0, 128
  %3579 = vxpose.xlu0.b32.cont [7/16] 0.0, 128
  %3580 = vxpose.xlu0.b32.cont [8/16] 0.0, 128
  %3581 = vxpose.xlu0.b32.cont [9/16] 0.0, 128
  %3582 = vxpose.xlu0.b32.cont [10/16] 0.0, 128
  %3583 = vxpose.xlu0.b32.cont [11/16] 0.0, 128
  %3584 = vxpose.xlu0.b32.cont [12/16] 0.0, 128
  %3585 = vxpose.xlu0.b32.cont [13/16] 0.0, 128
  %3586 = vxpose.xlu0.b32.cont [14/16] 0.0, 128
  %3587 = vxpose.xlu0.b32.cont [15/16] 0.0, 128
  %3588 = vxpose.xlu0.b32.end [16/16] 0.0, 128
  %v3589 = vpop.trf.xlu0
  %v3590 = vpop.trf.xlu0
  %v3591 = vpop.trf.xlu0
  %v3592 = vpop.trf.xlu0
  %v3593 = vpop.trf.xlu0
  %v3594 = vpop.trf.xlu0
  %v3595 = vpop.trf.xlu0
  %v3596 = vpop.trf.xlu0
  %v3597 = vpop.trf.xlu0
  %v3598 = vpop.trf.xlu0
  %v3599 = vpop.trf.xlu0
  %v3600 = vpop.trf.xlu0
  %v3601 = vpop.trf.xlu0
  %v3602 = vpop.trf.xlu0
  %v3603 = vpop.trf.xlu0
  %v3604 = vpop.trf.xlu0
  %3605 = vxpose.xlu0.b32.start [1/16] %v3562, 128
  %3606 = vxpose.xlu0.b32.cont [2/16] %v3563, 128
  %3607 = vxpose.xlu0.b32.cont [3/16] 0.0, 128
  %3608 = vxpose.xlu0.b32.cont [4/16] 0.0, 128
  %3609 = vxpose.xlu0.b32.cont [5/16] 0.0, 128
  %3610 = vxpose.xlu0.b32.cont [6/16] 0.0, 128
  %3611 = vxpose.xlu0.b32.cont [7/16] 0.0, 128
  %3612 = vxpose.xlu0.b32.cont [8/16] 0.0, 128
  %3613 = vxpose.xlu0.b32.cont [9/16] 0.0, 128
  %3614 = vxpose.xlu0.b32.cont [10/16] 0.0, 128
  %3615 = vxpose.xlu0.b32.cont [11/16] 0.0, 128
  %3616 = vxpose.xlu0.b32.cont [12/16] 0.0, 128
  %3617 = vxpose.xlu0.b32.cont [13/16] 0.0, 128
  %3618 = vxpose.xlu0.b32.cont [14/16] 0.0, 128
  %3619 = vxpose.xlu0.b32.cont [15/16] 0.0, 128
  %3620 = vxpose.xlu0.b32.end [16/16] 0.0, 128
  %v3621 = vpop.trf.xlu0
  %v3622 = vpop.trf.xlu0
  %v3623 = vpop.trf.xlu0
  %v3624 = vpop.trf.xlu0
  %v3625 = vpop.trf.xlu0
  %v3626 = vpop.trf.xlu0
  %v3627 = vpop.trf.xlu0
  %v3628 = vpop.trf.xlu0
  %v3629 = vpop.trf.xlu0
  %v3630 = vpop.trf.xlu0
  %v3631 = vpop.trf.xlu0
  %v3632 = vpop.trf.xlu0
  %v3633 = vpop.trf.xlu0
  %v3634 = vpop.trf.xlu0
  %v3635 = vpop.trf.xlu0
  %v3636 = vpop.trf.xlu0
  %v3637 = vpack.c.bf16 %v3565, %v3564
  %v3638 = vpack.c.bf16 %v3567, %v3566
  %v3639 = vpack.c.bf16 %v3590, %v3589
  %v3640 = vpack.c.bf16 %v3592, %v3591
  %v3641 = vpack.c.bf16 %v3622, %v3621
  %v3642 = vpack.c.bf16 %v3624, %v3623
  %v3643 = vpack.c.bf16 %v3561, %v3560
  %v3644 = vpack.c.bf16 %v3563, %v3562
  %v3646 = vsel %vm443, %v3637, 0
  %v3649 = vsel %vm443, %v3638, 0
  %v3652 = vsel %vm447, %v3639, 0
  %3654 = vmatprep.subr.bf16.mxu0 0
  %3655 = vmatpush1.bf16.msra.mxu0 %v3652
  %3656 = vmatprep.subr.bf16.mxu0 0
  %3657 = vmatpush1.bf16.msra.mxu0 0
  %3658 = vmatprep.subr.bf16.mxu0 0
  %3659 = vmatpush1.bf16.msra.mxu0 0
  %3660 = vmatprep.subr.bf16.mxu0 0
  %3661 = vmatpush1.bf16.msra.mxu0 0
  %3662 = vmatprep.subr.bf16.mxu0 0
  %3663 = vmatpush1.bf16.msra.mxu0 0
  %3664 = vmatprep.subr.bf16.mxu0 0
  %3665 = vmatpush1.bf16.msra.mxu0 0
  %3666 = vmatprep.subr.bf16.mxu0 0
  %3667 = vmatpush1.bf16.msra.mxu0 0
  %3668 = vmatprep.subr.bf16.mxu0 0
  %3669 = vmatpush1.bf16.msra.mxu0 0
  %3670 = vmatprep.subr.bf16.mxu0 0
  %3671 = vmatpush1.bf16.msra.mxu0 0
  %3672 = vmatprep.subr.bf16.mxu0 0
  %3673 = vmatpush1.bf16.msra.mxu0 0
  %3674 = vmatprep.subr.bf16.mxu0 0
  %3675 = vmatpush1.bf16.msra.mxu0 0
  %3676 = vmatprep.subr.bf16.mxu0 0
  %3677 = vmatpush1.bf16.msra.mxu0 0
  %3678 = vmatprep.subr.bf16.mxu0 0
  %3679 = vmatpush1.bf16.msra.mxu0 0
  %3680 = vmatprep.subr.bf16.mxu0 0
  %3681 = vmatpush1.bf16.msra.mxu0 0
  %3682 = vmatprep.subr.bf16.mxu0 0
  %3683 = vmatpush1.bf16.msra.mxu0 0
  %3684 = vmatprep.subr.bf16.mxu0 0
  %3685 = vmatpush1.bf16.msra.mxu0 0
  %3686 = vmatprep.mubr.bf16.mxu0 0
  %3687 = vmatmul.mubr.bf16.gmra.mrb[0].mxu0 %v3646
  %v3688 = vpop.f32.mrb[0].mxu0
  %v3689 = vadd.f32 0.0, %v3688
  %v3690 = vpop.f32.mrb[0].mxu0
  %v3691 = vpop.f32.mrb[0].mxu0
  %v3692 = vadd.f32 0.0, %v3691
  %v3693 = vpop.f32.mrb[0].mxu0
  %3694 = vmatprep.mubr.bf16.mxu0 0
  %3695 = vmatmul.mubr.bf16.gmra.mrb[0].mxu0 %v3649
  %v3696 = vpop.f32.mrb[0].mxu0
  %v3697 = vadd.f32 0.0, %v3696
  %v3698 = vpop.f32.mrb[0].mxu0
  %v3699 = vpop.f32.mrb[0].mxu0
  %v3700 = vadd.f32 0.0, %v3699
  %v3701 = vpop.f32.mrb[0].mxu0
  %3702 = vdwg.mxu0
  %v3704 = vsel %vm447, %v3641, 0
  %3706 = vmatprep.subr.bf16.mxu0 0
  %3707 = vmatpush1.bf16.msra.mxu0 %v3704
  %3708 = vmatprep.subr.bf16.mxu0 0
  %3709 = vmatpush1.bf16.msra.mxu0 0
  %3710 = vmatprep.subr.bf16.mxu0 0
  %3711 = vmatpush1.bf16.msra.mxu0 0
  %3712 = vmatprep.subr.bf16.mxu0 0
  %3713 = vmatpush1.bf16.msra.mxu0 0
  %3714 = vmatprep.subr.bf16.mxu0 0
  %3715 = vmatpush1.bf16.msra.mxu0 0
  %3716 = vmatprep.subr.bf16.mxu0 0
  %3717 = vmatpush1.bf16.msra.mxu0 0
  %3718 = vmatprep.subr.bf16.mxu0 0
  %3719 = vmatpush1.bf16.msra.mxu0 0
  %3720 = vmatprep.subr.bf16.mxu0 0
  %3721 = vmatpush1.bf16.msra.mxu0 0
  %3722 = vmatprep.subr.bf16.mxu0 0
  %3723 = vmatpush1.bf16.msra.mxu0 0
  %3724 = vmatprep.subr.bf16.mxu0 0
  %3725 = vmatpush1.bf16.msra.mxu0 0
  %3726 = vmatprep.subr.bf16.mxu0 0
  %3727 = vmatpush1.bf16.msra.mxu0 0
  %3728 = vmatprep.subr.bf16.mxu0 0
  %3729 = vmatpush1.bf16.msra.mxu0 0
  %3730 = vmatprep.subr.bf16.mxu0 0
  %3731 = vmatpush1.bf16.msra.mxu0 0
  %3732 = vmatprep.subr.bf16.mxu0 0
  %3733 = vmatpush1.bf16.msra.mxu0 0
  %3734 = vmatprep.subr.bf16.mxu0 0
  %3735 = vmatpush1.bf16.msra.mxu0 0
  %3736 = vmatprep.subr.bf16.mxu0 0
  %3737 = vmatpush1.bf16.msra.mxu0 0
  %3738 = vmatprep.mubr.bf16.mxu0 0
  %3739 = vmatmul.mubr.bf16.gmra.mrb[0].mxu0 %v3646
  %v3740 = vpop.f32.mrb[0].mxu0
  %v3741 = vadd.f32 0.0, %v3740
  %v3742 = vpop.f32.mrb[0].mxu0
  %v3743 = vpop.f32.mrb[0].mxu0
  %v3744 = vadd.f32 0.0, %v3743
  %v3745 = vpop.f32.mrb[0].mxu0
  %3746 = vmatprep.mubr.bf16.mxu0 0
  %3747 = vmatmul.mubr.bf16.gmra.mrb[0].mxu0 %v3649
  %v3748 = vpop.f32.mrb[0].mxu0
  %v3749 = vadd.f32 0.0, %v3748
  %v3750 = vpop.f32.mrb[0].mxu0
  %v3751 = vpop.f32.mrb[0].mxu0
  %v3752 = vadd.f32 0.0, %v3751
  %v3753 = vpop.f32.mrb[0].mxu0
  %3754 = vdwg.mxu0
  %v3755 = vsel %vm539, %v3689, -inf
  %3756 = vmax.xlane.f32.xlu0 %v3755
  %v3757 = vpop.xlane.xlu0 %3756
  %v3758 = vsel %vm539, %v3692, -inf
  %3759 = vmax.xlane.f32.xlu0 %v3758
  %v3760 = vpop.xlane.xlu0 %3759
  %v3761 = vsel %vm539, %v3697, -inf
  %3762 = vmax.xlane.f32.xlu0 %v3761
  %v3763 = vpop.xlane.xlu0 %3762
  %v3764 = vsel %vm539, %v3700, -inf
  %3765 = vmax.xlane.f32.xlu0 %v3764
  %v3766 = vpop.xlane.xlu0 %3765
  %v3767 = vsel %vm539, %v3741, -inf
  %3768 = vmax.xlane.f32.xlu0 %v3767
  %v3769 = vpop.xlane.xlu0 %3768
  %v3770 = vsel %vm539, %v3744, -inf
  %3771 = vmax.xlane.f32.xlu0 %v3770
  %v3772 = vpop.xlane.xlu0 %3771
  %v3773 = vsel %vm539, %v3749, -inf
  %3774 = vmax.xlane.f32.xlu0 %v3773
  %v3775 = vpop.xlane.xlu0 %3774
  %v3776 = vsel %vm539, %v3752, -inf
  %3777 = vmax.xlane.f32.xlu0 %v3776
  %v3778 = vpop.xlane.xlu0 %3777
  %v3779 = vsub.f32 %v3689, %v3757
  %v3780 = vsub.f32 %v3692, %v3760
  %v3781 = vsub.f32 %v3697, %v3763
  %v3782 = vsub.f32 %v3700, %v3766
  %v3783 = vsub.f32 %v3741, %v3769
  %v3784 = vsub.f32 %v3744, %v3772
  %v3785 = vsub.f32 %v3749, %v3775
  %v3786 = vsub.f32 %v3752, %v3778
  %v3787 = vmul.f32 %v3779, 1.442695
  %v3788 = vpow.pop %v3787
  %v3789 = vmul.f32 %v3780, 1.442695
  %v3790 = vpow.pop %v3789
  %v3791 = vmul.f32 %v3781, 1.442695
  %v3792 = vpow.pop %v3791
  %v3793 = vmul.f32 %v3782, 1.442695
  %v3794 = vpow.pop %v3793
  %v3795 = vmul.f32 %v3783, 1.442695
  %v3796 = vpow.pop %v3795
  %v3797 = vmul.f32 %v3784, 1.442695
  %v3798 = vpow.pop %v3797
  %v3799 = vmul.f32 %v3785, 1.442695
  %v3800 = vpow.pop %v3799
  %v3801 = vmul.f32 %v3786, 1.442695
  %v3802 = vpow.pop %v3801
  %v3803 = vsel %vm539, %v3788, 0.0
  %3804 = vadd.xlane.f32.xlu0 %v3803
  %v3805 = vpop.xlane.xlu0 %3804
  %v3806 = vsel %vm539, %v3790, 0.0
  %3807 = vadd.xlane.f32.xlu0 %v3806
  %v3808 = vpop.xlane.xlu0 %3807
  %v3809 = vsel %vm539, %v3792, 0.0
  %3810 = vadd.xlane.f32.xlu0 %v3809
  %v3811 = vpop.xlane.xlu0 %3810
  %v3812 = vsel %vm539, %v3794, 0.0
  %3813 = vadd.xlane.f32.xlu0 %v3812
  %v3814 = vpop.xlane.xlu0 %3813
  %v3815 = vsel %vm539, %v3796, 0.0
  %3816 = vadd.xlane.f32.xlu0 %v3815
  %v3817 = vpop.xlane.xlu0 %3816
  %v3818 = vsel %vm539, %v3798, 0.0
  %3819 = vadd.xlane.f32.xlu0 %v3818
  %v3820 = vpop.xlane.xlu0 %3819
  %v3821 = vsel %vm539, %v3800, 0.0
  %3822 = vadd.xlane.f32.xlu0 %v3821
  %v3823 = vpop.xlane.xlu0 %3822
  %v3824 = vsel %vm539, %v3802, 0.0
  %3825 = vadd.xlane.f32.xlu0 %v3824
  %v3826 = vpop.xlane.xlu0 %3825
  %v3827 = vrcp.pop %v3805
  %v3828 = vrcp.pop %v3808
  %v3829 = vrcp.pop %v3811
  %v3830 = vrcp.pop %v3814
  %v3831 = vrcp.pop %v3817
  %v3832 = vrcp.pop %v3820
  %v3833 = vrcp.pop %v3823
  %v3834 = vrcp.pop %v3826
  %v3835 = vmul.f32 %v3788, %v3827
  %v3836 = vmul.f32 %v3790, %v3828
  %v3837 = vmul.f32 %v3792, %v3829
  %v3838 = vmul.f32 %v3794, %v3830
  %v3839 = vmul.f32 %v3796, %v3831
  %v3840 = vmul.f32 %v3798, %v3832
  %v3841 = vmul.f32 %v3800, %v3833
  %v3842 = vmul.f32 %v3802, %v3834
  %v3843 = vpack.c.bf16 %v3836, %v3835
  %v3844 = vpack.c.bf16 %v3838, %v3837
  %v3845 = vpack.c.bf16 %v3840, %v3839
  %v3846 = vpack.c.bf16 %v3842, %v3841
  %3848 = vrot.lane.b32.xlu0 %v3643, 96
  %v3849 = vpop.permute.xlu0 %3848
  %v3852 = vsel %vm539, %v3843, 0
  %v3855 = vsel %vm539, %v3844, 0
  %3857 = vmatprep.subr.bf16.mxu0 0
  %3858 = vmatpush1.bf16.msra.mxu0 %v3849
  %3859 = vmatprep.subr.bf16.mxu0 0
  %3860 = vmatpush1.bf16.msra.mxu0 0
  %3861 = vmatprep.subr.bf16.mxu0 0
  %3862 = vmatpush1.bf16.msra.mxu0 0
  %3863 = vmatprep.subr.bf16.mxu0 0
  %3864 = vmatpush1.bf16.msra.mxu0 0
  %3865 = vmatprep.subr.bf16.mxu0 0
  %3866 = vmatpush1.bf16.msra.mxu0 0
  %3867 = vmatprep.subr.bf16.mxu0 0
  %3868 = vmatpush1.bf16.msra.mxu0 0
  %3869 = vmatprep.subr.bf16.mxu0 0
  %3870 = vmatpush1.bf16.msra.mxu0 0
  %3871 = vmatprep.subr.bf16.mxu0 0
  %3872 = vmatpush1.bf16.msra.mxu0 0
  %3873 = vmatprep.subr.bf16.mxu0 0
  %3874 = vmatpush1.bf16.msra.mxu0 0
  %3875 = vmatprep.subr.bf16.mxu0 0
  %3876 = vmatpush1.bf16.msra.mxu0 0
  %3877 = vmatprep.subr.bf16.mxu0 0
  %3878 = vmatpush1.bf16.msra.mxu0 0
  %3879 = vmatprep.subr.bf16.mxu0 0
  %3880 = vmatpush1.bf16.msra.mxu0 0
  %3881 = vmatprep.subr.bf16.mxu0 0
  %3882 = vmatpush1.bf16.msra.mxu0 0
  %3883 = vmatprep.subr.bf16.mxu0 0
  %3884 = vmatpush1.bf16.msra.mxu0 0
  %3885 = vmatprep.subr.bf16.mxu0 0
  %3886 = vmatpush1.bf16.msra.mxu0 0
  %3887 = vmatprep.subr.bf16.mxu0 0
  %3888 = vmatpush1.bf16.msra.mxu0 0
  %3889 = vmatprep.mubr.bf16.mxu0 0
  %3890 = vmatmul.mubr.bf16.gmra.mrb[0].mxu0 %v3852
  %v3891 = vpop.f32.mrb[0].mxu0
  %v3892 = vadd.f32 0.0, %v3891
  %v3893 = vpop.f32.mrb[0].mxu0
  %v3894 = vpop.f32.mrb[0].mxu0
  %v3895 = vadd.f32 0.0, %v3894
  %v3896 = vpop.f32.mrb[0].mxu0
  %3897 = vmatprep.mubr.bf16.mxu0 0
  %3898 = vmatmul.mubr.bf16.gmra.mrb[0].mxu0 %v3855
  %v3899 = vpop.f32.mrb[0].mxu0
  %v3900 = vadd.f32 0.0, %v3899
  %v3901 = vpop.f32.mrb[0].mxu0
  %v3902 = vpop.f32.mrb[0].mxu0
  %v3903 = vadd.f32 0.0, %v3902
  %v3904 = vpop.f32.mrb[0].mxu0
  %3905 = vdwg.mxu0
  %3907 = vrot.lane.b32.xlu0 %v3644, 96
  %v3908 = vpop.permute.xlu0 %3907
  %v3911 = vsel %vm539, %v3845, 0
  %v3914 = vsel %vm539, %v3846, 0
  %3916 = vmatprep.subr.bf16.mxu0 0
  %3917 = vmatpush1.bf16.msra.mxu0 %v3908
  %3918 = vmatprep.subr.bf16.mxu0 0
  %3919 = vmatpush1.bf16.msra.mxu0 0
  %3920 = vmatprep.subr.bf16.mxu0 0
  %3921 = vmatpush1.bf16.msra.mxu0 0
  %3922 = vmatprep.subr.bf16.mxu0 0
  %3923 = vmatpush1.bf16.msra.mxu0 0
  %3924 = vmatprep.subr.bf16.mxu0 0
  %3925 = vmatpush1.bf16.msra.mxu0 0
  %3926 = vmatprep.subr.bf16.mxu0 0
  %3927 = vmatpush1.bf16.msra.mxu0 0
  %3928 = vmatprep.subr.bf16.mxu0 0
  %3929 = vmatpush1.bf16.msra.mxu0 0
  %3930 = vmatprep.subr.bf16.mxu0 0
  %3931 = vmatpush1.bf16.msra.mxu0 0
  %3932 = vmatprep.subr.bf16.mxu0 0
  %3933 = vmatpush1.bf16.msra.mxu0 0
  %3934 = vmatprep.subr.bf16.mxu0 0
  %3935 = vmatpush1.bf16.msra.mxu0 0
  %3936 = vmatprep.subr.bf16.mxu0 0
  %3937 = vmatpush1.bf16.msra.mxu0 0
  %3938 = vmatprep.subr.bf16.mxu0 0
  %3939 = vmatpush1.bf16.msra.mxu0 0
  %3940 = vmatprep.subr.bf16.mxu0 0
  %3941 = vmatpush1.bf16.msra.mxu0 0
  %3942 = vmatprep.subr.bf16.mxu0 0
  %3943 = vmatpush1.bf16.msra.mxu0 0
  %3944 = vmatprep.subr.bf16.mxu0 0
  %3945 = vmatpush1.bf16.msra.mxu0 0
  %3946 = vmatprep.subr.bf16.mxu0 0
  %3947 = vmatpush1.bf16.msra.mxu0 0
  %3948 = vmatprep.mubr.bf16.mxu0 0
  %3949 = vmatmul.mubr.bf16.gmra.mrb[0].mxu0 %v3911
  %v3950 = vpop.f32.mrb[0].mxu0
  %v3951 = vadd.f32 0.0, %v3950
  %v3952 = vpop.f32.mrb[0].mxu0
  %v3953 = vpop.f32.mrb[0].mxu0
  %v3954 = vadd.f32 0.0, %v3953
  %v3955 = vpop.f32.mrb[0].mxu0
  %3956 = vmatprep.mubr.bf16.mxu0 0
  %3957 = vmatmul.mubr.bf16.gmra.mrb[0].mxu0 %v3914
  %v3958 = vpop.f32.mrb[0].mxu0
  %v3959 = vadd.f32 0.0, %v3958
  %v3960 = vpop.f32.mrb[0].mxu0
  %v3961 = vpop.f32.mrb[0].mxu0
  %v3962 = vadd.f32 0.0, %v3961
  %v3963 = vpop.f32.mrb[0].mxu0
  %3964 = vdwg.mxu0
  %3967 = vrot.lane.b32.xlu0 %v3637, 120
  %v3968 = vpop.permute.xlu0 %3967
  %3969 = vrot.lane.b32.xlu0 %v3638, 120
  %v3970 = vpop.permute.xlu0 %3969
  %v3972 = vrot.slane %v3639, 4
  %v3974 = vsel %vm443, %v3968, 0
  %v3977 = vsel %vm443, %v3970, 0
  %v3980 = vsel %vm447, %v3972, 0
  %3982 = vmatprep.subr.bf16.mxu0 0
  %3983 = vmatpush1.bf16.msra.mxu0 %v3980
  %3984 = vmatprep.subr.bf16.mxu0 0
  %3985 = vmatpush1.bf16.msra.mxu0 0
  %3986 = vmatprep.subr.bf16.mxu0 0
  %3987 = vmatpush1.bf16.msra.mxu0 0
  %3988 = vmatprep.subr.bf16.mxu0 0
  %3989 = vmatpush1.bf16.msra.mxu0 0
  %3990 = vmatprep.subr.bf16.mxu0 0
  %3991 = vmatpush1.bf16.msra.mxu0 0
  %3992 = vmatprep.subr.bf16.mxu0 0
  %3993 = vmatpush1.bf16.msra.mxu0 0
  %3994 = vmatprep.subr.bf16.mxu0 0
  %3995 = vmatpush1.bf16.msra.mxu0 0
  %3996 = vmatprep.subr.bf16.mxu0 0
  %3997 = vmatpush1.bf16.msra.mxu0 0
  %3998 = vmatprep.subr.bf16.mxu0 0
  %3999 = vmatpush1.bf16.msra.mxu0 0
  %4000 = vmatprep.subr.bf16.mxu0 0
  %4001 = vmatpush1.bf16.msra.mxu0 0
  %4002 = vmatprep.subr.bf16.mxu0 0
  %4003 = vmatpush1.bf16.msra.mxu0 0
  %4004 = vmatprep.subr.bf16.mxu0 0
  %4005 = vmatpush1.bf16.msra.mxu0 0
  %4006 = vmatprep.subr.bf16.mxu0 0
  %4007 = vmatpush1.bf16.msra.mxu0 0
  %4008 = vmatprep.subr.bf16.mxu0 0
  %4009 = vmatpush1.bf16.msra.mxu0 0
  %4010 = vmatprep.subr.bf16.mxu0 0
  %4011 = vmatpush1.bf16.msra.mxu0 0
  %4012 = vmatprep.subr.bf16.mxu0 0
  %4013 = vmatpush1.bf16.msra.mxu0 0
  %4014 = vmatprep.mubr.bf16.mxu0 0
  %4015 = vmatmul.mubr.bf16.gmra.mrb[0].mxu0 %v3974
  %v4016 = vpop.f32.mrb[0].mxu0
  %v4017 = vadd.f32 0.0, %v4016
  %v4018 = vpop.f32.mrb[0].mxu0
  %v4019 = vpop.f32.mrb[0].mxu0
  %v4020 = vadd.f32 0.0, %v4019
  %v4021 = vpop.f32.mrb[0].mxu0
  %4022 = vmatprep.mubr.bf16.mxu0 0
  %4023 = vmatmul.mubr.bf16.gmra.mrb[0].mxu0 %v3977
  %v4024 = vpop.f32.mrb[0].mxu0
  %v4025 = vadd.f32 0.0, %v4024
  %v4026 = vpop.f32.mrb[0].mxu0
  %v4027 = vpop.f32.mrb[0].mxu0
  %v4028 = vadd.f32 0.0, %v4027
  %v4029 = vpop.f32.mrb[0].mxu0
  %4030 = vdwg.mxu0
  %v4032 = vrot.slane %v3641, 4
  %v4034 = vsel %vm447, %v4032, 0
  %4036 = vmatprep.subr.bf16.mxu0 0
  %4037 = vmatpush1.bf16.msra.mxu0 %v4034
  %4038 = vmatprep.subr.bf16.mxu0 0
  %4039 = vmatpush1.bf16.msra.mxu0 0
  %4040 = vmatprep.subr.bf16.mxu0 0
  %4041 = vmatpush1.bf16.msra.mxu0 0
  %4042 = vmatprep.subr.bf16.mxu0 0
  %4043 = vmatpush1.bf16.msra.mxu0 0
  %4044 = vmatprep.subr.bf16.mxu0 0
  %4045 = vmatpush1.bf16.msra.mxu0 0
  %4046 = vmatprep.subr.bf16.mxu0 0
  %4047 = vmatpush1.bf16.msra.mxu0 0
  %4048 = vmatprep.subr.bf16.mxu0 0
  %4049 = vmatpush1.bf16.msra.mxu0 0
  %4050 = vmatprep.subr.bf16.mxu0 0
  %4051 = vmatpush1.bf16.msra.mxu0 0
  %4052 = vmatprep.subr.bf16.mxu0 0
  %4053 = vmatpush1.bf16.msra.mxu0 0
  %4054 = vmatprep.subr.bf16.mxu0 0
  %4055 = vmatpush1.bf16.msra.mxu0 0
  %4056 = vmatprep.subr.bf16.mxu0 0
  %4057 = vmatpush1.bf16.msra.mxu0 0
  %4058 = vmatprep.subr.bf16.mxu0 0
  %4059 = vmatpush1.bf16.msra.mxu0 0
  %4060 = vmatprep.subr.bf16.mxu0 0
  %4061 = vmatpush1.bf16.msra.mxu0 0
  %4062 = vmatprep.subr.bf16.mxu0 0
  %4063 = vmatpush1.bf16.msra.mxu0 0
  %4064 = vmatprep.subr.bf16.mxu0 0
  %4065 = vmatpush1.bf16.msra.mxu0 0
  %4066 = vmatprep.subr.bf16.mxu0 0
  %4067 = vmatpush1.bf16.msra.mxu0 0
  %4068 = vmatprep.mubr.bf16.mxu0 0
  %4069 = vmatmul.mubr.bf16.gmra.mrb[0].mxu0 %v3974
  %v4070 = vpop.f32.mrb[0].mxu0
  %v4071 = vadd.f32 0.0, %v4070
  %v4072 = vpop.f32.mrb[0].mxu0
  %v4073 = vpop.f32.mrb[0].mxu0
  %v4074 = vadd.f32 0.0, %v4073
  %v4075 = vpop.f32.mrb[0].mxu0
  %4076 = vmatprep.mubr.bf16.mxu0 0
  %4077 = vmatmul.mubr.bf16.gmra.mrb[0].mxu0 %v3977
  %v4078 = vpop.f32.mrb[0].mxu0
  %v4079 = vadd.f32 0.0, %v4078
  %v4080 = vpop.f32.mrb[0].mxu0
  %v4081 = vpop.f32.mrb[0].mxu0
  %v4082 = vadd.f32 0.0, %v4081
  %v4083 = vpop.f32.mrb[0].mxu0
  %4084 = vdwg.mxu0
  %v4085 = vsel %vm539, %v4017, -inf
  %4086 = vmax.xlane.f32.xlu0 %v4085
  %v4087 = vpop.xlane.xlu0 %4086
  %v4088 = vsel %vm539, %v4020, -inf
  %4089 = vmax.xlane.f32.xlu0 %v4088
  %v4090 = vpop.xlane.xlu0 %4089
  %v4091 = vsel %vm539, %v4025, -inf
  %4092 = vmax.xlane.f32.xlu0 %v4091
  %v4093 = vpop.xlane.xlu0 %4092
  %v4094 = vsel %vm539, %v4028, -inf
  %4095 = vmax.xlane.f32.xlu0 %v4094
  %v4096 = vpop.xlane.xlu0 %4095
  %v4097 = vsel %vm539, %v4071, -inf
  %4098 = vmax.xlane.f32.xlu0 %v4097
  %v4099 = vpop.xlane.xlu0 %4098
  %v4100 = vsel %vm539, %v4074, -inf
  %4101 = vmax.xlane.f32.xlu0 %v4100
  %v4102 = vpop.xlane.xlu0 %4101
  %v4103 = vsel %vm539, %v4079, -inf
  %4104 = vmax.xlane.f32.xlu0 %v4103
  %v4105 = vpop.xlane.xlu0 %4104
  %v4106 = vsel %vm539, %v4082, -inf
  %4107 = vmax.xlane.f32.xlu0 %v4106
  %v4108 = vpop.xlane.xlu0 %4107
  %v4109 = vsub.f32 %v4017, %v4087
  %v4110 = vsub.f32 %v4020, %v4090
  %v4111 = vsub.f32 %v4025, %v4093
  %v4112 = vsub.f32 %v4028, %v4096
  %v4113 = vsub.f32 %v4071, %v4099
  %v4114 = vsub.f32 %v4074, %v4102
  %v4115 = vsub.f32 %v4079, %v4105
  %v4116 = vsub.f32 %v4082, %v4108
  %v4117 = vmul.f32 %v4109, 1.442695
  %v4118 = vpow.pop %v4117
  %v4119 = vmul.f32 %v4110, 1.442695
  %v4120 = vpow.pop %v4119
  %v4121 = vmul.f32 %v4111, 1.442695
  %v4122 = vpow.pop %v4121
  %v4123 = vmul.f32 %v4112, 1.442695
  %v4124 = vpow.pop %v4123
  %v4125 = vmul.f32 %v4113, 1.442695
  %v4126 = vpow.pop %v4125
  %v4127 = vmul.f32 %v4114, 1.442695
  %v4128 = vpow.pop %v4127
  %v4129 = vmul.f32 %v4115, 1.442695
  %v4130 = vpow.pop %v4129
  %v4131 = vmul.f32 %v4116, 1.442695
  %v4132 = vpow.pop %v4131
  %v4133 = vsel %vm539, %v4118, 0.0
  %4134 = vadd.xlane.f32.xlu0 %v4133
  %v4135 = vpop.xlane.xlu0 %4134
  %v4136 = vsel %vm539, %v4120, 0.0
  %4137 = vadd.xlane.f32.xlu0 %v4136
  %v4138 = vpop.xlane.xlu0 %4137
  %v4139 = vsel %vm539, %v4122, 0.0
  %4140 = vadd.xlane.f32.xlu0 %v4139
  %v4141 = vpop.xlane.xlu0 %4140
  %v4142 = vsel %vm539, %v4124, 0.0
  %4143 = vadd.xlane.f32.xlu0 %v4142
  %v4144 = vpop.xlane.xlu0 %4143
  %v4145 = vsel %vm539, %v4126, 0.0
  %4146 = vadd.xlane.f32.xlu0 %v4145
  %v4147 = vpop.xlane.xlu0 %4146
  %v4148 = vsel %vm539, %v4128, 0.0
  %4149 = vadd.xlane.f32.xlu0 %v4148
  %v4150 = vpop.xlane.xlu0 %4149
  %v4151 = vsel %vm539, %v4130, 0.0
  %4152 = vadd.xlane.f32.xlu0 %v4151
  %v4153 = vpop.xlane.xlu0 %4152
  %v4154 = vsel %vm539, %v4132, 0.0
  %4155 = vadd.xlane.f32.xlu0 %v4154
  %v4156 = vpop.xlane.xlu0 %4155
  %v4157 = vrcp.pop %v4135
  %v4158 = vrcp.pop %v4138
  %v4159 = vrcp.pop %v4141
  %v4160 = vrcp.pop %v4144
  %v4161 = vrcp.pop %v4147
  %v4162 = vrcp.pop %v4150
  %v4163 = vrcp.pop %v4153
  %v4164 = vrcp.pop %v4156
  %v4165 = vmul.f32 %v4118, %v4157
  %v4166 = vmul.f32 %v4120, %v4158
  %v4167 = vmul.f32 %v4122, %v4159
  %v4168 = vmul.f32 %v4124, %v4160
  %v4169 = vmul.f32 %v4126, %v4161
  %v4170 = vmul.f32 %v4128, %v4162
  %v4171 = vmul.f32 %v4130, %v4163
  %v4172 = vmul.f32 %v4132, %v4164
  %v4173 = vpack.c.bf16 %v4166, %v4165
  %v4174 = vpack.c.bf16 %v4168, %v4167
  %v4175 = vpack.c.bf16 %v4170, %v4169
  %v4176 = vpack.c.bf16 %v4172, %v4171
  %4177 = vrot.lane.b32.xlu0 %v3643, 88
  %v4178 = vpop.permute.xlu0 %4177
  %v4181 = vsel %vm539, %v4173, 0
  %v4184 = vsel %vm539, %v4174, 0
  %4186 = vmatprep.subr.bf16.mxu0 0
  %4187 = vmatpush1.bf16.msra.mxu0 %v4178
  %4188 = vmatprep.subr.bf16.mxu0 0
  %4189 = vmatpush1.bf16.msra.mxu0 0
  %4190 = vmatprep.subr.bf16.mxu0 0
  %4191 = vmatpush1.bf16.msra.mxu0 0
  %4192 = vmatprep.subr.bf16.mxu0 0
  %4193 = vmatpush1.bf16.msra.mxu0 0
  %4194 = vmatprep.subr.bf16.mxu0 0
  %4195 = vmatpush1.bf16.msra.mxu0 0
  %4196 = vmatprep.subr.bf16.mxu0 0
  %4197 = vmatpush1.bf16.msra.mxu0 0
  %4198 = vmatprep.subr.bf16.mxu0 0
  %4199 = vmatpush1.bf16.msra.mxu0 0
  %4200 = vmatprep.subr.bf16.mxu0 0
  %4201 = vmatpush1.bf16.msra.mxu0 0
  %4202 = vmatprep.subr.bf16.mxu0 0
  %4203 = vmatpush1.bf16.msra.mxu0 0
  %4204 = vmatprep.subr.bf16.mxu0 0
  %4205 = vmatpush1.bf16.msra.mxu0 0
  %4206 = vmatprep.subr.bf16.mxu0 0
  %4207 = vmatpush1.bf16.msra.mxu0 0
  %4208 = vmatprep.subr.bf16.mxu0 0
  %4209 = vmatpush1.bf16.msra.mxu0 0
  %4210 = vmatprep.subr.bf16.mxu0 0
  %4211 = vmatpush1.bf16.msra.mxu0 0
  %4212 = vmatprep.subr.bf16.mxu0 0
  %4213 = vmatpush1.bf16.msra.mxu0 0
  %4214 = vmatprep.subr.bf16.mxu0 0
  %4215 = vmatpush1.bf16.msra.mxu0 0
  %4216 = vmatprep.subr.bf16.mxu0 0
  %4217 = vmatpush1.bf16.msra.mxu0 0
  %4218 = vmatprep.mubr.bf16.mxu0 0
  %4219 = vmatmul.mubr.bf16.gmra.mrb[0].mxu0 %v4181
  %v4220 = vpop.f32.mrb[0].mxu0
  %v4221 = vadd.f32 0.0, %v4220
  %v4222 = vpop.f32.mrb[0].mxu0
  %v4223 = vpop.f32.mrb[0].mxu0
  %v4224 = vadd.f32 0.0, %v4223
  %v4225 = vpop.f32.mrb[0].mxu0
  %4226 = vmatprep.mubr.bf16.mxu0 0
  %4227 = vmatmul.mubr.bf16.gmra.mrb[0].mxu0 %v4184
  %v4228 = vpop.f32.mrb[0].mxu0
  %v4229 = vadd.f32 0.0, %v4228
  %v4230 = vpop.f32.mrb[0].mxu0
  %v4231 = vpop.f32.mrb[0].mxu0
  %v4232 = vadd.f32 0.0, %v4231
  %v4233 = vpop.f32.mrb[0].mxu0
  %4234 = vdwg.mxu0
  %4235 = vrot.lane.b32.xlu0 %v3644, 88
  %v4236 = vpop.permute.xlu0 %4235
  %v4239 = vsel %vm539, %v4175, 0
  %v4242 = vsel %vm539, %v4176, 0
  %4244 = vmatprep.subr.bf16.mxu0 0
  %4245 = vmatpush1.bf16.msra.mxu0 %v4236
  %4246 = vmatprep.subr.bf16.mxu0 0
  %4247 = vmatpush1.bf16.msra.mxu0 0
  %4248 = vmatprep.subr.bf16.mxu0 0
  %4249 = vmatpush1.bf16.msra.mxu0 0
  %4250 = vmatprep.subr.bf16.mxu0 0
  %4251 = vmatpush1.bf16.msra.mxu0 0
  %4252 = vmatprep.subr.bf16.mxu0 0
  %4253 = vmatpush1.bf16.msra.mxu0 0
  %4254 = vmatprep.subr.bf16.mxu0 0
  %4255 = vmatpush1.bf16.msra.mxu0 0
  %4256 = vmatprep.subr.bf16.mxu0 0
  %4257 = vmatpush1.bf16.msra.mxu0 0
  %4258 = vmatprep.subr.bf16.mxu0 0
  %4259 = vmatpush1.bf16.msra.mxu0 0
  %4260 = vmatprep.subr.bf16.mxu0 0
  %4261 = vmatpush1.bf16.msra.mxu0 0
  %4262 = vmatprep.subr.bf16.mxu0 0
  %4263 = vmatpush1.bf16.msra.mxu0 0
  %4264 = vmatprep.subr.bf16.mxu0 0
  %4265 = vmatpush1.bf16.msra.mxu0 0
  %4266 = vmatprep.subr.bf16.mxu0 0
  %4267 = vmatpush1.bf16.msra.mxu0 0
  %4268 = vmatprep.subr.bf16.mxu0 0
  %4269 = vmatpush1.bf16.msra.mxu0 0
  %4270 = vmatprep.subr.bf16.mxu0 0
  %4271 = vmatpush1.bf16.msra.mxu0 0
  %4272 = vmatprep.subr.bf16.mxu0 0
  %4273 = vmatpush1.bf16.msra.mxu0 0
  %4274 = vmatprep.subr.bf16.mxu0 0
  %4275 = vmatpush1.bf16.msra.mxu0 0
  %4276 = vmatprep.mubr.bf16.mxu0 0
  %4277 = vmatmul.mubr.bf16.gmra.mrb[0].mxu0 %v4239
  %v4278 = vpop.f32.mrb[0].mxu0
  %v4279 = vadd.f32 0.0, %v4278
  %v4280 = vpop.f32.mrb[0].mxu0
  %v4281 = vpop.f32.mrb[0].mxu0
  %v4282 = vadd.f32 0.0, %v4281
  %v4283 = vpop.f32.mrb[0].mxu0
  %4284 = vmatprep.mubr.bf16.mxu0 0
  %4285 = vmatmul.mubr.bf16.gmra.mrb[0].mxu0 %v4242
  %v4286 = vpop.f32.mrb[0].mxu0
  %v4287 = vadd.f32 0.0, %v4286
  %v4288 = vpop.f32.mrb[0].mxu0
  %v4289 = vpop.f32.mrb[0].mxu0
  %v4290 = vadd.f32 0.0, %v4289
  %v4291 = vpop.f32.mrb[0].mxu0
  %4292 = vdwg.mxu0
  %4293 = vrot.lane.b32.xlu0 %v3637, 112
  %v4294 = vpop.permute.xlu0 %4293
  %4295 = vrot.lane.b32.xlu0 %v3638, 112
  %v4296 = vpop.permute.xlu0 %4295
  %v4298 = vsel %vm443, %v4294, 0
  %v4301 = vsel %vm443, %v4296, 0
  %v4304 = vsel %vm447, %v3640, 0
  %4306 = vmatprep.subr.bf16.mxu0 0
  %4307 = vmatpush1.bf16.msra.mxu0 %v4304
  %4308 = vmatprep.subr.bf16.mxu0 0
  %4309 = vmatpush1.bf16.msra.mxu0 0
  %4310 = vmatprep.subr.bf16.mxu0 0
  %4311 = vmatpush1.bf16.msra.mxu0 0
  %4312 = vmatprep.subr.bf16.mxu0 0
  %4313 = vmatpush1.bf16.msra.mxu0 0
  %4314 = vmatprep.subr.bf16.mxu0 0
  %4315 = vmatpush1.bf16.msra.mxu0 0
  %4316 = vmatprep.subr.bf16.mxu0 0
  %4317 = vmatpush1.bf16.msra.mxu0 0
  %4318 = vmatprep.subr.bf16.mxu0 0
  %4319 = vmatpush1.bf16.msra.mxu0 0
  %4320 = vmatprep.subr.bf16.mxu0 0
  %4321 = vmatpush1.bf16.msra.mxu0 0
  %4322 = vmatprep.subr.bf16.mxu0 0
  %4323 = vmatpush1.bf16.msra.mxu0 0
  %4324 = vmatprep.subr.bf16.mxu0 0
  %4325 = vmatpush1.bf16.msra.mxu0 0
  %4326 = vmatprep.subr.bf16.mxu0 0
  %4327 = vmatpush1.bf16.msra.mxu0 0
  %4328 = vmatprep.subr.bf16.mxu0 0
  %4329 = vmatpush1.bf16.msra.mxu0 0
  %4330 = vmatprep.subr.bf16.mxu0 0
  %4331 = vmatpush1.bf16.msra.mxu0 0
  %4332 = vmatprep.subr.bf16.mxu0 0
  %4333 = vmatpush1.bf16.msra.mxu0 0
  %4334 = vmatprep.subr.bf16.mxu0 0
  %4335 = vmatpush1.bf16.msra.mxu0 0
  %4336 = vmatprep.subr.bf16.mxu0 0
  %4337 = vmatpush1.bf16.msra.mxu0 0
  %4338 = vmatprep.mubr.bf16.mxu0 0
  %4339 = vmatmul.mubr.bf16.gmra.mrb[0].mxu0 %v4298
  %v4340 = vpop.f32.mrb[0].mxu0
  %v4341 = vadd.f32 0.0, %v4340
  %v4342 = vpop.f32.mrb[0].mxu0
  %v4343 = vpop.f32.mrb[0].mxu0
  %v4344 = vadd.f32 0.0, %v4343
  %v4345 = vpop.f32.mrb[0].mxu0
  %4346 = vmatprep.mubr.bf16.mxu0 0
  %4347 = vmatmul.mubr.bf16.gmra.mrb[0].mxu0 %v4301
  %v4348 = vpop.f32.mrb[0].mxu0
  %v4349 = vadd.f32 0.0, %v4348
  %v4350 = vpop.f32.mrb[0].mxu0
  %v4351 = vpop.f32.mrb[0].mxu0
  %v4352 = vadd.f32 0.0, %v4351
  %v4353 = vpop.f32.mrb[0].mxu0
  %4354 = vdwg.mxu0
  %v4356 = vsel %vm447, %v3642, 0
  %4358 = vmatprep.subr.bf16.mxu0 0
  %4359 = vmatpush1.bf16.msra.mxu0 %v4356
  %4360 = vmatprep.subr.bf16.mxu0 0
  %4361 = vmatpush1.bf16.msra.mxu0 0
  %4362 = vmatprep.subr.bf16.mxu0 0
  %4363 = vmatpush1.bf16.msra.mxu0 0
  %4364 = vmatprep.subr.bf16.mxu0 0
  %4365 = vmatpush1.bf16.msra.mxu0 0
  %4366 = vmatprep.subr.bf16.mxu0 0
  %4367 = vmatpush1.bf16.msra.mxu0 0
  %4368 = vmatprep.subr.bf16.mxu0 0
  %4369 = vmatpush1.bf16.msra.mxu0 0
  %4370 = vmatprep.subr.bf16.mxu0 0
  %4371 = vmatpush1.bf16.msra.mxu0 0
  %4372 = vmatprep.subr.bf16.mxu0 0
  %4373 = vmatpush1.bf16.msra.mxu0 0
  %4374 = vmatprep.subr.bf16.mxu0 0
  %4375 = vmatpush1.bf16.msra.mxu0 0
  %4376 = vmatprep.subr.bf16.mxu0 0
  %4377 = vmatpush1.bf16.msra.mxu0 0
  %4378 = vmatprep.subr.bf16.mxu0 0
  %4379 = vmatpush1.bf16.msra.mxu0 0
  %4380 = vmatprep.subr.bf16.mxu0 0
  %4381 = vmatpush1.bf16.msra.mxu0 0
  %4382 = vmatprep.subr.bf16.mxu0 0
  %4383 = vmatpush1.bf16.msra.mxu0 0
  %4384 = vmatprep.subr.bf16.mxu0 0
  %4385 = vmatpush1.bf16.msra.mxu0 0
  %4386 = vmatprep.subr.bf16.mxu0 0
  %4387 = vmatpush1.bf16.msra.mxu0 0
  %4388 = vmatprep.subr.bf16.mxu0 0
  %4389 = vmatpush1.bf16.msra.mxu0 0
  %4390 = vmatprep.mubr.bf16.mxu0 0
  %4391 = vmatmul.mubr.bf16.gmra.mrb[0].mxu0 %v4298
  %v4392 = vpop.f32.mrb[0].mxu0
  %v4393 = vadd.f32 0.0, %v4392
  %v4394 = vpop.f32.mrb[0].mxu0
  %v4395 = vpop.f32.mrb[0].mxu0
  %v4396 = vadd.f32 0.0, %v4395
  %v4397 = vpop.f32.mrb[0].mxu0
  %4398 = vmatprep.mubr.bf16.mxu0 0
  %4399 = vmatmul.mubr.bf16.gmra.mrb[0].mxu0 %v4301
  %v4400 = vpop.f32.mrb[0].mxu0
  %v4401 = vadd.f32 0.0, %v4400
  %v4402 = vpop.f32.mrb[0].mxu0
  %v4403 = vpop.f32.mrb[0].mxu0
  %v4404 = vadd.f32 0.0, %v4403
  %v4405 = vpop.f32.mrb[0].mxu0
  %4406 = vdwg.mxu0
  %v4407 = vsel %vm539, %v4341, -inf
  %4408 = vmax.xlane.f32.xlu0 %v4407
  %v4409 = vpop.xlane.xlu0 %4408
  %v4410 = vsel %vm539, %v4344, -inf
  %4411 = vmax.xlane.f32.xlu0 %v4410
  %v4412 = vpop.xlane.xlu0 %4411
  %v4413 = vsel %vm539, %v4349, -inf
  %4414 = vmax.xlane.f32.xlu0 %v4413
  %v4415 = vpop.xlane.xlu0 %4414
  %v4416 = vsel %vm539, %v4352, -inf
  %4417 = vmax.xlane.f32.xlu0 %v4416
  %v4418 = vpop.xlane.xlu0 %4417
  %v4419 = vsel %vm539, %v4393, -inf
  %4420 = vmax.xlane.f32.xlu0 %v4419
  %v4421 = vpop.xlane.xlu0 %4420
  %v4422 = vsel %vm539, %v4396, -inf
  %4423 = vmax.xlane.f32.xlu0 %v4422
  %v4424 = vpop.xlane.xlu0 %4423
  %v4425 = vsel %vm539, %v4401, -inf
  %4426 = vmax.xlane.f32.xlu0 %v4425
  %v4427 = vpop.xlane.xlu0 %4426
  %v4428 = vsel %vm539, %v4404, -inf
  %4429 = vmax.xlane.f32.xlu0 %v4428
  %v4430 = vpop.xlane.xlu0 %4429
  %v4431 = vsub.f32 %v4341, %v4409
  %v4432 = vsub.f32 %v4344, %v4412
  %v4433 = vsub.f32 %v4349, %v4415
  %v4434 = vsub.f32 %v4352, %v4418
  %v4435 = vsub.f32 %v4393, %v4421
  %v4436 = vsub.f32 %v4396, %v4424
  %v4437 = vsub.f32 %v4401, %v4427
  %v4438 = vsub.f32 %v4404, %v4430
  %v4439 = vmul.f32 %v4431, 1.442695
  %v4440 = vpow.pop %v4439
  %v4441 = vmul.f32 %v4432, 1.442695
  %v4442 = vpow.pop %v4441
  %v4443 = vmul.f32 %v4433, 1.442695
  %v4444 = vpow.pop %v4443
  %v4445 = vmul.f32 %v4434, 1.442695
  %v4446 = vpow.pop %v4445
  %v4447 = vmul.f32 %v4435, 1.442695
  %v4448 = vpow.pop %v4447
  %v4449 = vmul.f32 %v4436, 1.442695
  %v4450 = vpow.pop %v4449
  %v4451 = vmul.f32 %v4437, 1.442695
  %v4452 = vpow.pop %v4451
  %v4453 = vmul.f32 %v4438, 1.442695
  %v4454 = vpow.pop %v4453
  %v4455 = vsel %vm539, %v4440, 0.0
  %4456 = vadd.xlane.f32.xlu0 %v4455
  %v4457 = vpop.xlane.xlu0 %4456
  %v4458 = vsel %vm539, %v4442, 0.0
  %4459 = vadd.xlane.f32.xlu0 %v4458
  %v4460 = vpop.xlane.xlu0 %4459
  %v4461 = vsel %vm539, %v4444, 0.0
  %4462 = vadd.xlane.f32.xlu0 %v4461
  %v4463 = vpop.xlane.xlu0 %4462
  %v4464 = vsel %vm539, %v4446, 0.0
  %4465 = vadd.xlane.f32.xlu0 %v4464
  %v4466 = vpop.xlane.xlu0 %4465
  %v4467 = vsel %vm539, %v4448, 0.0
  %4468 = vadd.xlane.f32.xlu0 %v4467
  %v4469 = vpop.xlane.xlu0 %4468
  %v4470 = vsel %vm539, %v4450, 0.0
  %4471 = vadd.xlane.f32.xlu0 %v4470
  %v4472 = vpop.xlane.xlu0 %4471
  %v4473 = vsel %vm539, %v4452, 0.0
  %4474 = vadd.xlane.f32.xlu0 %v4473
  %v4475 = vpop.xlane.xlu0 %4474
  %v4476 = vsel %vm539, %v4454, 0.0
  %4477 = vadd.xlane.f32.xlu0 %v4476
  %v4478 = vpop.xlane.xlu0 %4477
  %v4479 = vrcp.pop %v4457
  %v4480 = vrcp.pop %v4460
  %v4481 = vrcp.pop %v4463
  %v4482 = vrcp.pop %v4466
  %v4483 = vrcp.pop %v4469
  %v4484 = vrcp.pop %v4472
  %v4485 = vrcp.pop %v4475
  %v4486 = vrcp.pop %v4478
  %v4487 = vmul.f32 %v4440, %v4479
  %v4488 = vmul.f32 %v4442, %v4480
  %v4489 = vmul.f32 %v4444, %v4481
  %v4490 = vmul.f32 %v4446, %v4482
  %v4491 = vmul.f32 %v4448, %v4483
  %v4492 = vmul.f32 %v4450, %v4484
  %v4493 = vmul.f32 %v4452, %v4485
  %v4494 = vmul.f32 %v4454, %v4486
  %v4495 = vpack.c.bf16 %v4488, %v4487
  %v4496 = vpack.c.bf16 %v4490, %v4489
  %v4497 = vpack.c.bf16 %v4492, %v4491
  %v4498 = vpack.c.bf16 %v4494, %v4493
  %4499 = vrot.lane.b32.xlu0 %v3643, 80
  %v4500 = vpop.permute.xlu0 %4499
  %v4503 = vsel %vm539, %v4495, 0
  %v4506 = vsel %vm539, %v4496, 0
  %4508 = vmatprep.subr.bf16.mxu0 0
  %4509 = vmatpush1.bf16.msra.mxu0 %v4500
  %4510 = vmatprep.subr.bf16.mxu0 0
  %4511 = vmatpush1.bf16.msra.mxu0 0
  %4512 = vmatprep.subr.bf16.mxu0 0
  %4513 = vmatpush1.bf16.msra.mxu0 0
  %4514 = vmatprep.subr.bf16.mxu0 0
  %4515 = vmatpush1.bf16.msra.mxu0 0
  %4516 = vmatprep.subr.bf16.mxu0 0
  %4517 = vmatpush1.bf16.msra.mxu0 0
  %4518 = vmatprep.subr.bf16.mxu0 0
  %4519 = vmatpush1.bf16.msra.mxu0 0
  %4520 = vmatprep.subr.bf16.mxu0 0
  %4521 = vmatpush1.bf16.msra.mxu0 0
  %4522 = vmatprep.subr.bf16.mxu0 0
  %4523 = vmatpush1.bf16.msra.mxu0 0
  %4524 = vmatprep.subr.bf16.mxu0 0
  %4525 = vmatpush1.bf16.msra.mxu0 0
  %4526 = vmatprep.subr.bf16.mxu0 0
  %4527 = vmatpush1.bf16.msra.mxu0 0
  %4528 = vmatprep.subr.bf16.mxu0 0
  %4529 = vmatpush1.bf16.msra.mxu0 0
  %4530 = vmatprep.subr.bf16.mxu0 0
  %4531 = vmatpush1.bf16.msra.mxu0 0
  %4532 = vmatprep.subr.bf16.mxu0 0
  %4533 = vmatpush1.bf16.msra.mxu0 0
  %4534 = vmatprep.subr.bf16.mxu0 0
  %4535 = vmatpush1.bf16.msra.mxu0 0
  %4536 = vmatprep.subr.bf16.mxu0 0
  %4537 = vmatpush1.bf16.msra.mxu0 0
  %4538 = vmatprep.subr.bf16.mxu0 0
  %4539 = vmatpush1.bf16.msra.mxu0 0
  %4540 = vmatprep.mubr.bf16.mxu0 0
  %4541 = vmatmul.mubr.bf16.gmra.mrb[0].mxu0 %v4503
  %v4542 = vpop.f32.mrb[0].mxu0
  %v4543 = vadd.f32 0.0, %v4542
  %v4544 = vpop.f32.mrb[0].mxu0
  %v4545 = vpop.f32.mrb[0].mxu0
  %v4546 = vadd.f32 0.0, %v4545
  %v4547 = vpop.f32.mrb[0].mxu0
  %4548 = vmatprep.mubr.bf16.mxu0 0
  %4549 = vmatmul.mubr.bf16.gmra.mrb[0].mxu0 %v4506
  %v4550 = vpop.f32.mrb[0].mxu0
  %v4551 = vadd.f32 0.0, %v4550
  %v4552 = vpop.f32.mrb[0].mxu0
  %v4553 = vpop.f32.mrb[0].mxu0
  %v4554 = vadd.f32 0.0, %v4553
  %v4555 = vpop.f32.mrb[0].mxu0
  %4556 = vdwg.mxu0
  %4557 = vrot.lane.b32.xlu0 %v3644, 80
  %v4558 = vpop.permute.xlu0 %4557
  %v4561 = vsel %vm539, %v4497, 0
  %v4564 = vsel %vm539, %v4498, 0
  %4566 = vmatprep.subr.bf16.mxu0 0
  %4567 = vmatpush1.bf16.msra.mxu0 %v4558
  %4568 = vmatprep.subr.bf16.mxu0 0
  %4569 = vmatpush1.bf16.msra.mxu0 0
  %4570 = vmatprep.subr.bf16.mxu0 0
  %4571 = vmatpush1.bf16.msra.mxu0 0
  %4572 = vmatprep.subr.bf16.mxu0 0
  %4573 = vmatpush1.bf16.msra.mxu0 0
  %4574 = vmatprep.subr.bf16.mxu0 0
  %4575 = vmatpush1.bf16.msra.mxu0 0
  %4576 = vmatprep.subr.bf16.mxu0 0
  %4577 = vmatpush1.bf16.msra.mxu0 0
  %4578 = vmatprep.subr.bf16.mxu0 0
  %4579 = vmatpush1.bf16.msra.mxu0 0
  %4580 = vmatprep.subr.bf16.mxu0 0
  %4581 = vmatpush1.bf16.msra.mxu0 0
  %4582 = vmatprep.subr.bf16.mxu0 0
  %4583 = vmatpush1.bf16.msra.mxu0 0
  %4584 = vmatprep.subr.bf16.mxu0 0
  %4585 = vmatpush1.bf16.msra.mxu0 0
  %4586 = vmatprep.subr.bf16.mxu0 0
  %4587 = vmatpush1.bf16.msra.mxu0 0
  %4588 = vmatprep.subr.bf16.mxu0 0
  %4589 = vmatpush1.bf16.msra.mxu0 0
  %4590 = vmatprep.subr.bf16.mxu0 0
  %4591 = vmatpush1.bf16.msra.mxu0 0
  %4592 = vmatprep.subr.bf16.mxu0 0
  %4593 = vmatpush1.bf16.msra.mxu0 0
  %4594 = vmatprep.subr.bf16.mxu0 0
  %4595 = vmatpush1.bf16.msra.mxu0 0
  %4596 = vmatprep.subr.bf16.mxu0 0
  %4597 = vmatpush1.bf16.msra.mxu0 0
  %4598 = vmatprep.mubr.bf16.mxu0 0
  %4599 = vmatmul.mubr.bf16.gmra.mrb[0].mxu0 %v4561
  %v4600 = vpop.f32.mrb[0].mxu0
  %v4601 = vadd.f32 0.0, %v4600
  %v4602 = vpop.f32.mrb[0].mxu0
  %v4603 = vpop.f32.mrb[0].mxu0
  %v4604 = vadd.f32 0.0, %v4603
  %v4605 = vpop.f32.mrb[0].mxu0
  %4606 = vmatprep.mubr.bf16.mxu0 0
  %4607 = vmatmul.mubr.bf16.gmra.mrb[0].mxu0 %v4564
  %v4608 = vpop.f32.mrb[0].mxu0
  %v4609 = vadd.f32 0.0, %v4608
  %v4610 = vpop.f32.mrb[0].mxu0
  %v4611 = vpop.f32.mrb[0].mxu0
  %v4612 = vadd.f32 0.0, %v4611
  %v4613 = vpop.f32.mrb[0].mxu0
  %4614 = vdwg.mxu0
  %4615 = vrot.lane.b32.xlu0 %v3637, 104
  %v4616 = vpop.permute.xlu0 %4615
  %4617 = vrot.lane.b32.xlu0 %v3638, 104
  %v4618 = vpop.permute.xlu0 %4617
  %v4620 = vrot.slane %v3640, 4
  %v4622 = vsel %vm443, %v4616, 0
  %v4625 = vsel %vm443, %v4618, 0
  %v4628 = vsel %vm447, %v4620, 0
  %4630 = vmatprep.subr.bf16.mxu0 0
  %4631 = vmatpush1.bf16.msra.mxu0 %v4628
  %4632 = vmatprep.subr.bf16.mxu0 0
  %4633 = vmatpush1.bf16.msra.mxu0 0
  %4634 = vmatprep.subr.bf16.mxu0 0
  %4635 = vmatpush1.bf16.msra.mxu0 0
  %4636 = vmatprep.subr.bf16.mxu0 0
  %4637 = vmatpush1.bf16.msra.mxu0 0
  %4638 = vmatprep.subr.bf16.mxu0 0
  %4639 = vmatpush1.bf16.msra.mxu0 0
  %4640 = vmatprep.subr.bf16.mxu0 0
  %4641 = vmatpush1.bf16.msra.mxu0 0
  %4642 = vmatprep.subr.bf16.mxu0 0
  %4643 = vmatpush1.bf16.msra.mxu0 0
  %4644 = vmatprep.subr.bf16.mxu0 0
  %4645 = vmatpush1.bf16.msra.mxu0 0
  %4646 = vmatprep.subr.bf16.mxu0 0
  %4647 = vmatpush1.bf16.msra.mxu0 0
  %4648 = vmatprep.subr.bf16.mxu0 0
  %4649 = vmatpush1.bf16.msra.mxu0 0
  %4650 = vmatprep.subr.bf16.mxu0 0
  %4651 = vmatpush1.bf16.msra.mxu0 0
  %4652 = vmatprep.subr.bf16.mxu0 0
  %4653 = vmatpush1.bf16.msra.mxu0 0
  %4654 = vmatprep.subr.bf16.mxu0 0
  %4655 = vmatpush1.bf16.msra.mxu0 0
  %4656 = vmatprep.subr.bf16.mxu0 0
  %4657 = vmatpush1.bf16.msra.mxu0 0
  %4658 = vmatprep.subr.bf16.mxu0 0
  %4659 = vmatpush1.bf16.msra.mxu0 0
  %4660 = vmatprep.subr.bf16.mxu0 0
  %4661 = vmatpush1.bf16.msra.mxu0 0
  %4662 = vmatprep.mubr.bf16.mxu0 0
  %4663 = vmatmul.mubr.bf16.gmra.mrb[0].mxu0 %v4622
  %v4664 = vpop.f32.mrb[0].mxu0
  %v4665 = vadd.f32 0.0, %v4664
  %v4666 = vpop.f32.mrb[0].mxu0
  %v4667 = vpop.f32.mrb[0].mxu0
  %v4668 = vadd.f32 0.0, %v4667
  %v4669 = vpop.f32.mrb[0].mxu0
  %4670 = vmatprep.mubr.bf16.mxu0 0
  %4671 = vmatmul.mubr.bf16.gmra.mrb[0].mxu0 %v4625
  %v4672 = vpop.f32.mrb[0].mxu0
  %v4673 = vadd.f32 0.0, %v4672
  %v4674 = vpop.f32.mrb[0].mxu0
  %v4675 = vpop.f32.mrb[0].mxu0
  %v4676 = vadd.f32 0.0, %v4675
  %v4677 = vpop.f32.mrb[0].mxu0
  %4678 = vdwg.mxu0
  %v4680 = vrot.slane %v3642, 4
  %v4682 = vsel %vm447, %v4680, 0
  %4684 = vmatprep.subr.bf16.mxu0 0
  %4685 = vmatpush1.bf16.msra.mxu0 %v4682
  %4686 = vmatprep.subr.bf16.mxu0 0
  %4687 = vmatpush1.bf16.msra.mxu0 0
  %4688 = vmatprep.subr.bf16.mxu0 0
  %4689 = vmatpush1.bf16.msra.mxu0 0
  %4690 = vmatprep.subr.bf16.mxu0 0
  %4691 = vmatpush1.bf16.msra.mxu0 0
  %4692 = vmatprep.subr.bf16.mxu0 0
  %4693 = vmatpush1.bf16.msra.mxu0 0
  %4694 = vmatprep.subr.bf16.mxu0 0
  %4695 = vmatpush1.bf16.msra.mxu0 0
  %4696 = vmatprep.subr.bf16.mxu0 0
  %4697 = vmatpush1.bf16.msra.mxu0 0
  %4698 = vmatprep.subr.bf16.mxu0 0
  %4699 = vmatpush1.bf16.msra.mxu0 0
  %4700 = vmatprep.subr.bf16.mxu0 0
  %4701 = vmatpush1.bf16.msra.mxu0 0
  %4702 = vmatprep.subr.bf16.mxu0 0
  %4703 = vmatpush1.bf16.msra.mxu0 0
  %4704 = vmatprep.subr.bf16.mxu0 0
  %4705 = vmatpush1.bf16.msra.mxu0 0
  %4706 = vmatprep.subr.bf16.mxu0 0
  %4707 = vmatpush1.bf16.msra.mxu0 0
  %4708 = vmatprep.subr.bf16.mxu0 0
  %4709 = vmatpush1.bf16.msra.mxu0 0
  %4710 = vmatprep.subr.bf16.mxu0 0
  %4711 = vmatpush1.bf16.msra.mxu0 0
  %4712 = vmatprep.subr.bf16.mxu0 0
  %4713 = vmatpush1.bf16.msra.mxu0 0
  %4714 = vmatprep.subr.bf16.mxu0 0
  %4715 = vmatpush1.bf16.msra.mxu0 0
  %4716 = vmatprep.mubr.bf16.mxu0 0
  %4717 = vmatmul.mubr.bf16.gmra.mrb[0].mxu0 %v4622
  %v4718 = vpop.f32.mrb[0].mxu0
  %v4719 = vadd.f32 0.0, %v4718
  %v4720 = vpop.f32.mrb[0].mxu0
  %v4721 = vpop.f32.mrb[0].mxu0
  %v4722 = vadd.f32 0.0, %v4721
  %v4723 = vpop.f32.mrb[0].mxu0
  %4724 = vmatprep.mubr.bf16.mxu0 0
  %4725 = vmatmul.mubr.bf16.gmra.mrb[0].mxu0 %v4625
  %v4726 = vpop.f32.mrb[0].mxu0
  %v4727 = vadd.f32 0.0, %v4726
  %v4728 = vpop.f32.mrb[0].mxu0
  %v4729 = vpop.f32.mrb[0].mxu0
  %v4730 = vadd.f32 0.0, %v4729
  %v4731 = vpop.f32.mrb[0].mxu0
  %4732 = vdwg.mxu0
  %v4733 = vsel %vm539, %v4665, -inf
  %4734 = vmax.xlane.f32.xlu0 %v4733
  %v4735 = vpop.xlane.xlu0 %4734
  %v4736 = vsel %vm539, %v4668, -inf
  %4737 = vmax.xlane.f32.xlu0 %v4736
  %v4738 = vpop.xlane.xlu0 %4737
  %v4739 = vsel %vm539, %v4673, -inf
  %4740 = vmax.xlane.f32.xlu0 %v4739
  %v4741 = vpop.xlane.xlu0 %4740
  %v4742 = vsel %vm539, %v4676, -inf
  %4743 = vmax.xlane.f32.xlu0 %v4742
  %v4744 = vpop.xlane.xlu0 %4743
  %v4745 = vsel %vm539, %v4719, -inf
  %4746 = vmax.xlane.f32.xlu0 %v4745
  %v4747 = vpop.xlane.xlu0 %4746
  %v4748 = vsel %vm539, %v4722, -inf
  %4749 = vmax.xlane.f32.xlu0 %v4748
  %v4750 = vpop.xlane.xlu0 %4749
  %v4751 = vsel %vm539, %v4727, -inf
  %4752 = vmax.xlane.f32.xlu0 %v4751
  %v4753 = vpop.xlane.xlu0 %4752
  %v4754 = vsel %vm539, %v4730, -inf
  %4755 = vmax.xlane.f32.xlu0 %v4754
  %v4756 = vpop.xlane.xlu0 %4755
  %v4757 = vsub.f32 %v4665, %v4735
  %v4758 = vsub.f32 %v4668, %v4738
  %v4759 = vsub.f32 %v4673, %v4741
  %v4760 = vsub.f32 %v4676, %v4744
  %v4761 = vsub.f32 %v4719, %v4747
  %v4762 = vsub.f32 %v4722, %v4750
  %v4763 = vsub.f32 %v4727, %v4753
  %v4764 = vsub.f32 %v4730, %v4756
  %v4765 = vmul.f32 %v4757, 1.442695
  %v4766 = vpow.pop %v4765
  %v4767 = vmul.f32 %v4758, 1.442695
  %v4768 = vpow.pop %v4767
  %v4769 = vmul.f32 %v4759, 1.442695
  %v4770 = vpow.pop %v4769
  %v4771 = vmul.f32 %v4760, 1.442695
  %v4772 = vpow.pop %v4771
  %v4773 = vmul.f32 %v4761, 1.442695
  %v4774 = vpow.pop %v4773
  %v4775 = vmul.f32 %v4762, 1.442695
  %v4776 = vpow.pop %v4775
  %v4777 = vmul.f32 %v4763, 1.442695
  %v4778 = vpow.pop %v4777
  %v4779 = vmul.f32 %v4764, 1.442695
  %v4780 = vpow.pop %v4779
  %v4781 = vsel %vm539, %v4766, 0.0
  %4782 = vadd.xlane.f32.xlu0 %v4781
  %v4783 = vpop.xlane.xlu0 %4782
  %v4784 = vsel %vm539, %v4768, 0.0
  %4785 = vadd.xlane.f32.xlu0 %v4784
  %v4786 = vpop.xlane.xlu0 %4785
  %v4787 = vsel %vm539, %v4770, 0.0
  %4788 = vadd.xlane.f32.xlu0 %v4787
  %v4789 = vpop.xlane.xlu0 %4788
  %v4790 = vsel %vm539, %v4772, 0.0
  %4791 = vadd.xlane.f32.xlu0 %v4790
  %v4792 = vpop.xlane.xlu0 %4791
  %v4793 = vsel %vm539, %v4774, 0.0
  %4794 = vadd.xlane.f32.xlu0 %v4793
  %v4795 = vpop.xlane.xlu0 %4794
  %v4796 = vsel %vm539, %v4776, 0.0
  %4797 = vadd.xlane.f32.xlu0 %v4796
  %v4798 = vpop.xlane.xlu0 %4797
  %v4799 = vsel %vm539, %v4778, 0.0
  %4800 = vadd.xlane.f32.xlu0 %v4799
  %v4801 = vpop.xlane.xlu0 %4800
  %v4802 = vsel %vm539, %v4780, 0.0
  %4803 = vadd.xlane.f32.xlu0 %v4802
  %v4804 = vpop.xlane.xlu0 %4803
  %v4805 = vrcp.pop %v4783
  %v4806 = vrcp.pop %v4786
  %v4807 = vrcp.pop %v4789
  %v4808 = vrcp.pop %v4792
  %v4809 = vrcp.pop %v4795
  %v4810 = vrcp.pop %v4798
  %v4811 = vrcp.pop %v4801
  %v4812 = vrcp.pop %v4804
  %v4813 = vmul.f32 %v4766, %v4805
  %v4814 = vmul.f32 %v4768, %v4806
  %v4815 = vmul.f32 %v4770, %v4807
  %v4816 = vmul.f32 %v4772, %v4808
  %v4817 = vmul.f32 %v4774, %v4809
  %v4818 = vmul.f32 %v4776, %v4810
  %v4819 = vmul.f32 %v4778, %v4811
  %v4820 = vmul.f32 %v4780, %v4812
  %v4821 = vpack.c.bf16 %v4814, %v4813
  %v4822 = vpack.c.bf16 %v4816, %v4815
  %v4823 = vpack.c.bf16 %v4818, %v4817
  %v4824 = vpack.c.bf16 %v4820, %v4819
  %4825 = vrot.lane.b32.xlu0 %v3643, 72
  %v4826 = vpop.permute.xlu0 %4825
  %v4829 = vsel %vm539, %v4821, 0
  %v4832 = vsel %vm539, %v4822, 0
  %4834 = vmatprep.subr.bf16.mxu0 0
  %4835 = vmatpush1.bf16.msra.mxu0 %v4826
  %4836 = vmatprep.subr.bf16.mxu0 0
  %4837 = vmatpush1.bf16.msra.mxu0 0
  %4838 = vmatprep.subr.bf16.mxu0 0
  %4839 = vmatpush1.bf16.msra.mxu0 0
  %4840 = vmatprep.subr.bf16.mxu0 0
  %4841 = vmatpush1.bf16.msra.mxu0 0
  %4842 = vmatprep.subr.bf16.mxu0 0
  %4843 = vmatpush1.bf16.msra.mxu0 0
  %4844 = vmatprep.subr.bf16.mxu0 0
  %4845 = vmatpush1.bf16.msra.mxu0 0
  %4846 = vmatprep.subr.bf16.mxu0 0
  %4847 = vmatpush1.bf16.msra.mxu0 0
  %4848 = vmatprep.subr.bf16.mxu0 0
  %4849 = vmatpush1.bf16.msra.mxu0 0
  %4850 = vmatprep.subr.bf16.mxu0 0
  %4851 = vmatpush1.bf16.msra.mxu0 0
  %4852 = vmatprep.subr.bf16.mxu0 0
  %4853 = vmatpush1.bf16.msra.mxu0 0
  %4854 = vmatprep.subr.bf16.mxu0 0
  %4855 = vmatpush1.bf16.msra.mxu0 0
  %4856 = vmatprep.subr.bf16.mxu0 0
  %4857 = vmatpush1.bf16.msra.mxu0 0
  %4858 = vmatprep.subr.bf16.mxu0 0
  %4859 = vmatpush1.bf16.msra.mxu0 0
  %4860 = vmatprep.subr.bf16.mxu0 0
  %4861 = vmatpush1.bf16.msra.mxu0 0
  %4862 = vmatprep.subr.bf16.mxu0 0
  %4863 = vmatpush1.bf16.msra.mxu0 0
  %4864 = vmatprep.subr.bf16.mxu0 0
  %4865 = vmatpush1.bf16.msra.mxu0 0
  %4866 = vmatprep.mubr.bf16.mxu0 0
  %4867 = vmatmul.mubr.bf16.gmra.mrb[0].mxu0 %v4829
  %v4868 = vpop.f32.mrb[0].mxu0
  %v4869 = vadd.f32 0.0, %v4868
  %v4870 = vpop.f32.mrb[0].mxu0
  %v4871 = vpop.f32.mrb[0].mxu0
  %v4872 = vadd.f32 0.0, %v4871
  %v4873 = vpop.f32.mrb[0].mxu0
  %4874 = vmatprep.mubr.bf16.mxu0 0
  %4875 = vmatmul.mubr.bf16.gmra.mrb[0].mxu0 %v4832
  %v4876 = vpop.f32.mrb[0].mxu0
  %v4877 = vadd.f32 0.0, %v4876
  %v4878 = vpop.f32.mrb[0].mxu0
  %v4879 = vpop.f32.mrb[0].mxu0
  %v4880 = vadd.f32 0.0, %v4879
  %v4881 = vpop.f32.mrb[0].mxu0
  %4882 = vdwg.mxu0
  %4883 = vrot.lane.b32.xlu0 %v3644, 72
  %v4884 = vpop.permute.xlu0 %4883
  %v4887 = vsel %vm539, %v4823, 0
  %v4890 = vsel %vm539, %v4824, 0
  %4892 = vmatprep.subr.bf16.mxu0 0
  %4893 = vmatpush1.bf16.msra.mxu0 %v4884
  %4894 = vmatprep.subr.bf16.mxu0 0
  %4895 = vmatpush1.bf16.msra.mxu0 0
  %4896 = vmatprep.subr.bf16.mxu0 0
  %4897 = vmatpush1.bf16.msra.mxu0 0
  %4898 = vmatprep.subr.bf16.mxu0 0
  %4899 = vmatpush1.bf16.msra.mxu0 0
  %4900 = vmatprep.subr.bf16.mxu0 0
  %4901 = vmatpush1.bf16.msra.mxu0 0
  %4902 = vmatprep.subr.bf16.mxu0 0
  %4903 = vmatpush1.bf16.msra.mxu0 0
  %4904 = vmatprep.subr.bf16.mxu0 0
  %4905 = vmatpush1.bf16.msra.mxu0 0
  %4906 = vmatprep.subr.bf16.mxu0 0
  %4907 = vmatpush1.bf16.msra.mxu0 0
  %4908 = vmatprep.subr.bf16.mxu0 0
  %4909 = vmatpush1.bf16.msra.mxu0 0
  %4910 = vmatprep.subr.bf16.mxu0 0
  %4911 = vmatpush1.bf16.msra.mxu0 0
  %4912 = vmatprep.subr.bf16.mxu0 0
  %4913 = vmatpush1.bf16.msra.mxu0 0
  %4914 = vmatprep.subr.bf16.mxu0 0
  %4915 = vmatpush1.bf16.msra.mxu0 0
  %4916 = vmatprep.subr.bf16.mxu0 0
  %4917 = vmatpush1.bf16.msra.mxu0 0
  %4918 = vmatprep.subr.bf16.mxu0 0
  %4919 = vmatpush1.bf16.msra.mxu0 0
  %4920 = vmatprep.subr.bf16.mxu0 0
  %4921 = vmatpush1.bf16.msra.mxu0 0
  %4922 = vmatprep.subr.bf16.mxu0 0
  %4923 = vmatpush1.bf16.msra.mxu0 0
  %4924 = vmatprep.mubr.bf16.mxu0 0
  %4925 = vmatmul.mubr.bf16.gmra.mrb[0].mxu0 %v4887
  %v4926 = vpop.f32.mrb[0].mxu0
  %v4927 = vadd.f32 0.0, %v4926
  %v4928 = vpop.f32.mrb[0].mxu0
  %v4929 = vpop.f32.mrb[0].mxu0
  %v4930 = vadd.f32 0.0, %v4929
  %v4931 = vpop.f32.mrb[0].mxu0
  %4932 = vmatprep.mubr.bf16.mxu0 0
  %4933 = vmatmul.mubr.bf16.gmra.mrb[0].mxu0 %v4890
  %v4934 = vpop.f32.mrb[0].mxu0
  %v4935 = vadd.f32 0.0, %v4934
  %v4936 = vpop.f32.mrb[0].mxu0
  %v4937 = vpop.f32.mrb[0].mxu0
  %v4938 = vadd.f32 0.0, %v4937
  %v4939 = vpop.f32.mrb[0].mxu0
  %4940 = vdwg.mxu0
  %4949 = vrot.lane.b32.xlu0 %v4221, 8
  %v4950 = vpop.permute.xlu0 %4949
  %4951 = vrot.lane.b32.xlu0 %v4224, 8
  %v4952 = vpop.permute.xlu0 %4951
  %4953 = vrot.lane.b32.xlu0 %v4229, 8
  %v4954 = vpop.permute.xlu0 %4953
  %4955 = vrot.lane.b32.xlu0 %v4232, 8
  %v4956 = vpop.permute.xlu0 %4955
  %4957 = vrot.lane.b32.xlu0 %v4279, 8
  %v4958 = vpop.permute.xlu0 %4957
  %4959 = vrot.lane.b32.xlu0 %v4282, 8
  %v4960 = vpop.permute.xlu0 %4959
  %4961 = vrot.lane.b32.xlu0 %v4287, 8
  %v4962 = vpop.permute.xlu0 %4961
  %4963 = vrot.lane.b32.xlu0 %v4290, 8
  %v4964 = vpop.permute.xlu0 %4963
  %4981 = vrot.lane.b32.xlu0 %v4543, 16
  %v4982 = vpop.permute.xlu0 %4981
  %4983 = vrot.lane.b32.xlu0 %v4546, 16
  %v4984 = vpop.permute.xlu0 %4983
  %4985 = vrot.lane.b32.xlu0 %v4551, 16
  %v4986 = vpop.permute.xlu0 %4985
  %4987 = vrot.lane.b32.xlu0 %v4554, 16
  %v4988 = vpop.permute.xlu0 %4987
  %4989 = vrot.lane.b32.xlu0 %v4601, 16
  %v4990 = vpop.permute.xlu0 %4989
  %4991 = vrot.lane.b32.xlu0 %v4604, 16
  %v4992 = vpop.permute.xlu0 %4991
  %4993 = vrot.lane.b32.xlu0 %v4609, 16
  %v4994 = vpop.permute.xlu0 %4993
  %4995 = vrot.lane.b32.xlu0 %v4612, 16
  %v4996 = vpop.permute.xlu0 %4995
  %5013 = vrot.lane.b32.xlu0 %v4869, 24
  %v5014 = vpop.permute.xlu0 %5013
  %5015 = vrot.lane.b32.xlu0 %v4872, 24
  %v5016 = vpop.permute.xlu0 %5015
  %5017 = vrot.lane.b32.xlu0 %v4877, 24
  %v5018 = vpop.permute.xlu0 %5017
  %5019 = vrot.lane.b32.xlu0 %v4880, 24
  %v5020 = vpop.permute.xlu0 %5019
  %5021 = vrot.lane.b32.xlu0 %v4927, 24
  %v5022 = vpop.permute.xlu0 %5021
  %5023 = vrot.lane.b32.xlu0 %v4930, 24
  %v5024 = vpop.permute.xlu0 %5023
  %5025 = vrot.lane.b32.xlu0 %v4935, 24
  %v5026 = vpop.permute.xlu0 %5025
  %5027 = vrot.lane.b32.xlu0 %v4938, 24
  %v5028 = vpop.permute.xlu0 %5027
  %v5037 = vsel %vm443, %v3892, %v4950
  %v5038 = vsel %vm443, %v3895, %v4952
  %v5039 = vsel %vm443, %v3900, %v4954
  %v5040 = vsel %vm443, %v3903, %v4956
  %v5041 = vsel %vm443, %v3951, %v4958
  %v5042 = vsel %vm443, %v3954, %v4960
  %v5043 = vsel %vm443, %v3959, %v4962
  %v5044 = vsel %vm443, %v3962, %v4964
  %v5045 = vsel %vm539, %v5037, %v4982
  %v5046 = vsel %vm539, %v5038, %v4984
  %v5047 = vsel %vm539, %v5039, %v4986
  %v5048 = vsel %vm539, %v5040, %v4988
  %v5049 = vsel %vm539, %v5041, %v4990
  %v5050 = vsel %vm539, %v5042, %v4992
  %v5051 = vsel %vm539, %v5043, %v4994
  %v5052 = vsel %vm539, %v5044, %v4996
  %v5053 = vsel %vm1460, %v5045, %v5014
  %v5054 = vsel %vm1460, %v5046, %v5016
  %v5055 = vsel %vm1460, %v5047, %v5018
  %v5056 = vsel %vm1460, %v5048, %v5020
  %v5057 = vsel %vm1460, %v5049, %v5022
  %v5058 = vsel %vm1460, %v5050, %v5024
  %v5059 = vsel %vm1460, %v5051, %v5026
  %v5060 = vsel %vm1460, %v5052, %v5028
  %v5061 = vpack.c.bf16 %v5054, %v5053
  %v5062 = vpack.c.bf16 %v5056, %v5055
  %v5063 = vpack.c.bf16 %v5058, %v5057
  %v5064 = vpack.c.bf16 %v5060, %v5059
  %v5066 = vlaneseq
  %v5067 = vshrl.u32 %v5066, 7
  %v5068 = vsub.s32 0, %v5067
  %v5069 = vrot.slane %v3572, %v5068
  %v5075 = vunpack.c.l.b16 %v3568
  %v5076 = vunpack.c.l.b16 %v3569
  %v5077 = vunpack.c.l.b16 %v3570
  %v5078 = vunpack.c.l.b16 %v3571
  %v5079 = vpack.c.b16 %v5076, %v5075
  %v5080 = vpack.c.b16 %v5078, %v5077
  %v5084 = vsel %vm290, %v5061, 0
  %v5087 = vsel %vm290, %v5062, 0
  %v5090 = vsel %vm290, %v5063, 0
  %v5093 = vsel %vm290, %v5064, 0
  %5095 = vmatprep.subr.bf16.mxu0 0
  %5096 = vmatpush1.bf16.msra.mxu0 %v5079
  %5097 = vmatprep.subr.bf16.mxu0 0
  %5098 = vmatpush1.bf16.msra.mxu0 %v5080
  %5099 = vmatprep.subr.bf16.mxu0 0
  %5100 = vmatpush1.bf16.msra.mxu0 0
  %5101 = vmatprep.subr.bf16.mxu0 0
  %5102 = vmatpush1.bf16.msra.mxu0 0
  %5103 = vmatprep.subr.bf16.mxu0 0
  %5104 = vmatpush1.bf16.msra.mxu0 0
  %5105 = vmatprep.subr.bf16.mxu0 0
  %5106 = vmatpush1.bf16.msra.mxu0 0
  %5107 = vmatprep.subr.bf16.mxu0 0
  %5108 = vmatpush1.bf16.msra.mxu0 0
  %5109 = vmatprep.subr.bf16.mxu0 0
  %5110 = vmatpush1.bf16.msra.mxu0 0
  %5111 = vmatprep.subr.bf16.mxu0 0
  %5112 = vmatpush1.bf16.msra.mxu0 0
  %5113 = vmatprep.subr.bf16.mxu0 0
  %5114 = vmatpush1.bf16.msra.mxu0 0
  %5115 = vmatprep.subr.bf16.mxu0 0
  %5116 = vmatpush1.bf16.msra.mxu0 0
  %5117 = vmatprep.subr.bf16.mxu0 0
  %5118 = vmatpush1.bf16.msra.mxu0 0
  %5119 = vmatprep.subr.bf16.mxu0 0
  %5120 = vmatpush1.bf16.msra.mxu0 0
  %5121 = vmatprep.subr.bf16.mxu0 0
  %5122 = vmatpush1.bf16.msra.mxu0 0
  %5123 = vmatprep.subr.bf16.mxu0 0
  %5124 = vmatpush1.bf16.msra.mxu0 0
  %5125 = vmatprep.subr.bf16.mxu0 0
  %5126 = vmatpush1.bf16.msra.mxu0 0
  %5127 = vmatprep.mubr.bf16.mxu0 0
  %5128 = vmatmul.mubr.bf16.gmra.mrb[0].mxu0 %v5084
  %v5129 = vpop.f32.mrb[0].mxu0
  %v5130 = vadd.f32 %v5069, %v5129
  %v5131 = vpop.f32.mrb[0].mxu0
  %v5132 = vpop.f32.mrb[0].mxu0
  %v5133 = vadd.f32 %v5069, %v5132
  %v5134 = vpop.f32.mrb[0].mxu0
  %5135 = vmatprep.mubr.bf16.mxu0 0
  %5136 = vmatmul.mubr.bf16.gmra.mrb[0].mxu0 %v5087
  %v5137 = vpop.f32.mrb[0].mxu0
  %v5138 = vadd.f32 %v5069, %v5137
  %v5139 = vpop.f32.mrb[0].mxu0
  %v5140 = vpop.f32.mrb[0].mxu0
  %v5141 = vadd.f32 %v5069, %v5140
  %v5142 = vpop.f32.mrb[0].mxu0
  %5143 = vmatprep.mubr.bf16.mxu0 0
  %5144 = vmatmul.mubr.bf16.gmra.mrb[0].mxu0 %v5090
  %v5145 = vpop.f32.mrb[0].mxu0
  %v5146 = vadd.f32 %v5069, %v5145
  %v5147 = vpop.f32.mrb[0].mxu0
  %v5148 = vpop.f32.mrb[0].mxu0
  %v5149 = vadd.f32 %v5069, %v5148
  %v5150 = vpop.f32.mrb[0].mxu0
  %5151 = vmatprep.mubr.bf16.mxu0 0
  %5152 = vmatmul.mubr.bf16.gmra.mrb[0].mxu0 %v5093
  %v5153 = vpop.f32.mrb[0].mxu0
  %v5154 = vadd.f32 %v5069, %v5153
  %v5155 = vpop.f32.mrb[0].mxu0
  %v5156 = vpop.f32.mrb[0].mxu0
  %v5157 = vadd.f32 %v5069, %v5156
  %v5158 = vpop.f32.mrb[0].mxu0
  %5159 = vdwg.mxu0
  %v5160 = vld [vmem:[%s55] sm:$0xff]
  %v5161 = vld [vmem:[%s55 + $0x8] sm:$0xff]
  %v5162 = vld [vmem:[%s55 + $0x10] sm:$0xff]
  %v5163 = vld [vmem:[%s55 + $0x18] sm:$0xff]
  %v5164 = vadd.f32 %v5160, %v5130
  %v5165 = vadd.f32 %v5161, %v5133
  %v5166 = vadd.f32 %v5162, %v5138
  %v5167 = vadd.f32 %v5163, %v5141
  %v5168 = vadd.f32 %v5160, %v5146
  %v5169 = vadd.f32 %v5161, %v5149
  %v5170 = vadd.f32 %v5162, %v5154
  %v5171 = vadd.f32 %v5163, %v5157
  %v5172 = vld [vmem:[%s67] sm:$0x1]
  %v5173 = vld [vmem:[%s69] sm:$0x1]
  %v5174 = vsel %vm290, %v5164, 0.0
  %5175 = vadd.xlane.f32.xlu0 %v5174
  %v5176 = vpop.xlane.xlu0 %5175
  %v5177 = vsel %vm290, %v5165, 0.0
  %5178 = vadd.xlane.f32.xlu0 %v5177
  %v5179 = vpop.xlane.xlu0 %5178
  %v5180 = vsel %vm290, %v5166, 0.0
  %5181 = vadd.xlane.f32.xlu0 %v5180
  %v5182 = vpop.xlane.xlu0 %5181
  %v5183 = vsel %vm290, %v5167, 0.0
  %5184 = vadd.xlane.f32.xlu0 %v5183
  %v5185 = vpop.xlane.xlu0 %5184
  %v5186 = vsel %vm290, %v5168, 0.0
  %5187 = vadd.xlane.f32.xlu0 %v5186
  %v5188 = vpop.xlane.xlu0 %5187
  %v5189 = vsel %vm290, %v5169, 0.0
  %5190 = vadd.xlane.f32.xlu0 %v5189
  %v5191 = vpop.xlane.xlu0 %5190
  %v5192 = vsel %vm290, %v5170, 0.0
  %5193 = vadd.xlane.f32.xlu0 %v5192
  %v5194 = vpop.xlane.xlu0 %5193
  %v5195 = vsel %vm290, %v5171, 0.0
  %5196 = vadd.xlane.f32.xlu0 %v5195
  %v5197 = vpop.xlane.xlu0 %5196
  %v5198 = vmul.f32 %v5176, %v1558
  %v5199 = vmul.f32 %v5179, %v1558
  %v5200 = vmul.f32 %v5182, %v1558
  %v5201 = vmul.f32 %v5185, %v1558
  %v5202 = vmul.f32 %v5188, %v1558
  %v5203 = vmul.f32 %v5191, %v1558
  %v5204 = vmul.f32 %v5194, %v1558
  %v5205 = vmul.f32 %v5197, %v1558
  %v5206 = vsub.f32 %v5164, %v5198
  %v5207 = vsub.f32 %v5165, %v5199
  %v5208 = vsub.f32 %v5166, %v5200
  %v5209 = vsub.f32 %v5167, %v5201
  %v5210 = vsub.f32 %v5168, %v5202
  %v5211 = vsub.f32 %v5169, %v5203
  %v5212 = vsub.f32 %v5170, %v5204
  %v5213 = vsub.f32 %v5171, %v5205
  %v5214 = vmul.f32 %v5206, %v5206
  %v5215 = vmul.f32 %v5207, %v5207
  %v5216 = vmul.f32 %v5208, %v5208
  %v5217 = vmul.f32 %v5209, %v5209
  %v5218 = vmul.f32 %v5210, %v5210
  %v5219 = vmul.f32 %v5211, %v5211
  %v5220 = vmul.f32 %v5212, %v5212
  %v5221 = vmul.f32 %v5213, %v5213
  %v5222 = vsel %vm290, %v5214, 0.0
  %5223 = vadd.xlane.f32.xlu0 %v5222
  %v5224 = vpop.xlane.xlu0 %5223
  %v5225 = vsel %vm290, %v5215, 0.0
  %5226 = vadd.xlane.f32.xlu0 %v5225
  %v5227 = vpop.xlane.xlu0 %5226
  %v5228 = vsel %vm290, %v5216, 0.0
  %5229 = vadd.xlane.f32.xlu0 %v5228
  %v5230 = vpop.xlane.xlu0 %5229
  %v5231 = vsel %vm290, %v5217, 0.0
  %5232 = vadd.xlane.f32.xlu0 %v5231
  %v5233 = vpop.xlane.xlu0 %5232
  %v5234 = vsel %vm290, %v5218, 0.0
  %5235 = vadd.xlane.f32.xlu0 %v5234
  %v5236 = vpop.xlane.xlu0 %5235
  %v5237 = vsel %vm290, %v5219, 0.0
  %5238 = vadd.xlane.f32.xlu0 %v5237
  %v5239 = vpop.xlane.xlu0 %5238
  %v5240 = vsel %vm290, %v5220, 0.0
  %5241 = vadd.xlane.f32.xlu0 %v5240
  %v5242 = vpop.xlane.xlu0 %5241
  %v5243 = vsel %vm290, %v5221, 0.0
  %5244 = vadd.xlane.f32.xlu0 %v5243
  %v5245 = vpop.xlane.xlu0 %5244
  %v5246 = vmul.f32 %v5224, %v1558
  %v5247 = vmul.f32 %v5227, %v1558
  %v5248 = vmul.f32 %v5230, %v1558
  %v5249 = vmul.f32 %v5233, %v1558
  %v5250 = vmul.f32 %v5236, %v1558
  %v5251 = vmul.f32 %v5239, %v1558
  %v5252 = vmul.f32 %v5242, %v1558
  %v5253 = vmul.f32 %v5245, %v1558
  %v5254 = vadd.f32 %v5246, 1e-05
  %v5255 = vadd.f32 %v5247, 1e-05
  %v5256 = vadd.f32 %v5248, 1e-05
  %v5257 = vadd.f32 %v5249, 1e-05
  %v5258 = vadd.f32 %v5250, 1e-05
  %v5259 = vadd.f32 %v5251, 1e-05
  %v5260 = vadd.f32 %v5252, 1e-05
  %v5261 = vadd.f32 %v5253, 1e-05
  %v5262 = vrsqrt.pop %v5254
  %v5263 = vrsqrt.pop %v5255
  %v5264 = vrsqrt.pop %v5256
  %v5265 = vrsqrt.pop %v5257
  %v5266 = vrsqrt.pop %v5258
  %v5267 = vrsqrt.pop %v5259
  %v5268 = vrsqrt.pop %v5260
  %v5269 = vrsqrt.pop %v5261
  %v5270 = vmul.f32 %v5206, %v5262
  %v5271 = vmul.f32 %v5207, %v5263
  %v5272 = vmul.f32 %v5208, %v5264
  %v5273 = vmul.f32 %v5209, %v5265
  %v5274 = vmul.f32 %v5210, %v5266
  %v5275 = vmul.f32 %v5211, %v5267
  %v5276 = vmul.f32 %v5212, %v5268
  %v5277 = vmul.f32 %v5213, %v5269
  %v5279 = vlaneseq
  %v5280 = vshrl.u32 %v5279, 7
  %v5281 = vsub.s32 0, %v5280
  %v5282 = vrot.slane %v5172, %v5281
  %v5284 = vmul.f32 %v5270, %v5282
  %v5285 = vmul.f32 %v5271, %v5282
  %v5286 = vmul.f32 %v5272, %v5282
  %v5287 = vmul.f32 %v5273, %v5282
  %v5288 = vmul.f32 %v5274, %v5282
  %v5289 = vmul.f32 %v5275, %v5282
  %v5290 = vmul.f32 %v5276, %v5282
  %v5291 = vmul.f32 %v5277, %v5282
  %v5293 = vlaneseq
  %v5294 = vshrl.u32 %v5293, 7
  %v5295 = vsub.s32 0, %v5294
  %v5296 = vrot.slane %v5173, %v5295
  %v5298 = vadd.f32 %v5284, %v5296
  %v5299 = vadd.f32 %v5285, %v5296
  %v5300 = vadd.f32 %v5286, %v5296
  %v5301 = vadd.f32 %v5287, %v5296
  %v5302 = vadd.f32 %v5288, %v5296
  %v5303 = vadd.f32 %v5289, %v5296
  %v5304 = vadd.f32 %v5290, %v5296
  %v5305 = vadd.f32 %v5291, %v5296
  %v5306 = vpack.c.bf16 %v5299, %v5298
  %v5307 = vpack.c.bf16 %v5301, %v5300
  %v5308 = vpack.c.bf16 %v5303, %v5302
  %v5309 = vpack.c.bf16 %v5305, %v5304
  %v5310 = vld [vmem:[%s71] sm:$0xf]
  %v5311 = vld [vmem:[%s71 + $0x4] sm:$0xf]
  %v5312 = vld [vmem:[%s71 + $0x8] sm:$0xf]
  %v5313 = vld [vmem:[%s71 + $0xc] sm:$0xf]
  %v5314 = vld [vmem:[%s73] sm:$0x1]
  %v5316 = vlaneseq
  %v5317 = vshrl.u32 %v5316, 7
  %v5318 = vsub.s32 0, %v5317
  %v5319 = vrot.slane %v5314, %v5318
  %v5325 = vunpack.c.l.b16 %v5310
  %v5326 = vunpack.c.l.b16 %v5311
  %v5327 = vunpack.c.l.b16 %v5312
  %v5328 = vunpack.c.l.b16 %v5313
  %v5329 = vpack.c.b16 %v5326, %v5325
  %v5330 = vpack.c.b16 %v5328, %v5327
  %v5334 = vsel %vm290, %v5306, 0
  %v5337 = vsel %vm290, %v5307, 0
  %v5340 = vsel %vm290, %v5308, 0
  %v5343 = vsel %vm290, %v5309, 0
  %5345 = vmatprep.subr.bf16.mxu0 0
  %5346 = vmatpush1.bf16.msra.mxu0 %v5329
  %5347 = vmatprep.subr.bf16.mxu0 0
  %5348 = vmatpush1.bf16.msra.mxu0 %v5330
  %5349 = vmatprep.subr.bf16.mxu0 0
  %5350 = vmatpush1.bf16.msra.mxu0 0
  %5351 = vmatprep.subr.bf16.mxu0 0
  %5352 = vmatpush1.bf16.msra.mxu0 0
  %5353 = vmatprep.subr.bf16.mxu0 0
  %5354 = vmatpush1.bf16.msra.mxu0 0
  %5355 = vmatprep.subr.bf16.mxu0 0
  %5356 = vmatpush1.bf16.msra.mxu0 0
  %5357 = vmatprep.subr.bf16.mxu0 0
  %5358 = vmatpush1.bf16.msra.mxu0 0
  %5359 = vmatprep.subr.bf16.mxu0 0
  %5360 = vmatpush1.bf16.msra.mxu0 0
  %5361 = vmatprep.subr.bf16.mxu0 0
  %5362 = vmatpush1.bf16.msra.mxu0 0
  %5363 = vmatprep.subr.bf16.mxu0 0
  %5364 = vmatpush1.bf16.msra.mxu0 0
  %5365 = vmatprep.subr.bf16.mxu0 0
  %5366 = vmatpush1.bf16.msra.mxu0 0
  %5367 = vmatprep.subr.bf16.mxu0 0
  %5368 = vmatpush1.bf16.msra.mxu0 0
  %5369 = vmatprep.subr.bf16.mxu0 0
  %5370 = vmatpush1.bf16.msra.mxu0 0
  %5371 = vmatprep.subr.bf16.mxu0 0
  %5372 = vmatpush1.bf16.msra.mxu0 0
  %5373 = vmatprep.subr.bf16.mxu0 0
  %5374 = vmatpush1.bf16.msra.mxu0 0
  %5375 = vmatprep.subr.bf16.mxu0 0
  %5376 = vmatpush1.bf16.msra.mxu0 0
  %5377 = vmatprep.mubr.bf16.mxu0 0
  %5378 = vmatmul.mubr.bf16.gmra.mrb[0].mxu0 %v5334
  %v5379 = vpop.f32.mrb[0].mxu0
  %v5380 = vadd.f32 %v5319, %v5379
  %v5381 = vpop.f32.mrb[0].mxu0
  %v5382 = vpop.f32.mrb[0].mxu0
  %v5383 = vadd.f32 %v5319, %v5382
  %v5384 = vpop.f32.mrb[0].mxu0
  %5385 = vmatprep.mubr.bf16.mxu0 0
  %5386 = vmatmul.mubr.bf16.gmra.mrb[0].mxu0 %v5337
  %v5387 = vpop.f32.mrb[0].mxu0
  %v5388 = vadd.f32 %v5319, %v5387
  %v5389 = vpop.f32.mrb[0].mxu0
  %v5390 = vpop.f32.mrb[0].mxu0
  %v5391 = vadd.f32 %v5319, %v5390
  %v5392 = vpop.f32.mrb[0].mxu0
  %5393 = vmatprep.mubr.bf16.mxu0 0
  %5394 = vmatmul.mubr.bf16.gmra.mrb[0].mxu0 %v5340
  %v5395 = vpop.f32.mrb[0].mxu0
  %v5396 = vadd.f32 %v5319, %v5395
  %v5397 = vpop.f32.mrb[0].mxu0
  %v5398 = vpop.f32.mrb[0].mxu0
  %v5399 = vadd.f32 %v5319, %v5398
  %v5400 = vpop.f32.mrb[0].mxu0
  %5401 = vmatprep.mubr.bf16.mxu0 0
  %5402 = vmatmul.mubr.bf16.gmra.mrb[0].mxu0 %v5343
  %v5403 = vpop.f32.mrb[0].mxu0
  %v5404 = vadd.f32 %v5319, %v5403
  %v5405 = vpop.f32.mrb[0].mxu0
  %v5406 = vpop.f32.mrb[0].mxu0
  %v5407 = vadd.f32 %v5319, %v5406
  %v5408 = vpop.f32.mrb[0].mxu0
  %5409 = vdwg.mxu0
  %v5410 = vmax.f32 %v5380, 0.0
  %v5411 = vmax.f32 %v5383, 0.0
  %v5412 = vmax.f32 %v5388, 0.0
  %v5413 = vmax.f32 %v5391, 0.0
  %v5414 = vmax.f32 %v5396, 0.0
  %v5415 = vmax.f32 %v5399, 0.0
  %v5416 = vmax.f32 %v5404, 0.0
  %v5417 = vmax.f32 %v5407, 0.0
  %v5418 = vpack.c.bf16 %v5411, %v5410
  %v5419 = vpack.c.bf16 %v5413, %v5412
  %v5420 = vpack.c.bf16 %v5415, %v5414
  %v5421 = vpack.c.bf16 %v5417, %v5416
  %v5422 = vld [vmem:[%s75] sm:$0xf]
  %v5423 = vld [vmem:[%s75 + $0x4] sm:$0xf]
  %v5424 = vld [vmem:[%s75 + $0x8] sm:$0xf]
  %v5425 = vld [vmem:[%s75 + $0xc] sm:$0xf]
  %v5426 = vld [vmem:[%s75 + $0x10] sm:$0xf]
  %v5427 = vld [vmem:[%s75 + $0x14] sm:$0xf]
  %v5428 = vld [vmem:[%s75 + $0x18] sm:$0xf]
  %v5429 = vld [vmem:[%s75 + $0x1c] sm:$0xf]
  %v5438 = vunpack.c.l.b16 %v5422
  %v5439 = vunpack.c.l.b16 %v5423
  %v5440 = vunpack.c.l.b16 %v5424
  %v5441 = vunpack.c.l.b16 %v5425
  %v5442 = vunpack.c.l.b16 %v5426
  %v5443 = vunpack.c.l.b16 %v5427
  %v5444 = vunpack.c.l.b16 %v5428
  %v5445 = vunpack.c.l.b16 %v5429
  %v5446 = vpack.c.b16 %v5439, %v5438
  %v5447 = vpack.c.b16 %v5441, %v5440
  %v5448 = vpack.c.b16 %v5443, %v5442
  %v5449 = vpack.c.b16 %v5445, %v5444
  %v5455 = vsel %vm1737, %v5418, 0
  %v5458 = vsel %vm1737, %v5419, 0
  %v5461 = vsel %vm1737, %v5420, 0
  %v5464 = vsel %vm1737, %v5421, 0
  %5466 = vmatprep.subr.bf16.mxu0 0
  %5467 = vmatpush1.bf16.msra.mxu0 %v5446
  %5468 = vmatprep.subr.bf16.mxu0 0
  %5469 = vmatpush1.bf16.msra.mxu0 %v5447
  %5470 = vmatprep.subr.bf16.mxu0 0
  %5471 = vmatpush1.bf16.msra.mxu0 %v5448
  %5472 = vmatprep.subr.bf16.mxu0 0
  %5473 = vmatpush1.bf16.msra.mxu0 %v5449
  %5474 = vmatprep.subr.bf16.mxu0 0
  %5475 = vmatpush1.bf16.msra.mxu0 0
  %5476 = vmatprep.subr.bf16.mxu0 0
  %5477 = vmatpush1.bf16.msra.mxu0 0
  %5478 = vmatprep.subr.bf16.mxu0 0
  %5479 = vmatpush1.bf16.msra.mxu0 0
  %5480 = vmatprep.subr.bf16.mxu0 0
  %5481 = vmatpush1.bf16.msra.mxu0 0
  %5482 = vmatprep.subr.bf16.mxu0 0
  %5483 = vmatpush1.bf16.msra.mxu0 0
  %5484 = vmatprep.subr.bf16.mxu0 0
  %5485 = vmatpush1.bf16.msra.mxu0 0
  %5486 = vmatprep.subr.bf16.mxu0 0
  %5487 = vmatpush1.bf16.msra.mxu0 0
  %5488 = vmatprep.subr.bf16.mxu0 0
  %5489 = vmatpush1.bf16.msra.mxu0 0
  %5490 = vmatprep.subr.bf16.mxu0 0
  %5491 = vmatpush1.bf16.msra.mxu0 0
  %5492 = vmatprep.subr.bf16.mxu0 0
  %5493 = vmatpush1.bf16.msra.mxu0 0
  %5494 = vmatprep.subr.bf16.mxu0 0
  %5495 = vmatpush1.bf16.msra.mxu0 0
  %5496 = vmatprep.subr.bf16.mxu0 0
  %5497 = vmatpush1.bf16.msra.mxu0 0
  %5498 = vmatprep.mubr.bf16.mxu0 0
  %5499 = vmatmul.mubr.bf16.gmra.mrb[0].mxu0 %v5455
  %v5500 = vpop.f32.mrb[0].mxu0
  %v5501 = vadd.f32 0.0, %v5500
  %v5502 = vpop.f32.mrb[0].mxu0
  %v5503 = vpop.f32.mrb[0].mxu0
  %v5504 = vadd.f32 0.0, %v5503
  %v5505 = vpop.f32.mrb[0].mxu0
  %5506 = vmatprep.mubr.bf16.mxu0 0
  %5507 = vmatmul.mubr.bf16.gmra.mrb[0].mxu0 %v5458
  %v5508 = vpop.f32.mrb[0].mxu0
  %v5509 = vadd.f32 0.0, %v5508
  %v5510 = vpop.f32.mrb[0].mxu0
  %v5511 = vpop.f32.mrb[0].mxu0
  %v5512 = vadd.f32 0.0, %v5511
  %v5513 = vpop.f32.mrb[0].mxu0
  %5514 = vmatprep.mubr.bf16.mxu0 0
  %5515 = vmatmul.mubr.bf16.gmra.mrb[0].mxu0 %v5461
  %v5516 = vpop.f32.mrb[0].mxu0
  %v5517 = vadd.f32 0.0, %v5516
  %v5518 = vpop.f32.mrb[0].mxu0
  %v5519 = vpop.f32.mrb[0].mxu0
  %v5520 = vadd.f32 0.0, %v5519
  %v5521 = vpop.f32.mrb[0].mxu0
  %5522 = vmatprep.mubr.bf16.mxu0 0
  %5523 = vmatmul.mubr.bf16.gmra.mrb[0].mxu0 %v5464
  %v5524 = vpop.f32.mrb[0].mxu0
  %v5525 = vadd.f32 0.0, %v5524
  %v5526 = vpop.f32.mrb[0].mxu0
  %v5527 = vpop.f32.mrb[0].mxu0
  %v5528 = vadd.f32 0.0, %v5527
  %v5529 = vpop.f32.mrb[0].mxu0
  %5530 = vdwg.mxu0
  %v5531 = vadd.f32 %v5298, %v5501
  %v5532 = vadd.f32 %v5299, %v5504
  %v5533 = vadd.f32 %v5300, %v5509
  %v5534 = vadd.f32 %v5301, %v5512
  %v5535 = vadd.f32 %v5302, %v5517
  %v5536 = vadd.f32 %v5303, %v5520
  %v5537 = vadd.f32 %v5304, %v5525
  %v5538 = vadd.f32 %v5305, %v5528
  %v5539 = vld [vmem:[%s77] sm:$0x1]
  %v5541 = vlaneseq
  %v5542 = vshrl.u32 %v5541, 7
  %v5543 = vsub.s32 0, %v5542
  %v5544 = vrot.slane %v5539, %v5543
  %v5546 = vadd.f32 %v5531, %v5544
  %v5547 = vadd.f32 %v5532, %v5544
  %v5548 = vadd.f32 %v5533, %v5544
  %v5549 = vadd.f32 %v5534, %v5544
  %v5550 = vadd.f32 %v5535, %v5544
  %v5551 = vadd.f32 %v5536, %v5544
  %v5552 = vadd.f32 %v5537, %v5544
  %v5553 = vadd.f32 %v5538, %v5544
  %v5554 = vld [vmem:[%s79] sm:$0x1]
  %v5555 = vld [vmem:[%s81] sm:$0x1]
  %v5556 = vsel %vm290, %v5546, 0.0
  %5557 = vadd.xlane.f32.xlu0 %v5556
  %v5558 = vpop.xlane.xlu0 %5557
  %v5559 = vsel %vm290, %v5547, 0.0
  %5560 = vadd.xlane.f32.xlu0 %v5559
  %v5561 = vpop.xlane.xlu0 %5560
  %v5562 = vsel %vm290, %v5548, 0.0
  %5563 = vadd.xlane.f32.xlu0 %v5562
  %v5564 = vpop.xlane.xlu0 %5563
  %v5565 = vsel %vm290, %v5549, 0.0
  %5566 = vadd.xlane.f32.xlu0 %v5565
  %v5567 = vpop.xlane.xlu0 %5566
  %v5568 = vsel %vm290, %v5550, 0.0
  %5569 = vadd.xlane.f32.xlu0 %v5568
  %v5570 = vpop.xlane.xlu0 %5569
  %v5571 = vsel %vm290, %v5551, 0.0
  %5572 = vadd.xlane.f32.xlu0 %v5571
  %v5573 = vpop.xlane.xlu0 %5572
  %v5574 = vsel %vm290, %v5552, 0.0
  %5575 = vadd.xlane.f32.xlu0 %v5574
  %v5576 = vpop.xlane.xlu0 %5575
  %v5577 = vsel %vm290, %v5553, 0.0
  %5578 = vadd.xlane.f32.xlu0 %v5577
  %v5579 = vpop.xlane.xlu0 %5578
  %v5580 = vmul.f32 %v5558, %v1558
  %v5581 = vmul.f32 %v5561, %v1558
  %v5582 = vmul.f32 %v5564, %v1558
  %v5583 = vmul.f32 %v5567, %v1558
  %v5584 = vmul.f32 %v5570, %v1558
  %v5585 = vmul.f32 %v5573, %v1558
  %v5586 = vmul.f32 %v5576, %v1558
  %v5587 = vmul.f32 %v5579, %v1558
  %v5588 = vsub.f32 %v5546, %v5580
  %v5589 = vsub.f32 %v5547, %v5581
  %v5590 = vsub.f32 %v5548, %v5582
  %v5591 = vsub.f32 %v5549, %v5583
  %v5592 = vsub.f32 %v5550, %v5584
  %v5593 = vsub.f32 %v5551, %v5585
  %v5594 = vsub.f32 %v5552, %v5586
  %v5595 = vsub.f32 %v5553, %v5587
  %v5596 = vmul.f32 %v5588, %v5588
  %v5597 = vmul.f32 %v5589, %v5589
  %v5598 = vmul.f32 %v5590, %v5590
  %v5599 = vmul.f32 %v5591, %v5591
  %v5600 = vmul.f32 %v5592, %v5592
  %v5601 = vmul.f32 %v5593, %v5593
  %v5602 = vmul.f32 %v5594, %v5594
  %v5603 = vmul.f32 %v5595, %v5595
  %v5604 = vsel %vm290, %v5596, 0.0
  %5605 = vadd.xlane.f32.xlu0 %v5604
  %v5606 = vpop.xlane.xlu0 %5605
  %v5607 = vsel %vm290, %v5597, 0.0
  %5608 = vadd.xlane.f32.xlu0 %v5607
  %v5609 = vpop.xlane.xlu0 %5608
  %v5610 = vsel %vm290, %v5598, 0.0
  %5611 = vadd.xlane.f32.xlu0 %v5610
  %v5612 = vpop.xlane.xlu0 %5611
  %v5613 = vsel %vm290, %v5599, 0.0
  %5614 = vadd.xlane.f32.xlu0 %v5613
  %v5615 = vpop.xlane.xlu0 %5614
  %v5616 = vsel %vm290, %v5600, 0.0
  %5617 = vadd.xlane.f32.xlu0 %v5616
  %v5618 = vpop.xlane.xlu0 %5617
  %v5619 = vsel %vm290, %v5601, 0.0
  %5620 = vadd.xlane.f32.xlu0 %v5619
  %v5621 = vpop.xlane.xlu0 %5620
  %v5622 = vsel %vm290, %v5602, 0.0
  %5623 = vadd.xlane.f32.xlu0 %v5622
  %v5624 = vpop.xlane.xlu0 %5623
  %v5625 = vsel %vm290, %v5603, 0.0
  %5626 = vadd.xlane.f32.xlu0 %v5625
  %v5627 = vpop.xlane.xlu0 %5626
  %v5628 = vmul.f32 %v5606, %v1558
  %v5629 = vmul.f32 %v5609, %v1558
  %v5630 = vmul.f32 %v5612, %v1558
  %v5631 = vmul.f32 %v5615, %v1558
  %v5632 = vmul.f32 %v5618, %v1558
  %v5633 = vmul.f32 %v5621, %v1558
  %v5634 = vmul.f32 %v5624, %v1558
  %v5635 = vmul.f32 %v5627, %v1558
  %v5636 = vadd.f32 %v5628, 1e-05
  %v5637 = vadd.f32 %v5629, 1e-05
  %v5638 = vadd.f32 %v5630, 1e-05
  %v5639 = vadd.f32 %v5631, 1e-05
  %v5640 = vadd.f32 %v5632, 1e-05
  %v5641 = vadd.f32 %v5633, 1e-05
  %v5642 = vadd.f32 %v5634, 1e-05
  %v5643 = vadd.f32 %v5635, 1e-05
  %v5644 = vrsqrt.pop %v5636
  %v5645 = vrsqrt.pop %v5637
  %v5646 = vrsqrt.pop %v5638
  %v5647 = vrsqrt.pop %v5639
  %v5648 = vrsqrt.pop %v5640
  %v5649 = vrsqrt.pop %v5641
  %v5650 = vrsqrt.pop %v5642
  %v5651 = vrsqrt.pop %v5643
  %v5652 = vmul.f32 %v5588, %v5644
  %v5653 = vmul.f32 %v5589, %v5645
  %v5654 = vmul.f32 %v5590, %v5646
  %v5655 = vmul.f32 %v5591, %v5647
  %v5656 = vmul.f32 %v5592, %v5648
  %v5657 = vmul.f32 %v5593, %v5649
  %v5658 = vmul.f32 %v5594, %v5650
  %v5659 = vmul.f32 %v5595, %v5651
  %v5661 = vlaneseq
  %v5662 = vshrl.u32 %v5661, 7
  %v5663 = vsub.s32 0, %v5662
  %v5664 = vrot.slane %v5554, %v5663
  %v5666 = vmul.f32 %v5652, %v5664
  %v5667 = vmul.f32 %v5653, %v5664
  %v5668 = vmul.f32 %v5654, %v5664
  %v5669 = vmul.f32 %v5655, %v5664
  %v5670 = vmul.f32 %v5656, %v5664
  %v5671 = vmul.f32 %v5657, %v5664
  %v5672 = vmul.f32 %v5658, %v5664
  %v5673 = vmul.f32 %v5659, %v5664
  %v5675 = vlaneseq
  %v5676 = vshrl.u32 %v5675, 7
  %v5677 = vsub.s32 0, %v5676
  %v5678 = vrot.slane %v5555, %v5677
  %v5680 = vadd.f32 %v5666, %v5678
  %v5681 = vadd.f32 %v5667, %v5678
  %v5682 = vadd.f32 %v5668, %v5678
  %v5683 = vadd.f32 %v5669, %v5678
  %v5684 = vadd.f32 %v5670, %v5678
  %v5685 = vadd.f32 %v5671, %v5678
  %v5686 = vadd.f32 %v5672, %v5678
  %v5687 = vadd.f32 %v5673, %v5678
  %v5688 = vpack.c.bf16 %v5681, %v5680
  %v5689 = vpack.c.bf16 %v5683, %v5682
  %v5690 = vpack.c.bf16 %v5685, %v5684
  %v5691 = vpack.c.bf16 %v5687, %v5686
  %v5692 = vld [vmem:[%s83] sm:$0xf]
  %v5693 = vld [vmem:[%s83 + $0x4] sm:$0xf]
  %v5694 = vld [vmem:[%s83 + $0x8] sm:$0xf]
  %v5695 = vld [vmem:[%s83 + $0xc] sm:$0xf]
  %v5696 = vld [vmem:[%s85] sm:$0x1]
  %v5698 = vlaneseq
  %v5699 = vshrl.u32 %v5698, 7
  %v5700 = vsub.s32 0, %v5699
  %v5701 = vrot.slane %v5696, %v5700
  %v5707 = vunpack.c.l.b16 %v5692
  %v5708 = vunpack.c.l.b16 %v5693
  %v5709 = vunpack.c.l.b16 %v5694
  %v5710 = vunpack.c.l.b16 %v5695
  %v5711 = vpack.c.b16 %v5708, %v5707
  %v5712 = vpack.c.b16 %v5710, %v5709
  %v5716 = vsel %vm290, %v5688, 0
  %v5719 = vsel %vm290, %v5689, 0
  %v5722 = vsel %vm290, %v5690, 0
  %v5725 = vsel %vm290, %v5691, 0
  %5727 = vmatprep.subr.bf16.mxu0 0
  %5728 = vmatpush1.bf16.msra.mxu0 %v5711
  %5729 = vmatprep.subr.bf16.mxu0 0
  %5730 = vmatpush1.bf16.msra.mxu0 %v5712
  %5731 = vmatprep.subr.bf16.mxu0 0
  %5732 = vmatpush1.bf16.msra.mxu0 0
  %5733 = vmatprep.subr.bf16.mxu0 0
  %5734 = vmatpush1.bf16.msra.mxu0 0
  %5735 = vmatprep.subr.bf16.mxu0 0
  %5736 = vmatpush1.bf16.msra.mxu0 0
  %5737 = vmatprep.subr.bf16.mxu0 0
  %5738 = vmatpush1.bf16.msra.mxu0 0
  %5739 = vmatprep.subr.bf16.mxu0 0
  %5740 = vmatpush1.bf16.msra.mxu0 0
  %5741 = vmatprep.subr.bf16.mxu0 0
  %5742 = vmatpush1.bf16.msra.mxu0 0
  %5743 = vmatprep.subr.bf16.mxu0 0
  %5744 = vmatpush1.bf16.msra.mxu0 0
  %5745 = vmatprep.subr.bf16.mxu0 0
  %5746 = vmatpush1.bf16.msra.mxu0 0
  %5747 = vmatprep.subr.bf16.mxu0 0
  %5748 = vmatpush1.bf16.msra.mxu0 0
  %5749 = vmatprep.subr.bf16.mxu0 0
  %5750 = vmatpush1.bf16.msra.mxu0 0
  %5751 = vmatprep.subr.bf16.mxu0 0
  %5752 = vmatpush1.bf16.msra.mxu0 0
  %5753 = vmatprep.subr.bf16.mxu0 0
  %5754 = vmatpush1.bf16.msra.mxu0 0
  %5755 = vmatprep.subr.bf16.mxu0 0
  %5756 = vmatpush1.bf16.msra.mxu0 0
  %5757 = vmatprep.subr.bf16.mxu0 0
  %5758 = vmatpush1.bf16.msra.mxu0 0
  %5759 = vmatprep.mubr.bf16.mxu0 0
  %5760 = vmatmul.mubr.bf16.gmra.mrb[0].mxu0 %v5716
  %v5761 = vpop.f32.mrb[0].mxu0
  %v5762 = vadd.f32 %v5701, %v5761
  %v5763 = vpop.f32.mrb[0].mxu0
  %v5764 = vpop.f32.mrb[0].mxu0
  %v5765 = vadd.f32 %v5701, %v5764
  %v5766 = vpop.f32.mrb[0].mxu0
  %5767 = vmatprep.mubr.bf16.mxu0 0
  %5768 = vmatmul.mubr.bf16.gmra.mrb[0].mxu0 %v5719
  %v5769 = vpop.f32.mrb[0].mxu0
  %v5770 = vadd.f32 %v5701, %v5769
  %v5771 = vpop.f32.mrb[0].mxu0
  %v5772 = vpop.f32.mrb[0].mxu0
  %v5773 = vadd.f32 %v5701, %v5772
  %v5774 = vpop.f32.mrb[0].mxu0
  %5775 = vmatprep.mubr.bf16.mxu0 0
  %5776 = vmatmul.mubr.bf16.gmra.mrb[0].mxu0 %v5722
  %v5777 = vpop.f32.mrb[0].mxu0
  %v5778 = vadd.f32 %v5701, %v5777
  %v5779 = vpop.f32.mrb[0].mxu0
  %v5780 = vpop.f32.mrb[0].mxu0
  %v5781 = vadd.f32 %v5701, %v5780
  %v5782 = vpop.f32.mrb[0].mxu0
  %5783 = vmatprep.mubr.bf16.mxu0 0
  %5784 = vmatmul.mubr.bf16.gmra.mrb[0].mxu0 %v5725
  %v5785 = vpop.f32.mrb[0].mxu0
  %v5786 = vadd.f32 %v5701, %v5785
  %v5787 = vpop.f32.mrb[0].mxu0
  %v5788 = vpop.f32.mrb[0].mxu0
  %v5789 = vadd.f32 %v5701, %v5788
  %v5790 = vpop.f32.mrb[0].mxu0
  %5791 = vdwg.mxu0
  %5792 = vst [vmem:[%s87] sm:$0xff] %v5762
  %5793 = vst [vmem:[%s87 + $0x8] sm:$0xff] %v5765
  %5794 = vst [vmem:[%s87 + $0x10] sm:$0xff] %v5770
  %5795 = vst [vmem:[%s87 + $0x18] sm:$0xff] %v5773
  %5796 = vst [vmem:[%s87 + $0x20] sm:$0xff] %v5778
  %5797 = vst [vmem:[%s87 + $0x28] sm:$0xff] %v5781
  %5798 = vst [vmem:[%s87 + $0x30] sm:$0xff] %v5786
  %5799 = vst [vmem:[%s87 + $0x38] sm:$0xff] %v5789
  // Predicated region
  $region174: #{bddoia_forward.1} parent=0 // pred_check
    _
  $region175: #{bddoia_forward.1} parent=0 // pred_check_branch
    %5801 = sbr.rel (0) target = $region177
  $region176: #{bddoia_forward.1} parent=0 // pred_region
    _
  $region177: #{bddoia_forward.1} parent=0 // pred_fallthru
    _
  // Predicated region
  $region178: #{bddoia_forward.1} parent=0 // pred_check
    _
  $region179: #{bddoia_forward.1} parent=0 // pred_check_branch
    %5803 = sbr.rel (0) target = $region181
  $region180: #{bddoia_forward.1} parent=0 // pred_region
    _
  $region181: #{bddoia_forward.1} parent=0 // pred_fallthru
    _

</llo_original>
